<compile_context>
chip_gen: v7x
topology: tpu7x:2x2x1
jax: 0.10.0
libtpu: 0.0.40
codegen_flags: <defaults>
</compile_context>

<pallas_src>
import functools

import jax
import jax.numpy as jnp
import numpy as np
from jax import lax
from jax.experimental import pallas as pl
from jax.experimental.pallas import tpu as pltpu

C_HALF = 1040          # in_channels // 2 (forced by the residual add)
B0 = 192               # branch_0: 1x1 conv out channels
B1A = 192              # branch_1[0]: 1x1 conv out channels
B1B = 224              # branch_1[1]: (1,3) conv out channels
B1C = 256              # branch_1[2]: (3,1) conv out channels
CAT = B0 + B1C         # 448
COUT = 1040            # final 1x1 conv out channels


def _shift(a, s, axis):
    """out[i] = a[i - s] along `axis`, zero-filled outside (s, axis static)."""
    if s == 0:
        return a
    n = a.shape[axis]
    pad_shape = list(a.shape)
    pad_shape[axis] = abs(s)
    z = jnp.zeros(pad_shape, a.dtype)
    idx = [slice(None)] * a.ndim
    if s > 0:
        idx[axis] = slice(0, n - s)
        return jnp.concatenate([z, a[tuple(idx)]], axis=axis)
    idx[axis] = slice(-s, n)
    return jnp.concatenate([a[tuple(idx)], z], axis=axis)


def _block_c_kernel(scale, p1_ref, w01_ref, w1b_ref, w1c_ref, wc_ref, bc_ref,
                    out_ref):
    NB, H, W, C1 = p1_ref.shape
    M = NB * H * W

    # (NB,H,W,C) -> (M,C) is layout-free (W == 8 is exactly the sublane tile).
    p1_bf = p1_ref[...].reshape(M, C1).astype(jnp.bfloat16)

    # branch_0 and branch_1[0] are both 1x1 convs with K=1040 -> one fused matmul.
    x01 = jnp.dot(p1_bf, w01_ref[...], preferred_element_type=jnp.float32)
    x0 = x01[:, :B0]                                # (M, 192)  branch_0
    t = x01[:, B0:].reshape(NB, H, W, B1A)          # (NB,H,W,192)  branch_1[0]

    # branch_1[1]: (1,3) conv, padding (0,1) -> 3 shifted matmuls along W.
    y = None
    for kw in range(3):
        sh = _shift(t, 1 - kw, axis=2).reshape(M, B1A).astype(jnp.bfloat16)
        d = jnp.dot(sh, w1b_ref[kw], preferred_element_type=jnp.float32)
        y = d if y is None else y + d

    # branch_1[2]: (3,1) conv, padding (1,0) -> 3 shifted matmuls along H.
    y = y.reshape(NB, H, W, B1B)
    z = None
    for kh in range(3):
        sh = _shift(y, 1 - kh, axis=1).reshape(M, B1B).astype(jnp.bfloat16)
        d = jnp.dot(sh, w1c_ref[kh], preferred_element_type=jnp.float32)
        z = d if z is None else z + d

    # torch.cat((x0, x1), dim=1) followed by a 1x1 conv == split matmul (exact).
    res = (jnp.dot(x0.astype(jnp.bfloat16), wc_ref[:B0, :],
                   preferred_element_type=jnp.float32)
           + jnp.dot(z.astype(jnp.bfloat16), wc_ref[B0:, :],
                     preferred_element_type=jnp.float32)
           + bc_ref[...])

    # residual + ReLU (f32 epilogue); re-read part1 from the VMEM block instead of
    # keeping a (M,1040) f32 value live across all the matmuls.
    out = jnp.maximum(p1_ref[...].reshape(M, C1) + scale * res, 0.0)
    out_ref[...] = out.reshape(NB, H, W, C1)


def _pick_batch_block(n, h, w):
    """Largest batch block with <= 512 matmul rows that evenly divides N."""
    nb = max(1, min(n, 512 // max(1, h * w)))
    while n % nb:
        nb -= 1
    return nb


def block_c_forward(x_nchw, params, scale=1.0):
    N, C, H, W = x_nchw.shape
    assert C == 2 * C_HALF, "Block_C.forward requires in_channels == 2080"
    part1_nchw = x_nchw[:, :C_HALF]
    part2_nchw = x_nchw[:, C_HALF:]
    part1 = jnp.transpose(part1_nchw, (0, 2, 3, 1))            # -> NHWC

    NB = _pick_batch_block(N, H, W)
    kernel = functools.partial(_block_c_kernel, float(scale))

    def const_spec(shape):
        # Constant index map: the pipeline detects the unchanged block index and
        # only DMAs these (grid-invariant) weights once.
        return pl.BlockSpec(shape, lambda n, s=shape: (0,) * len(s))

    x_res_nhwc = pl.pallas_call(
        kernel,
        out_shape=jax.ShapeDtypeStruct((N, H, W, C_HALF), jnp.float32),
        grid_spec=pltpu.PrefetchScalarGridSpec(
            num_scalar_prefetch=0,
            grid=(N // NB,),
            in_specs=[
                pl.BlockSpec((NB, H, W, C_HALF), lambda n: (n, 0, 0, 0)),
                const_spec((C_HALF, B0 + B1A)),     # fused w0 | w1a  (bf16)
                const_spec((3, B1A, B1B)),          # (1,3) conv taps (bf16)
                const_spec((3, B1B, B1C)),          # (3,1) conv taps (bf16)
                const_spec((CAT, COUT)),            # final 1x1 conv  (bf16)
                const_spec((1, COUT)),              # bias            (f32)
            ],
            out_specs=pl.BlockSpec((NB, H, W, C_HALF), lambda n: (n, 0, 0, 0)),
        ),
        compiler_params=pltpu.CompilerParams(
            dimension_semantics=("parallel",),
            vmem_limit_bytes=32 * 1024 * 1024,
        ),
    )(part1, params["w01"], params["w1b"], params["w1c"], params["wc"],
      params["bc"])

    x_res = jnp.transpose(x_res_nhwc, (0, 3, 1, 2))            # back to NCHW
    return jnp.concatenate([part2_nchw, x_res], axis=1)        # cat(part2, x_res)


def init_params(key):
    """Deterministic synthetic weights in kernel layout; matmul weights in bf16."""
    ks = jax.random.split(key, 5)

    def nrm(k, shape, fan_in):
        w = jax.random.normal(k, shape, jnp.float32) / jnp.sqrt(float(fan_in))
        return w.astype(jnp.bfloat16)

    return {
        # branch_0 (1040->192) and branch_1[0] (1040->192) fused: (1040, 384)
        "w01": nrm(ks[0], (C_HALF, B0 + B1A), C_HALF),
        "w1b": nrm(ks[1], (3, B1A, B1B), 3 * B1A),
        "w1c": nrm(ks[2], (3, B1B, B1C), 3 * B1B),
        "wc":  nrm(ks[3], (CAT, COUT), CAT),
        "bc":  jax.random.normal(ks[4], (1, COUT), jnp.float32) * 0.1,
    }


def block_c_reference(x, params, scale=1.0):
    """Pure-JAX f32 NCHW reference using lax.conv (mirrors the PyTorch forward)."""
    part1 = x[:, :C_HALF]
    part2 = x[:, C_HALF:]
    dn = ("NCHW", "OIHW", "NCHW")

    def conv(inp, w, padding):
        return lax.conv_general_dilated(inp, w, (1, 1), padding,
                                        dimension_numbers=dn,
                                        precision=lax.Precision.HIGHEST)

    w01 = params["w01"].astype(jnp.float32)
    w0 = jnp.transpose(w01[:, :B0])[:, :, None, None]                        # (192,1040,1,1)
    w1a = jnp.transpose(w01[:, B0:])[:, :, None, None]                       # (192,1040,1,1)
    w1b = jnp.transpose(params["w1b"].astype(jnp.float32), (2, 1, 0))[:, :, None, :]  # (224,192,1,3)
    w1c = jnp.transpose(params["w1c"].astype(jnp.float32), (2, 1, 0))[:, :, :, None]  # (256,224,3,1)
    wc = jnp.transpose(params["wc"].astype(jnp.float32))[:, :, None, None]   # (1040,448,1,1)

    x0 = conv(part1, w0, [(0, 0), (0, 0)])
    t = conv(part1, w1a, [(0, 0), (0, 0)])
    t = conv(t, w1b, [(0, 0), (1, 1)])
    t = conv(t, w1c, [(1, 1), (0, 0)])
    cat = jnp.concatenate([x0, t], axis=1)
    res = conv(cat, wc, [(0, 0), (0, 0)]) + params["bc"].reshape(1, COUT, 1, 1)
    res = jnp.maximum(part1 + scale * res, 0.0)
    return jnp.concatenate([part2, res], axis=1)


if __name__ == "__main__":
    key = jax.random.PRNGKey(0)
    kx, kp = jax.random.split(key)

    N, C, H, W = 2, 2 * C_HALF, 8, 8      # small batch/spatial; channels fixed by module
    x = jax.random.normal(kx, (N, C, H, W), jnp.float32)
    params = init_params(kp)
    scale = 0.5

    fwd = jax.jit(block_c_forward, static_argnames=("scale",))
    out = jax.block_until_ready(fwd(x, params, scale=scale))

    ref = block_c_reference(x, params, scale)
    assert out.shape == (N, C, H, W)
    max_err = float(jnp.max(jnp.abs(out - ref)))
    # bf16 MXU inputs with f32 accumulation vs. a pure-f32 reference.
    if not np.allclose(np.asarray(out), np.asarray(ref), atol=2e-2, rtol=2e-2):
        raise AssertionError(f"mismatch vs reference, max_err={max_err}")

    print("KERNEL_OK")
</pallas_src>

<mosaic_0001>
module attributes {stable_mosaic.version = 11 : i64} {
  func.func @_block_c_kernel(%arg0: i32, %arg1: memref<2x8x8x1040xf32, #tpu.memory_space<vmem>>, %arg2: memref<1040x384xbf16, #tpu.memory_space<vmem>>, %arg3: memref<3x192x224xbf16, #tpu.memory_space<vmem>>, %arg4: memref<3x224x256xbf16, #tpu.memory_space<vmem>>, %arg5: memref<448x1040xbf16, #tpu.memory_space<vmem>>, %arg6: memref<1x1040xf32, #tpu.memory_space<vmem>>, %arg7: memref<2x8x8x1040xf32, #tpu.memory_space<vmem>>) attributes {dimension_semantics = [#tpu.dimension_semantics<parallel>], iteration_bounds = array<i64: 1>, scalar_prefetch = 0 : i64, scratch_operands = 0 : i64, tpu.core_type = #tpu.core_type<tc>, window_params = [{transform_indices = @transform_0, window_bounds = array<i64: 2, 8, 8, 1040>}, {pipeline_mode = #tpu.pipeline_mode<synchronous>, transform_indices = @transform_1, window_bounds = array<i64: 1040, 384>}, {pipeline_mode = #tpu.pipeline_mode<synchronous>, transform_indices = @transform_2, window_bounds = array<i64: 3, 192, 224>}, {pipeline_mode = #tpu.pipeline_mode<synchronous>, transform_indices = @transform_3, window_bounds = array<i64: 3, 224, 256>}, {pipeline_mode = #tpu.pipeline_mode<synchronous>, transform_indices = @transform_4, window_bounds = array<i64: 448, 1040>}, {pipeline_mode = #tpu.pipeline_mode<synchronous>, transform_indices = @transform_5, window_bounds = array<i64: 1, 1040>}, {transform_indices = @transform_6, window_bounds = array<i64: 2, 8, 8, 1040>}]} {
    %c0 = arith.constant 0 : index
    %c0_0 = arith.constant 0 : index
    %c0_1 = arith.constant 0 : index
    %c0_2 = arith.constant 0 : index
    %0 = vector.load %arg1[%c0, %c0_0, %c0_1, %c0_2] : memref<2x8x8x1040xf32, #tpu.memory_space<vmem>>, vector<2x8x8x1040xf32>
    %1 = vector.shape_cast %0 : vector<2x8x8x1040xf32> to vector<128x1040xf32>
    %2 = arith.truncf %1 : vector<128x1040xf32> to vector<128x1040xbf16>
    %c0_3 = arith.constant 0 : index
    %c0_4 = arith.constant 0 : index
    %3 = vector.load %arg2[%c0_3, %c0_4] : memref<1040x384xbf16, #tpu.memory_space<vmem>>, vector<1040x384xbf16>
    %cst = arith.constant dense<0.000000e+00> : vector<128x384xf32>
    %4 = tpu.matmul %2, %3, %cst {dimension_numbers = #tpu.dot_dimension_numbers<[1], [0], [0], [1], [0, 0, 1, 1], [], []>} : vector<128x1040xbf16>, vector<1040x384xbf16>, vector<128x384xf32> -> vector<128x384xf32>
    %5 = vector.extract_strided_slice %4 {offsets = [0, 0], sizes = [128, 192], strides = [1, 1]} : vector<128x384xf32> to vector<128x192xf32>
    %6 = vector.extract_strided_slice %4 {offsets = [0, 192], sizes = [128, 192], strides = [1, 1]} : vector<128x384xf32> to vector<128x192xf32>
    %7 = vector.shape_cast %6 : vector<128x192xf32> to vector<2x8x8x192xf32>
    %cst_5 = arith.constant 0.000000e+00 : f32
    %8 = vector.broadcast %cst_5 : f32 to vector<2x8x1x192xf32>
    %9 = vector.extract_strided_slice %7 {offsets = [0, 0, 0, 0], sizes = [2, 8, 7, 192], strides = [1, 1, 1, 1]} : vector<2x8x8x192xf32> to vector<2x8x7x192xf32>
    %10 = tpu.concatenate %8, %9 in 2 : vector<2x8x1x192xf32>, vector<2x8x7x192xf32> -> vector<2x8x8x192xf32>
    %11 = vector.shape_cast %10 : vector<2x8x8x192xf32> to vector<128x192xf32>
    %12 = arith.truncf %11 : vector<128x192xf32> to vector<128x192xbf16>
    %c0_6 = arith.constant 0 : index
    %c0_7 = arith.constant 0 : index
    %c0_8 = arith.constant 0 : index
    %13 = vector.load %arg3[%c0_6, %c0_7, %c0_8] : memref<3x192x224xbf16, #tpu.memory_space<vmem>>, vector<1x192x224xbf16>
    %14 = vector.shape_cast %13 : vector<1x192x224xbf16> to vector<192x224xbf16>
    %cst_9 = arith.constant dense<0.000000e+00> : vector<128x224xf32>
    %15 = tpu.matmul %12, %14, %cst_9 {dimension_numbers = #tpu.dot_dimension_numbers<[1], [0], [0], [1], [0, 0, 1, 1], [], []>} : vector<128x192xbf16>, vector<192x224xbf16>, vector<128x224xf32> -> vector<128x224xf32>
    %16 = vector.shape_cast %7 : vector<2x8x8x192xf32> to vector<128x192xf32>
    %17 = arith.truncf %16 : vector<128x192xf32> to vector<128x192xbf16>
    %c1 = arith.constant 1 : index
    %c0_10 = arith.constant 0 : index
    %c0_11 = arith.constant 0 : index
    %18 = vector.load %arg3[%c1, %c0_10, %c0_11] : memref<3x192x224xbf16, #tpu.memory_space<vmem>>, vector<1x192x224xbf16>
    %19 = vector.shape_cast %18 : vector<1x192x224xbf16> to vector<192x224xbf16>
    %cst_12 = arith.constant dense<0.000000e+00> : vector<128x224xf32>
    %20 = tpu.matmul %17, %19, %cst_12 {dimension_numbers = #tpu.dot_dimension_numbers<[1], [0], [0], [1], [0, 0, 1, 1], [], []>} : vector<128x192xbf16>, vector<192x224xbf16>, vector<128x224xf32> -> vector<128x224xf32>
    %21 = arith.addf %15, %20 : vector<128x224xf32>
    %cst_13 = arith.constant 0.000000e+00 : f32
    %22 = vector.broadcast %cst_13 : f32 to vector<2x8x1x192xf32>
    %23 = vector.extract_strided_slice %7 {offsets = [0, 0, 1, 0], sizes = [2, 8, 7, 192], strides = [1, 1, 1, 1]} : vector<2x8x8x192xf32> to vector<2x8x7x192xf32>
    %24 = tpu.concatenate %23, %22 in 2 : vector<2x8x7x192xf32>, vector<2x8x1x192xf32> -> vector<2x8x8x192xf32>
    %25 = vector.shape_cast %24 : vector<2x8x8x192xf32> to vector<128x192xf32>
    %26 = arith.truncf %25 : vector<128x192xf32> to vector<128x192xbf16>
    %c2 = arith.constant 2 : index
    %c0_14 = arith.constant 0 : index
    %c0_15 = arith.constant 0 : index
    %27 = vector.load %arg3[%c2, %c0_14, %c0_15] : memref<3x192x224xbf16, #tpu.memory_space<vmem>>, vector<1x192x224xbf16>
    %28 = vector.shape_cast %27 : vector<1x192x224xbf16> to vector<192x224xbf16>
    %cst_16 = arith.constant dense<0.000000e+00> : vector<128x224xf32>
    %29 = tpu.matmul %26, %28, %cst_16 {dimension_numbers = #tpu.dot_dimension_numbers<[1], [0], [0], [1], [0, 0, 1, 1], [], []>} : vector<128x192xbf16>, vector<192x224xbf16>, vector<128x224xf32> -> vector<128x224xf32>
    %30 = arith.addf %21, %29 : vector<128x224xf32>
    %31 = vector.shape_cast %30 : vector<128x224xf32> to vector<2x8x8x224xf32>
    %cst_17 = arith.constant 0.000000e+00 : f32
    %32 = vector.broadcast %cst_17 : f32 to vector<2x1x8x224xf32>
    %33 = vector.extract_strided_slice %31 {offsets = [0, 0, 0, 0], sizes = [2, 7, 8, 224], strides = [1, 1, 1, 1]} : vector<2x8x8x224xf32> to vector<2x7x8x224xf32>
    %34 = tpu.concatenate %32, %33 in 1 : vector<2x1x8x224xf32>, vector<2x7x8x224xf32> -> vector<2x8x8x224xf32>
    %35 = vector.shape_cast %34 : vector<2x8x8x224xf32> to vector<128x224xf32>
    %36 = arith.truncf %35 : vector<128x224xf32> to vector<128x224xbf16>
    %c0_18 = arith.constant 0 : index
    %c0_19 = arith.constant 0 : index
    %c0_20 = arith.constant 0 : index
    %37 = vector.load %arg4[%c0_18, %c0_19, %c0_20] : memref<3x224x256xbf16, #tpu.memory_space<vmem>>, vector<1x224x256xbf16>
    %38 = vector.shape_cast %37 : vector<1x224x256xbf16> to vector<224x256xbf16>
    %cst_21 = arith.constant dense<0.000000e+00> : vector<128x256xf32>
    %39 = tpu.matmul %36, %38, %cst_21 {dimension_numbers = #tpu.dot_dimension_numbers<[1], [0], [0], [1], [0, 0, 1, 1], [], []>} : vector<128x224xbf16>, vector<224x256xbf16>, vector<128x256xf32> -> vector<128x256xf32>
    %40 = vector.shape_cast %31 : vector<2x8x8x224xf32> to vector<128x224xf32>
    %41 = arith.truncf %40 : vector<128x224xf32> to vector<128x224xbf16>
    %c1_22 = arith.constant 1 : index
    %c0_23 = arith.constant 0 : index
    %c0_24 = arith.constant 0 : index
    %42 = vector.load %arg4[%c1_22, %c0_23, %c0_24] : memref<3x224x256xbf16, #tpu.memory_space<vmem>>, vector<1x224x256xbf16>
    %43 = vector.shape_cast %42 : vector<1x224x256xbf16> to vector<224x256xbf16>
    %cst_25 = arith.constant dense<0.000000e+00> : vector<128x256xf32>
    %44 = tpu.matmul %41, %43, %cst_25 {dimension_numbers = #tpu.dot_dimension_numbers<[1], [0], [0], [1], [0, 0, 1, 1], [], []>} : vector<128x224xbf16>, vector<224x256xbf16>, vector<128x256xf32> -> vector<128x256xf32>
    %45 = arith.addf %39, %44 : vector<128x256xf32>
    %cst_26 = arith.constant 0.000000e+00 : f32
    %46 = vector.broadcast %cst_26 : f32 to vector<2x1x8x224xf32>
    %47 = vector.extract_strided_slice %31 {offsets = [0, 1, 0, 0], sizes = [2, 7, 8, 224], strides = [1, 1, 1, 1]} : vector<2x8x8x224xf32> to vector<2x7x8x224xf32>
    %48 = tpu.concatenate %47, %46 in 1 : vector<2x7x8x224xf32>, vector<2x1x8x224xf32> -> vector<2x8x8x224xf32>
    %49 = vector.shape_cast %48 : vector<2x8x8x224xf32> to vector<128x224xf32>
    %50 = arith.truncf %49 : vector<128x224xf32> to vector<128x224xbf16>
    %c2_27 = arith.constant 2 : index
    %c0_28 = arith.constant 0 : index
    %c0_29 = arith.constant 0 : index
    %51 = vector.load %arg4[%c2_27, %c0_28, %c0_29] : memref<3x224x256xbf16, #tpu.memory_space<vmem>>, vector<1x224x256xbf16>
    %52 = vector.shape_cast %51 : vector<1x224x256xbf16> to vector<224x256xbf16>
    %cst_30 = arith.constant dense<0.000000e+00> : vector<128x256xf32>
    %53 = tpu.matmul %50, %52, %cst_30 {dimension_numbers = #tpu.dot_dimension_numbers<[1], [0], [0], [1], [0, 0, 1, 1], [], []>} : vector<128x224xbf16>, vector<224x256xbf16>, vector<128x256xf32> -> vector<128x256xf32>
    %54 = arith.addf %45, %53 : vector<128x256xf32>
    %55 = arith.truncf %5 : vector<128x192xf32> to vector<128x192xbf16>
    %c0_31 = arith.constant 0 : index
    %c0_32 = arith.constant 0 : index
    %56 = vector.load %arg5[%c0_31, %c0_32] : memref<448x1040xbf16, #tpu.memory_space<vmem>>, vector<192x1040xbf16>
    %cst_33 = arith.constant dense<0.000000e+00> : vector<128x1040xf32>
    %57 = tpu.matmul %55, %56, %cst_33 {dimension_numbers = #tpu.dot_dimension_numbers<[1], [0], [0], [1], [0, 0, 1, 1], [], []>} : vector<128x192xbf16>, vector<192x1040xbf16>, vector<128x1040xf32> -> vector<128x1040xf32>
    %58 = arith.truncf %54 : vector<128x256xf32> to vector<128x256xbf16>
    %c192 = arith.constant 192 : index
    %c0_34 = arith.constant 0 : index
    %59 = vector.load %arg5[%c192, %c0_34] : memref<448x1040xbf16, #tpu.memory_space<vmem>>, vector<256x1040xbf16>
    %cst_35 = arith.constant dense<0.000000e+00> : vector<128x1040xf32>
    %60 = tpu.matmul %58, %59, %cst_35 {dimension_numbers = #tpu.dot_dimension_numbers<[1], [0], [0], [1], [0, 0, 1, 1], [], []>} : vector<128x256xbf16>, vector<256x1040xbf16>, vector<128x1040xf32> -> vector<128x1040xf32>
    %61 = arith.addf %57, %60 : vector<128x1040xf32>
    %c0_36 = arith.constant 0 : index
    %c0_37 = arith.constant 0 : index
    %62 = vector.load %arg6[%c0_36, %c0_37] : memref<1x1040xf32, #tpu.memory_space<vmem>>, vector<1x1040xf32>
    %63 = vector.broadcast %62 : vector<1x1040xf32> to vector<128x1040xf32>
    %64 = arith.addf %61, %63 : vector<128x1040xf32>
    %c0_38 = arith.constant 0 : index
    %c0_39 = arith.constant 0 : index
    %c0_40 = arith.constant 0 : index
    %c0_41 = arith.constant 0 : index
    %65 = vector.load %arg1[%c0_38, %c0_39, %c0_40, %c0_41] : memref<2x8x8x1040xf32, #tpu.memory_space<vmem>>, vector<2x8x8x1040xf32>
    %66 = vector.shape_cast %65 : vector<2x8x8x1040xf32> to vector<128x1040xf32>
    %cst_42 = arith.constant 5.000000e-01 : f32
    %67 = vector.broadcast %cst_42 : f32 to vector<128x1040xf32>
    %68 = arith.mulf %67, %64 : vector<128x1040xf32>
    %69 = arith.addf %66, %68 : vector<128x1040xf32>
    %cst_43 = arith.constant 0.000000e+00 : f32
    %70 = vector.broadcast %cst_43 : f32 to vector<128x1040xf32>
    %71 = arith.maximumf %69, %70 : vector<128x1040xf32>
    %72 = vector.shape_cast %71 : vector<128x1040xf32> to vector<2x8x8x1040xf32>
    %c0_44 = arith.constant 0 : index
    %c0_45 = arith.constant 0 : index
    %c0_46 = arith.constant 0 : index
    %c0_47 = arith.constant 0 : index
    %73 = vector.load %arg7[%c0_44, %c0_45, %c0_46, %c0_47] : memref<2x8x8x1040xf32, #tpu.memory_space<vmem>>, vector<2x8x8x1040xf32>
    tpu.vector_store %arg7[%c0_44, %c0_45, %c0_46, %c0_47], %72 {strides = array<i32>} : memref<2x8x8x1040xf32, #tpu.memory_space<vmem>>, vector<2x8x8x1040xf32>,
    return
  }
  func.func @transform_0(%arg0: i32) -> (i32, i32, i32, i32) {
    %c0_i32 = arith.constant 0 : i32
    %c0_i32_0 = arith.constant 0 : i32
    %c0_i32_1 = arith.constant 0 : i32
    %c0_i32_2 = arith.constant 0 : i32
    return %arg0, %c0_i32, %c0_i32_0, %c0_i32_1 : i32, i32, i32, i32
  }
  func.func @transform_1(%arg0: i32) -> (i32, i32) {
    %c0_i32 = arith.constant 0 : i32
    %c0_i32_0 = arith.constant 0 : i32
    %c0_i32_1 = arith.constant 0 : i32
    return %c0_i32, %c0_i32_0 : i32, i32
  }
  func.func @transform_2(%arg0: i32) -> (i32, i32, i32) {
    %c0_i32 = arith.constant 0 : i32
    %c0_i32_0 = arith.constant 0 : i32
    %c0_i32_1 = arith.constant 0 : i32
    %c0_i32_2 = arith.constant 0 : i32
    return %c0_i32, %c0_i32_0, %c0_i32_1 : i32, i32, i32
  }
  func.func @transform_3(%arg0: i32) -> (i32, i32, i32) {
    %c0_i32 = arith.constant 0 : i32
    %c0_i32_0 = arith.constant 0 : i32
    %c0_i32_1 = arith.constant 0 : i32
    %c0_i32_2 = arith.constant 0 : i32
    return %c0_i32, %c0_i32_0, %c0_i32_1 : i32, i32, i32
  }
  func.func @transform_4(%arg0: i32) -> (i32, i32) {
    %c0_i32 = arith.constant 0 : i32
    %c0_i32_0 = arith.constant 0 : i32
    %c0_i32_1 = arith.constant 0 : i32
    return %c0_i32, %c0_i32_0 : i32, i32
  }
  func.func @transform_5(%arg0: i32) -> (i32, i32) {
    %c0_i32 = arith.constant 0 : i32
    %c0_i32_0 = arith.constant 0 : i32
    %c0_i32_1 = arith.constant 0 : i32
    return %c0_i32, %c0_i32_0 : i32, i32
  }
  func.func @transform_6(%arg0: i32) -> (i32, i32, i32, i32) {
    %c0_i32 = arith.constant 0 : i32
    %c0_i32_0 = arith.constant 0 : i32
    %c0_i32_1 = arith.constant 0 : i32
    %c0_i32_2 = arith.constant 0 : i32
    return %arg0, %c0_i32, %c0_i32_0, %c0_i32_1 : i32, i32, i32, i32
  }
}

</mosaic_0001>

<llo_original>
// kernel: block_c_forward.1
$region0: #{block_c_forward.1}
  #allocation0 [shape = 'u32[]', space=smem, size = 0x4, offset = 0x4, fixed_abs, tag = 'smem constant byte address 0x4 - core index']
  #allocation1 [shape = 'u32[144,128]{1,0:T(1,128)}', space=vmem, size = 0x12000, scoped, tag = 'internal scratch']
  %s0 = inlined_call_operand.vmem [shape: f32[2,8,8,1040], index: 0, kind: input, shape index: {}]
  %s1 = inlined_call_operand.vmem [shape: bf16[1040,384], index: 1, kind: input, shape index: {}]
  %s2 = inlined_call_operand.hbm [shape: bf16[3,192,224], index: 2, kind: input, shape index: {}]
  %s3 = inlined_call_operand.vmem [shape: bf16[3,224,256], index: 3, kind: input, shape index: {}]
  %s4 = inlined_call_operand.vmem [shape: bf16[448,1040], index: 4, kind: input, shape index: {}]
  %s5 = inlined_call_operand.vmem [shape: f32[1,1040], index: 5, kind: input, shape index: {}]
  %s6 = inlined_call_operand.vmem [shape: f32[2,8,8,1040], index: 6, kind: output, shape index: {}]
  %s7 = sld [smem:[#allocation0]]
  $region38: #{block_c_forward.1} parent=0
    _
  %s9 = ssub.s32 1, %s7
  %s10 = scalar_select 0, %s9, %s7
  $region1: #{block_c_forward.1} parent=0
    #allocation2 [shape = 'u8[294912]{0}', space=vmem, size = 0x48000, scoped, tag = 'input window, operand 2, single buffered']
    #allocation3 [shape = 's32[1]{0}', space=sflag, size = 0x4, scoped, tag = 'scoped memory for block_c_forward.1']
    %11 = vsyncpa [#allocation3], 0
    // Predicated region
    $region2: #{block_c_forward.1} parent=1 // pred_check
      _
    $region3: #{block_c_forward.1} parent=1 // pred_check_branch
      %13 = sbr.rel (0) target = $region5
    $region4: #{block_c_forward.1} parent=1 // pred_region
      _
    $region5: #{block_c_forward.1} parent=1 // pred_fallthru
      _
    // Predicated region
    $region6: #{block_c_forward.1} parent=1 // pred_check
      _
    $region7: #{block_c_forward.1} parent=1 // pred_check_branch
      %15 = sbr.rel (0) target = $region9
    $region8: #{block_c_forward.1} parent=1 // pred_region
      _
    $region9: #{block_c_forward.1} parent=1 // pred_fallthru
      _
    // Predicated region
    $region10: #{block_c_forward.1} parent=1 // pred_check
      _
    $region11: #{block_c_forward.1} parent=1 // pred_check_branch
      %17 = sbr.rel (0) target = $region13
    $region12: #{block_c_forward.1} parent=1 // pred_region
      %s19 = ssub.s32 9216, 9216
      %20 = vsyncadd [#allocation3], %s19
      %s21 = sshll.u32 [#allocation2], 4
      %s22 = int_to_ptr.vmem [resolvable:$true] %s21
      %27 = dma.hbm_to_vmem [thread:$0]  %s2, 9216, %s22, [#allocation3], 128, 128, 8
    $region13: #{block_c_forward.1} parent=1 // pred_fallthru
      _
    // Predicated region
    $region14: #{block_c_forward.1} parent=1 // pred_check
      _
    $region15: #{block_c_forward.1} parent=1 // pred_check_branch
      %29 = sbr.rel (0) target = $region17
    $region16: #{block_c_forward.1} parent=1 // pred_region
      _
    $region17: #{block_c_forward.1} parent=1 // pred_fallthru
      _
    // Predicated region
    $region18: #{block_c_forward.1} parent=1 // pred_check
      _
    $region19: #{block_c_forward.1} parent=1 // pred_check_branch
      %31 = sbr.rel (0) target = $region21
    $region20: #{block_c_forward.1} parent=1 // pred_region
      _
    $region21: #{block_c_forward.1} parent=1 // pred_fallthru
      _
    // Predicated region
    $region22: #{block_c_forward.1} parent=1 // pred_check
      _
    $region23: #{block_c_forward.1} parent=1 // pred_check_branch
      %33 = sbr.rel (0) target = $region25
    $region24: #{block_c_forward.1} parent=1 // pred_region
      _
    $region25: #{block_c_forward.1} parent=1 // pred_fallthru
      _
    // Predicated region
    $region26: #{block_c_forward.1} parent=1 // pred_check
      _
    $region27: #{block_c_forward.1} parent=1 // pred_check_branch
      %35 = sbr.rel (0) target = $region29
    $region28: #{block_c_forward.1} parent=1 // pred_region
      %36 = dma.done [#allocation3], 9216
    $region29: #{block_c_forward.1} parent=1 // pred_fallthru
      _
    %v38 = vld [vmem:[%s0] sm:$0xff]
    %v39 = vld [vmem:[%s0 + $0x8] sm:$0xff]
    %v40 = vld [vmem:[%s0 + $0x10] sm:$0xff]
    %v41 = vld [vmem:[%s0 + $0x18] sm:$0xff]
    %v42 = vld [vmem:[%s0 + $0x20] sm:$0xff]
    %v43 = vld [vmem:[%s0 + $0x28] sm:$0xff]
    %v44 = vld [vmem:[%s0 + $0x30] sm:$0xff]
    %v45 = vld [vmem:[%s0 + $0x38] sm:$0xff]
    %v46 = vld [vmem:[%s0 + $0x40] sm:$0xff]
    %v47 = vld [vmem:[%s0 + $0x48] sm:$0xff]
    %v48 = vld [vmem:[%s0 + $0x50] sm:$0xff]
    %v49 = vld [vmem:[%s0 + $0x58] sm:$0xff]
    %v50 = vld [vmem:[%s0 + $0x60] sm:$0xff]
    %v51 = vld [vmem:[%s0 + $0x68] sm:$0xff]
    %v52 = vld [vmem:[%s0 + $0x70] sm:$0xff]
    %v53 = vld [vmem:[%s0 + $0x78] sm:$0xff]
    %v54 = vld [vmem:[%s0 + $0x80] sm:$0xff]
    %v55 = vld [vmem:[%s0 + $0x88] sm:$0xff]
    %v56 = vld [vmem:[%s0 + $0x90] sm:$0xff]
    %v57 = vld [vmem:[%s0 + $0x98] sm:$0xff]
    %v58 = vld [vmem:[%s0 + $0xa0] sm:$0xff]
    %v59 = vld [vmem:[%s0 + $0xa8] sm:$0xff]
    %v60 = vld [vmem:[%s0 + $0xb0] sm:$0xff]
    %v61 = vld [vmem:[%s0 + $0xb8] sm:$0xff]
    %v62 = vld [vmem:[%s0 + $0xc0] sm:$0xff]
    %v63 = vld [vmem:[%s0 + $0xc8] sm:$0xff]
    %v64 = vld [vmem:[%s0 + $0xd0] sm:$0xff]
    %v65 = vld [vmem:[%s0 + $0xd8] sm:$0xff]
    %v66 = vld [vmem:[%s0 + $0xe0] sm:$0xff]
    %v67 = vld [vmem:[%s0 + $0xe8] sm:$0xff]
    %v68 = vld [vmem:[%s0 + $0xf0] sm:$0xff]
    %v69 = vld [vmem:[%s0 + $0xf8] sm:$0xff]
    %v70 = vld [vmem:[%s0 + $0x100] sm:$0xff]
    %v71 = vld [vmem:[%s0 + $0x108] sm:$0xff]
    %v72 = vld [vmem:[%s0 + $0x110] sm:$0xff]
    %v73 = vld [vmem:[%s0 + $0x118] sm:$0xff]
    %v74 = vld [vmem:[%s0 + $0x120] sm:$0xff]
    %v75 = vld [vmem:[%s0 + $0x128] sm:$0xff]
    %v76 = vld [vmem:[%s0 + $0x130] sm:$0xff]
    %v77 = vld [vmem:[%s0 + $0x138] sm:$0xff]
    %v78 = vld [vmem:[%s0 + $0x140] sm:$0xff]
    %v79 = vld [vmem:[%s0 + $0x148] sm:$0xff]
    %v80 = vld [vmem:[%s0 + $0x150] sm:$0xff]
    %v81 = vld [vmem:[%s0 + $0x158] sm:$0xff]
    %v82 = vld [vmem:[%s0 + $0x160] sm:$0xff]
    %v83 = vld [vmem:[%s0 + $0x168] sm:$0xff]
    %v84 = vld [vmem:[%s0 + $0x170] sm:$0xff]
    %v85 = vld [vmem:[%s0 + $0x178] sm:$0xff]
    %v86 = vld [vmem:[%s0 + $0x180] sm:$0xff]
    %v87 = vld [vmem:[%s0 + $0x188] sm:$0xff]
    %v88 = vld [vmem:[%s0 + $0x190] sm:$0xff]
    %v89 = vld [vmem:[%s0 + $0x198] sm:$0xff]
    %v90 = vld [vmem:[%s0 + $0x1a0] sm:$0xff]
    %v91 = vld [vmem:[%s0 + $0x1a8] sm:$0xff]
    %v92 = vld [vmem:[%s0 + $0x1b0] sm:$0xff]
    %v93 = vld [vmem:[%s0 + $0x1b8] sm:$0xff]
    %v94 = vld [vmem:[%s0 + $0x1c0] sm:$0xff]
    %v95 = vld [vmem:[%s0 + $0x1c8] sm:$0xff]
    %v96 = vld [vmem:[%s0 + $0x1d0] sm:$0xff]
    %v97 = vld [vmem:[%s0 + $0x1d8] sm:$0xff]
    %v98 = vld [vmem:[%s0 + $0x1e0] sm:$0xff]
    %v99 = vld [vmem:[%s0 + $0x1e8] sm:$0xff]
    %v100 = vld [vmem:[%s0 + $0x1f0] sm:$0xff]
    %v101 = vld [vmem:[%s0 + $0x1f8] sm:$0xff]
    %v102 = vld [vmem:[%s0 + $0x200] sm:$0xff]
    %v103 = vld [vmem:[%s0 + $0x208] sm:$0xff]
    %v104 = vld [vmem:[%s0 + $0x210] sm:$0xff]
    %v105 = vld [vmem:[%s0 + $0x218] sm:$0xff]
    %v106 = vld [vmem:[%s0 + $0x220] sm:$0xff]
    %v107 = vld [vmem:[%s0 + $0x228] sm:$0xff]
    %v108 = vld [vmem:[%s0 + $0x230] sm:$0xff]
    %v109 = vld [vmem:[%s0 + $0x238] sm:$0xff]
    %v110 = vld [vmem:[%s0 + $0x240] sm:$0xff]
    %v111 = vld [vmem:[%s0 + $0x248] sm:$0xff]
    %v112 = vld [vmem:[%s0 + $0x250] sm:$0xff]
    %v113 = vld [vmem:[%s0 + $0x258] sm:$0xff]
    %v114 = vld [vmem:[%s0 + $0x260] sm:$0xff]
    %v115 = vld [vmem:[%s0 + $0x268] sm:$0xff]
    %v116 = vld [vmem:[%s0 + $0x270] sm:$0xff]
    %v117 = vld [vmem:[%s0 + $0x278] sm:$0xff]
    %v118 = vld [vmem:[%s0 + $0x280] sm:$0xff]
    %v119 = vld [vmem:[%s0 + $0x288] sm:$0xff]
    %v120 = vld [vmem:[%s0 + $0x290] sm:$0xff]
    %v121 = vld [vmem:[%s0 + $0x298] sm:$0xff]
    %v122 = vld [vmem:[%s0 + $0x2a0] sm:$0xff]
    %v123 = vld [vmem:[%s0 + $0x2a8] sm:$0xff]
    %v124 = vld [vmem:[%s0 + $0x2b0] sm:$0xff]
    %v125 = vld [vmem:[%s0 + $0x2b8] sm:$0xff]
    %v126 = vld [vmem:[%s0 + $0x2c0] sm:$0xff]
    %v127 = vld [vmem:[%s0 + $0x2c8] sm:$0xff]
    %v128 = vld [vmem:[%s0 + $0x2d0] sm:$0xff]
    %v129 = vld [vmem:[%s0 + $0x2d8] sm:$0xff]
    %v130 = vld [vmem:[%s0 + $0x2e0] sm:$0xff]
    %v131 = vld [vmem:[%s0 + $0x2e8] sm:$0xff]
    %v132 = vld [vmem:[%s0 + $0x2f0] sm:$0xff]
    %v133 = vld [vmem:[%s0 + $0x2f8] sm:$0xff]
    %v134 = vld [vmem:[%s0 + $0x300] sm:$0xff]
    %v135 = vld [vmem:[%s0 + $0x308] sm:$0xff]
    %v136 = vld [vmem:[%s0 + $0x310] sm:$0xff]
    %v137 = vld [vmem:[%s0 + $0x318] sm:$0xff]
    %v138 = vld [vmem:[%s0 + $0x320] sm:$0xff]
    %v139 = vld [vmem:[%s0 + $0x328] sm:$0xff]
    %v140 = vld [vmem:[%s0 + $0x330] sm:$0xff]
    %v141 = vld [vmem:[%s0 + $0x338] sm:$0xff]
    %v142 = vld [vmem:[%s0 + $0x340] sm:$0xff]
    %v143 = vld [vmem:[%s0 + $0x348] sm:$0xff]
    %v144 = vld [vmem:[%s0 + $0x350] sm:$0xff]
    %v145 = vld [vmem:[%s0 + $0x358] sm:$0xff]
    %v146 = vld [vmem:[%s0 + $0x360] sm:$0xff]
    %v147 = vld [vmem:[%s0 + $0x368] sm:$0xff]
    %v148 = vld [vmem:[%s0 + $0x370] sm:$0xff]
    %v149 = vld [vmem:[%s0 + $0x378] sm:$0xff]
    %v150 = vld [vmem:[%s0 + $0x380] sm:$0xff]
    %v151 = vld [vmem:[%s0 + $0x388] sm:$0xff]
    %v152 = vld [vmem:[%s0 + $0x390] sm:$0xff]
    %v153 = vld [vmem:[%s0 + $0x398] sm:$0xff]
    %v154 = vld [vmem:[%s0 + $0x3a0] sm:$0xff]
    %v155 = vld [vmem:[%s0 + $0x3a8] sm:$0xff]
    %v156 = vld [vmem:[%s0 + $0x3b0] sm:$0xff]
    %v157 = vld [vmem:[%s0 + $0x3b8] sm:$0xff]
    %v158 = vld [vmem:[%s0 + $0x3c0] sm:$0xff]
    %v159 = vld [vmem:[%s0 + $0x3c8] sm:$0xff]
    %v160 = vld [vmem:[%s0 + $0x3d0] sm:$0xff]
    %v161 = vld [vmem:[%s0 + $0x3d8] sm:$0xff]
    %v162 = vld [vmem:[%s0 + $0x3e0] sm:$0xff]
    %v163 = vld [vmem:[%s0 + $0x3e8] sm:$0xff]
    %v164 = vld [vmem:[%s0 + $0x3f0] sm:$0xff]
    %v165 = vld [vmem:[%s0 + $0x3f8] sm:$0xff]
    %v166 = vld [vmem:[%s0 + $0x400] sm:$0xff]
    %v167 = vld [vmem:[%s0 + $0x408] sm:$0xff]
    %v168 = vld [vmem:[%s0 + $0x410] sm:$0xff]
    %v169 = vld [vmem:[%s0 + $0x418] sm:$0xff]
    %v170 = vld [vmem:[%s0 + $0x420] sm:$0xff]
    %v171 = vld [vmem:[%s0 + $0x428] sm:$0xff]
    %v172 = vld [vmem:[%s0 + $0x430] sm:$0xff]
    %v173 = vld [vmem:[%s0 + $0x438] sm:$0xff]
    %v174 = vld [vmem:[%s0 + $0x440] sm:$0xff]
    %v175 = vld [vmem:[%s0 + $0x448] sm:$0xff]
    %v176 = vld [vmem:[%s0 + $0x450] sm:$0xff]
    %v177 = vld [vmem:[%s0 + $0x458] sm:$0xff]
    %v178 = vld [vmem:[%s0 + $0x460] sm:$0xff]
    %v179 = vld [vmem:[%s0 + $0x468] sm:$0xff]
    %v180 = vld [vmem:[%s0 + $0x470] sm:$0xff]
    %v181 = vld [vmem:[%s0 + $0x478] sm:$0xff]
    %v182 = vpack.c.bf16 %v47, %v38
    %v183 = vpack.c.bf16 %v48, %v39
    %v184 = vpack.c.bf16 %v49, %v40
    %v185 = vpack.c.bf16 %v50, %v41
    %v186 = vpack.c.bf16 %v51, %v42
    %v187 = vpack.c.bf16 %v52, %v43
    %v188 = vpack.c.bf16 %v53, %v44
    %v189 = vpack.c.bf16 %v54, %v45
    %v190 = vpack.c.bf16 %v55, %v46
    %v191 = vpack.c.bf16 %v65, %v56
    %v192 = vpack.c.bf16 %v66, %v57
    %v193 = vpack.c.bf16 %v67, %v58
    %v194 = vpack.c.bf16 %v68, %v59
    %v195 = vpack.c.bf16 %v69, %v60
    %v196 = vpack.c.bf16 %v70, %v61
    %v197 = vpack.c.bf16 %v71, %v62
    %v198 = vpack.c.bf16 %v72, %v63
    %v199 = vpack.c.bf16 %v73, %v64
    %v200 = vpack.c.bf16 %v83, %v74
    %v201 = vpack.c.bf16 %v84, %v75
    %v202 = vpack.c.bf16 %v85, %v76
    %v203 = vpack.c.bf16 %v86, %v77
    %v204 = vpack.c.bf16 %v87, %v78
    %v205 = vpack.c.bf16 %v88, %v79
    %v206 = vpack.c.bf16 %v89, %v80
    %v207 = vpack.c.bf16 %v90, %v81
    %v208 = vpack.c.bf16 %v91, %v82
    %v209 = vpack.c.bf16 %v101, %v92
    %v210 = vpack.c.bf16 %v102, %v93
    %v211 = vpack.c.bf16 %v103, %v94
    %v212 = vpack.c.bf16 %v104, %v95
    %v213 = vpack.c.bf16 %v105, %v96
    %v214 = vpack.c.bf16 %v106, %v97
    %v215 = vpack.c.bf16 %v107, %v98
    %v216 = vpack.c.bf16 %v108, %v99
    %v217 = vpack.c.bf16 %v109, %v100
    %v218 = vpack.c.bf16 %v119, %v110
    %v219 = vpack.c.bf16 %v120, %v111
    %v220 = vpack.c.bf16 %v121, %v112
    %v221 = vpack.c.bf16 %v122, %v113
    %v222 = vpack.c.bf16 %v123, %v114
    %v223 = vpack.c.bf16 %v124, %v115
    %v224 = vpack.c.bf16 %v125, %v116
    %v225 = vpack.c.bf16 %v126, %v117
    %v226 = vpack.c.bf16 %v127, %v118
    %v227 = vpack.c.bf16 %v137, %v128
    %v228 = vpack.c.bf16 %v138, %v129
    %v229 = vpack.c.bf16 %v139, %v130
    %v230 = vpack.c.bf16 %v140, %v131
    %v231 = vpack.c.bf16 %v141, %v132
    %v232 = vpack.c.bf16 %v142, %v133
    %v233 = vpack.c.bf16 %v143, %v134
    %v234 = vpack.c.bf16 %v144, %v135
    %v235 = vpack.c.bf16 %v145, %v136
    %v236 = vpack.c.bf16 %v155, %v146
    %v237 = vpack.c.bf16 %v156, %v147
    %v238 = vpack.c.bf16 %v157, %v148
    %v239 = vpack.c.bf16 %v158, %v149
    %v240 = vpack.c.bf16 %v159, %v150
    %v241 = vpack.c.bf16 %v160, %v151
    %v242 = vpack.c.bf16 %v161, %v152
    %v243 = vpack.c.bf16 %v162, %v153
    %v244 = vpack.c.bf16 %v163, %v154
    %v245 = vpack.c.bf16 %v173, %v164
    %v246 = vpack.c.bf16 %v174, %v165
    %v247 = vpack.c.bf16 %v175, %v166
    %v248 = vpack.c.bf16 %v176, %v167
    %v249 = vpack.c.bf16 %v177, %v168
    %v250 = vpack.c.bf16 %v178, %v169
    %v251 = vpack.c.bf16 %v179, %v170
    %v252 = vpack.c.bf16 %v180, %v171
    %v253 = vpack.c.bf16 %v181, %v172
    %v254 = vld [vmem:[%s1] sm:$0xff]
    %v255 = vld [vmem:[%s1 + $0x8] sm:$0xf]
    %v256 = vld [vmem:[%s1 + $0xc] sm:$0xff]
    %v257 = vld [vmem:[%s1 + $0x14] sm:$0xf]
    %v258 = vld [vmem:[%s1 + $0x18] sm:$0xff]
    %v259 = vld [vmem:[%s1 + $0x20] sm:$0xf]
    %v260 = vld [vmem:[%s1 + $0x24] sm:$0xff]
    %v261 = vld [vmem:[%s1 + $0x2c] sm:$0xf]
    %v262 = vld [vmem:[%s1 + $0x30] sm:$0xff]
    %v263 = vld [vmem:[%s1 + $0x38] sm:$0xf]
    %v264 = vld [vmem:[%s1 + $0x3c] sm:$0xff]
    %v265 = vld [vmem:[%s1 + $0x44] sm:$0xf]
    %v266 = vld [vmem:[%s1 + $0x48] sm:$0xff]
    %v267 = vld [vmem:[%s1 + $0x50] sm:$0xf]
    %v268 = vld [vmem:[%s1 + $0x54] sm:$0xff]
    %v269 = vld [vmem:[%s1 + $0x5c] sm:$0xf]
    %v270 = vld [vmem:[%s1 + $0x60] sm:$0xff]
    %v271 = vld [vmem:[%s1 + $0x68] sm:$0xf]
    %v272 = vld [vmem:[%s1 + $0x6c] sm:$0xff]
    %v273 = vld [vmem:[%s1 + $0x74] sm:$0xf]
    %v274 = vld [vmem:[%s1 + $0x78] sm:$0xff]
    %v275 = vld [vmem:[%s1 + $0x80] sm:$0xf]
    %v276 = vld [vmem:[%s1 + $0x84] sm:$0xff]
    %v277 = vld [vmem:[%s1 + $0x8c] sm:$0xf]
    %v278 = vld [vmem:[%s1 + $0x90] sm:$0xff]
    %v279 = vld [vmem:[%s1 + $0x98] sm:$0xf]
    %v280 = vld [vmem:[%s1 + $0x9c] sm:$0xff]
    %v281 = vld [vmem:[%s1 + $0xa4] sm:$0xf]
    %v282 = vld [vmem:[%s1 + $0xa8] sm:$0xff]
    %v283 = vld [vmem:[%s1 + $0xb0] sm:$0xf]
    %v284 = vld [vmem:[%s1 + $0xb4] sm:$0xff]
    %v285 = vld [vmem:[%s1 + $0xbc] sm:$0xf]
    %v286 = vld [vmem:[%s1 + $0xc0] sm:$0xff]
    %v287 = vld [vmem:[%s1 + $0xc8] sm:$0xf]
    %v288 = vld [vmem:[%s1 + $0xcc] sm:$0xff]
    %v289 = vld [vmem:[%s1 + $0xd4] sm:$0xf]
    %v290 = vld [vmem:[%s1 + $0xd8] sm:$0xff]
    %v291 = vld [vmem:[%s1 + $0xe0] sm:$0xf]
    %v292 = vld [vmem:[%s1 + $0xe4] sm:$0xff]
    %v293 = vld [vmem:[%s1 + $0xec] sm:$0xf]
    %v294 = vld [vmem:[%s1 + $0xf0] sm:$0xff]
    %v295 = vld [vmem:[%s1 + $0xf8] sm:$0xf]
    %v296 = vld [vmem:[%s1 + $0xfc] sm:$0xff]
    %v297 = vld [vmem:[%s1 + $0x104] sm:$0xf]
    %v298 = vld [vmem:[%s1 + $0x108] sm:$0xff]
    %v299 = vld [vmem:[%s1 + $0x110] sm:$0xf]
    %v300 = vld [vmem:[%s1 + $0x114] sm:$0xff]
    %v301 = vld [vmem:[%s1 + $0x11c] sm:$0xf]
    %v302 = vld [vmem:[%s1 + $0x120] sm:$0xff]
    %v303 = vld [vmem:[%s1 + $0x128] sm:$0xf]
    %v304 = vld [vmem:[%s1 + $0x12c] sm:$0xff]
    %v305 = vld [vmem:[%s1 + $0x134] sm:$0xf]
    %v306 = vld [vmem:[%s1 + $0x138] sm:$0xff]
    %v307 = vld [vmem:[%s1 + $0x140] sm:$0xf]
    %v308 = vld [vmem:[%s1 + $0x144] sm:$0xff]
    %v309 = vld [vmem:[%s1 + $0x14c] sm:$0xf]
    %v310 = vld [vmem:[%s1 + $0x150] sm:$0xff]
    %v311 = vld [vmem:[%s1 + $0x158] sm:$0xf]
    %v312 = vld [vmem:[%s1 + $0x15c] sm:$0xff]
    %v313 = vld [vmem:[%s1 + $0x164] sm:$0xf]
    %v314 = vld [vmem:[%s1 + $0x168] sm:$0xff]
    %v315 = vld [vmem:[%s1 + $0x170] sm:$0xf]
    %v316 = vld [vmem:[%s1 + $0x174] sm:$0xff]
    %v317 = vld [vmem:[%s1 + $0x17c] sm:$0xf]
    %v318 = vld [vmem:[%s1 + $0x180] sm:$0xff]
    %v319 = vld [vmem:[%s1 + $0x188] sm:$0xf]
    %v320 = vld [vmem:[%s1 + $0x18c] sm:$0xff]
    %v321 = vld [vmem:[%s1 + $0x194] sm:$0xf]
    %v322 = vld [vmem:[%s1 + $0x198] sm:$0xff]
    %v323 = vld [vmem:[%s1 + $0x1a0] sm:$0xf]
    %v324 = vld [vmem:[%s1 + $0x1a4] sm:$0xff]
    %v325 = vld [vmem:[%s1 + $0x1ac] sm:$0xf]
    %v326 = vld [vmem:[%s1 + $0x1b0] sm:$0xff]
    %v327 = vld [vmem:[%s1 + $0x1b8] sm:$0xf]
    %v328 = vld [vmem:[%s1 + $0x1bc] sm:$0xff]
    %v329 = vld [vmem:[%s1 + $0x1c4] sm:$0xf]
    %v330 = vld [vmem:[%s1 + $0x1c8] sm:$0xff]
    %v331 = vld [vmem:[%s1 + $0x1d0] sm:$0xf]
    %v332 = vld [vmem:[%s1 + $0x1d4] sm:$0xff]
    %v333 = vld [vmem:[%s1 + $0x1dc] sm:$0xf]
    %v334 = vld [vmem:[%s1 + $0x1e0] sm:$0xff]
    %v335 = vld [vmem:[%s1 + $0x1e8] sm:$0xf]
    %v336 = vld [vmem:[%s1 + $0x1ec] sm:$0xff]
    %v337 = vld [vmem:[%s1 + $0x1f4] sm:$0xf]
    %v338 = vld [vmem:[%s1 + $0x1f8] sm:$0xff]
    %v339 = vld [vmem:[%s1 + $0x200] sm:$0xf]
    %v340 = vld [vmem:[%s1 + $0x204] sm:$0xff]
    %v341 = vld [vmem:[%s1 + $0x20c] sm:$0xf]
    %v342 = vld [vmem:[%s1 + $0x210] sm:$0xff]
    %v343 = vld [vmem:[%s1 + $0x218] sm:$0xf]
    %v344 = vld [vmem:[%s1 + $0x21c] sm:$0xff]
    %v345 = vld [vmem:[%s1 + $0x224] sm:$0xf]
    %v346 = vld [vmem:[%s1 + $0x228] sm:$0xff]
    %v347 = vld [vmem:[%s1 + $0x230] sm:$0xf]
    %v348 = vld [vmem:[%s1 + $0x234] sm:$0xff]
    %v349 = vld [vmem:[%s1 + $0x23c] sm:$0xf]
    %v350 = vld [vmem:[%s1 + $0x240] sm:$0xff]
    %v351 = vld [vmem:[%s1 + $0x248] sm:$0xf]
    %v352 = vld [vmem:[%s1 + $0x24c] sm:$0xff]
    %v353 = vld [vmem:[%s1 + $0x254] sm:$0xf]
    %v354 = vld [vmem:[%s1 + $0x258] sm:$0xff]
    %v355 = vld [vmem:[%s1 + $0x260] sm:$0xf]
    %v356 = vld [vmem:[%s1 + $0x264] sm:$0xff]
    %v357 = vld [vmem:[%s1 + $0x26c] sm:$0xf]
    %v358 = vld [vmem:[%s1 + $0x270] sm:$0xff]
    %v359 = vld [vmem:[%s1 + $0x278] sm:$0xf]
    %v360 = vld [vmem:[%s1 + $0x27c] sm:$0xff]
    %v361 = vld [vmem:[%s1 + $0x284] sm:$0xf]
    %v362 = vld [vmem:[%s1 + $0x288] sm:$0xff]
    %v363 = vld [vmem:[%s1 + $0x290] sm:$0xf]
    %v364 = vld [vmem:[%s1 + $0x294] sm:$0xff]
    %v365 = vld [vmem:[%s1 + $0x29c] sm:$0xf]
    %v366 = vld [vmem:[%s1 + $0x2a0] sm:$0xff]
    %v367 = vld [vmem:[%s1 + $0x2a8] sm:$0xf]
    %v368 = vld [vmem:[%s1 + $0x2ac] sm:$0xff]
    %v369 = vld [vmem:[%s1 + $0x2b4] sm:$0xf]
    %v370 = vld [vmem:[%s1 + $0x2b8] sm:$0xff]
    %v371 = vld [vmem:[%s1 + $0x2c0] sm:$0xf]
    %v372 = vld [vmem:[%s1 + $0x2c4] sm:$0xff]
    %v373 = vld [vmem:[%s1 + $0x2cc] sm:$0xf]
    %v374 = vld [vmem:[%s1 + $0x2d0] sm:$0xff]
    %v375 = vld [vmem:[%s1 + $0x2d8] sm:$0xf]
    %v376 = vld [vmem:[%s1 + $0x2dc] sm:$0xff]
    %v377 = vld [vmem:[%s1 + $0x2e4] sm:$0xf]
    %v378 = vld [vmem:[%s1 + $0x2e8] sm:$0xff]
    %v379 = vld [vmem:[%s1 + $0x2f0] sm:$0xf]
    %v380 = vld [vmem:[%s1 + $0x2f4] sm:$0xff]
    %v381 = vld [vmem:[%s1 + $0x2fc] sm:$0xf]
    %v382 = vld [vmem:[%s1 + $0x300] sm:$0xff]
    %v383 = vld [vmem:[%s1 + $0x308] sm:$0xf]
    %v384 = vld [vmem:[%s1 + $0x30c] sm:$0xff]
    %v385 = vld [vmem:[%s1 + $0x314] sm:$0xf]
    %v386 = vld [vmem:[%s1 + $0x318] sm:$0xff]
    %v387 = vld [vmem:[%s1 + $0x320] sm:$0xf]
    %v388 = vld [vmem:[%s1 + $0x324] sm:$0xff]
    %v389 = vld [vmem:[%s1 + $0x32c] sm:$0xf]
    %v390 = vld [vmem:[%s1 + $0x330] sm:$0xff]
    %v391 = vld [vmem:[%s1 + $0x338] sm:$0xf]
    %v392 = vld [vmem:[%s1 + $0x33c] sm:$0xff]
    %v393 = vld [vmem:[%s1 + $0x344] sm:$0xf]
    %v394 = vld [vmem:[%s1 + $0x348] sm:$0xff]
    %v395 = vld [vmem:[%s1 + $0x350] sm:$0xf]
    %v396 = vld [vmem:[%s1 + $0x354] sm:$0xff]
    %v397 = vld [vmem:[%s1 + $0x35c] sm:$0xf]
    %v398 = vld [vmem:[%s1 + $0x360] sm:$0xff]
    %v399 = vld [vmem:[%s1 + $0x368] sm:$0xf]
    %v400 = vld [vmem:[%s1 + $0x36c] sm:$0xff]
    %v401 = vld [vmem:[%s1 + $0x374] sm:$0xf]
    %v402 = vld [vmem:[%s1 + $0x378] sm:$0xff]
    %v403 = vld [vmem:[%s1 + $0x380] sm:$0xf]
    %v404 = vld [vmem:[%s1 + $0x384] sm:$0xff]
    %v405 = vld [vmem:[%s1 + $0x38c] sm:$0xf]
    %v406 = vld [vmem:[%s1 + $0x390] sm:$0xff]
    %v407 = vld [vmem:[%s1 + $0x398] sm:$0xf]
    %v408 = vld [vmem:[%s1 + $0x39c] sm:$0xff]
    %v409 = vld [vmem:[%s1 + $0x3a4] sm:$0xf]
    %v410 = vld [vmem:[%s1 + $0x3a8] sm:$0xff]
    %v411 = vld [vmem:[%s1 + $0x3b0] sm:$0xf]
    %v412 = vld [vmem:[%s1 + $0x3b4] sm:$0xff]
    %v413 = vld [vmem:[%s1 + $0x3bc] sm:$0xf]
    %v414 = vld [vmem:[%s1 + $0x3c0] sm:$0xff]
    %v415 = vld [vmem:[%s1 + $0x3c8] sm:$0xf]
    %v416 = vld [vmem:[%s1 + $0x3cc] sm:$0xff]
    %v417 = vld [vmem:[%s1 + $0x3d4] sm:$0xf]
    %v418 = vld [vmem:[%s1 + $0x3d8] sm:$0xff]
    %v419 = vld [vmem:[%s1 + $0x3e0] sm:$0xf]
    %v420 = vld [vmem:[%s1 + $0x3e4] sm:$0xff]
    %v421 = vld [vmem:[%s1 + $0x3ec] sm:$0xf]
    %v422 = vld [vmem:[%s1 + $0x3f0] sm:$0xff]
    %v423 = vld [vmem:[%s1 + $0x3f8] sm:$0xf]
    %v424 = vld [vmem:[%s1 + $0x3fc] sm:$0xff]
    %v425 = vld [vmem:[%s1 + $0x404] sm:$0xf]
    %v426 = vld [vmem:[%s1 + $0x408] sm:$0xff]
    %v427 = vld [vmem:[%s1 + $0x410] sm:$0xf]
    %v428 = vld [vmem:[%s1 + $0x414] sm:$0xff]
    %v429 = vld [vmem:[%s1 + $0x41c] sm:$0xf]
    %v430 = vld [vmem:[%s1 + $0x420] sm:$0xff]
    %v431 = vld [vmem:[%s1 + $0x428] sm:$0xf]
    %v432 = vld [vmem:[%s1 + $0x42c] sm:$0xff]
    %v433 = vld [vmem:[%s1 + $0x434] sm:$0xf]
    %v434 = vld [vmem:[%s1 + $0x438] sm:$0xff]
    %v435 = vld [vmem:[%s1 + $0x440] sm:$0xf]
    %v436 = vld [vmem:[%s1 + $0x444] sm:$0xff]
    %v437 = vld [vmem:[%s1 + $0x44c] sm:$0xf]
    %v438 = vld [vmem:[%s1 + $0x450] sm:$0xff]
    %v439 = vld [vmem:[%s1 + $0x458] sm:$0xf]
    %v440 = vld [vmem:[%s1 + $0x45c] sm:$0xff]
    %v441 = vld [vmem:[%s1 + $0x464] sm:$0xf]
    %v442 = vld [vmem:[%s1 + $0x468] sm:$0xff]
    %v443 = vld [vmem:[%s1 + $0x470] sm:$0xf]
    %v444 = vld [vmem:[%s1 + $0x474] sm:$0xff]
    %v445 = vld [vmem:[%s1 + $0x47c] sm:$0xf]
    %v446 = vld [vmem:[%s1 + $0x480] sm:$0xff]
    %v447 = vld [vmem:[%s1 + $0x488] sm:$0xf]
    %v448 = vld [vmem:[%s1 + $0x48c] sm:$0xff]
    %v449 = vld [vmem:[%s1 + $0x494] sm:$0xf]
    %v450 = vld [vmem:[%s1 + $0x498] sm:$0xff]
    %v451 = vld [vmem:[%s1 + $0x4a0] sm:$0xf]
    %v452 = vld [vmem:[%s1 + $0x4a4] sm:$0xff]
    %v453 = vld [vmem:[%s1 + $0x4ac] sm:$0xf]
    %v454 = vld [vmem:[%s1 + $0x4b0] sm:$0xff]
    %v455 = vld [vmem:[%s1 + $0x4b8] sm:$0xf]
    %v456 = vld [vmem:[%s1 + $0x4bc] sm:$0xff]
    %v457 = vld [vmem:[%s1 + $0x4c4] sm:$0xf]
    %v458 = vld [vmem:[%s1 + $0x4c8] sm:$0xff]
    %v459 = vld [vmem:[%s1 + $0x4d0] sm:$0xf]
    %v460 = vld [vmem:[%s1 + $0x4d4] sm:$0xff]
    %v461 = vld [vmem:[%s1 + $0x4dc] sm:$0xf]
    %v462 = vld [vmem:[%s1 + $0x4e0] sm:$0xff]
    %v463 = vld [vmem:[%s1 + $0x4e8] sm:$0xf]
    %v464 = vld [vmem:[%s1 + $0x4ec] sm:$0xff]
    %v465 = vld [vmem:[%s1 + $0x4f4] sm:$0xf]
    %v466 = vld [vmem:[%s1 + $0x4f8] sm:$0xff]
    %v467 = vld [vmem:[%s1 + $0x500] sm:$0xf]
    %v468 = vld [vmem:[%s1 + $0x504] sm:$0xff]
    %v469 = vld [vmem:[%s1 + $0x50c] sm:$0xf]
    %v470 = vld [vmem:[%s1 + $0x510] sm:$0xff]
    %v471 = vld [vmem:[%s1 + $0x518] sm:$0xf]
    %v472 = vld [vmem:[%s1 + $0x51c] sm:$0xff]
    %v473 = vld [vmem:[%s1 + $0x524] sm:$0xf]
    %v474 = vld [vmem:[%s1 + $0x528] sm:$0xff]
    %v475 = vld [vmem:[%s1 + $0x530] sm:$0xf]
    %v476 = vld [vmem:[%s1 + $0x534] sm:$0xff]
    %v477 = vld [vmem:[%s1 + $0x53c] sm:$0xf]
    %v478 = vld [vmem:[%s1 + $0x540] sm:$0xff]
    %v479 = vld [vmem:[%s1 + $0x548] sm:$0xf]
    %v480 = vld [vmem:[%s1 + $0x54c] sm:$0xff]
    %v481 = vld [vmem:[%s1 + $0x554] sm:$0xf]
    %v482 = vld [vmem:[%s1 + $0x558] sm:$0xff]
    %v483 = vld [vmem:[%s1 + $0x560] sm:$0xf]
    %v484 = vld [vmem:[%s1 + $0x564] sm:$0xff]
    %v485 = vld [vmem:[%s1 + $0x56c] sm:$0xf]
    %v486 = vld [vmem:[%s1 + $0x570] sm:$0xff]
    %v487 = vld [vmem:[%s1 + $0x578] sm:$0xf]
    %v488 = vld [vmem:[%s1 + $0x57c] sm:$0xff]
    %v489 = vld [vmem:[%s1 + $0x584] sm:$0xf]
    %v490 = vld [vmem:[%s1 + $0x588] sm:$0xff]
    %v491 = vld [vmem:[%s1 + $0x590] sm:$0xf]
    %v492 = vld [vmem:[%s1 + $0x594] sm:$0xff]
    %v493 = vld [vmem:[%s1 + $0x59c] sm:$0xf]
    %v494 = vld [vmem:[%s1 + $0x5a0] sm:$0xff]
    %v495 = vld [vmem:[%s1 + $0x5a8] sm:$0xf]
    %v496 = vld [vmem:[%s1 + $0x5ac] sm:$0xff]
    %v497 = vld [vmem:[%s1 + $0x5b4] sm:$0xf]
    %v498 = vld [vmem:[%s1 + $0x5b8] sm:$0xff]
    %v499 = vld [vmem:[%s1 + $0x5c0] sm:$0xf]
    %v500 = vld [vmem:[%s1 + $0x5c4] sm:$0xff]
    %v501 = vld [vmem:[%s1 + $0x5cc] sm:$0xf]
    %v502 = vld [vmem:[%s1 + $0x5d0] sm:$0xff]
    %v503 = vld [vmem:[%s1 + $0x5d8] sm:$0xf]
    %v504 = vld [vmem:[%s1 + $0x5dc] sm:$0xff]
    %v505 = vld [vmem:[%s1 + $0x5e4] sm:$0xf]
    %v506 = vld [vmem:[%s1 + $0x5e8] sm:$0xff]
    %v507 = vld [vmem:[%s1 + $0x5f0] sm:$0xf]
    %v508 = vld [vmem:[%s1 + $0x5f4] sm:$0xff]
    %v509 = vld [vmem:[%s1 + $0x5fc] sm:$0xf]
    %v510 = vld [vmem:[%s1 + $0x600] sm:$0xff]
    %v511 = vld [vmem:[%s1 + $0x608] sm:$0xf]
    %v512 = vld [vmem:[%s1 + $0x60c] sm:$0xff]
    %v513 = vld [vmem:[%s1 + $0x614] sm:$0xf]
    %v774 = vunpack.c.l.b16 %v254
    %v775 = vunpack.c.h.b16 %v254
    %v776 = vunpack.c.l.b16 %v255
    %v777 = vunpack.c.l.b16 %v256
    %v778 = vunpack.c.h.b16 %v256
    %v779 = vunpack.c.l.b16 %v257
    %v780 = vunpack.c.l.b16 %v258
    %v781 = vunpack.c.h.b16 %v258
    %v782 = vunpack.c.l.b16 %v259
    %v783 = vunpack.c.l.b16 %v260
    %v784 = vunpack.c.h.b16 %v260
    %v785 = vunpack.c.l.b16 %v261
    %v786 = vunpack.c.l.b16 %v262
    %v787 = vunpack.c.h.b16 %v262
    %v788 = vunpack.c.l.b16 %v263
    %v789 = vunpack.c.l.b16 %v264
    %v790 = vunpack.c.h.b16 %v264
    %v791 = vunpack.c.l.b16 %v265
    %v792 = vunpack.c.l.b16 %v266
    %v793 = vunpack.c.h.b16 %v266
    %v794 = vunpack.c.l.b16 %v267
    %v795 = vunpack.c.l.b16 %v268
    %v796 = vunpack.c.h.b16 %v268
    %v797 = vunpack.c.l.b16 %v269
    %v798 = vunpack.c.l.b16 %v270
    %v799 = vunpack.c.h.b16 %v270
    %v800 = vunpack.c.l.b16 %v271
    %v801 = vunpack.c.l.b16 %v272
    %v802 = vunpack.c.h.b16 %v272
    %v803 = vunpack.c.l.b16 %v273
    %v804 = vunpack.c.l.b16 %v274
    %v805 = vunpack.c.h.b16 %v274
    %v806 = vunpack.c.l.b16 %v275
    %v807 = vunpack.c.l.b16 %v276
    %v808 = vunpack.c.h.b16 %v276
    %v809 = vunpack.c.l.b16 %v277
    %v810 = vunpack.c.l.b16 %v278
    %v811 = vunpack.c.h.b16 %v278
    %v812 = vunpack.c.l.b16 %v279
    %v813 = vunpack.c.l.b16 %v280
    %v814 = vunpack.c.h.b16 %v280
    %v815 = vunpack.c.l.b16 %v281
    %v816 = vunpack.c.l.b16 %v282
    %v817 = vunpack.c.h.b16 %v282
    %v818 = vunpack.c.l.b16 %v283
    %v819 = vunpack.c.l.b16 %v284
    %v820 = vunpack.c.h.b16 %v284
    %v821 = vunpack.c.l.b16 %v285
    %v822 = vunpack.c.l.b16 %v286
    %v823 = vunpack.c.h.b16 %v286
    %v824 = vunpack.c.l.b16 %v287
    %v825 = vunpack.c.l.b16 %v288
    %v826 = vunpack.c.h.b16 %v288
    %v827 = vunpack.c.l.b16 %v289
    %v828 = vunpack.c.l.b16 %v290
    %v829 = vunpack.c.h.b16 %v290
    %v830 = vunpack.c.l.b16 %v291
    %v831 = vunpack.c.l.b16 %v292
    %v832 = vunpack.c.h.b16 %v292
    %v833 = vunpack.c.l.b16 %v293
    %v834 = vunpack.c.l.b16 %v294
    %v835 = vunpack.c.h.b16 %v294
    %v836 = vunpack.c.l.b16 %v295
    %v837 = vunpack.c.l.b16 %v296
    %v838 = vunpack.c.h.b16 %v296
    %v839 = vunpack.c.l.b16 %v297
    %v840 = vunpack.c.l.b16 %v298
    %v841 = vunpack.c.h.b16 %v298
    %v842 = vunpack.c.l.b16 %v299
    %v843 = vunpack.c.l.b16 %v300
    %v844 = vunpack.c.h.b16 %v300
    %v845 = vunpack.c.l.b16 %v301
    %v846 = vunpack.c.l.b16 %v302
    %v847 = vunpack.c.h.b16 %v302
    %v848 = vunpack.c.l.b16 %v303
    %v849 = vunpack.c.l.b16 %v304
    %v850 = vunpack.c.h.b16 %v304
    %v851 = vunpack.c.l.b16 %v305
    %v852 = vunpack.c.l.b16 %v306
    %v853 = vunpack.c.h.b16 %v306
    %v854 = vunpack.c.l.b16 %v307
    %v855 = vunpack.c.l.b16 %v308
    %v856 = vunpack.c.h.b16 %v308
    %v857 = vunpack.c.l.b16 %v309
    %v858 = vunpack.c.l.b16 %v310
    %v859 = vunpack.c.h.b16 %v310
    %v860 = vunpack.c.l.b16 %v311
    %v861 = vunpack.c.l.b16 %v312
    %v862 = vunpack.c.h.b16 %v312
    %v863 = vunpack.c.l.b16 %v313
    %v864 = vunpack.c.l.b16 %v314
    %v865 = vunpack.c.h.b16 %v314
    %v866 = vunpack.c.l.b16 %v315
    %v867 = vunpack.c.l.b16 %v316
    %v868 = vunpack.c.h.b16 %v316
    %v869 = vunpack.c.l.b16 %v317
    %v870 = vunpack.c.l.b16 %v318
    %v871 = vunpack.c.h.b16 %v318
    %v872 = vunpack.c.l.b16 %v319
    %v873 = vunpack.c.l.b16 %v320
    %v874 = vunpack.c.h.b16 %v320
    %v875 = vunpack.c.l.b16 %v321
    %v876 = vunpack.c.l.b16 %v322
    %v877 = vunpack.c.h.b16 %v322
    %v878 = vunpack.c.l.b16 %v323
    %v879 = vunpack.c.l.b16 %v324
    %v880 = vunpack.c.h.b16 %v324
    %v881 = vunpack.c.l.b16 %v325
    %v882 = vunpack.c.l.b16 %v326
    %v883 = vunpack.c.h.b16 %v326
    %v884 = vunpack.c.l.b16 %v327
    %v885 = vunpack.c.l.b16 %v328
    %v886 = vunpack.c.h.b16 %v328
    %v887 = vunpack.c.l.b16 %v329
    %v888 = vunpack.c.l.b16 %v330
    %v889 = vunpack.c.h.b16 %v330
    %v890 = vunpack.c.l.b16 %v331
    %v891 = vunpack.c.l.b16 %v332
    %v892 = vunpack.c.h.b16 %v332
    %v893 = vunpack.c.l.b16 %v333
    %v894 = vunpack.c.l.b16 %v334
    %v895 = vunpack.c.h.b16 %v334
    %v896 = vunpack.c.l.b16 %v335
    %v897 = vunpack.c.l.b16 %v336
    %v898 = vunpack.c.h.b16 %v336
    %v899 = vunpack.c.l.b16 %v337
    %v900 = vunpack.c.l.b16 %v338
    %v901 = vunpack.c.h.b16 %v338
    %v902 = vunpack.c.l.b16 %v339
    %v903 = vunpack.c.l.b16 %v340
    %v904 = vunpack.c.h.b16 %v340
    %v905 = vunpack.c.l.b16 %v341
    %v906 = vunpack.c.l.b16 %v342
    %v907 = vunpack.c.h.b16 %v342
    %v908 = vunpack.c.l.b16 %v343
    %v909 = vunpack.c.l.b16 %v344
    %v910 = vunpack.c.h.b16 %v344
    %v911 = vunpack.c.l.b16 %v345
    %v912 = vunpack.c.l.b16 %v346
    %v913 = vunpack.c.h.b16 %v346
    %v914 = vunpack.c.l.b16 %v347
    %v915 = vunpack.c.l.b16 %v348
    %v916 = vunpack.c.h.b16 %v348
    %v917 = vunpack.c.l.b16 %v349
    %v918 = vunpack.c.l.b16 %v350
    %v919 = vunpack.c.h.b16 %v350
    %v920 = vunpack.c.l.b16 %v351
    %v921 = vunpack.c.l.b16 %v352
    %v922 = vunpack.c.h.b16 %v352
    %v923 = vunpack.c.l.b16 %v353
    %v924 = vunpack.c.l.b16 %v354
    %v925 = vunpack.c.h.b16 %v354
    %v926 = vunpack.c.l.b16 %v355
    %v927 = vunpack.c.l.b16 %v356
    %v928 = vunpack.c.h.b16 %v356
    %v929 = vunpack.c.l.b16 %v357
    %v930 = vunpack.c.l.b16 %v358
    %v931 = vunpack.c.h.b16 %v358
    %v932 = vunpack.c.l.b16 %v359
    %v933 = vunpack.c.l.b16 %v360
    %v934 = vunpack.c.h.b16 %v360
    %v935 = vunpack.c.l.b16 %v361
    %v936 = vunpack.c.l.b16 %v362
    %v937 = vunpack.c.h.b16 %v362
    %v938 = vunpack.c.l.b16 %v363
    %v939 = vunpack.c.l.b16 %v364
    %v940 = vunpack.c.h.b16 %v364
    %v941 = vunpack.c.l.b16 %v365
    %v942 = vunpack.c.l.b16 %v366
    %v943 = vunpack.c.h.b16 %v366
    %v944 = vunpack.c.l.b16 %v367
    %v945 = vunpack.c.l.b16 %v368
    %v946 = vunpack.c.h.b16 %v368
    %v947 = vunpack.c.l.b16 %v369
    %v948 = vunpack.c.l.b16 %v370
    %v949 = vunpack.c.h.b16 %v370
    %v950 = vunpack.c.l.b16 %v371
    %v951 = vunpack.c.l.b16 %v372
    %v952 = vunpack.c.h.b16 %v372
    %v953 = vunpack.c.l.b16 %v373
    %v954 = vunpack.c.l.b16 %v374
    %v955 = vunpack.c.h.b16 %v374
    %v956 = vunpack.c.l.b16 %v375
    %v957 = vunpack.c.l.b16 %v376
    %v958 = vunpack.c.h.b16 %v376
    %v959 = vunpack.c.l.b16 %v377
    %v960 = vunpack.c.l.b16 %v378
    %v961 = vunpack.c.h.b16 %v378
    %v962 = vunpack.c.l.b16 %v379
    %v963 = vunpack.c.l.b16 %v380
    %v964 = vunpack.c.h.b16 %v380
    %v965 = vunpack.c.l.b16 %v381
    %v966 = vunpack.c.l.b16 %v382
    %v967 = vunpack.c.h.b16 %v382
    %v968 = vunpack.c.l.b16 %v383
    %v969 = vunpack.c.l.b16 %v384
    %v970 = vunpack.c.h.b16 %v384
    %v971 = vunpack.c.l.b16 %v385
    %v972 = vunpack.c.l.b16 %v386
    %v973 = vunpack.c.h.b16 %v386
    %v974 = vunpack.c.l.b16 %v387
    %v975 = vunpack.c.l.b16 %v388
    %v976 = vunpack.c.h.b16 %v388
    %v977 = vunpack.c.l.b16 %v389
    %v978 = vunpack.c.l.b16 %v390
    %v979 = vunpack.c.h.b16 %v390
    %v980 = vunpack.c.l.b16 %v391
    %v981 = vunpack.c.l.b16 %v392
    %v982 = vunpack.c.h.b16 %v392
    %v983 = vunpack.c.l.b16 %v393
    %v984 = vunpack.c.l.b16 %v394
    %v985 = vunpack.c.h.b16 %v394
    %v986 = vunpack.c.l.b16 %v395
    %v987 = vunpack.c.l.b16 %v396
    %v988 = vunpack.c.h.b16 %v396
    %v989 = vunpack.c.l.b16 %v397
    %v990 = vunpack.c.l.b16 %v398
    %v991 = vunpack.c.h.b16 %v398
    %v992 = vunpack.c.l.b16 %v399
    %v993 = vunpack.c.l.b16 %v400
    %v994 = vunpack.c.h.b16 %v400
    %v995 = vunpack.c.l.b16 %v401
    %v996 = vunpack.c.l.b16 %v402
    %v997 = vunpack.c.h.b16 %v402
    %v998 = vunpack.c.l.b16 %v403
    %v999 = vunpack.c.l.b16 %v404
    %v1000 = vunpack.c.h.b16 %v404
    %v1001 = vunpack.c.l.b16 %v405
    %v1002 = vunpack.c.l.b16 %v406
    %v1003 = vunpack.c.h.b16 %v406
    %v1004 = vunpack.c.l.b16 %v407
    %v1005 = vunpack.c.l.b16 %v408
    %v1006 = vunpack.c.h.b16 %v408
    %v1007 = vunpack.c.l.b16 %v409
    %v1008 = vunpack.c.l.b16 %v410
    %v1009 = vunpack.c.h.b16 %v410
    %v1010 = vunpack.c.l.b16 %v411
    %v1011 = vunpack.c.l.b16 %v412
    %v1012 = vunpack.c.h.b16 %v412
    %v1013 = vunpack.c.l.b16 %v413
    %v1014 = vunpack.c.l.b16 %v414
    %v1015 = vunpack.c.h.b16 %v414
    %v1016 = vunpack.c.l.b16 %v415
    %v1017 = vunpack.c.l.b16 %v416
    %v1018 = vunpack.c.h.b16 %v416
    %v1019 = vunpack.c.l.b16 %v417
    %v1020 = vunpack.c.l.b16 %v418
    %v1021 = vunpack.c.h.b16 %v418
    %v1022 = vunpack.c.l.b16 %v419
    %v1023 = vunpack.c.l.b16 %v420
    %v1024 = vunpack.c.h.b16 %v420
    %v1025 = vunpack.c.l.b16 %v421
    %v1026 = vunpack.c.l.b16 %v422
    %v1027 = vunpack.c.h.b16 %v422
    %v1028 = vunpack.c.l.b16 %v423
    %v1029 = vunpack.c.l.b16 %v424
    %v1030 = vunpack.c.h.b16 %v424
    %v1031 = vunpack.c.l.b16 %v425
    %v1032 = vunpack.c.l.b16 %v426
    %v1033 = vunpack.c.h.b16 %v426
    %v1034 = vunpack.c.l.b16 %v427
    %v1035 = vunpack.c.l.b16 %v428
    %v1036 = vunpack.c.h.b16 %v428
    %v1037 = vunpack.c.l.b16 %v429
    %v1038 = vunpack.c.l.b16 %v430
    %v1039 = vunpack.c.h.b16 %v430
    %v1040 = vunpack.c.l.b16 %v431
    %v1041 = vunpack.c.l.b16 %v432
    %v1042 = vunpack.c.h.b16 %v432
    %v1043 = vunpack.c.l.b16 %v433
    %v1044 = vunpack.c.l.b16 %v434
    %v1045 = vunpack.c.h.b16 %v434
    %v1046 = vunpack.c.l.b16 %v435
    %v1047 = vunpack.c.l.b16 %v436
    %v1048 = vunpack.c.h.b16 %v436
    %v1049 = vunpack.c.l.b16 %v437
    %v1050 = vunpack.c.l.b16 %v438
    %v1051 = vunpack.c.h.b16 %v438
    %v1052 = vunpack.c.l.b16 %v439
    %v1053 = vunpack.c.l.b16 %v440
    %v1054 = vunpack.c.h.b16 %v440
    %v1055 = vunpack.c.l.b16 %v441
    %v1056 = vunpack.c.l.b16 %v442
    %v1057 = vunpack.c.h.b16 %v442
    %v1058 = vunpack.c.l.b16 %v443
    %v1059 = vunpack.c.l.b16 %v444
    %v1060 = vunpack.c.h.b16 %v444
    %v1061 = vunpack.c.l.b16 %v445
    %v1062 = vunpack.c.l.b16 %v446
    %v1063 = vunpack.c.h.b16 %v446
    %v1064 = vunpack.c.l.b16 %v447
    %v1065 = vunpack.c.l.b16 %v448
    %v1066 = vunpack.c.h.b16 %v448
    %v1067 = vunpack.c.l.b16 %v449
    %v1068 = vunpack.c.l.b16 %v450
    %v1069 = vunpack.c.h.b16 %v450
    %v1070 = vunpack.c.l.b16 %v451
    %v1071 = vunpack.c.l.b16 %v452
    %v1072 = vunpack.c.h.b16 %v452
    %v1073 = vunpack.c.l.b16 %v453
    %v1074 = vunpack.c.l.b16 %v454
    %v1075 = vunpack.c.h.b16 %v454
    %v1076 = vunpack.c.l.b16 %v455
    %v1077 = vunpack.c.l.b16 %v456
    %v1078 = vunpack.c.h.b16 %v456
    %v1079 = vunpack.c.l.b16 %v457
    %v1080 = vunpack.c.l.b16 %v458
    %v1081 = vunpack.c.h.b16 %v458
    %v1082 = vunpack.c.l.b16 %v459
    %v1083 = vunpack.c.l.b16 %v460
    %v1084 = vunpack.c.h.b16 %v460
    %v1085 = vunpack.c.l.b16 %v461
    %v1086 = vunpack.c.l.b16 %v462
    %v1087 = vunpack.c.h.b16 %v462
    %v1088 = vunpack.c.l.b16 %v463
    %v1089 = vunpack.c.l.b16 %v464
    %v1090 = vunpack.c.h.b16 %v464
    %v1091 = vunpack.c.l.b16 %v465
    %v1092 = vunpack.c.l.b16 %v466
    %v1093 = vunpack.c.h.b16 %v466
    %v1094 = vunpack.c.l.b16 %v467
    %v1095 = vunpack.c.l.b16 %v468
    %v1096 = vunpack.c.h.b16 %v468
    %v1097 = vunpack.c.l.b16 %v469
    %v1098 = vunpack.c.l.b16 %v470
    %v1099 = vunpack.c.h.b16 %v470
    %v1100 = vunpack.c.l.b16 %v471
    %v1101 = vunpack.c.l.b16 %v472
    %v1102 = vunpack.c.h.b16 %v472
    %v1103 = vunpack.c.l.b16 %v473
    %v1104 = vunpack.c.l.b16 %v474
    %v1105 = vunpack.c.h.b16 %v474
    %v1106 = vunpack.c.l.b16 %v475
    %v1107 = vunpack.c.l.b16 %v476
    %v1108 = vunpack.c.h.b16 %v476
    %v1109 = vunpack.c.l.b16 %v477
    %v1110 = vunpack.c.l.b16 %v478
    %v1111 = vunpack.c.h.b16 %v478
    %v1112 = vunpack.c.l.b16 %v479
    %v1113 = vunpack.c.l.b16 %v480
    %v1114 = vunpack.c.h.b16 %v480
    %v1115 = vunpack.c.l.b16 %v481
    %v1116 = vunpack.c.l.b16 %v482
    %v1117 = vunpack.c.h.b16 %v482
    %v1118 = vunpack.c.l.b16 %v483
    %v1119 = vunpack.c.l.b16 %v484
    %v1120 = vunpack.c.h.b16 %v484
    %v1121 = vunpack.c.l.b16 %v485
    %v1122 = vunpack.c.l.b16 %v486
    %v1123 = vunpack.c.h.b16 %v486
    %v1124 = vunpack.c.l.b16 %v487
    %v1125 = vunpack.c.l.b16 %v488
    %v1126 = vunpack.c.h.b16 %v488
    %v1127 = vunpack.c.l.b16 %v489
    %v1128 = vunpack.c.l.b16 %v490
    %v1129 = vunpack.c.h.b16 %v490
    %v1130 = vunpack.c.l.b16 %v491
    %v1131 = vunpack.c.l.b16 %v492
    %v1132 = vunpack.c.h.b16 %v492
    %v1133 = vunpack.c.l.b16 %v493
    %v1134 = vunpack.c.l.b16 %v494
    %v1135 = vunpack.c.h.b16 %v494
    %v1136 = vunpack.c.l.b16 %v495
    %v1137 = vunpack.c.l.b16 %v496
    %v1138 = vunpack.c.h.b16 %v496
    %v1139 = vunpack.c.l.b16 %v497
    %v1140 = vunpack.c.l.b16 %v498
    %v1141 = vunpack.c.h.b16 %v498
    %v1142 = vunpack.c.l.b16 %v499
    %v1143 = vunpack.c.l.b16 %v500
    %v1144 = vunpack.c.h.b16 %v500
    %v1145 = vunpack.c.l.b16 %v501
    %v1146 = vunpack.c.l.b16 %v502
    %v1147 = vunpack.c.h.b16 %v502
    %v1148 = vunpack.c.l.b16 %v503
    %v1149 = vunpack.c.l.b16 %v504
    %v1150 = vunpack.c.h.b16 %v504
    %v1151 = vunpack.c.l.b16 %v505
    %v1152 = vunpack.c.l.b16 %v506
    %v1153 = vunpack.c.h.b16 %v506
    %v1154 = vunpack.c.l.b16 %v507
    %v1155 = vunpack.c.l.b16 %v508
    %v1156 = vunpack.c.h.b16 %v508
    %v1157 = vunpack.c.l.b16 %v509
    %v1158 = vunpack.c.l.b16 %v510
    %v1159 = vunpack.c.h.b16 %v510
    %v1160 = vunpack.c.l.b16 %v511
    %v1161 = vunpack.c.l.b16 %v512
    %v1162 = vunpack.c.h.b16 %v512
    %v1163 = vunpack.c.l.b16 %v513
    %v1164 = vpack.c.b16 %v777, %v774
    %v1165 = vpack.c.b16 %v778, %v775
    %v1166 = vpack.c.b16 %v779, %v776
    %v1167 = vpack.c.b16 %v783, %v780
    %v1168 = vpack.c.b16 %v784, %v781
    %v1169 = vpack.c.b16 %v785, %v782
    %v1170 = vpack.c.b16 %v789, %v786
    %v1171 = vpack.c.b16 %v790, %v787
    %v1172 = vpack.c.b16 %v791, %v788
    %v1173 = vpack.c.b16 %v795, %v792
    %v1174 = vpack.c.b16 %v796, %v793
    %v1175 = vpack.c.b16 %v797, %v794
    %v1176 = vpack.c.b16 %v801, %v798
    %v1177 = vpack.c.b16 %v802, %v799
    %v1178 = vpack.c.b16 %v803, %v800
    %v1179 = vpack.c.b16 %v807, %v804
    %v1180 = vpack.c.b16 %v808, %v805
    %v1181 = vpack.c.b16 %v809, %v806
    %v1182 = vpack.c.b16 %v813, %v810
    %v1183 = vpack.c.b16 %v814, %v811
    %v1184 = vpack.c.b16 %v815, %v812
    %v1185 = vpack.c.b16 %v819, %v816
    %v1186 = vpack.c.b16 %v820, %v817
    %v1187 = vpack.c.b16 %v821, %v818
    %v1188 = vpack.c.b16 %v825, %v822
    %v1189 = vpack.c.b16 %v826, %v823
    %v1190 = vpack.c.b16 %v827, %v824
    %v1191 = vpack.c.b16 %v831, %v828
    %v1192 = vpack.c.b16 %v832, %v829
    %v1193 = vpack.c.b16 %v833, %v830
    %v1194 = vpack.c.b16 %v837, %v834
    %v1195 = vpack.c.b16 %v838, %v835
    %v1196 = vpack.c.b16 %v839, %v836
    %v1197 = vpack.c.b16 %v843, %v840
    %v1198 = vpack.c.b16 %v844, %v841
    %v1199 = vpack.c.b16 %v845, %v842
    %v1200 = vpack.c.b16 %v849, %v846
    %v1201 = vpack.c.b16 %v850, %v847
    %v1202 = vpack.c.b16 %v851, %v848
    %v1203 = vpack.c.b16 %v855, %v852
    %v1204 = vpack.c.b16 %v856, %v853
    %v1205 = vpack.c.b16 %v857, %v854
    %v1206 = vpack.c.b16 %v861, %v858
    %v1207 = vpack.c.b16 %v862, %v859
    %v1208 = vpack.c.b16 %v863, %v860
    %v1209 = vpack.c.b16 %v867, %v864
    %v1210 = vpack.c.b16 %v868, %v865
    %v1211 = vpack.c.b16 %v869, %v866
    %v1212 = vpack.c.b16 %v873, %v870
    %v1213 = vpack.c.b16 %v874, %v871
    %v1214 = vpack.c.b16 %v875, %v872
    %v1215 = vpack.c.b16 %v879, %v876
    %v1216 = vpack.c.b16 %v880, %v877
    %v1217 = vpack.c.b16 %v881, %v878
    %v1218 = vpack.c.b16 %v885, %v882
    %v1219 = vpack.c.b16 %v886, %v883
    %v1220 = vpack.c.b16 %v887, %v884
    %v1221 = vpack.c.b16 %v891, %v888
    %v1222 = vpack.c.b16 %v892, %v889
    %v1223 = vpack.c.b16 %v893, %v890
    %v1224 = vpack.c.b16 %v897, %v894
    %v1225 = vpack.c.b16 %v898, %v895
    %v1226 = vpack.c.b16 %v899, %v896
    %v1227 = vpack.c.b16 %v903, %v900
    %v1228 = vpack.c.b16 %v904, %v901
    %v1229 = vpack.c.b16 %v905, %v902
    %v1230 = vpack.c.b16 %v909, %v906
    %v1231 = vpack.c.b16 %v910, %v907
    %v1232 = vpack.c.b16 %v911, %v908
    %v1233 = vpack.c.b16 %v915, %v912
    %v1234 = vpack.c.b16 %v916, %v913
    %v1235 = vpack.c.b16 %v917, %v914
    %v1236 = vpack.c.b16 %v921, %v918
    %v1237 = vpack.c.b16 %v922, %v919
    %v1238 = vpack.c.b16 %v923, %v920
    %v1239 = vpack.c.b16 %v927, %v924
    %v1240 = vpack.c.b16 %v928, %v925
    %v1241 = vpack.c.b16 %v929, %v926
    %v1242 = vpack.c.b16 %v933, %v930
    %v1243 = vpack.c.b16 %v934, %v931
    %v1244 = vpack.c.b16 %v935, %v932
    %v1245 = vpack.c.b16 %v939, %v936
    %v1246 = vpack.c.b16 %v940, %v937
    %v1247 = vpack.c.b16 %v941, %v938
    %v1248 = vpack.c.b16 %v945, %v942
    %v1249 = vpack.c.b16 %v946, %v943
    %v1250 = vpack.c.b16 %v947, %v944
    %v1251 = vpack.c.b16 %v951, %v948
    %v1252 = vpack.c.b16 %v952, %v949
    %v1253 = vpack.c.b16 %v953, %v950
    %v1254 = vpack.c.b16 %v957, %v954
    %v1255 = vpack.c.b16 %v958, %v955
    %v1256 = vpack.c.b16 %v959, %v956
    %v1257 = vpack.c.b16 %v963, %v960
    %v1258 = vpack.c.b16 %v964, %v961
    %v1259 = vpack.c.b16 %v965, %v962
    %v1260 = vpack.c.b16 %v969, %v966
    %v1261 = vpack.c.b16 %v970, %v967
    %v1262 = vpack.c.b16 %v971, %v968
    %v1263 = vpack.c.b16 %v975, %v972
    %v1264 = vpack.c.b16 %v976, %v973
    %v1265 = vpack.c.b16 %v977, %v974
    %v1266 = vpack.c.b16 %v981, %v978
    %v1267 = vpack.c.b16 %v982, %v979
    %v1268 = vpack.c.b16 %v983, %v980
    %v1269 = vpack.c.b16 %v987, %v984
    %v1270 = vpack.c.b16 %v988, %v985
    %v1271 = vpack.c.b16 %v989, %v986
    %v1272 = vpack.c.b16 %v993, %v990
    %v1273 = vpack.c.b16 %v994, %v991
    %v1274 = vpack.c.b16 %v995, %v992
    %v1275 = vpack.c.b16 %v999, %v996
    %v1276 = vpack.c.b16 %v1000, %v997
    %v1277 = vpack.c.b16 %v1001, %v998
    %v1278 = vpack.c.b16 %v1005, %v1002
    %v1279 = vpack.c.b16 %v1006, %v1003
    %v1280 = vpack.c.b16 %v1007, %v1004
    %v1281 = vpack.c.b16 %v1011, %v1008
    %v1282 = vpack.c.b16 %v1012, %v1009
    %v1283 = vpack.c.b16 %v1013, %v1010
    %v1284 = vpack.c.b16 %v1017, %v1014
    %v1285 = vpack.c.b16 %v1018, %v1015
    %v1286 = vpack.c.b16 %v1019, %v1016
    %v1287 = vpack.c.b16 %v1023, %v1020
    %v1288 = vpack.c.b16 %v1024, %v1021
    %v1289 = vpack.c.b16 %v1025, %v1022
    %v1290 = vpack.c.b16 %v1029, %v1026
    %v1291 = vpack.c.b16 %v1030, %v1027
    %v1292 = vpack.c.b16 %v1031, %v1028
    %v1293 = vpack.c.b16 %v1035, %v1032
    %v1294 = vpack.c.b16 %v1036, %v1033
    %v1295 = vpack.c.b16 %v1037, %v1034
    %v1296 = vpack.c.b16 %v1041, %v1038
    %v1297 = vpack.c.b16 %v1042, %v1039
    %v1298 = vpack.c.b16 %v1043, %v1040
    %v1299 = vpack.c.b16 %v1047, %v1044
    %v1300 = vpack.c.b16 %v1048, %v1045
    %v1301 = vpack.c.b16 %v1049, %v1046
    %v1302 = vpack.c.b16 %v1053, %v1050
    %v1303 = vpack.c.b16 %v1054, %v1051
    %v1304 = vpack.c.b16 %v1055, %v1052
    %v1305 = vpack.c.b16 %v1059, %v1056
    %v1306 = vpack.c.b16 %v1060, %v1057
    %v1307 = vpack.c.b16 %v1061, %v1058
    %v1308 = vpack.c.b16 %v1065, %v1062
    %v1309 = vpack.c.b16 %v1066, %v1063
    %v1310 = vpack.c.b16 %v1067, %v1064
    %v1311 = vpack.c.b16 %v1071, %v1068
    %v1312 = vpack.c.b16 %v1072, %v1069
    %v1313 = vpack.c.b16 %v1073, %v1070
    %v1314 = vpack.c.b16 %v1077, %v1074
    %v1315 = vpack.c.b16 %v1078, %v1075
    %v1316 = vpack.c.b16 %v1079, %v1076
    %v1317 = vpack.c.b16 %v1083, %v1080
    %v1318 = vpack.c.b16 %v1084, %v1081
    %v1319 = vpack.c.b16 %v1085, %v1082
    %v1320 = vpack.c.b16 %v1089, %v1086
    %v1321 = vpack.c.b16 %v1090, %v1087
    %v1322 = vpack.c.b16 %v1091, %v1088
    %v1323 = vpack.c.b16 %v1095, %v1092
    %v1324 = vpack.c.b16 %v1096, %v1093
    %v1325 = vpack.c.b16 %v1097, %v1094
    %v1326 = vpack.c.b16 %v1101, %v1098
    %v1327 = vpack.c.b16 %v1102, %v1099
    %v1328 = vpack.c.b16 %v1103, %v1100
    %v1329 = vpack.c.b16 %v1107, %v1104
    %v1330 = vpack.c.b16 %v1108, %v1105
    %v1331 = vpack.c.b16 %v1109, %v1106
    %v1332 = vpack.c.b16 %v1113, %v1110
    %v1333 = vpack.c.b16 %v1114, %v1111
    %v1334 = vpack.c.b16 %v1115, %v1112
    %v1335 = vpack.c.b16 %v1119, %v1116
    %v1336 = vpack.c.b16 %v1120, %v1117
    %v1337 = vpack.c.b16 %v1121, %v1118
    %v1338 = vpack.c.b16 %v1125, %v1122
    %v1339 = vpack.c.b16 %v1126, %v1123
    %v1340 = vpack.c.b16 %v1127, %v1124
    %v1341 = vpack.c.b16 %v1131, %v1128
    %v1342 = vpack.c.b16 %v1132, %v1129
    %v1343 = vpack.c.b16 %v1133, %v1130
    %v1344 = vpack.c.b16 %v1137, %v1134
    %v1345 = vpack.c.b16 %v1138, %v1135
    %v1346 = vpack.c.b16 %v1139, %v1136
    %v1347 = vpack.c.b16 %v1143, %v1140
    %v1348 = vpack.c.b16 %v1144, %v1141
    %v1349 = vpack.c.b16 %v1145, %v1142
    %v1350 = vpack.c.b16 %v1149, %v1146
    %v1351 = vpack.c.b16 %v1150, %v1147
    %v1352 = vpack.c.b16 %v1151, %v1148
    %v1353 = vpack.c.b16 %v1155, %v1152
    %v1354 = vpack.c.b16 %v1156, %v1153
    %v1355 = vpack.c.b16 %v1157, %v1154
    %v1356 = vpack.c.b16 %v1161, %v1158
    %v1357 = vpack.c.b16 %v1162, %v1159
    %v1358 = vpack.c.b16 %v1163, %v1160
    %vm1554 = vcmask 130048
    %v1556 = vsel %vm1554, %v190, 0
    %v1559 = vsel %vm1554, %v199, 0
    %v1562 = vsel %vm1554, %v208, 0
    %v1565 = vsel %vm1554, %v217, 0
    %v1568 = vsel %vm1554, %v226, 0
    %v1571 = vsel %vm1554, %v235, 0
    %v1574 = vsel %vm1554, %v244, 0
    %v1577 = vsel %vm1554, %v253, 0
    %1579 = vmatprep.subr.bf16.mxu0 %v1165
    %1580 = vmatpush1.bf16.msra.mxu0 %v1164
    %1581 = vmatprep.subr.bf16.mxu0 %v1168
    %1582 = vmatpush1.bf16.msra.mxu0 %v1167
    %1583 = vmatprep.subr.bf16.mxu0 %v1171
    %1584 = vmatpush1.bf16.msra.mxu0 %v1170
    %1585 = vmatprep.subr.bf16.mxu0 %v1174
    %1586 = vmatpush1.bf16.msra.mxu0 %v1173
    %1587 = vmatprep.subr.bf16.mxu0 %v1177
    %1588 = vmatpush1.bf16.msra.mxu0 %v1176
    %1589 = vmatprep.subr.bf16.mxu0 %v1180
    %1590 = vmatpush1.bf16.msra.mxu0 %v1179
    %1591 = vmatprep.subr.bf16.mxu0 %v1183
    %1592 = vmatpush1.bf16.msra.mxu0 %v1182
    %1593 = vmatprep.subr.bf16.mxu0 %v1186
    %1594 = vmatpush1.bf16.msra.mxu0 %v1185
    %1595 = vmatprep.subr.bf16.mxu0 %v1189
    %1596 = vmatpush1.bf16.msra.mxu0 %v1188
    %1597 = vmatprep.subr.bf16.mxu0 %v1192
    %1598 = vmatpush1.bf16.msra.mxu0 %v1191
    %1599 = vmatprep.subr.bf16.mxu0 %v1195
    %1600 = vmatpush1.bf16.msra.mxu0 %v1194
    %1601 = vmatprep.subr.bf16.mxu0 %v1198
    %1602 = vmatpush1.bf16.msra.mxu0 %v1197
    %1603 = vmatprep.subr.bf16.mxu0 %v1201
    %1604 = vmatpush1.bf16.msra.mxu0 %v1200
    %1605 = vmatprep.subr.bf16.mxu0 %v1204
    %1606 = vmatpush1.bf16.msra.mxu0 %v1203
    %1607 = vmatprep.subr.bf16.mxu0 %v1207
    %1608 = vmatpush1.bf16.msra.mxu0 %v1206
    %1609 = vmatprep.subr.bf16.mxu0 %v1210
    %1610 = vmatpush1.bf16.msra.mxu0 %v1209
    %1611 = vmatprep.mubr.bf16.mxu0 %v183
    %1612 = vmatmul.mubr.bf16.gmra.mrb[0].mxu0 %v182
    %v1613 = vpop.f32.mrb[0].mxu0
    %v1614 = vadd.f32 0.0, %v1613
    %v1615 = vpop.f32.mrb[0].mxu0
    %v1616 = vadd.f32 0.0, %v1615
    %v1617 = vpop.f32.mrb[0].mxu0
    %v1618 = vadd.f32 0.0, %v1617
    %v1619 = vpop.f32.mrb[0].mxu0
    %v1620 = vadd.f32 0.0, %v1619
    %1621 = vmatprep.mubr.bf16.mxu0 %v192
    %1622 = vmatmul.mubr.bf16.gmra.mrb[0].mxu0 %v191
    %v1623 = vpop.f32.mrb[0].mxu0
    %v1624 = vadd.f32 0.0, %v1623
    %v1625 = vpop.f32.mrb[0].mxu0
    %v1626 = vadd.f32 0.0, %v1625
    %v1627 = vpop.f32.mrb[0].mxu0
    %v1628 = vadd.f32 0.0, %v1627
    %v1629 = vpop.f32.mrb[0].mxu0
    %v1630 = vadd.f32 0.0, %v1629
    %1631 = vmatprep.mubr.bf16.mxu0 %v201
    %1632 = vmatmul.mubr.bf16.gmra.mrb[0].mxu0 %v200
    %v1633 = vpop.f32.mrb[0].mxu0
    %v1634 = vadd.f32 0.0, %v1633
    %v1635 = vpop.f32.mrb[0].mxu0
    %v1636 = vadd.f32 0.0, %v1635
    %v1637 = vpop.f32.mrb[0].mxu0
    %v1638 = vadd.f32 0.0, %v1637
    %v1639 = vpop.f32.mrb[0].mxu0
    %v1640 = vadd.f32 0.0, %v1639
    %1641 = vmatprep.mubr.bf16.mxu0 %v210
    %1642 = vmatmul.mubr.bf16.gmra.mrb[0].mxu0 %v209
    %v1643 = vpop.f32.mrb[0].mxu0
    %v1644 = vadd.f32 0.0, %v1643
    %v1645 = vpop.f32.mrb[0].mxu0
    %v1646 = vadd.f32 0.0, %v1645
    %v1647 = vpop.f32.mrb[0].mxu0
    %v1648 = vadd.f32 0.0, %v1647
    %v1649 = vpop.f32.mrb[0].mxu0
    %v1650 = vadd.f32 0.0, %v1649
    %1651 = vmatprep.mubr.bf16.mxu0 %v219
    %1652 = vmatmul.mubr.bf16.gmra.mrb[0].mxu0 %v218
    %v1653 = vpop.f32.mrb[0].mxu0
    %v1654 = vadd.f32 0.0, %v1653
    %v1655 = vpop.f32.mrb[0].mxu0
    %v1656 = vadd.f32 0.0, %v1655
    %v1657 = vpop.f32.mrb[0].mxu0
    %v1658 = vadd.f32 0.0, %v1657
    %v1659 = vpop.f32.mrb[0].mxu0
    %v1660 = vadd.f32 0.0, %v1659
    %1661 = vmatprep.mubr.bf16.mxu0 %v228
    %1662 = vmatmul.mubr.bf16.gmra.mrb[0].mxu0 %v227
    %v1663 = vpop.f32.mrb[0].mxu0
    %v1664 = vadd.f32 0.0, %v1663
    %v1665 = vpop.f32.mrb[0].mxu0
    %v1666 = vadd.f32 0.0, %v1665
    %v1667 = vpop.f32.mrb[0].mxu0
    %v1668 = vadd.f32 0.0, %v1667
    %v1669 = vpop.f32.mrb[0].mxu0
    %v1670 = vadd.f32 0.0, %v1669
    %1671 = vmatprep.mubr.bf16.mxu0 %v237
    %1672 = vmatmul.mubr.bf16.gmra.mrb[0].mxu0 %v236
    %v1673 = vpop.f32.mrb[0].mxu0
    %v1674 = vadd.f32 0.0, %v1673
    %v1675 = vpop.f32.mrb[0].mxu0
    %v1676 = vadd.f32 0.0, %v1675
    %v1677 = vpop.f32.mrb[0].mxu0
    %v1678 = vadd.f32 0.0, %v1677
    %v1679 = vpop.f32.mrb[0].mxu0
    %v1680 = vadd.f32 0.0, %v1679
    %1681 = vmatprep.mubr.bf16.mxu0 %v246
    %1682 = vmatmul.mubr.bf16.gmra.mrb[0].mxu0 %v245
    %v1683 = vpop.f32.mrb[0].mxu0
    %v1684 = vadd.f32 0.0, %v1683
    %v1685 = vpop.f32.mrb[0].mxu0
    %v1686 = vadd.f32 0.0, %v1685
    %v1687 = vpop.f32.mrb[0].mxu0
    %v1688 = vadd.f32 0.0, %v1687
    %v1689 = vpop.f32.mrb[0].mxu0
    %v1690 = vadd.f32 0.0, %v1689
    %1691 = vdwg.mxu0
    %1692 = vmatprep.subr.bf16.mxu0 %v1213
    %1693 = vmatpush1.bf16.msra.mxu0 %v1212
    %1694 = vmatprep.subr.bf16.mxu0 %v1216
    %1695 = vmatpush1.bf16.msra.mxu0 %v1215
    %1696 = vmatprep.subr.bf16.mxu0 %v1219
    %1697 = vmatpush1.bf16.msra.mxu0 %v1218
    %1698 = vmatprep.subr.bf16.mxu0 %v1222
    %1699 = vmatpush1.bf16.msra.mxu0 %v1221
    %1700 = vmatprep.subr.bf16.mxu0 %v1225
    %1701 = vmatpush1.bf16.msra.mxu0 %v1224
    %1702 = vmatprep.subr.bf16.mxu0 %v1228
    %1703 = vmatpush1.bf16.msra.mxu0 %v1227
    %1704 = vmatprep.subr.bf16.mxu0 %v1231
    %1705 = vmatpush1.bf16.msra.mxu0 %v1230
    %1706 = vmatprep.subr.bf16.mxu0 %v1234
    %1707 = vmatpush1.bf16.msra.mxu0 %v1233
    %1708 = vmatprep.subr.bf16.mxu0 %v1237
    %1709 = vmatpush1.bf16.msra.mxu0 %v1236
    %1710 = vmatprep.subr.bf16.mxu0 %v1240
    %1711 = vmatpush1.bf16.msra.mxu0 %v1239
    %1712 = vmatprep.subr.bf16.mxu0 %v1243
    %1713 = vmatpush1.bf16.msra.mxu0 %v1242
    %1714 = vmatprep.subr.bf16.mxu0 %v1246
    %1715 = vmatpush1.bf16.msra.mxu0 %v1245
    %1716 = vmatprep.subr.bf16.mxu0 %v1249
    %1717 = vmatpush1.bf16.msra.mxu0 %v1248
    %1718 = vmatprep.subr.bf16.mxu0 %v1252
    %1719 = vmatpush1.bf16.msra.mxu0 %v1251
    %1720 = vmatprep.subr.bf16.mxu0 %v1255
    %1721 = vmatpush1.bf16.msra.mxu0 %v1254
    %1722 = vmatprep.subr.bf16.mxu0 %v1258
    %1723 = vmatpush1.bf16.msra.mxu0 %v1257
    %1724 = vmatprep.mubr.bf16.mxu0 %v185
    %1725 = vmatmul.mubr.bf16.gmra.mrb[0].mxu0 %v184
    %v1726 = vpop.f32.mrb[0].mxu0
    %v1727 = vadd.f32 %v1614, %v1726
    %v1728 = vpop.f32.mrb[0].mxu0
    %v1729 = vadd.f32 %v1616, %v1728
    %v1730 = vpop.f32.mrb[0].mxu0
    %v1731 = vadd.f32 %v1618, %v1730
    %v1732 = vpop.f32.mrb[0].mxu0
    %v1733 = vadd.f32 %v1620, %v1732
    %1734 = vmatprep.mubr.bf16.mxu0 %v194
    %1735 = vmatmul.mubr.bf16.gmra.mrb[0].mxu0 %v193
    %v1736 = vpop.f32.mrb[0].mxu0
    %v1737 = vadd.f32 %v1624, %v1736
    %v1738 = vpop.f32.mrb[0].mxu0
    %v1739 = vadd.f32 %v1626, %v1738
    %v1740 = vpop.f32.mrb[0].mxu0
    %v1741 = vadd.f32 %v1628, %v1740
    %v1742 = vpop.f32.mrb[0].mxu0
    %v1743 = vadd.f32 %v1630, %v1742
    %1744 = vmatprep.mubr.bf16.mxu0 %v203
    %1745 = vmatmul.mubr.bf16.gmra.mrb[0].mxu0 %v202
    %v1746 = vpop.f32.mrb[0].mxu0
    %v1747 = vadd.f32 %v1634, %v1746
    %v1748 = vpop.f32.mrb[0].mxu0
    %v1749 = vadd.f32 %v1636, %v1748
    %v1750 = vpop.f32.mrb[0].mxu0
    %v1751 = vadd.f32 %v1638, %v1750
    %v1752 = vpop.f32.mrb[0].mxu0
    %v1753 = vadd.f32 %v1640, %v1752
    %1754 = vmatprep.mubr.bf16.mxu0 %v212
    %1755 = vmatmul.mubr.bf16.gmra.mrb[0].mxu0 %v211
    %v1756 = vpop.f32.mrb[0].mxu0
    %v1757 = vadd.f32 %v1644, %v1756
    %v1758 = vpop.f32.mrb[0].mxu0
    %v1759 = vadd.f32 %v1646, %v1758
    %v1760 = vpop.f32.mrb[0].mxu0
    %v1761 = vadd.f32 %v1648, %v1760
    %v1762 = vpop.f32.mrb[0].mxu0
    %v1763 = vadd.f32 %v1650, %v1762
    %1764 = vmatprep.mubr.bf16.mxu0 %v221
    %1765 = vmatmul.mubr.bf16.gmra.mrb[0].mxu0 %v220
    %v1766 = vpop.f32.mrb[0].mxu0
    %v1767 = vadd.f32 %v1654, %v1766
    %v1768 = vpop.f32.mrb[0].mxu0
    %v1769 = vadd.f32 %v1656, %v1768
    %v1770 = vpop.f32.mrb[0].mxu0
    %v1771 = vadd.f32 %v1658, %v1770
    %v1772 = vpop.f32.mrb[0].mxu0
    %v1773 = vadd.f32 %v1660, %v1772
    %1774 = vmatprep.mubr.bf16.mxu0 %v230
    %1775 = vmatmul.mubr.bf16.gmra.mrb[0].mxu0 %v229
    %v1776 = vpop.f32.mrb[0].mxu0
    %v1777 = vadd.f32 %v1664, %v1776
    %v1778 = vpop.f32.mrb[0].mxu0
    %v1779 = vadd.f32 %v1666, %v1778
    %v1780 = vpop.f32.mrb[0].mxu0
    %v1781 = vadd.f32 %v1668, %v1780
    %v1782 = vpop.f32.mrb[0].mxu0
    %v1783 = vadd.f32 %v1670, %v1782
    %1784 = vmatprep.mubr.bf16.mxu0 %v239
    %1785 = vmatmul.mubr.bf16.gmra.mrb[0].mxu0 %v238
    %v1786 = vpop.f32.mrb[0].mxu0
    %v1787 = vadd.f32 %v1674, %v1786
    %v1788 = vpop.f32.mrb[0].mxu0
    %v1789 = vadd.f32 %v1676, %v1788
    %v1790 = vpop.f32.mrb[0].mxu0
    %v1791 = vadd.f32 %v1678, %v1790
    %v1792 = vpop.f32.mrb[0].mxu0
    %v1793 = vadd.f32 %v1680, %v1792
    %1794 = vmatprep.mubr.bf16.mxu0 %v248
    %1795 = vmatmul.mubr.bf16.gmra.mrb[0].mxu0 %v247
    %v1796 = vpop.f32.mrb[0].mxu0
    %v1797 = vadd.f32 %v1684, %v1796
    %v1798 = vpop.f32.mrb[0].mxu0
    %v1799 = vadd.f32 %v1686, %v1798
    %v1800 = vpop.f32.mrb[0].mxu0
    %v1801 = vadd.f32 %v1688, %v1800
    %v1802 = vpop.f32.mrb[0].mxu0
    %v1803 = vadd.f32 %v1690, %v1802
    %1804 = vdwg.mxu0
    %1805 = vmatprep.subr.bf16.mxu0 %v1261
    %1806 = vmatpush1.bf16.msra.mxu0 %v1260
    %1807 = vmatprep.subr.bf16.mxu0 %v1264
    %1808 = vmatpush1.bf16.msra.mxu0 %v1263
    %1809 = vmatprep.subr.bf16.mxu0 %v1267
    %1810 = vmatpush1.bf16.msra.mxu0 %v1266
    %1811 = vmatprep.subr.bf16.mxu0 %v1270
    %1812 = vmatpush1.bf16.msra.mxu0 %v1269
    %1813 = vmatprep.subr.bf16.mxu0 %v1273
    %1814 = vmatpush1.bf16.msra.mxu0 %v1272
    %1815 = vmatprep.subr.bf16.mxu0 %v1276
    %1816 = vmatpush1.bf16.msra.mxu0 %v1275
    %1817 = vmatprep.subr.bf16.mxu0 %v1279
    %1818 = vmatpush1.bf16.msra.mxu0 %v1278
    %1819 = vmatprep.subr.bf16.mxu0 %v1282
    %1820 = vmatpush1.bf16.msra.mxu0 %v1281
    %1821 = vmatprep.subr.bf16.mxu0 %v1285
    %1822 = vmatpush1.bf16.msra.mxu0 %v1284
    %1823 = vmatprep.subr.bf16.mxu0 %v1288
    %1824 = vmatpush1.bf16.msra.mxu0 %v1287
    %1825 = vmatprep.subr.bf16.mxu0 %v1291
    %1826 = vmatpush1.bf16.msra.mxu0 %v1290
    %1827 = vmatprep.subr.bf16.mxu0 %v1294
    %1828 = vmatpush1.bf16.msra.mxu0 %v1293
    %1829 = vmatprep.subr.bf16.mxu0 %v1297
    %1830 = vmatpush1.bf16.msra.mxu0 %v1296
    %1831 = vmatprep.subr.bf16.mxu0 %v1300
    %1832 = vmatpush1.bf16.msra.mxu0 %v1299
    %1833 = vmatprep.subr.bf16.mxu0 %v1303
    %1834 = vmatpush1.bf16.msra.mxu0 %v1302
    %1835 = vmatprep.subr.bf16.mxu0 %v1306
    %1836 = vmatpush1.bf16.msra.mxu0 %v1305
    %1837 = vmatprep.mubr.bf16.mxu0 %v187
    %1838 = vmatmul.mubr.bf16.gmra.mrb[0].mxu0 %v186
    %v1839 = vpop.f32.mrb[0].mxu0
    %v1840 = vadd.f32 %v1727, %v1839
    %v1841 = vpop.f32.mrb[0].mxu0
    %v1842 = vadd.f32 %v1729, %v1841
    %v1843 = vpop.f32.mrb[0].mxu0
    %v1844 = vadd.f32 %v1731, %v1843
    %v1845 = vpop.f32.mrb[0].mxu0
    %v1846 = vadd.f32 %v1733, %v1845
    %1847 = vmatprep.mubr.bf16.mxu0 %v196
    %1848 = vmatmul.mubr.bf16.gmra.mrb[0].mxu0 %v195
    %v1849 = vpop.f32.mrb[0].mxu0
    %v1850 = vadd.f32 %v1737, %v1849
    %v1851 = vpop.f32.mrb[0].mxu0
    %v1852 = vadd.f32 %v1739, %v1851
    %v1853 = vpop.f32.mrb[0].mxu0
    %v1854 = vadd.f32 %v1741, %v1853
    %v1855 = vpop.f32.mrb[0].mxu0
    %v1856 = vadd.f32 %v1743, %v1855
    %1857 = vmatprep.mubr.bf16.mxu0 %v205
    %1858 = vmatmul.mubr.bf16.gmra.mrb[0].mxu0 %v204
    %v1859 = vpop.f32.mrb[0].mxu0
    %v1860 = vadd.f32 %v1747, %v1859
    %v1861 = vpop.f32.mrb[0].mxu0
    %v1862 = vadd.f32 %v1749, %v1861
    %v1863 = vpop.f32.mrb[0].mxu0
    %v1864 = vadd.f32 %v1751, %v1863
    %v1865 = vpop.f32.mrb[0].mxu0
    %v1866 = vadd.f32 %v1753, %v1865
    %1867 = vmatprep.mubr.bf16.mxu0 %v214
    %1868 = vmatmul.mubr.bf16.gmra.mrb[0].mxu0 %v213
    %v1869 = vpop.f32.mrb[0].mxu0
    %v1870 = vadd.f32 %v1757, %v1869
    %v1871 = vpop.f32.mrb[0].mxu0
    %v1872 = vadd.f32 %v1759, %v1871
    %v1873 = vpop.f32.mrb[0].mxu0
    %v1874 = vadd.f32 %v1761, %v1873
    %v1875 = vpop.f32.mrb[0].mxu0
    %v1876 = vadd.f32 %v1763, %v1875
    %1877 = vmatprep.mubr.bf16.mxu0 %v223
    %1878 = vmatmul.mubr.bf16.gmra.mrb[0].mxu0 %v222
    %v1879 = vpop.f32.mrb[0].mxu0
    %v1880 = vadd.f32 %v1767, %v1879
    %v1881 = vpop.f32.mrb[0].mxu0
    %v1882 = vadd.f32 %v1769, %v1881
    %v1883 = vpop.f32.mrb[0].mxu0
    %v1884 = vadd.f32 %v1771, %v1883
    %v1885 = vpop.f32.mrb[0].mxu0
    %v1886 = vadd.f32 %v1773, %v1885
    %1887 = vmatprep.mubr.bf16.mxu0 %v232
    %1888 = vmatmul.mubr.bf16.gmra.mrb[0].mxu0 %v231
    %v1889 = vpop.f32.mrb[0].mxu0
    %v1890 = vadd.f32 %v1777, %v1889
    %v1891 = vpop.f32.mrb[0].mxu0
    %v1892 = vadd.f32 %v1779, %v1891
    %v1893 = vpop.f32.mrb[0].mxu0
    %v1894 = vadd.f32 %v1781, %v1893
    %v1895 = vpop.f32.mrb[0].mxu0
    %v1896 = vadd.f32 %v1783, %v1895
    %1897 = vmatprep.mubr.bf16.mxu0 %v241
    %1898 = vmatmul.mubr.bf16.gmra.mrb[0].mxu0 %v240
    %v1899 = vpop.f32.mrb[0].mxu0
    %v1900 = vadd.f32 %v1787, %v1899
    %v1901 = vpop.f32.mrb[0].mxu0
    %v1902 = vadd.f32 %v1789, %v1901
    %v1903 = vpop.f32.mrb[0].mxu0
    %v1904 = vadd.f32 %v1791, %v1903
    %v1905 = vpop.f32.mrb[0].mxu0
    %v1906 = vadd.f32 %v1793, %v1905
    %1907 = vmatprep.mubr.bf16.mxu0 %v250
    %1908 = vmatmul.mubr.bf16.gmra.mrb[0].mxu0 %v249
    %v1909 = vpop.f32.mrb[0].mxu0
    %v1910 = vadd.f32 %v1797, %v1909
    %v1911 = vpop.f32.mrb[0].mxu0
    %v1912 = vadd.f32 %v1799, %v1911
    %v1913 = vpop.f32.mrb[0].mxu0
    %v1914 = vadd.f32 %v1801, %v1913
    %v1915 = vpop.f32.mrb[0].mxu0
    %v1916 = vadd.f32 %v1803, %v1915
    %1917 = vdwg.mxu0
    %1918 = vmatprep.subr.bf16.mxu0 %v1309
    %1919 = vmatpush1.bf16.msra.mxu0 %v1308
    %1920 = vmatprep.subr.bf16.mxu0 %v1312
    %1921 = vmatpush1.bf16.msra.mxu0 %v1311
    %1922 = vmatprep.subr.bf16.mxu0 %v1315
    %1923 = vmatpush1.bf16.msra.mxu0 %v1314
    %1924 = vmatprep.subr.bf16.mxu0 %v1318
    %1925 = vmatpush1.bf16.msra.mxu0 %v1317
    %1926 = vmatprep.subr.bf16.mxu0 %v1321
    %1927 = vmatpush1.bf16.msra.mxu0 %v1320
    %1928 = vmatprep.subr.bf16.mxu0 %v1324
    %1929 = vmatpush1.bf16.msra.mxu0 %v1323
    %1930 = vmatprep.subr.bf16.mxu0 %v1327
    %1931 = vmatpush1.bf16.msra.mxu0 %v1326
    %1932 = vmatprep.subr.bf16.mxu0 %v1330
    %1933 = vmatpush1.bf16.msra.mxu0 %v1329
    %1934 = vmatprep.subr.bf16.mxu0 %v1333
    %1935 = vmatpush1.bf16.msra.mxu0 %v1332
    %1936 = vmatprep.subr.bf16.mxu0 %v1336
    %1937 = vmatpush1.bf16.msra.mxu0 %v1335
    %1938 = vmatprep.subr.bf16.mxu0 %v1339
    %1939 = vmatpush1.bf16.msra.mxu0 %v1338
    %1940 = vmatprep.subr.bf16.mxu0 %v1342
    %1941 = vmatpush1.bf16.msra.mxu0 %v1341
    %1942 = vmatprep.subr.bf16.mxu0 %v1345
    %1943 = vmatpush1.bf16.msra.mxu0 %v1344
    %1944 = vmatprep.subr.bf16.mxu0 %v1348
    %1945 = vmatpush1.bf16.msra.mxu0 %v1347
    %1946 = vmatprep.subr.bf16.mxu0 %v1351
    %1947 = vmatpush1.bf16.msra.mxu0 %v1350
    %1948 = vmatprep.subr.bf16.mxu0 %v1354
    %1949 = vmatpush1.bf16.msra.mxu0 %v1353
    %1950 = vmatprep.mubr.bf16.mxu0 %v189
    %1951 = vmatmul.mubr.bf16.gmra.mrb[0].mxu0 %v188
    %v1952 = vpop.f32.mrb[0].mxu0
    %v1953 = vadd.f32 %v1840, %v1952
    %v1954 = vpop.f32.mrb[0].mxu0
    %v1955 = vadd.f32 %v1842, %v1954
    %v1956 = vpop.f32.mrb[0].mxu0
    %v1957 = vadd.f32 %v1844, %v1956
    %v1958 = vpop.f32.mrb[0].mxu0
    %v1959 = vadd.f32 %v1846, %v1958
    %1960 = vmatprep.mubr.bf16.mxu0 %v198
    %1961 = vmatmul.mubr.bf16.gmra.mrb[0].mxu0 %v197
    %v1962 = vpop.f32.mrb[0].mxu0
    %v1963 = vadd.f32 %v1850, %v1962
    %v1964 = vpop.f32.mrb[0].mxu0
    %v1965 = vadd.f32 %v1852, %v1964
    %v1966 = vpop.f32.mrb[0].mxu0
    %v1967 = vadd.f32 %v1854, %v1966
    %v1968 = vpop.f32.mrb[0].mxu0
    %v1969 = vadd.f32 %v1856, %v1968
    %1970 = vmatprep.mubr.bf16.mxu0 %v207
    %1971 = vmatmul.mubr.bf16.gmra.mrb[0].mxu0 %v206
    %v1972 = vpop.f32.mrb[0].mxu0
    %v1973 = vadd.f32 %v1860, %v1972
    %v1974 = vpop.f32.mrb[0].mxu0
    %v1975 = vadd.f32 %v1862, %v1974
    %v1976 = vpop.f32.mrb[0].mxu0
    %v1977 = vadd.f32 %v1864, %v1976
    %v1978 = vpop.f32.mrb[0].mxu0
    %v1979 = vadd.f32 %v1866, %v1978
    %1980 = vmatprep.mubr.bf16.mxu0 %v216
    %1981 = vmatmul.mubr.bf16.gmra.mrb[0].mxu0 %v215
    %v1982 = vpop.f32.mrb[0].mxu0
    %v1983 = vadd.f32 %v1870, %v1982
    %v1984 = vpop.f32.mrb[0].mxu0
    %v1985 = vadd.f32 %v1872, %v1984
    %v1986 = vpop.f32.mrb[0].mxu0
    %v1987 = vadd.f32 %v1874, %v1986
    %v1988 = vpop.f32.mrb[0].mxu0
    %v1989 = vadd.f32 %v1876, %v1988
    %1990 = vmatprep.mubr.bf16.mxu0 %v225
    %1991 = vmatmul.mubr.bf16.gmra.mrb[0].mxu0 %v224
    %v1992 = vpop.f32.mrb[0].mxu0
    %v1993 = vadd.f32 %v1880, %v1992
    %v1994 = vpop.f32.mrb[0].mxu0
    %v1995 = vadd.f32 %v1882, %v1994
    %v1996 = vpop.f32.mrb[0].mxu0
    %v1997 = vadd.f32 %v1884, %v1996
    %v1998 = vpop.f32.mrb[0].mxu0
    %v1999 = vadd.f32 %v1886, %v1998
    %2000 = vmatprep.mubr.bf16.mxu0 %v234
    %2001 = vmatmul.mubr.bf16.gmra.mrb[0].mxu0 %v233
    %v2002 = vpop.f32.mrb[0].mxu0
    %v2003 = vadd.f32 %v1890, %v2002
    %v2004 = vpop.f32.mrb[0].mxu0
    %v2005 = vadd.f32 %v1892, %v2004
    %v2006 = vpop.f32.mrb[0].mxu0
    %v2007 = vadd.f32 %v1894, %v2006
    %v2008 = vpop.f32.mrb[0].mxu0
    %v2009 = vadd.f32 %v1896, %v2008
    %2010 = vmatprep.mubr.bf16.mxu0 %v243
    %2011 = vmatmul.mubr.bf16.gmra.mrb[0].mxu0 %v242
    %v2012 = vpop.f32.mrb[0].mxu0
    %v2013 = vadd.f32 %v1900, %v2012
    %v2014 = vpop.f32.mrb[0].mxu0
    %v2015 = vadd.f32 %v1902, %v2014
    %v2016 = vpop.f32.mrb[0].mxu0
    %v2017 = vadd.f32 %v1904, %v2016
    %v2018 = vpop.f32.mrb[0].mxu0
    %v2019 = vadd.f32 %v1906, %v2018
    %2020 = vmatprep.mubr.bf16.mxu0 %v252
    %2021 = vmatmul.mubr.bf16.gmra.mrb[0].mxu0 %v251
    %v2022 = vpop.f32.mrb[0].mxu0
    %v2023 = vadd.f32 %v1910, %v2022
    %v2024 = vpop.f32.mrb[0].mxu0
    %v2025 = vadd.f32 %v1912, %v2024
    %v2026 = vpop.f32.mrb[0].mxu0
    %v2027 = vadd.f32 %v1914, %v2026
    %v2028 = vpop.f32.mrb[0].mxu0
    %v2029 = vadd.f32 %v1916, %v2028
    %2030 = vdwg.mxu0
    %2031 = vmatprep.subr.bf16.mxu0 %v1357
    %2032 = vmatpush1.bf16.msra.mxu0 %v1356
    %2033 = vmatprep.subr.bf16.mxu0 0
    %2034 = vmatpush1.bf16.msra.mxu0 0
    %2035 = vmatprep.subr.bf16.mxu0 0
    %2036 = vmatpush1.bf16.msra.mxu0 0
    %2037 = vmatprep.subr.bf16.mxu0 0
    %2038 = vmatpush1.bf16.msra.mxu0 0
    %2039 = vmatprep.subr.bf16.mxu0 0
    %2040 = vmatpush1.bf16.msra.mxu0 0
    %2041 = vmatprep.subr.bf16.mxu0 0
    %2042 = vmatpush1.bf16.msra.mxu0 0
    %2043 = vmatprep.subr.bf16.mxu0 0
    %2044 = vmatpush1.bf16.msra.mxu0 0
    %2045 = vmatprep.subr.bf16.mxu0 0
    %2046 = vmatpush1.bf16.msra.mxu0 0
    %2047 = vmatprep.subr.bf16.mxu0 0
    %2048 = vmatpush1.bf16.msra.mxu0 0
    %2049 = vmatprep.subr.bf16.mxu0 0
    %2050 = vmatpush1.bf16.msra.mxu0 0
    %2051 = vmatprep.subr.bf16.mxu0 0
    %2052 = vmatpush1.bf16.msra.mxu0 0
    %2053 = vmatprep.subr.bf16.mxu0 0
    %2054 = vmatpush1.bf16.msra.mxu0 0
    %2055 = vmatprep.subr.bf16.mxu0 0
    %2056 = vmatpush1.bf16.msra.mxu0 0
    %2057 = vmatprep.subr.bf16.mxu0 0
    %2058 = vmatpush1.bf16.msra.mxu0 0
    %2059 = vmatprep.subr.bf16.mxu0 0
    %2060 = vmatpush1.bf16.msra.mxu0 0
    %2061 = vmatprep.subr.bf16.mxu0 0
    %2062 = vmatpush1.bf16.msra.mxu0 0
    %2063 = vmatprep.mubr.bf16.mxu0 0
    %2064 = vmatmul.mubr.bf16.gmra.mrb[0].mxu0 %v1556
    %v2065 = vpop.f32.mrb[0].mxu0
    %v2066 = vadd.f32 %v1953, %v2065
    %v2067 = vpop.f32.mrb[0].mxu0
    %v2068 = vadd.f32 %v1955, %v2067
    %v2069 = vpop.f32.mrb[0].mxu0
    %v2070 = vadd.f32 %v1957, %v2069
    %v2071 = vpop.f32.mrb[0].mxu0
    %v2072 = vadd.f32 %v1959, %v2071
    %2073 = vmatprep.mubr.bf16.mxu0 0
    %2074 = vmatmul.mubr.bf16.gmra.mrb[0].mxu0 %v1559
    %v2075 = vpop.f32.mrb[0].mxu0
    %v2076 = vadd.f32 %v1963, %v2075
    %v2077 = vpop.f32.mrb[0].mxu0
    %v2078 = vadd.f32 %v1965, %v2077
    %v2079 = vpop.f32.mrb[0].mxu0
    %v2080 = vadd.f32 %v1967, %v2079
    %v2081 = vpop.f32.mrb[0].mxu0
    %v2082 = vadd.f32 %v1969, %v2081
    %2083 = vmatprep.mubr.bf16.mxu0 0
    %2084 = vmatmul.mubr.bf16.gmra.mrb[0].mxu0 %v1562
    %v2085 = vpop.f32.mrb[0].mxu0
    %v2086 = vadd.f32 %v1973, %v2085
    %v2087 = vpop.f32.mrb[0].mxu0
    %v2088 = vadd.f32 %v1975, %v2087
    %v2089 = vpop.f32.mrb[0].mxu0
    %v2090 = vadd.f32 %v1977, %v2089
    %v2091 = vpop.f32.mrb[0].mxu0
    %v2092 = vadd.f32 %v1979, %v2091
    %2093 = vmatprep.mubr.bf16.mxu0 0
    %2094 = vmatmul.mubr.bf16.gmra.mrb[0].mxu0 %v1565
    %v2095 = vpop.f32.mrb[0].mxu0
    %v2096 = vadd.f32 %v1983, %v2095
    %v2097 = vpop.f32.mrb[0].mxu0
    %v2098 = vadd.f32 %v1985, %v2097
    %v2099 = vpop.f32.mrb[0].mxu0
    %v2100 = vadd.f32 %v1987, %v2099
    %v2101 = vpop.f32.mrb[0].mxu0
    %v2102 = vadd.f32 %v1989, %v2101
    %2103 = vmatprep.mubr.bf16.mxu0 0
    %2104 = vmatmul.mubr.bf16.gmra.mrb[0].mxu0 %v1568
    %v2105 = vpop.f32.mrb[0].mxu0
    %v2106 = vadd.f32 %v1993, %v2105
    %v2107 = vpop.f32.mrb[0].mxu0
    %v2108 = vadd.f32 %v1995, %v2107
    %v2109 = vpop.f32.mrb[0].mxu0
    %v2110 = vadd.f32 %v1997, %v2109
    %v2111 = vpop.f32.mrb[0].mxu0
    %v2112 = vadd.f32 %v1999, %v2111
    %2113 = vmatprep.mubr.bf16.mxu0 0
    %2114 = vmatmul.mubr.bf16.gmra.mrb[0].mxu0 %v1571
    %v2115 = vpop.f32.mrb[0].mxu0
    %v2116 = vadd.f32 %v2003, %v2115
    %v2117 = vpop.f32.mrb[0].mxu0
    %v2118 = vadd.f32 %v2005, %v2117
    %v2119 = vpop.f32.mrb[0].mxu0
    %v2120 = vadd.f32 %v2007, %v2119
    %v2121 = vpop.f32.mrb[0].mxu0
    %v2122 = vadd.f32 %v2009, %v2121
    %2123 = vmatprep.mubr.bf16.mxu0 0
    %2124 = vmatmul.mubr.bf16.gmra.mrb[0].mxu0 %v1574
    %v2125 = vpop.f32.mrb[0].mxu0
    %v2126 = vadd.f32 %v2013, %v2125
    %v2127 = vpop.f32.mrb[0].mxu0
    %v2128 = vadd.f32 %v2015, %v2127
    %v2129 = vpop.f32.mrb[0].mxu0
    %v2130 = vadd.f32 %v2017, %v2129
    %v2131 = vpop.f32.mrb[0].mxu0
    %v2132 = vadd.f32 %v2019, %v2131
    %2133 = vmatprep.mubr.bf16.mxu0 0
    %2134 = vmatmul.mubr.bf16.gmra.mrb[0].mxu0 %v1577
    %v2135 = vpop.f32.mrb[0].mxu0
    %v2136 = vadd.f32 %v2023, %v2135
    %v2137 = vpop.f32.mrb[0].mxu0
    %v2138 = vadd.f32 %v2025, %v2137
    %v2139 = vpop.f32.mrb[0].mxu0
    %v2140 = vadd.f32 %v2027, %v2139
    %v2141 = vpop.f32.mrb[0].mxu0
    %v2142 = vadd.f32 %v2029, %v2141
    %2143 = vdwg.mxu0
    %2144 = vmatprep.subr.bf16.mxu0 0
    %2145 = vmatpush1.bf16.msra.mxu0 %v1166
    %2146 = vmatprep.subr.bf16.mxu0 0
    %2147 = vmatpush1.bf16.msra.mxu0 %v1169
    %2148 = vmatprep.subr.bf16.mxu0 0
    %2149 = vmatpush1.bf16.msra.mxu0 %v1172
    %2150 = vmatprep.subr.bf16.mxu0 0
    %2151 = vmatpush1.bf16.msra.mxu0 %v1175
    %2152 = vmatprep.subr.bf16.mxu0 0
    %2153 = vmatpush1.bf16.msra.mxu0 %v1178
    %2154 = vmatprep.subr.bf16.mxu0 0
    %2155 = vmatpush1.bf16.msra.mxu0 %v1181
    %2156 = vmatprep.subr.bf16.mxu0 0
    %2157 = vmatpush1.bf16.msra.mxu0 %v1184
    %2158 = vmatprep.subr.bf16.mxu0 0
    %2159 = vmatpush1.bf16.msra.mxu0 %v1187
    %2160 = vmatprep.subr.bf16.mxu0 0
    %2161 = vmatpush1.bf16.msra.mxu0 %v1190
    %2162 = vmatprep.subr.bf16.mxu0 0
    %2163 = vmatpush1.bf16.msra.mxu0 %v1193
    %2164 = vmatprep.subr.bf16.mxu0 0
    %2165 = vmatpush1.bf16.msra.mxu0 %v1196
    %2166 = vmatprep.subr.bf16.mxu0 0
    %2167 = vmatpush1.bf16.msra.mxu0 %v1199
    %2168 = vmatprep.subr.bf16.mxu0 0
    %2169 = vmatpush1.bf16.msra.mxu0 %v1202
    %2170 = vmatprep.subr.bf16.mxu0 0
    %2171 = vmatpush1.bf16.msra.mxu0 %v1205
    %2172 = vmatprep.subr.bf16.mxu0 0
    %2173 = vmatpush1.bf16.msra.mxu0 %v1208
    %2174 = vmatprep.subr.bf16.mxu0 0
    %2175 = vmatpush1.bf16.msra.mxu0 %v1211
    %2176 = vmatprep.mubr.bf16.mxu0 %v183
    %2177 = vmatmul.mubr.bf16.gmra.mrb[0].mxu0 %v182
    %v2178 = vpop.f32.mrb[0].mxu0
    %v2179 = vadd.f32 0.0, %v2178
    %v2180 = vpop.f32.mrb[0].mxu0
    %v2181 = vpop.f32.mrb[0].mxu0
    %v2182 = vadd.f32 0.0, %v2181
    %v2183 = vpop.f32.mrb[0].mxu0
    %2184 = vmatprep.mubr.bf16.mxu0 %v192
    %2185 = vmatmul.mubr.bf16.gmra.mrb[0].mxu0 %v191
    %v2186 = vpop.f32.mrb[0].mxu0
    %v2187 = vadd.f32 0.0, %v2186
    %v2188 = vpop.f32.mrb[0].mxu0
    %v2189 = vpop.f32.mrb[0].mxu0
    %v2190 = vadd.f32 0.0, %v2189
    %v2191 = vpop.f32.mrb[0].mxu0
    %2192 = vmatprep.mubr.bf16.mxu0 %v201
    %2193 = vmatmul.mubr.bf16.gmra.mrb[0].mxu0 %v200
    %v2194 = vpop.f32.mrb[0].mxu0
    %v2195 = vadd.f32 0.0, %v2194
    %v2196 = vpop.f32.mrb[0].mxu0
    %v2197 = vpop.f32.mrb[0].mxu0
    %v2198 = vadd.f32 0.0, %v2197
    %v2199 = vpop.f32.mrb[0].mxu0
    %2200 = vmatprep.mubr.bf16.mxu0 %v210
    %2201 = vmatmul.mubr.bf16.gmra.mrb[0].mxu0 %v209
    %v2202 = vpop.f32.mrb[0].mxu0
    %v2203 = vadd.f32 0.0, %v2202
    %v2204 = vpop.f32.mrb[0].mxu0
    %v2205 = vpop.f32.mrb[0].mxu0
    %v2206 = vadd.f32 0.0, %v2205
    %v2207 = vpop.f32.mrb[0].mxu0
    %2208 = vmatprep.mubr.bf16.mxu0 %v219
    %2209 = vmatmul.mubr.bf16.gmra.mrb[0].mxu0 %v218
    %v2210 = vpop.f32.mrb[0].mxu0
    %v2211 = vadd.f32 0.0, %v2210
    %v2212 = vpop.f32.mrb[0].mxu0
    %v2213 = vpop.f32.mrb[0].mxu0
    %v2214 = vadd.f32 0.0, %v2213
    %v2215 = vpop.f32.mrb[0].mxu0
    %2216 = vmatprep.mubr.bf16.mxu0 %v228
    %2217 = vmatmul.mubr.bf16.gmra.mrb[0].mxu0 %v227
    %v2218 = vpop.f32.mrb[0].mxu0
    %v2219 = vadd.f32 0.0, %v2218
    %v2220 = vpop.f32.mrb[0].mxu0
    %v2221 = vpop.f32.mrb[0].mxu0
    %v2222 = vadd.f32 0.0, %v2221
    %v2223 = vpop.f32.mrb[0].mxu0
    %2224 = vmatprep.mubr.bf16.mxu0 %v237
    %2225 = vmatmul.mubr.bf16.gmra.mrb[0].mxu0 %v236
    %v2226 = vpop.f32.mrb[0].mxu0
    %v2227 = vadd.f32 0.0, %v2226
    %v2228 = vpop.f32.mrb[0].mxu0
    %v2229 = vpop.f32.mrb[0].mxu0
    %v2230 = vadd.f32 0.0, %v2229
    %v2231 = vpop.f32.mrb[0].mxu0
    %2232 = vmatprep.mubr.bf16.mxu0 %v246
    %2233 = vmatmul.mubr.bf16.gmra.mrb[0].mxu0 %v245
    %v2234 = vpop.f32.mrb[0].mxu0
    %v2235 = vadd.f32 0.0, %v2234
    %v2236 = vpop.f32.mrb[0].mxu0
    %v2237 = vpop.f32.mrb[0].mxu0
    %v2238 = vadd.f32 0.0, %v2237
    %v2239 = vpop.f32.mrb[0].mxu0
    %2240 = vdwg.mxu0
    %2241 = vmatprep.subr.bf16.mxu0 0
    %2242 = vmatpush1.bf16.msra.mxu0 %v1214
    %2243 = vmatprep.subr.bf16.mxu0 0
    %2244 = vmatpush1.bf16.msra.mxu0 %v1217
    %2245 = vmatprep.subr.bf16.mxu0 0
    %2246 = vmatpush1.bf16.msra.mxu0 %v1220
    %2247 = vmatprep.subr.bf16.mxu0 0
    %2248 = vmatpush1.bf16.msra.mxu0 %v1223
    %2249 = vmatprep.subr.bf16.mxu0 0
    %2250 = vmatpush1.bf16.msra.mxu0 %v1226
    %2251 = vmatprep.subr.bf16.mxu0 0
    %2252 = vmatpush1.bf16.msra.mxu0 %v1229
    %2253 = vmatprep.subr.bf16.mxu0 0
    %2254 = vmatpush1.bf16.msra.mxu0 %v1232
    %2255 = vmatprep.subr.bf16.mxu0 0
    %2256 = vmatpush1.bf16.msra.mxu0 %v1235
    %2257 = vmatprep.subr.bf16.mxu0 0
    %2258 = vmatpush1.bf16.msra.mxu0 %v1238
    %2259 = vmatprep.subr.bf16.mxu0 0
    %2260 = vmatpush1.bf16.msra.mxu0 %v1241
    %2261 = vmatprep.subr.bf16.mxu0 0
    %2262 = vmatpush1.bf16.msra.mxu0 %v1244
    %2263 = vmatprep.subr.bf16.mxu0 0
    %2264 = vmatpush1.bf16.msra.mxu0 %v1247
    %2265 = vmatprep.subr.bf16.mxu0 0
    %2266 = vmatpush1.bf16.msra.mxu0 %v1250
    %2267 = vmatprep.subr.bf16.mxu0 0
    %2268 = vmatpush1.bf16.msra.mxu0 %v1253
    %2269 = vmatprep.subr.bf16.mxu0 0
    %2270 = vmatpush1.bf16.msra.mxu0 %v1256
    %2271 = vmatprep.subr.bf16.mxu0 0
    %2272 = vmatpush1.bf16.msra.mxu0 %v1259
    %2273 = vmatprep.mubr.bf16.mxu0 %v185
    %2274 = vmatmul.mubr.bf16.gmra.mrb[0].mxu0 %v184
    %v2275 = vpop.f32.mrb[0].mxu0
    %v2276 = vadd.f32 %v2179, %v2275
    %v2277 = vpop.f32.mrb[0].mxu0
    %v2278 = vpop.f32.mrb[0].mxu0
    %v2279 = vadd.f32 %v2182, %v2278
    %v2280 = vpop.f32.mrb[0].mxu0
    %2281 = vmatprep.mubr.bf16.mxu0 %v194
    %2282 = vmatmul.mubr.bf16.gmra.mrb[0].mxu0 %v193
    %v2283 = vpop.f32.mrb[0].mxu0
    %v2284 = vadd.f32 %v2187, %v2283
    %v2285 = vpop.f32.mrb[0].mxu0
    %v2286 = vpop.f32.mrb[0].mxu0
    %v2287 = vadd.f32 %v2190, %v2286
    %v2288 = vpop.f32.mrb[0].mxu0
    %2289 = vmatprep.mubr.bf16.mxu0 %v203
    %2290 = vmatmul.mubr.bf16.gmra.mrb[0].mxu0 %v202
    %v2291 = vpop.f32.mrb[0].mxu0
    %v2292 = vadd.f32 %v2195, %v2291
    %v2293 = vpop.f32.mrb[0].mxu0
    %v2294 = vpop.f32.mrb[0].mxu0
    %v2295 = vadd.f32 %v2198, %v2294
    %v2296 = vpop.f32.mrb[0].mxu0
    %2297 = vmatprep.mubr.bf16.mxu0 %v212
    %2298 = vmatmul.mubr.bf16.gmra.mrb[0].mxu0 %v211
    %v2299 = vpop.f32.mrb[0].mxu0
    %v2300 = vadd.f32 %v2203, %v2299
    %v2301 = vpop.f32.mrb[0].mxu0
    %v2302 = vpop.f32.mrb[0].mxu0
    %v2303 = vadd.f32 %v2206, %v2302
    %v2304 = vpop.f32.mrb[0].mxu0
    %2305 = vmatprep.mubr.bf16.mxu0 %v221
    %2306 = vmatmul.mubr.bf16.gmra.mrb[0].mxu0 %v220
    %v2307 = vpop.f32.mrb[0].mxu0
    %v2308 = vadd.f32 %v2211, %v2307
    %v2309 = vpop.f32.mrb[0].mxu0
    %v2310 = vpop.f32.mrb[0].mxu0
    %v2311 = vadd.f32 %v2214, %v2310
    %v2312 = vpop.f32.mrb[0].mxu0
    %2313 = vmatprep.mubr.bf16.mxu0 %v230
    %2314 = vmatmul.mubr.bf16.gmra.mrb[0].mxu0 %v229
    %v2315 = vpop.f32.mrb[0].mxu0
    %v2316 = vadd.f32 %v2219, %v2315
    %v2317 = vpop.f32.mrb[0].mxu0
    %v2318 = vpop.f32.mrb[0].mxu0
    %v2319 = vadd.f32 %v2222, %v2318
    %v2320 = vpop.f32.mrb[0].mxu0
    %2321 = vmatprep.mubr.bf16.mxu0 %v239
    %2322 = vmatmul.mubr.bf16.gmra.mrb[0].mxu0 %v238
    %v2323 = vpop.f32.mrb[0].mxu0
    %v2324 = vadd.f32 %v2227, %v2323
    %v2325 = vpop.f32.mrb[0].mxu0
    %v2326 = vpop.f32.mrb[0].mxu0
    %v2327 = vadd.f32 %v2230, %v2326
    %v2328 = vpop.f32.mrb[0].mxu0
    %2329 = vmatprep.mubr.bf16.mxu0 %v248
    %2330 = vmatmul.mubr.bf16.gmra.mrb[0].mxu0 %v247
    %v2331 = vpop.f32.mrb[0].mxu0
    %v2332 = vadd.f32 %v2235, %v2331
    %v2333 = vpop.f32.mrb[0].mxu0
    %v2334 = vpop.f32.mrb[0].mxu0
    %v2335 = vadd.f32 %v2238, %v2334
    %v2336 = vpop.f32.mrb[0].mxu0
    %2337 = vdwg.mxu0
    %2338 = vmatprep.subr.bf16.mxu0 0
    %2339 = vmatpush1.bf16.msra.mxu0 %v1262
    %2340 = vmatprep.subr.bf16.mxu0 0
    %2341 = vmatpush1.bf16.msra.mxu0 %v1265
    %2342 = vmatprep.subr.bf16.mxu0 0
    %2343 = vmatpush1.bf16.msra.mxu0 %v1268
    %2344 = vmatprep.subr.bf16.mxu0 0
    %2345 = vmatpush1.bf16.msra.mxu0 %v1271
    %2346 = vmatprep.subr.bf16.mxu0 0
    %2347 = vmatpush1.bf16.msra.mxu0 %v1274
    %2348 = vmatprep.subr.bf16.mxu0 0
    %2349 = vmatpush1.bf16.msra.mxu0 %v1277
    %2350 = vmatprep.subr.bf16.mxu0 0
    %2351 = vmatpush1.bf16.msra.mxu0 %v1280
    %2352 = vmatprep.subr.bf16.mxu0 0
    %2353 = vmatpush1.bf16.msra.mxu0 %v1283
    %2354 = vmatprep.subr.bf16.mxu0 0
    %2355 = vmatpush1.bf16.msra.mxu0 %v1286
    %2356 = vmatprep.subr.bf16.mxu0 0
    %2357 = vmatpush1.bf16.msra.mxu0 %v1289
    %2358 = vmatprep.subr.bf16.mxu0 0
    %2359 = vmatpush1.bf16.msra.mxu0 %v1292
    %2360 = vmatprep.subr.bf16.mxu0 0
    %2361 = vmatpush1.bf16.msra.mxu0 %v1295
    %2362 = vmatprep.subr.bf16.mxu0 0
    %2363 = vmatpush1.bf16.msra.mxu0 %v1298
    %2364 = vmatprep.subr.bf16.mxu0 0
    %2365 = vmatpush1.bf16.msra.mxu0 %v1301
    %2366 = vmatprep.subr.bf16.mxu0 0
    %2367 = vmatpush1.bf16.msra.mxu0 %v1304
    %2368 = vmatprep.subr.bf16.mxu0 0
    %2369 = vmatpush1.bf16.msra.mxu0 %v1307
    %2370 = vmatprep.mubr.bf16.mxu0 %v187
    %2371 = vmatmul.mubr.bf16.gmra.mrb[0].mxu0 %v186
    %v2372 = vpop.f32.mrb[0].mxu0
    %v2373 = vadd.f32 %v2276, %v2372
    %v2374 = vpop.f32.mrb[0].mxu0
    %v2375 = vpop.f32.mrb[0].mxu0
    %v2376 = vadd.f32 %v2279, %v2375
    %v2377 = vpop.f32.mrb[0].mxu0
    %2378 = vmatprep.mubr.bf16.mxu0 %v196
    %2379 = vmatmul.mubr.bf16.gmra.mrb[0].mxu0 %v195
    %v2380 = vpop.f32.mrb[0].mxu0
    %v2381 = vadd.f32 %v2284, %v2380
    %v2382 = vpop.f32.mrb[0].mxu0
    %v2383 = vpop.f32.mrb[0].mxu0
    %v2384 = vadd.f32 %v2287, %v2383
    %v2385 = vpop.f32.mrb[0].mxu0
    %2386 = vmatprep.mubr.bf16.mxu0 %v205
    %2387 = vmatmul.mubr.bf16.gmra.mrb[0].mxu0 %v204
    %v2388 = vpop.f32.mrb[0].mxu0
    %v2389 = vadd.f32 %v2292, %v2388
    %v2390 = vpop.f32.mrb[0].mxu0
    %v2391 = vpop.f32.mrb[0].mxu0
    %v2392 = vadd.f32 %v2295, %v2391
    %v2393 = vpop.f32.mrb[0].mxu0
    %2394 = vmatprep.mubr.bf16.mxu0 %v214
    %2395 = vmatmul.mubr.bf16.gmra.mrb[0].mxu0 %v213
    %v2396 = vpop.f32.mrb[0].mxu0
    %v2397 = vadd.f32 %v2300, %v2396
    %v2398 = vpop.f32.mrb[0].mxu0
    %v2399 = vpop.f32.mrb[0].mxu0
    %v2400 = vadd.f32 %v2303, %v2399
    %v2401 = vpop.f32.mrb[0].mxu0
    %2402 = vmatprep.mubr.bf16.mxu0 %v223
    %2403 = vmatmul.mubr.bf16.gmra.mrb[0].mxu0 %v222
    %v2404 = vpop.f32.mrb[0].mxu0
    %v2405 = vadd.f32 %v2308, %v2404
    %v2406 = vpop.f32.mrb[0].mxu0
    %v2407 = vpop.f32.mrb[0].mxu0
    %v2408 = vadd.f32 %v2311, %v2407
    %v2409 = vpop.f32.mrb[0].mxu0
    %2410 = vmatprep.mubr.bf16.mxu0 %v232
    %2411 = vmatmul.mubr.bf16.gmra.mrb[0].mxu0 %v231
    %v2412 = vpop.f32.mrb[0].mxu0
    %v2413 = vadd.f32 %v2316, %v2412
    %v2414 = vpop.f32.mrb[0].mxu0
    %v2415 = vpop.f32.mrb[0].mxu0
    %v2416 = vadd.f32 %v2319, %v2415
    %v2417 = vpop.f32.mrb[0].mxu0
    %2418 = vmatprep.mubr.bf16.mxu0 %v241
    %2419 = vmatmul.mubr.bf16.gmra.mrb[0].mxu0 %v240
    %v2420 = vpop.f32.mrb[0].mxu0
    %v2421 = vadd.f32 %v2324, %v2420
    %v2422 = vpop.f32.mrb[0].mxu0
    %v2423 = vpop.f32.mrb[0].mxu0
    %v2424 = vadd.f32 %v2327, %v2423
    %v2425 = vpop.f32.mrb[0].mxu0
    %2426 = vmatprep.mubr.bf16.mxu0 %v250
    %2427 = vmatmul.mubr.bf16.gmra.mrb[0].mxu0 %v249
    %v2428 = vpop.f32.mrb[0].mxu0
    %v2429 = vadd.f32 %v2332, %v2428
    %v2430 = vpop.f32.mrb[0].mxu0
    %v2431 = vpop.f32.mrb[0].mxu0
    %v2432 = vadd.f32 %v2335, %v2431
    %v2433 = vpop.f32.mrb[0].mxu0
    %2434 = vdwg.mxu0
    %2435 = vmatprep.subr.bf16.mxu0 0
    %2436 = vmatpush1.bf16.msra.mxu0 %v1310
    %2437 = vmatprep.subr.bf16.mxu0 0
    %2438 = vmatpush1.bf16.msra.mxu0 %v1313
    %2439 = vmatprep.subr.bf16.mxu0 0
    %2440 = vmatpush1.bf16.msra.mxu0 %v1316
    %2441 = vmatprep.subr.bf16.mxu0 0
    %2442 = vmatpush1.bf16.msra.mxu0 %v1319
    %2443 = vmatprep.subr.bf16.mxu0 0
    %2444 = vmatpush1.bf16.msra.mxu0 %v1322
    %2445 = vmatprep.subr.bf16.mxu0 0
    %2446 = vmatpush1.bf16.msra.mxu0 %v1325
    %2447 = vmatprep.subr.bf16.mxu0 0
    %2448 = vmatpush1.bf16.msra.mxu0 %v1328
    %2449 = vmatprep.subr.bf16.mxu0 0
    %2450 = vmatpush1.bf16.msra.mxu0 %v1331
    %2451 = vmatprep.subr.bf16.mxu0 0
    %2452 = vmatpush1.bf16.msra.mxu0 %v1334
    %2453 = vmatprep.subr.bf16.mxu0 0
    %2454 = vmatpush1.bf16.msra.mxu0 %v1337
    %2455 = vmatprep.subr.bf16.mxu0 0
    %2456 = vmatpush1.bf16.msra.mxu0 %v1340
    %2457 = vmatprep.subr.bf16.mxu0 0
    %2458 = vmatpush1.bf16.msra.mxu0 %v1343
    %2459 = vmatprep.subr.bf16.mxu0 0
    %2460 = vmatpush1.bf16.msra.mxu0 %v1346
    %2461 = vmatprep.subr.bf16.mxu0 0
    %2462 = vmatpush1.bf16.msra.mxu0 %v1349
    %2463 = vmatprep.subr.bf16.mxu0 0
    %2464 = vmatpush1.bf16.msra.mxu0 %v1352
    %2465 = vmatprep.subr.bf16.mxu0 0
    %2466 = vmatpush1.bf16.msra.mxu0 %v1355
    %2467 = vmatprep.mubr.bf16.mxu0 %v189
    %2468 = vmatmul.mubr.bf16.gmra.mrb[0].mxu0 %v188
    %v2469 = vpop.f32.mrb[0].mxu0
    %v2470 = vadd.f32 %v2373, %v2469
    %v2471 = vpop.f32.mrb[0].mxu0
    %v2472 = vpop.f32.mrb[0].mxu0
    %v2473 = vadd.f32 %v2376, %v2472
    %v2474 = vpop.f32.mrb[0].mxu0
    %2475 = vmatprep.mubr.bf16.mxu0 %v198
    %2476 = vmatmul.mubr.bf16.gmra.mrb[0].mxu0 %v197
    %v2477 = vpop.f32.mrb[0].mxu0
    %v2478 = vadd.f32 %v2381, %v2477
    %v2479 = vpop.f32.mrb[0].mxu0
    %v2480 = vpop.f32.mrb[0].mxu0
    %v2481 = vadd.f32 %v2384, %v2480
    %v2482 = vpop.f32.mrb[0].mxu0
    %2483 = vmatprep.mubr.bf16.mxu0 %v207
    %2484 = vmatmul.mubr.bf16.gmra.mrb[0].mxu0 %v206
    %v2485 = vpop.f32.mrb[0].mxu0
    %v2486 = vadd.f32 %v2389, %v2485
    %v2487 = vpop.f32.mrb[0].mxu0
    %v2488 = vpop.f32.mrb[0].mxu0
    %v2489 = vadd.f32 %v2392, %v2488
    %v2490 = vpop.f32.mrb[0].mxu0
    %2491 = vmatprep.mubr.bf16.mxu0 %v216
    %2492 = vmatmul.mubr.bf16.gmra.mrb[0].mxu0 %v215
    %v2493 = vpop.f32.mrb[0].mxu0
    %v2494 = vadd.f32 %v2397, %v2493
    %v2495 = vpop.f32.mrb[0].mxu0
    %v2496 = vpop.f32.mrb[0].mxu0
    %v2497 = vadd.f32 %v2400, %v2496
    %v2498 = vpop.f32.mrb[0].mxu0
    %2499 = vmatprep.mubr.bf16.mxu0 %v225
    %2500 = vmatmul.mubr.bf16.gmra.mrb[0].mxu0 %v224
    %v2501 = vpop.f32.mrb[0].mxu0
    %v2502 = vadd.f32 %v2405, %v2501
    %v2503 = vpop.f32.mrb[0].mxu0
    %v2504 = vpop.f32.mrb[0].mxu0
    %v2505 = vadd.f32 %v2408, %v2504
    %v2506 = vpop.f32.mrb[0].mxu0
    %2507 = vmatprep.mubr.bf16.mxu0 %v234
    %2508 = vmatmul.mubr.bf16.gmra.mrb[0].mxu0 %v233
    %v2509 = vpop.f32.mrb[0].mxu0
    %v2510 = vadd.f32 %v2413, %v2509
    %v2511 = vpop.f32.mrb[0].mxu0
    %v2512 = vpop.f32.mrb[0].mxu0
    %v2513 = vadd.f32 %v2416, %v2512
    %v2514 = vpop.f32.mrb[0].mxu0
    %2515 = vmatprep.mubr.bf16.mxu0 %v243
    %2516 = vmatmul.mubr.bf16.gmra.mrb[0].mxu0 %v242
    %v2517 = vpop.f32.mrb[0].mxu0
    %v2518 = vadd.f32 %v2421, %v2517
    %v2519 = vpop.f32.mrb[0].mxu0
    %v2520 = vpop.f32.mrb[0].mxu0
    %v2521 = vadd.f32 %v2424, %v2520
    %v2522 = vpop.f32.mrb[0].mxu0
    %2523 = vmatprep.mubr.bf16.mxu0 %v252
    %2524 = vmatmul.mubr.bf16.gmra.mrb[0].mxu0 %v251
    %v2525 = vpop.f32.mrb[0].mxu0
    %v2526 = vadd.f32 %v2429, %v2525
    %v2527 = vpop.f32.mrb[0].mxu0
    %v2528 = vpop.f32.mrb[0].mxu0
    %v2529 = vadd.f32 %v2432, %v2528
    %v2530 = vpop.f32.mrb[0].mxu0
    %2531 = vdwg.mxu0
    %2532 = vmatprep.subr.bf16.mxu0 0
    %2533 = vmatpush1.bf16.msra.mxu0 %v1358
    %2534 = vmatprep.subr.bf16.mxu0 0
    %2535 = vmatpush1.bf16.msra.mxu0 0
    %2536 = vmatprep.subr.bf16.mxu0 0
    %2537 = vmatpush1.bf16.msra.mxu0 0
    %2538 = vmatprep.subr.bf16.mxu0 0
    %2539 = vmatpush1.bf16.msra.mxu0 0
    %2540 = vmatprep.subr.bf16.mxu0 0
    %2541 = vmatpush1.bf16.msra.mxu0 0
    %2542 = vmatprep.subr.bf16.mxu0 0
    %2543 = vmatpush1.bf16.msra.mxu0 0
    %2544 = vmatprep.subr.bf16.mxu0 0
    %2545 = vmatpush1.bf16.msra.mxu0 0
    %2546 = vmatprep.subr.bf16.mxu0 0
    %2547 = vmatpush1.bf16.msra.mxu0 0
    %2548 = vmatprep.subr.bf16.mxu0 0
    %2549 = vmatpush1.bf16.msra.mxu0 0
    %2550 = vmatprep.subr.bf16.mxu0 0
    %2551 = vmatpush1.bf16.msra.mxu0 0
    %2552 = vmatprep.subr.bf16.mxu0 0
    %2553 = vmatpush1.bf16.msra.mxu0 0
    %2554 = vmatprep.subr.bf16.mxu0 0
    %2555 = vmatpush1.bf16.msra.mxu0 0
    %2556 = vmatprep.subr.bf16.mxu0 0
    %2557 = vmatpush1.bf16.msra.mxu0 0
    %2558 = vmatprep.subr.bf16.mxu0 0
    %2559 = vmatpush1.bf16.msra.mxu0 0
    %2560 = vmatprep.subr.bf16.mxu0 0
    %2561 = vmatpush1.bf16.msra.mxu0 0
    %2562 = vmatprep.subr.bf16.mxu0 0
    %2563 = vmatpush1.bf16.msra.mxu0 0
    %2564 = vmatprep.mubr.bf16.mxu0 0
    %2565 = vmatmul.mubr.bf16.gmra.mrb[0].mxu0 %v1556
    %v2566 = vpop.f32.mrb[0].mxu0
    %v2567 = vadd.f32 %v2470, %v2566
    %v2568 = vpop.f32.mrb[0].mxu0
    %v2569 = vpop.f32.mrb[0].mxu0
    %v2570 = vadd.f32 %v2473, %v2569
    %v2571 = vpop.f32.mrb[0].mxu0
    %2572 = vmatprep.mubr.bf16.mxu0 0
    %2573 = vmatmul.mubr.bf16.gmra.mrb[0].mxu0 %v1559
    %v2574 = vpop.f32.mrb[0].mxu0
    %v2575 = vadd.f32 %v2478, %v2574
    %v2576 = vpop.f32.mrb[0].mxu0
    %v2577 = vpop.f32.mrb[0].mxu0
    %v2578 = vadd.f32 %v2481, %v2577
    %v2579 = vpop.f32.mrb[0].mxu0
    %2580 = vmatprep.mubr.bf16.mxu0 0
    %2581 = vmatmul.mubr.bf16.gmra.mrb[0].mxu0 %v1562
    %v2582 = vpop.f32.mrb[0].mxu0
    %v2583 = vadd.f32 %v2486, %v2582
    %v2584 = vpop.f32.mrb[0].mxu0
    %v2585 = vpop.f32.mrb[0].mxu0
    %v2586 = vadd.f32 %v2489, %v2585
    %v2587 = vpop.f32.mrb[0].mxu0
    %2588 = vmatprep.mubr.bf16.mxu0 0
    %2589 = vmatmul.mubr.bf16.gmra.mrb[0].mxu0 %v1565
    %v2590 = vpop.f32.mrb[0].mxu0
    %v2591 = vadd.f32 %v2494, %v2590
    %v2592 = vpop.f32.mrb[0].mxu0
    %v2593 = vpop.f32.mrb[0].mxu0
    %v2594 = vadd.f32 %v2497, %v2593
    %v2595 = vpop.f32.mrb[0].mxu0
    %2596 = vmatprep.mubr.bf16.mxu0 0
    %2597 = vmatmul.mubr.bf16.gmra.mrb[0].mxu0 %v1568
    %v2598 = vpop.f32.mrb[0].mxu0
    %v2599 = vadd.f32 %v2502, %v2598
    %v2600 = vpop.f32.mrb[0].mxu0
    %v2601 = vpop.f32.mrb[0].mxu0
    %v2602 = vadd.f32 %v2505, %v2601
    %v2603 = vpop.f32.mrb[0].mxu0
    %2604 = vmatprep.mubr.bf16.mxu0 0
    %2605 = vmatmul.mubr.bf16.gmra.mrb[0].mxu0 %v1571
    %v2606 = vpop.f32.mrb[0].mxu0
    %v2607 = vadd.f32 %v2510, %v2606
    %v2608 = vpop.f32.mrb[0].mxu0
    %v2609 = vpop.f32.mrb[0].mxu0
    %v2610 = vadd.f32 %v2513, %v2609
    %v2611 = vpop.f32.mrb[0].mxu0
    %2612 = vmatprep.mubr.bf16.mxu0 0
    %2613 = vmatmul.mubr.bf16.gmra.mrb[0].mxu0 %v1574
    %v2614 = vpop.f32.mrb[0].mxu0
    %v2615 = vadd.f32 %v2518, %v2614
    %v2616 = vpop.f32.mrb[0].mxu0
    %v2617 = vpop.f32.mrb[0].mxu0
    %v2618 = vadd.f32 %v2521, %v2617
    %v2619 = vpop.f32.mrb[0].mxu0
    %2620 = vmatprep.mubr.bf16.mxu0 0
    %2621 = vmatmul.mubr.bf16.gmra.mrb[0].mxu0 %v1577
    %v2622 = vpop.f32.mrb[0].mxu0
    %v2623 = vadd.f32 %v2526, %v2622
    %v2624 = vpop.f32.mrb[0].mxu0
    %v2625 = vpop.f32.mrb[0].mxu0
    %v2626 = vadd.f32 %v2529, %v2625
    %v2627 = vpop.f32.mrb[0].mxu0
    %2628 = vdwg.mxu0
    %v2661 = vrot.slane %v2068, 7
    %v2662 = vrot.slane %v2567, 7
    %v2663 = vrot.slane %v2072, 7
    %v2664 = vrot.slane %v2570, 7
    %v2665 = vrot.slane %v2078, 7
    %v2666 = vrot.slane %v2575, 7
    %v2667 = vrot.slane %v2082, 7
    %v2668 = vrot.slane %v2578, 7
    %v2669 = vrot.slane %v2088, 7
    %v2670 = vrot.slane %v2583, 7
    %v2671 = vrot.slane %v2092, 7
    %v2672 = vrot.slane %v2586, 7
    %v2673 = vrot.slane %v2098, 7
    %v2674 = vrot.slane %v2591, 7
    %v2675 = vrot.slane %v2102, 7
    %v2676 = vrot.slane %v2594, 7
    %v2677 = vrot.slane %v2108, 7
    %v2678 = vrot.slane %v2599, 7
    %v2679 = vrot.slane %v2112, 7
    %v2680 = vrot.slane %v2602, 7
    %v2681 = vrot.slane %v2118, 7
    %v2682 = vrot.slane %v2607, 7
    %v2683 = vrot.slane %v2122, 7
    %v2684 = vrot.slane %v2610, 7
    %v2685 = vrot.slane %v2128, 7
    %v2686 = vrot.slane %v2615, 7
    %v2687 = vrot.slane %v2132, 7
    %v2688 = vrot.slane %v2618, 7
    %v2689 = vrot.slane %v2138, 7
    %v2690 = vrot.slane %v2623, 7
    %v2691 = vrot.slane %v2142, 7
    %v2692 = vrot.slane %v2626, 7
    %2693 = vrot.lane.b32.xlu0 %v2661, 64
    %v2694 = vpop.permute.xlu0 %2693
    %2695 = vrot.lane.b32.xlu0 %v2662, 64
    %v2696 = vpop.permute.xlu0 %2695
    %2697 = vrot.lane.b32.xlu0 %v2663, 64
    %v2698 = vpop.permute.xlu0 %2697
    %2699 = vrot.lane.b32.xlu0 %v2664, 64
    %v2700 = vpop.permute.xlu0 %2699
    %2701 = vrot.lane.b32.xlu0 %v2665, 64
    %v2702 = vpop.permute.xlu0 %2701
    %2703 = vrot.lane.b32.xlu0 %v2666, 64
    %v2704 = vpop.permute.xlu0 %2703
    %2705 = vrot.lane.b32.xlu0 %v2667, 64
    %v2706 = vpop.permute.xlu0 %2705
    %2707 = vrot.lane.b32.xlu0 %v2668, 64
    %v2708 = vpop.permute.xlu0 %2707
    %2709 = vrot.lane.b32.xlu0 %v2669, 64
    %v2710 = vpop.permute.xlu0 %2709
    %2711 = vrot.lane.b32.xlu0 %v2670, 64
    %v2712 = vpop.permute.xlu0 %2711
    %2713 = vrot.lane.b32.xlu0 %v2671, 64
    %v2714 = vpop.permute.xlu0 %2713
    %2715 = vrot.lane.b32.xlu0 %v2672, 64
    %v2716 = vpop.permute.xlu0 %2715
    %2717 = vrot.lane.b32.xlu0 %v2673, 64
    %v2718 = vpop.permute.xlu0 %2717
    %2719 = vrot.lane.b32.xlu0 %v2674, 64
    %v2720 = vpop.permute.xlu0 %2719
    %2721 = vrot.lane.b32.xlu0 %v2675, 64
    %v2722 = vpop.permute.xlu0 %2721
    %2723 = vrot.lane.b32.xlu0 %v2676, 64
    %v2724 = vpop.permute.xlu0 %2723
    %2725 = vrot.lane.b32.xlu0 %v2677, 64
    %v2726 = vpop.permute.xlu0 %2725
    %2727 = vrot.lane.b32.xlu0 %v2678, 64
    %v2728 = vpop.permute.xlu0 %2727
    %2729 = vrot.lane.b32.xlu0 %v2679, 64
    %v2730 = vpop.permute.xlu0 %2729
    %2731 = vrot.lane.b32.xlu0 %v2680, 64
    %v2732 = vpop.permute.xlu0 %2731
    %2733 = vrot.lane.b32.xlu0 %v2681, 64
    %v2734 = vpop.permute.xlu0 %2733
    %2735 = vrot.lane.b32.xlu0 %v2682, 64
    %v2736 = vpop.permute.xlu0 %2735
    %2737 = vrot.lane.b32.xlu0 %v2683, 64
    %v2738 = vpop.permute.xlu0 %2737
    %2739 = vrot.lane.b32.xlu0 %v2684, 64
    %v2740 = vpop.permute.xlu0 %2739
    %2741 = vrot.lane.b32.xlu0 %v2685, 64
    %v2742 = vpop.permute.xlu0 %2741
    %2743 = vrot.lane.b32.xlu0 %v2686, 64
    %v2744 = vpop.permute.xlu0 %2743
    %2745 = vrot.lane.b32.xlu0 %v2687, 64
    %v2746 = vpop.permute.xlu0 %2745
    %2747 = vrot.lane.b32.xlu0 %v2688, 64
    %v2748 = vpop.permute.xlu0 %2747
    %2749 = vrot.lane.b32.xlu0 %v2689, 64
    %v2750 = vpop.permute.xlu0 %2749
    %2751 = vrot.lane.b32.xlu0 %v2690, 64
    %v2752 = vpop.permute.xlu0 %2751
    %2753 = vrot.lane.b32.xlu0 %v2691, 64
    %v2754 = vpop.permute.xlu0 %2753
    %2755 = vrot.lane.b32.xlu0 %v2692, 64
    %v2756 = vpop.permute.xlu0 %2755
    %vm2757 = vcmask 523264
    %v2758 = vsel %vm2757, %v2694, %v2696
    %v2759 = vsel %vm2757, %v2698, %v2700
    %v2760 = vsel %vm2757, %v2702, %v2704
    %v2761 = vsel %vm2757, %v2706, %v2708
    %v2762 = vsel %vm2757, %v2710, %v2712
    %v2763 = vsel %vm2757, %v2714, %v2716
    %v2764 = vsel %vm2757, %v2718, %v2720
    %v2765 = vsel %vm2757, %v2722, %v2724
    %v2766 = vsel %vm2757, %v2726, %v2728
    %v2767 = vsel %vm2757, %v2730, %v2732
    %v2768 = vsel %vm2757, %v2734, %v2736
    %v2769 = vsel %vm2757, %v2738, %v2740
    %v2770 = vsel %vm2757, %v2742, %v2744
    %v2771 = vsel %vm2757, %v2746, %v2748
    %v2772 = vsel %vm2757, %v2750, %v2752
    %v2773 = vsel %vm2757, %v2754, %v2756
    %vm2806 = vcmask 1040384
    %v2807 = vsel %vm2806, 0.0, %v2758
    %v2808 = vsel %vm2806, 0.0, %v2696
    %v2809 = vsel %vm2806, 0.0, %v2759
    %v2810 = vsel %vm2806, 0.0, %v2700
    %v2811 = vsel %vm2806, 0.0, %v2760
    %v2812 = vsel %vm2806, 0.0, %v2704
    %v2813 = vsel %vm2806, 0.0, %v2761
    %v2814 = vsel %vm2806, 0.0, %v2708
    %v2815 = vsel %vm2806, 0.0, %v2762
    %v2816 = vsel %vm2806, 0.0, %v2712
    %v2817 = vsel %vm2806, 0.0, %v2763
    %v2818 = vsel %vm2806, 0.0, %v2716
    %v2819 = vsel %vm2806, 0.0, %v2764
    %v2820 = vsel %vm2806, 0.0, %v2720
    %v2821 = vsel %vm2806, 0.0, %v2765
    %v2822 = vsel %vm2806, 0.0, %v2724
    %v2823 = vsel %vm2806, 0.0, %v2766
    %v2824 = vsel %vm2806, 0.0, %v2728
    %v2825 = vsel %vm2806, 0.0, %v2767
    %v2826 = vsel %vm2806, 0.0, %v2732
    %v2827 = vsel %vm2806, 0.0, %v2768
    %v2828 = vsel %vm2806, 0.0, %v2736
    %v2829 = vsel %vm2806, 0.0, %v2769
    %v2830 = vsel %vm2806, 0.0, %v2740
    %v2831 = vsel %vm2806, 0.0, %v2770
    %v2832 = vsel %vm2806, 0.0, %v2744
    %v2833 = vsel %vm2806, 0.0, %v2771
    %v2834 = vsel %vm2806, 0.0, %v2748
    %v2835 = vsel %vm2806, 0.0, %v2772
    %v2836 = vsel %vm2806, 0.0, %v2752
    %v2837 = vsel %vm2806, 0.0, %v2773
    %v2838 = vsel %vm2806, 0.0, %v2756
    %v2839 = vpack.c.bf16 %v2809, %v2807
    %v2840 = vpack.c.bf16 %v2810, %v2808
    %v2841 = vpack.c.bf16 %v2813, %v2811
    %v2842 = vpack.c.bf16 %v2814, %v2812
    %v2843 = vpack.c.bf16 %v2817, %v2815
    %v2844 = vpack.c.bf16 %v2818, %v2816
    %v2845 = vpack.c.bf16 %v2821, %v2819
    %v2846 = vpack.c.bf16 %v2822, %v2820
    %v2847 = vpack.c.bf16 %v2825, %v2823
    %v2848 = vpack.c.bf16 %v2826, %v2824
    %v2849 = vpack.c.bf16 %v2829, %v2827
    %v2850 = vpack.c.bf16 %v2830, %v2828
    %v2851 = vpack.c.bf16 %v2833, %v2831
    %v2852 = vpack.c.bf16 %v2834, %v2832
    %v2853 = vpack.c.bf16 %v2837, %v2835
    %v2854 = vpack.c.bf16 %v2838, %v2836
    %v2855 = vld [vmem:[#allocation2] sm:$0xff]
    %v2856 = vld [vmem:[#allocation2 + $0x8] sm:$0xff]
    %v2857 = vld [vmem:[#allocation2 + $0x10] sm:$0xff]
    %v2858 = vld [vmem:[#allocation2 + $0x18] sm:$0xff]
    %v2859 = vld [vmem:[#allocation2 + $0x20] sm:$0xff]
    %v2860 = vld [vmem:[#allocation2 + $0x28] sm:$0xff]
    %v2861 = vld [vmem:[#allocation2 + $0x30] sm:$0xff]
    %v2862 = vld [vmem:[#allocation2 + $0x38] sm:$0xff]
    %v2863 = vld [vmem:[#allocation2 + $0x40] sm:$0xff]
    %v2864 = vld [vmem:[#allocation2 + $0x48] sm:$0xff]
    %v2865 = vld [vmem:[#allocation2 + $0x50] sm:$0xff]
    %v2866 = vld [vmem:[#allocation2 + $0x58] sm:$0xff]
    %v2867 = vld [vmem:[#allocation2 + $0x60] sm:$0xff]
    %v2868 = vld [vmem:[#allocation2 + $0x68] sm:$0xff]
    %v2869 = vld [vmem:[#allocation2 + $0x70] sm:$0xff]
    %v2870 = vld [vmem:[#allocation2 + $0x78] sm:$0xff]
    %v2871 = vld [vmem:[#allocation2 + $0x80] sm:$0xff]
    %v2872 = vld [vmem:[#allocation2 + $0x88] sm:$0xff]
    %v2873 = vld [vmem:[#allocation2 + $0x90] sm:$0xff]
    %v2874 = vld [vmem:[#allocation2 + $0x98] sm:$0xff]
    %v2875 = vld [vmem:[#allocation2 + $0xa0] sm:$0xff]
    %v2876 = vld [vmem:[#allocation2 + $0xa8] sm:$0xff]
    %v2877 = vld [vmem:[#allocation2 + $0xb0] sm:$0xff]
    %v2878 = vld [vmem:[#allocation2 + $0xb8] sm:$0xff]
    %v2879 = vpack.c.bf16 %v2072, %v2068
    %v2880 = vpack.c.bf16 %v2570, %v2567
    %v2881 = vpack.c.bf16 %v2082, %v2078
    %v2882 = vpack.c.bf16 %v2578, %v2575
    %v2883 = vpack.c.bf16 %v2092, %v2088
    %v2884 = vpack.c.bf16 %v2586, %v2583
    %v2885 = vpack.c.bf16 %v2102, %v2098
    %v2886 = vpack.c.bf16 %v2594, %v2591
    %v2887 = vpack.c.bf16 %v2112, %v2108
    %v2888 = vpack.c.bf16 %v2602, %v2599
    %v2889 = vpack.c.bf16 %v2122, %v2118
    %v2890 = vpack.c.bf16 %v2610, %v2607
    %v2891 = vpack.c.bf16 %v2132, %v2128
    %v2892 = vpack.c.bf16 %v2618, %v2615
    %v2893 = vpack.c.bf16 %v2142, %v2138
    %v2894 = vpack.c.bf16 %v2626, %v2623
    %s2895 = scalar_lea.vmem [#allocation2], 192
    %v2896 = vld [vmem:[%s2895] sm:$0xff]
    %v2897 = vld [vmem:[%s2895 + $0x8] sm:$0xff]
    %v2898 = vld [vmem:[%s2895 + $0x10] sm:$0xff]
    %v2899 = vld [vmem:[%s2895 + $0x18] sm:$0xff]
    %v2900 = vld [vmem:[%s2895 + $0x20] sm:$0xff]
    %v2901 = vld [vmem:[%s2895 + $0x28] sm:$0xff]
    %v2902 = vld [vmem:[%s2895 + $0x30] sm:$0xff]
    %v2903 = vld [vmem:[%s2895 + $0x38] sm:$0xff]
    %v2904 = vld [vmem:[%s2895 + $0x40] sm:$0xff]
    %v2905 = vld [vmem:[%s2895 + $0x48] sm:$0xff]
    %v2906 = vld [vmem:[%s2895 + $0x50] sm:$0xff]
    %v2907 = vld [vmem:[%s2895 + $0x58] sm:$0xff]
    %v2908 = vld [vmem:[%s2895 + $0x60] sm:$0xff]
    %v2909 = vld [vmem:[%s2895 + $0x68] sm:$0xff]
    %v2910 = vld [vmem:[%s2895 + $0x70] sm:$0xff]
    %v2911 = vld [vmem:[%s2895 + $0x78] sm:$0xff]
    %v2912 = vld [vmem:[%s2895 + $0x80] sm:$0xff]
    %v2913 = vld [vmem:[%s2895 + $0x88] sm:$0xff]
    %v2914 = vld [vmem:[%s2895 + $0x90] sm:$0xff]
    %v2915 = vld [vmem:[%s2895 + $0x98] sm:$0xff]
    %v2916 = vld [vmem:[%s2895 + $0xa0] sm:$0xff]
    %v2917 = vld [vmem:[%s2895 + $0xa8] sm:$0xff]
    %v2918 = vld [vmem:[%s2895 + $0xb0] sm:$0xff]
    %v2919 = vld [vmem:[%s2895 + $0xb8] sm:$0xff]
    %2936 = vrot.lane.b32.xlu0 %v2879, 64
    %v2937 = vpop.permute.xlu0 %2936
    %2938 = vrot.lane.b32.xlu0 %v2880, 64
    %v2939 = vpop.permute.xlu0 %2938
    %2940 = vrot.lane.b32.xlu0 %v2881, 64
    %v2941 = vpop.permute.xlu0 %2940
    %2942 = vrot.lane.b32.xlu0 %v2882, 64
    %v2943 = vpop.permute.xlu0 %2942
    %2944 = vrot.lane.b32.xlu0 %v2883, 64
    %v2945 = vpop.permute.xlu0 %2944
    %2946 = vrot.lane.b32.xlu0 %v2884, 64
    %v2947 = vpop.permute.xlu0 %2946
    %2948 = vrot.lane.b32.xlu0 %v2885, 64
    %v2949 = vpop.permute.xlu0 %2948
    %2950 = vrot.lane.b32.xlu0 %v2886, 64
    %v2951 = vpop.permute.xlu0 %2950
    %2952 = vrot.lane.b32.xlu0 %v2887, 64
    %v2953 = vpop.permute.xlu0 %2952
    %2954 = vrot.lane.b32.xlu0 %v2888, 64
    %v2955 = vpop.permute.xlu0 %2954
    %2956 = vrot.lane.b32.xlu0 %v2889, 64
    %v2957 = vpop.permute.xlu0 %2956
    %2958 = vrot.lane.b32.xlu0 %v2890, 64
    %v2959 = vpop.permute.xlu0 %2958
    %2960 = vrot.lane.b32.xlu0 %v2891, 64
    %v2961 = vpop.permute.xlu0 %2960
    %2962 = vrot.lane.b32.xlu0 %v2892, 64
    %v2963 = vpop.permute.xlu0 %2962
    %2964 = vrot.lane.b32.xlu0 %v2893, 64
    %v2965 = vpop.permute.xlu0 %2964
    %2966 = vrot.lane.b32.xlu0 %v2894, 64
    %v2967 = vpop.permute.xlu0 %2966
    %vm2968 = vcmask 523264
    %v2969 = vsel %vm2968, %v2937, %v2939
    %v2970 = vsel %vm2968, %v2941, %v2943
    %v2971 = vsel %vm2968, %v2945, %v2947
    %v2972 = vsel %vm2968, %v2949, %v2951
    %v2973 = vsel %vm2968, %v2953, %v2955
    %v2974 = vsel %vm2968, %v2957, %v2959
    %v2975 = vsel %vm2968, %v2961, %v2963
    %v2976 = vsel %vm2968, %v2965, %v2967
    %v3009 = vunpack.c.l.b16 %v2896
    %v3010 = vunpack.c.h.b16 %v2896
    %v3011 = vunpack.c.l.b16 %v2897
    %v3012 = vunpack.c.h.b16 %v2897
    %v3013 = vunpack.c.l.b16 %v2898
    %v3014 = vunpack.c.h.b16 %v2898
    %v3015 = vunpack.c.l.b16 %v2899
    %v3016 = vunpack.c.h.b16 %v2899
    %v3017 = vunpack.c.l.b16 %v2900
    %v3018 = vunpack.c.h.b16 %v2900
    %v3019 = vunpack.c.l.b16 %v2901
    %v3020 = vunpack.c.h.b16 %v2901
    %v3021 = vunpack.c.l.b16 %v2902
    %v3022 = vunpack.c.h.b16 %v2902
    %v3023 = vunpack.c.l.b16 %v2903
    %v3024 = vunpack.c.h.b16 %v2903
    %v3025 = vunpack.c.l.b16 %v2904
    %v3026 = vunpack.c.h.b16 %v2904
    %v3027 = vunpack.c.l.b16 %v2905
    %v3028 = vunpack.c.h.b16 %v2905
    %v3029 = vunpack.c.l.b16 %v2906
    %v3030 = vunpack.c.h.b16 %v2906
    %v3031 = vunpack.c.l.b16 %v2907
    %v3032 = vunpack.c.h.b16 %v2907
    %v3033 = vunpack.c.l.b16 %v2908
    %v3034 = vunpack.c.h.b16 %v2908
    %v3035 = vunpack.c.l.b16 %v2909
    %v3036 = vunpack.c.h.b16 %v2909
    %v3037 = vunpack.c.l.b16 %v2910
    %v3038 = vunpack.c.h.b16 %v2910
    %v3039 = vunpack.c.l.b16 %v2911
    %v3040 = vunpack.c.h.b16 %v2911
    %v3041 = vunpack.c.l.b16 %v2912
    %v3042 = vunpack.c.h.b16 %v2912
    %v3043 = vunpack.c.l.b16 %v2913
    %v3044 = vunpack.c.h.b16 %v2913
    %v3045 = vunpack.c.l.b16 %v2914
    %v3046 = vunpack.c.h.b16 %v2914
    %v3047 = vunpack.c.l.b16 %v2915
    %v3048 = vunpack.c.h.b16 %v2915
    %v3049 = vunpack.c.l.b16 %v2916
    %v3050 = vunpack.c.h.b16 %v2916
    %v3051 = vunpack.c.l.b16 %v2917
    %v3052 = vunpack.c.h.b16 %v2917
    %v3053 = vunpack.c.l.b16 %v2918
    %v3054 = vunpack.c.h.b16 %v2918
    %v3055 = vunpack.c.l.b16 %v2919
    %v3056 = vunpack.c.h.b16 %v2919
    %v3057 = vpack.c.b16 %v3011, %v3009
    %v3058 = vpack.c.b16 %v3012, %v3010
    %v3059 = vpack.c.b16 %v3015, %v3013
    %v3060 = vpack.c.b16 %v3016, %v3014
    %v3061 = vpack.c.b16 %v3019, %v3017
    %v3062 = vpack.c.b16 %v3020, %v3018
    %v3063 = vpack.c.b16 %v3023, %v3021
    %v3064 = vpack.c.b16 %v3024, %v3022
    %v3065 = vpack.c.b16 %v3027, %v3025
    %v3066 = vpack.c.b16 %v3028, %v3026
    %v3067 = vpack.c.b16 %v3031, %v3029
    %v3068 = vpack.c.b16 %v3032, %v3030
    %v3069 = vpack.c.b16 %v3035, %v3033
    %v3070 = vpack.c.b16 %v3036, %v3034
    %v3071 = vpack.c.b16 %v3039, %v3037
    %v3072 = vpack.c.b16 %v3040, %v3038
    %v3073 = vpack.c.b16 %v3043, %v3041
    %v3074 = vpack.c.b16 %v3044, %v3042
    %v3075 = vpack.c.b16 %v3047, %v3045
    %v3076 = vpack.c.b16 %v3048, %v3046
    %v3077 = vpack.c.b16 %v3051, %v3049
    %v3078 = vpack.c.b16 %v3052, %v3050
    %v3079 = vpack.c.b16 %v3055, %v3053
    %v3080 = vpack.c.b16 %v3056, %v3054
    %v3106 = vsel %vm2757, %v2939, 0
    %v3109 = vsel %vm2757, %v2943, 0
    %v3112 = vsel %vm2757, %v2947, 0
    %v3115 = vsel %vm2757, %v2951, 0
    %v3118 = vsel %vm2757, %v2955, 0
    %v3121 = vsel %vm2757, %v2959, 0
    %v3124 = vsel %vm2757, %v2963, 0
    %v3127 = vsel %vm2757, %v2967, 0
    %3129 = vmatprep.subr.bf16.mxu0 %v3058
    %3130 = vmatpush1.bf16.msra.mxu0 %v3057
    %3131 = vmatprep.subr.bf16.mxu0 %v3060
    %3132 = vmatpush1.bf16.msra.mxu0 %v3059
    %3133 = vmatprep.subr.bf16.mxu0 %v3062
    %3134 = vmatpush1.bf16.msra.mxu0 %v3061
    %3135 = vmatprep.subr.bf16.mxu0 %v3064
    %3136 = vmatpush1.bf16.msra.mxu0 %v3063
    %3137 = vmatprep.subr.bf16.mxu0 %v3066
    %3138 = vmatpush1.bf16.msra.mxu0 %v3065
    %3139 = vmatprep.subr.bf16.mxu0 %v3068
    %3140 = vmatpush1.bf16.msra.mxu0 %v3067
    %3141 = vmatprep.subr.bf16.mxu0 %v3070
    %3142 = vmatpush1.bf16.msra.mxu0 %v3069
    %3143 = vmatprep.subr.bf16.mxu0 %v3072
    %3144 = vmatpush1.bf16.msra.mxu0 %v3071
    %3145 = vmatprep.subr.bf16.mxu0 %v3074
    %3146 = vmatpush1.bf16.msra.mxu0 %v3073
    %3147 = vmatprep.subr.bf16.mxu0 %v3076
    %3148 = vmatpush1.bf16.msra.mxu0 %v3075
    %3149 = vmatprep.subr.bf16.mxu0 %v3078
    %3150 = vmatpush1.bf16.msra.mxu0 %v3077
    %3151 = vmatprep.subr.bf16.mxu0 %v3080
    %3152 = vmatpush1.bf16.msra.mxu0 %v3079
    %3153 = vmatprep.subr.bf16.mxu0 0
    %3154 = vmatpush1.bf16.msra.mxu0 0
    %3155 = vmatprep.subr.bf16.mxu0 0
    %3156 = vmatpush1.bf16.msra.mxu0 0
    %3157 = vmatprep.subr.bf16.mxu0 0
    %3158 = vmatpush1.bf16.msra.mxu0 0
    %3159 = vmatprep.subr.bf16.mxu0 0
    %3160 = vmatpush1.bf16.msra.mxu0 0
    %3161 = vmatprep.mubr.bf16.mxu0 %v3106
    %3162 = vmatmul.mubr.bf16.gmra.mrb[0].mxu0 %v2969
    %v3163 = vpop.f32.mrb[0].mxu0
    %v3164 = vadd.f32 0.0, %v3163
    %v3165 = vpop.f32.mrb[0].mxu0
    %v3166 = vadd.f32 0.0, %v3165
    %v3167 = vpop.f32.mrb[0].mxu0
    %v3168 = vadd.f32 0.0, %v3167
    %v3169 = vpop.f32.mrb[0].mxu0
    %v3170 = vadd.f32 0.0, %v3169
    %3171 = vmatprep.mubr.bf16.mxu0 %v3109
    %3172 = vmatmul.mubr.bf16.gmra.mrb[0].mxu0 %v2970
    %v3173 = vpop.f32.mrb[0].mxu0
    %v3174 = vadd.f32 0.0, %v3173
    %v3175 = vpop.f32.mrb[0].mxu0
    %v3176 = vadd.f32 0.0, %v3175
    %v3177 = vpop.f32.mrb[0].mxu0
    %v3178 = vadd.f32 0.0, %v3177
    %v3179 = vpop.f32.mrb[0].mxu0
    %v3180 = vadd.f32 0.0, %v3179
    %3181 = vmatprep.mubr.bf16.mxu0 %v3112
    %3182 = vmatmul.mubr.bf16.gmra.mrb[0].mxu0 %v2971
    %v3183 = vpop.f32.mrb[0].mxu0
    %v3184 = vadd.f32 0.0, %v3183
    %v3185 = vpop.f32.mrb[0].mxu0
    %v3186 = vadd.f32 0.0, %v3185
    %v3187 = vpop.f32.mrb[0].mxu0
    %v3188 = vadd.f32 0.0, %v3187
    %v3189 = vpop.f32.mrb[0].mxu0
    %v3190 = vadd.f32 0.0, %v3189
    %3191 = vmatprep.mubr.bf16.mxu0 %v3115
    %3192 = vmatmul.mubr.bf16.gmra.mrb[0].mxu0 %v2972
    %v3193 = vpop.f32.mrb[0].mxu0
    %v3194 = vadd.f32 0.0, %v3193
    %v3195 = vpop.f32.mrb[0].mxu0
    %v3196 = vadd.f32 0.0, %v3195
    %v3197 = vpop.f32.mrb[0].mxu0
    %v3198 = vadd.f32 0.0, %v3197
    %v3199 = vpop.f32.mrb[0].mxu0
    %v3200 = vadd.f32 0.0, %v3199
    %3201 = vmatprep.mubr.bf16.mxu0 %v3118
    %3202 = vmatmul.mubr.bf16.gmra.mrb[0].mxu0 %v2973
    %v3203 = vpop.f32.mrb[0].mxu0
    %v3204 = vadd.f32 0.0, %v3203
    %v3205 = vpop.f32.mrb[0].mxu0
    %v3206 = vadd.f32 0.0, %v3205
    %v3207 = vpop.f32.mrb[0].mxu0
    %v3208 = vadd.f32 0.0, %v3207
    %v3209 = vpop.f32.mrb[0].mxu0
    %v3210 = vadd.f32 0.0, %v3209
    %3211 = vmatprep.mubr.bf16.mxu0 %v3121
    %3212 = vmatmul.mubr.bf16.gmra.mrb[0].mxu0 %v2974
    %v3213 = vpop.f32.mrb[0].mxu0
    %v3214 = vadd.f32 0.0, %v3213
    %v3215 = vpop.f32.mrb[0].mxu0
    %v3216 = vadd.f32 0.0, %v3215
    %v3217 = vpop.f32.mrb[0].mxu0
    %v3218 = vadd.f32 0.0, %v3217
    %v3219 = vpop.f32.mrb[0].mxu0
    %v3220 = vadd.f32 0.0, %v3219
    %3221 = vmatprep.mubr.bf16.mxu0 %v3124
    %3222 = vmatmul.mubr.bf16.gmra.mrb[0].mxu0 %v2975
    %v3223 = vpop.f32.mrb[0].mxu0
    %v3224 = vadd.f32 0.0, %v3223
    %v3225 = vpop.f32.mrb[0].mxu0
    %v3226 = vadd.f32 0.0, %v3225
    %v3227 = vpop.f32.mrb[0].mxu0
    %v3228 = vadd.f32 0.0, %v3227
    %v3229 = vpop.f32.mrb[0].mxu0
    %v3230 = vadd.f32 0.0, %v3229
    %3231 = vmatprep.mubr.bf16.mxu0 %v3127
    %3232 = vmatmul.mubr.bf16.gmra.mrb[0].mxu0 %v2976
    %v3233 = vpop.f32.mrb[0].mxu0
    %v3234 = vadd.f32 0.0, %v3233
    %v3235 = vpop.f32.mrb[0].mxu0
    %v3236 = vadd.f32 0.0, %v3235
    %v3237 = vpop.f32.mrb[0].mxu0
    %v3238 = vadd.f32 0.0, %v3237
    %v3239 = vpop.f32.mrb[0].mxu0
    %v3240 = vadd.f32 0.0, %v3239
    %3241 = vdwg.mxu0
    %v3266 = vunpack.c.l.b16 %v2855
    %v3267 = vunpack.c.h.b16 %v2855
    %v3268 = vunpack.c.l.b16 %v2856
    %v3269 = vunpack.c.h.b16 %v2856
    %v3270 = vunpack.c.l.b16 %v2857
    %v3271 = vunpack.c.h.b16 %v2857
    %v3272 = vunpack.c.l.b16 %v2858
    %v3273 = vunpack.c.h.b16 %v2858
    %v3274 = vunpack.c.l.b16 %v2859
    %v3275 = vunpack.c.h.b16 %v2859
    %v3276 = vunpack.c.l.b16 %v2860
    %v3277 = vunpack.c.h.b16 %v2860
    %v3278 = vunpack.c.l.b16 %v2861
    %v3279 = vunpack.c.h.b16 %v2861
    %v3280 = vunpack.c.l.b16 %v2862
    %v3281 = vunpack.c.h.b16 %v2862
    %v3282 = vunpack.c.l.b16 %v2863
    %v3283 = vunpack.c.h.b16 %v2863
    %v3284 = vunpack.c.l.b16 %v2864
    %v3285 = vunpack.c.h.b16 %v2864
    %v3286 = vunpack.c.l.b16 %v2865
    %v3287 = vunpack.c.h.b16 %v2865
    %v3288 = vunpack.c.l.b16 %v2866
    %v3289 = vunpack.c.h.b16 %v2866
    %v3290 = vunpack.c.l.b16 %v2867
    %v3291 = vunpack.c.h.b16 %v2867
    %v3292 = vunpack.c.l.b16 %v2868
    %v3293 = vunpack.c.h.b16 %v2868
    %v3294 = vunpack.c.l.b16 %v2869
    %v3295 = vunpack.c.h.b16 %v2869
    %v3296 = vunpack.c.l.b16 %v2870
    %v3297 = vunpack.c.h.b16 %v2870
    %v3298 = vunpack.c.l.b16 %v2871
    %v3299 = vunpack.c.h.b16 %v2871
    %v3300 = vunpack.c.l.b16 %v2872
    %v3301 = vunpack.c.h.b16 %v2872
    %v3302 = vunpack.c.l.b16 %v2873
    %v3303 = vunpack.c.h.b16 %v2873
    %v3304 = vunpack.c.l.b16 %v2874
    %v3305 = vunpack.c.h.b16 %v2874
    %v3306 = vunpack.c.l.b16 %v2875
    %v3307 = vunpack.c.h.b16 %v2875
    %v3308 = vunpack.c.l.b16 %v2876
    %v3309 = vunpack.c.h.b16 %v2876
    %v3310 = vunpack.c.l.b16 %v2877
    %v3311 = vunpack.c.h.b16 %v2877
    %v3312 = vunpack.c.l.b16 %v2878
    %v3313 = vunpack.c.h.b16 %v2878
    %v3314 = vpack.c.b16 %v3268, %v3266
    %v3315 = vpack.c.b16 %v3269, %v3267
    %v3316 = vpack.c.b16 %v3272, %v3270
    %v3317 = vpack.c.b16 %v3273, %v3271
    %v3318 = vpack.c.b16 %v3276, %v3274
    %v3319 = vpack.c.b16 %v3277, %v3275
    %v3320 = vpack.c.b16 %v3280, %v3278
    %v3321 = vpack.c.b16 %v3281, %v3279
    %v3322 = vpack.c.b16 %v3284, %v3282
    %v3323 = vpack.c.b16 %v3285, %v3283
    %v3324 = vpack.c.b16 %v3288, %v3286
    %v3325 = vpack.c.b16 %v3289, %v3287
    %v3326 = vpack.c.b16 %v3292, %v3290
    %v3327 = vpack.c.b16 %v3293, %v3291
    %v3328 = vpack.c.b16 %v3296, %v3294
    %v3329 = vpack.c.b16 %v3297, %v3295
    %v3330 = vpack.c.b16 %v3300, %v3298
    %v3331 = vpack.c.b16 %v3301, %v3299
    %v3332 = vpack.c.b16 %v3304, %v3302
    %v3333 = vpack.c.b16 %v3305, %v3303
    %v3334 = vpack.c.b16 %v3308, %v3306
    %v3335 = vpack.c.b16 %v3309, %v3307
    %v3336 = vpack.c.b16 %v3312, %v3310
    %v3337 = vpack.c.b16 %v3313, %v3311
    %v3363 = vsel %vm2757, %v2840, 0
    %v3366 = vsel %vm2757, %v2842, 0
    %v3369 = vsel %vm2757, %v2844, 0
    %v3372 = vsel %vm2757, %v2846, 0
    %v3375 = vsel %vm2757, %v2848, 0
    %v3378 = vsel %vm2757, %v2850, 0
    %v3381 = vsel %vm2757, %v2852, 0
    %v3384 = vsel %vm2757, %v2854, 0
    %3386 = vmatprep.subr.bf16.mxu0 %v3315
    %3387 = vmatpush1.bf16.msra.mxu0 %v3314
    %3388 = vmatprep.subr.bf16.mxu0 %v3317
    %3389 = vmatpush1.bf16.msra.mxu0 %v3316
    %3390 = vmatprep.subr.bf16.mxu0 %v3319
    %3391 = vmatpush1.bf16.msra.mxu0 %v3318
    %3392 = vmatprep.subr.bf16.mxu0 %v3321
    %3393 = vmatpush1.bf16.msra.mxu0 %v3320
    %3394 = vmatprep.subr.bf16.mxu0 %v3323
    %3395 = vmatpush1.bf16.msra.mxu0 %v3322
    %3396 = vmatprep.subr.bf16.mxu0 %v3325
    %3397 = vmatpush1.bf16.msra.mxu0 %v3324
    %3398 = vmatprep.subr.bf16.mxu0 %v3327
    %3399 = vmatpush1.bf16.msra.mxu0 %v3326
    %3400 = vmatprep.subr.bf16.mxu0 %v3329
    %3401 = vmatpush1.bf16.msra.mxu0 %v3328
    %3402 = vmatprep.subr.bf16.mxu0 %v3331
    %3403 = vmatpush1.bf16.msra.mxu0 %v3330
    %3404 = vmatprep.subr.bf16.mxu0 %v3333
    %3405 = vmatpush1.bf16.msra.mxu0 %v3332
    %3406 = vmatprep.subr.bf16.mxu0 %v3335
    %3407 = vmatpush1.bf16.msra.mxu0 %v3334
    %3408 = vmatprep.subr.bf16.mxu0 %v3337
    %3409 = vmatpush1.bf16.msra.mxu0 %v3336
    %3410 = vmatprep.subr.bf16.mxu0 0
    %3411 = vmatpush1.bf16.msra.mxu0 0
    %3412 = vmatprep.subr.bf16.mxu0 0
    %3413 = vmatpush1.bf16.msra.mxu0 0
    %3414 = vmatprep.subr.bf16.mxu0 0
    %3415 = vmatpush1.bf16.msra.mxu0 0
    %3416 = vmatprep.subr.bf16.mxu0 0
    %3417 = vmatpush1.bf16.msra.mxu0 0
    %3418 = vmatprep.mubr.bf16.mxu0 %v3363
    %3419 = vmatmul.mubr.bf16.gmra.mrb[0].mxu0 %v2839
    %v3420 = vpop.f32.mrb[0].mxu0
    %v3421 = vadd.f32 %v3164, %v3420
    %v3422 = vpop.f32.mrb[0].mxu0
    %v3423 = vadd.f32 %v3166, %v3422
    %v3424 = vpop.f32.mrb[0].mxu0
    %v3425 = vadd.f32 %v3168, %v3424
    %v3426 = vpop.f32.mrb[0].mxu0
    %v3427 = vadd.f32 %v3170, %v3426
    %3428 = vmatprep.mubr.bf16.mxu0 %v3366
    %3429 = vmatmul.mubr.bf16.gmra.mrb[0].mxu0 %v2841
    %v3430 = vpop.f32.mrb[0].mxu0
    %v3431 = vadd.f32 %v3174, %v3430
    %v3432 = vpop.f32.mrb[0].mxu0
    %v3433 = vadd.f32 %v3176, %v3432
    %v3434 = vpop.f32.mrb[0].mxu0
    %v3435 = vadd.f32 %v3178, %v3434
    %v3436 = vpop.f32.mrb[0].mxu0
    %v3437 = vadd.f32 %v3180, %v3436
    %3438 = vmatprep.mubr.bf16.mxu0 %v3369
    %3439 = vmatmul.mubr.bf16.gmra.mrb[0].mxu0 %v2843
    %v3440 = vpop.f32.mrb[0].mxu0
    %v3441 = vadd.f32 %v3184, %v3440
    %v3442 = vpop.f32.mrb[0].mxu0
    %v3443 = vadd.f32 %v3186, %v3442
    %v3444 = vpop.f32.mrb[0].mxu0
    %v3445 = vadd.f32 %v3188, %v3444
    %v3446 = vpop.f32.mrb[0].mxu0
    %v3447 = vadd.f32 %v3190, %v3446
    %3448 = vmatprep.mubr.bf16.mxu0 %v3372
    %3449 = vmatmul.mubr.bf16.gmra.mrb[0].mxu0 %v2845
    %v3450 = vpop.f32.mrb[0].mxu0
    %v3451 = vadd.f32 %v3194, %v3450
    %v3452 = vpop.f32.mrb[0].mxu0
    %v3453 = vadd.f32 %v3196, %v3452
    %v3454 = vpop.f32.mrb[0].mxu0
    %v3455 = vadd.f32 %v3198, %v3454
    %v3456 = vpop.f32.mrb[0].mxu0
    %v3457 = vadd.f32 %v3200, %v3456
    %3458 = vmatprep.mubr.bf16.mxu0 %v3375
    %3459 = vmatmul.mubr.bf16.gmra.mrb[0].mxu0 %v2847
    %v3460 = vpop.f32.mrb[0].mxu0
    %v3461 = vadd.f32 %v3204, %v3460
    %v3462 = vpop.f32.mrb[0].mxu0
    %v3463 = vadd.f32 %v3206, %v3462
    %v3464 = vpop.f32.mrb[0].mxu0
    %v3465 = vadd.f32 %v3208, %v3464
    %v3466 = vpop.f32.mrb[0].mxu0
    %v3467 = vadd.f32 %v3210, %v3466
    %3468 = vmatprep.mubr.bf16.mxu0 %v3378
    %3469 = vmatmul.mubr.bf16.gmra.mrb[0].mxu0 %v2849
    %v3470 = vpop.f32.mrb[0].mxu0
    %v3471 = vadd.f32 %v3214, %v3470
    %v3472 = vpop.f32.mrb[0].mxu0
    %v3473 = vadd.f32 %v3216, %v3472
    %v3474 = vpop.f32.mrb[0].mxu0
    %v3475 = vadd.f32 %v3218, %v3474
    %v3476 = vpop.f32.mrb[0].mxu0
    %v3477 = vadd.f32 %v3220, %v3476
    %3478 = vmatprep.mubr.bf16.mxu0 %v3381
    %3479 = vmatmul.mubr.bf16.gmra.mrb[0].mxu0 %v2851
    %v3480 = vpop.f32.mrb[0].mxu0
    %v3481 = vadd.f32 %v3224, %v3480
    %v3482 = vpop.f32.mrb[0].mxu0
    %v3483 = vadd.f32 %v3226, %v3482
    %v3484 = vpop.f32.mrb[0].mxu0
    %v3485 = vadd.f32 %v3228, %v3484
    %v3486 = vpop.f32.mrb[0].mxu0
    %v3487 = vadd.f32 %v3230, %v3486
    %3488 = vmatprep.mubr.bf16.mxu0 %v3384
    %3489 = vmatmul.mubr.bf16.gmra.mrb[0].mxu0 %v2853
    %v3490 = vpop.f32.mrb[0].mxu0
    %v3491 = vadd.f32 %v3234, %v3490
    %v3492 = vpop.f32.mrb[0].mxu0
    %v3493 = vadd.f32 %v3236, %v3492
    %v3494 = vpop.f32.mrb[0].mxu0
    %v3495 = vadd.f32 %v3238, %v3494
    %v3496 = vpop.f32.mrb[0].mxu0
    %v3497 = vadd.f32 %v3240, %v3496
    %3498 = vdwg.mxu0
    %v3499 = vrot.slane %v2068, 1
    %v3500 = vrot.slane %v2567, 1
    %v3501 = vrot.slane %v2072, 1
    %v3502 = vrot.slane %v2570, 1
    %v3503 = vrot.slane %v2078, 1
    %v3504 = vrot.slane %v2575, 1
    %v3505 = vrot.slane %v2082, 1
    %v3506 = vrot.slane %v2578, 1
    %v3507 = vrot.slane %v2088, 1
    %v3508 = vrot.slane %v2583, 1
    %v3509 = vrot.slane %v2092, 1
    %v3510 = vrot.slane %v2586, 1
    %v3511 = vrot.slane %v2098, 1
    %v3512 = vrot.slane %v2591, 1
    %v3513 = vrot.slane %v2102, 1
    %v3514 = vrot.slane %v2594, 1
    %v3515 = vrot.slane %v2108, 1
    %v3516 = vrot.slane %v2599, 1
    %v3517 = vrot.slane %v2112, 1
    %v3518 = vrot.slane %v2602, 1
    %v3519 = vrot.slane %v2118, 1
    %v3520 = vrot.slane %v2607, 1
    %v3521 = vrot.slane %v2122, 1
    %v3522 = vrot.slane %v2610, 1
    %v3523 = vrot.slane %v2128, 1
    %v3524 = vrot.slane %v2615, 1
    %v3525 = vrot.slane %v2132, 1
    %v3526 = vrot.slane %v2618, 1
    %v3527 = vrot.slane %v2138, 1
    %v3528 = vrot.slane %v2623, 1
    %v3529 = vrot.slane %v2142, 1
    %v3530 = vrot.slane %v2626, 1
    %vm3563 = vcmask 1046528
    %v3564 = vsel %vm3563, %v3499, 0.0
    %v3565 = vsel %vm3563, %v3500, 0.0
    %v3566 = vsel %vm3563, %v3501, 0.0
    %v3567 = vsel %vm3563, %v3502, 0.0
    %v3568 = vsel %vm3563, %v3503, 0.0
    %v3569 = vsel %vm3563, %v3504, 0.0
    %v3570 = vsel %vm3563, %v3505, 0.0
    %v3571 = vsel %vm3563, %v3506, 0.0
    %v3572 = vsel %vm3563, %v3507, 0.0
    %v3573 = vsel %vm3563, %v3508, 0.0
    %v3574 = vsel %vm3563, %v3509, 0.0
    %v3575 = vsel %vm3563, %v3510, 0.0
    %v3576 = vsel %vm3563, %v3511, 0.0
    %v3577 = vsel %vm3563, %v3512, 0.0
    %v3578 = vsel %vm3563, %v3513, 0.0
    %v3579 = vsel %vm3563, %v3514, 0.0
    %v3580 = vsel %vm3563, %v3515, 0.0
    %v3581 = vsel %vm3563, %v3516, 0.0
    %v3582 = vsel %vm3563, %v3517, 0.0
    %v3583 = vsel %vm3563, %v3518, 0.0
    %v3584 = vsel %vm3563, %v3519, 0.0
    %v3585 = vsel %vm3563, %v3520, 0.0
    %v3586 = vsel %vm3563, %v3521, 0.0
    %v3587 = vsel %vm3563, %v3522, 0.0
    %v3588 = vsel %vm3563, %v3523, 0.0
    %v3589 = vsel %vm3563, %v3524, 0.0
    %v3590 = vsel %vm3563, %v3525, 0.0
    %v3591 = vsel %vm3563, %v3526, 0.0
    %v3592 = vsel %vm3563, %v3527, 0.0
    %v3593 = vsel %vm3563, %v3528, 0.0
    %v3594 = vsel %vm3563, %v3529, 0.0
    %v3595 = vsel %vm3563, %v3530, 0.0
    %v3596 = vpack.c.bf16 %v3566, %v3564
    %v3597 = vpack.c.bf16 %v3567, %v3565
    %v3598 = vpack.c.bf16 %v3570, %v3568
    %v3599 = vpack.c.bf16 %v3571, %v3569
    %v3600 = vpack.c.bf16 %v3574, %v3572
    %v3601 = vpack.c.bf16 %v3575, %v3573
    %v3602 = vpack.c.bf16 %v3578, %v3576
    %v3603 = vpack.c.bf16 %v3579, %v3577
    %v3604 = vpack.c.bf16 %v3582, %v3580
    %v3605 = vpack.c.bf16 %v3583, %v3581
    %v3606 = vpack.c.bf16 %v3586, %v3584
    %v3607 = vpack.c.bf16 %v3587, %v3585
    %v3608 = vpack.c.bf16 %v3590, %v3588
    %v3609 = vpack.c.bf16 %v3591, %v3589
    %v3610 = vpack.c.bf16 %v3594, %v3592
    %v3611 = vpack.c.bf16 %v3595, %v3593
    %s3612 = scalar_lea.vmem [#allocation2], 384
    %v3613 = vld [vmem:[%s3612] sm:$0xff]
    %v3614 = vld [vmem:[%s3612 + $0x8] sm:$0xff]
    %v3615 = vld [vmem:[%s3612 + $0x10] sm:$0xff]
    %v3616 = vld [vmem:[%s3612 + $0x18] sm:$0xff]
    %v3617 = vld [vmem:[%s3612 + $0x20] sm:$0xff]
    %v3618 = vld [vmem:[%s3612 + $0x28] sm:$0xff]
    %v3619 = vld [vmem:[%s3612 + $0x30] sm:$0xff]
    %v3620 = vld [vmem:[%s3612 + $0x38] sm:$0xff]
    %v3621 = vld [vmem:[%s3612 + $0x40] sm:$0xff]
    %v3622 = vld [vmem:[%s3612 + $0x48] sm:$0xff]
    %v3623 = vld [vmem:[%s3612 + $0x50] sm:$0xff]
    %v3624 = vld [vmem:[%s3612 + $0x58] sm:$0xff]
    %v3625 = vld [vmem:[%s3612 + $0x60] sm:$0xff]
    %v3626 = vld [vmem:[%s3612 + $0x68] sm:$0xff]
    %v3627 = vld [vmem:[%s3612 + $0x70] sm:$0xff]
    %v3628 = vld [vmem:[%s3612 + $0x78] sm:$0xff]
    %v3629 = vld [vmem:[%s3612 + $0x80] sm:$0xff]
    %v3630 = vld [vmem:[%s3612 + $0x88] sm:$0xff]
    %v3631 = vld [vmem:[%s3612 + $0x90] sm:$0xff]
    %v3632 = vld [vmem:[%s3612 + $0x98] sm:$0xff]
    %v3633 = vld [vmem:[%s3612 + $0xa0] sm:$0xff]
    %v3634 = vld [vmem:[%s3612 + $0xa8] sm:$0xff]
    %v3635 = vld [vmem:[%s3612 + $0xb0] sm:$0xff]
    %v3636 = vld [vmem:[%s3612 + $0xb8] sm:$0xff]
    %3653 = vrot.lane.b32.xlu0 %v3596, 64
    %v3654 = vpop.permute.xlu0 %3653
    %3655 = vrot.lane.b32.xlu0 %v3597, 64
    %v3656 = vpop.permute.xlu0 %3655
    %3657 = vrot.lane.b32.xlu0 %v3598, 64
    %v3658 = vpop.permute.xlu0 %3657
    %3659 = vrot.lane.b32.xlu0 %v3599, 64
    %v3660 = vpop.permute.xlu0 %3659
    %3661 = vrot.lane.b32.xlu0 %v3600, 64
    %v3662 = vpop.permute.xlu0 %3661
    %3663 = vrot.lane.b32.xlu0 %v3601, 64
    %v3664 = vpop.permute.xlu0 %3663
    %3665 = vrot.lane.b32.xlu0 %v3602, 64
    %v3666 = vpop.permute.xlu0 %3665
    %3667 = vrot.lane.b32.xlu0 %v3603, 64
    %v3668 = vpop.permute.xlu0 %3667
    %3669 = vrot.lane.b32.xlu0 %v3604, 64
    %v3670 = vpop.permute.xlu0 %3669
    %3671 = vrot.lane.b32.xlu0 %v3605, 64
    %v3672 = vpop.permute.xlu0 %3671
    %3673 = vrot.lane.b32.xlu0 %v3606, 64
    %v3674 = vpop.permute.xlu0 %3673
    %3675 = vrot.lane.b32.xlu0 %v3607, 64
    %v3676 = vpop.permute.xlu0 %3675
    %3677 = vrot.lane.b32.xlu0 %v3608, 64
    %v3678 = vpop.permute.xlu0 %3677
    %3679 = vrot.lane.b32.xlu0 %v3609, 64
    %v3680 = vpop.permute.xlu0 %3679
    %3681 = vrot.lane.b32.xlu0 %v3610, 64
    %v3682 = vpop.permute.xlu0 %3681
    %3683 = vrot.lane.b32.xlu0 %v3611, 64
    %v3684 = vpop.permute.xlu0 %3683
    %v3685 = vsel %vm2968, %v3654, %v3656
    %v3686 = vsel %vm2968, %v3658, %v3660
    %v3687 = vsel %vm2968, %v3662, %v3664
    %v3688 = vsel %vm2968, %v3666, %v3668
    %v3689 = vsel %vm2968, %v3670, %v3672
    %v3690 = vsel %vm2968, %v3674, %v3676
    %v3691 = vsel %vm2968, %v3678, %v3680
    %v3692 = vsel %vm2968, %v3682, %v3684
    %v3725 = vunpack.c.l.b16 %v3613
    %v3726 = vunpack.c.h.b16 %v3613
    %v3727 = vunpack.c.l.b16 %v3614
    %v3728 = vunpack.c.h.b16 %v3614
    %v3729 = vunpack.c.l.b16 %v3615
    %v3730 = vunpack.c.h.b16 %v3615
    %v3731 = vunpack.c.l.b16 %v3616
    %v3732 = vunpack.c.h.b16 %v3616
    %v3733 = vunpack.c.l.b16 %v3617
    %v3734 = vunpack.c.h.b16 %v3617
    %v3735 = vunpack.c.l.b16 %v3618
    %v3736 = vunpack.c.h.b16 %v3618
    %v3737 = vunpack.c.l.b16 %v3619
    %v3738 = vunpack.c.h.b16 %v3619
    %v3739 = vunpack.c.l.b16 %v3620
    %v3740 = vunpack.c.h.b16 %v3620
    %v3741 = vunpack.c.l.b16 %v3621
    %v3742 = vunpack.c.h.b16 %v3621
    %v3743 = vunpack.c.l.b16 %v3622
    %v3744 = vunpack.c.h.b16 %v3622
    %v3745 = vunpack.c.l.b16 %v3623
    %v3746 = vunpack.c.h.b16 %v3623
    %v3747 = vunpack.c.l.b16 %v3624
    %v3748 = vunpack.c.h.b16 %v3624
    %v3749 = vunpack.c.l.b16 %v3625
    %v3750 = vunpack.c.h.b16 %v3625
    %v3751 = vunpack.c.l.b16 %v3626
    %v3752 = vunpack.c.h.b16 %v3626
    %v3753 = vunpack.c.l.b16 %v3627
    %v3754 = vunpack.c.h.b16 %v3627
    %v3755 = vunpack.c.l.b16 %v3628
    %v3756 = vunpack.c.h.b16 %v3628
    %v3757 = vunpack.c.l.b16 %v3629
    %v3758 = vunpack.c.h.b16 %v3629
    %v3759 = vunpack.c.l.b16 %v3630
    %v3760 = vunpack.c.h.b16 %v3630
    %v3761 = vunpack.c.l.b16 %v3631
    %v3762 = vunpack.c.h.b16 %v3631
    %v3763 = vunpack.c.l.b16 %v3632
    %v3764 = vunpack.c.h.b16 %v3632
    %v3765 = vunpack.c.l.b16 %v3633
    %v3766 = vunpack.c.h.b16 %v3633
    %v3767 = vunpack.c.l.b16 %v3634
    %v3768 = vunpack.c.h.b16 %v3634
    %v3769 = vunpack.c.l.b16 %v3635
    %v3770 = vunpack.c.h.b16 %v3635
    %v3771 = vunpack.c.l.b16 %v3636
    %v3772 = vunpack.c.h.b16 %v3636
    %v3773 = vpack.c.b16 %v3727, %v3725
    %v3774 = vpack.c.b16 %v3728, %v3726
    %v3775 = vpack.c.b16 %v3731, %v3729
    %v3776 = vpack.c.b16 %v3732, %v3730
    %v3777 = vpack.c.b16 %v3735, %v3733
    %v3778 = vpack.c.b16 %v3736, %v3734
    %v3779 = vpack.c.b16 %v3739, %v3737
    %v3780 = vpack.c.b16 %v3740, %v3738
    %v3781 = vpack.c.b16 %v3743, %v3741
    %v3782 = vpack.c.b16 %v3744, %v3742
    %v3783 = vpack.c.b16 %v3747, %v3745
    %v3784 = vpack.c.b16 %v3748, %v3746
    %v3785 = vpack.c.b16 %v3751, %v3749
    %v3786 = vpack.c.b16 %v3752, %v3750
    %v3787 = vpack.c.b16 %v3755, %v3753
    %v3788 = vpack.c.b16 %v3756, %v3754
    %v3789 = vpack.c.b16 %v3759, %v3757
    %v3790 = vpack.c.b16 %v3760, %v3758
    %v3791 = vpack.c.b16 %v3763, %v3761
    %v3792 = vpack.c.b16 %v3764, %v3762
    %v3793 = vpack.c.b16 %v3767, %v3765
    %v3794 = vpack.c.b16 %v3768, %v3766
    %v3795 = vpack.c.b16 %v3771, %v3769
    %v3796 = vpack.c.b16 %v3772, %v3770
    %v3822 = vsel %vm2757, %v3656, 0
    %v3825 = vsel %vm2757, %v3660, 0
    %v3828 = vsel %vm2757, %v3664, 0
    %v3831 = vsel %vm2757, %v3668, 0
    %v3834 = vsel %vm2757, %v3672, 0
    %v3837 = vsel %vm2757, %v3676, 0
    %v3840 = vsel %vm2757, %v3680, 0
    %v3843 = vsel %vm2757, %v3684, 0
    %3845 = vmatprep.subr.bf16.mxu0 %v3774
    %3846 = vmatpush1.bf16.msra.mxu0 %v3773
    %3847 = vmatprep.subr.bf16.mxu0 %v3776
    %3848 = vmatpush1.bf16.msra.mxu0 %v3775
    %3849 = vmatprep.subr.bf16.mxu0 %v3778
    %3850 = vmatpush1.bf16.msra.mxu0 %v3777
    %3851 = vmatprep.subr.bf16.mxu0 %v3780
    %3852 = vmatpush1.bf16.msra.mxu0 %v3779
    %3853 = vmatprep.subr.bf16.mxu0 %v3782
    %3854 = vmatpush1.bf16.msra.mxu0 %v3781
    %3855 = vmatprep.subr.bf16.mxu0 %v3784
    %3856 = vmatpush1.bf16.msra.mxu0 %v3783
    %3857 = vmatprep.subr.bf16.mxu0 %v3786
    %3858 = vmatpush1.bf16.msra.mxu0 %v3785
    %3859 = vmatprep.subr.bf16.mxu0 %v3788
    %3860 = vmatpush1.bf16.msra.mxu0 %v3787
    %3861 = vmatprep.subr.bf16.mxu0 %v3790
    %3862 = vmatpush1.bf16.msra.mxu0 %v3789
    %3863 = vmatprep.subr.bf16.mxu0 %v3792
    %3864 = vmatpush1.bf16.msra.mxu0 %v3791
    %3865 = vmatprep.subr.bf16.mxu0 %v3794
    %3866 = vmatpush1.bf16.msra.mxu0 %v3793
    %3867 = vmatprep.subr.bf16.mxu0 %v3796
    %3868 = vmatpush1.bf16.msra.mxu0 %v3795
    %3869 = vmatprep.subr.bf16.mxu0 0
    %3870 = vmatpush1.bf16.msra.mxu0 0
    %3871 = vmatprep.subr.bf16.mxu0 0
    %3872 = vmatpush1.bf16.msra.mxu0 0
    %3873 = vmatprep.subr.bf16.mxu0 0
    %3874 = vmatpush1.bf16.msra.mxu0 0
    %3875 = vmatprep.subr.bf16.mxu0 0
    %3876 = vmatpush1.bf16.msra.mxu0 0
    %3877 = vmatprep.mubr.bf16.mxu0 %v3822
    %3878 = vmatmul.mubr.bf16.gmra.mrb[0].mxu0 %v3685
    %v3879 = vpop.f32.mrb[0].mxu0
    %v3880 = vadd.f32 0.0, %v3879
    %v3881 = vpop.f32.mrb[0].mxu0
    %v3882 = vadd.f32 0.0, %v3881
    %v3883 = vpop.f32.mrb[0].mxu0
    %v3884 = vadd.f32 0.0, %v3883
    %v3885 = vpop.f32.mrb[0].mxu0
    %v3886 = vadd.f32 0.0, %v3885
    %3887 = vmatprep.mubr.bf16.mxu0 %v3825
    %3888 = vmatmul.mubr.bf16.gmra.mrb[0].mxu0 %v3686
    %v3889 = vpop.f32.mrb[0].mxu0
    %v3890 = vadd.f32 0.0, %v3889
    %v3891 = vpop.f32.mrb[0].mxu0
    %v3892 = vadd.f32 0.0, %v3891
    %v3893 = vpop.f32.mrb[0].mxu0
    %v3894 = vadd.f32 0.0, %v3893
    %v3895 = vpop.f32.mrb[0].mxu0
    %v3896 = vadd.f32 0.0, %v3895
    %3897 = vmatprep.mubr.bf16.mxu0 %v3828
    %3898 = vmatmul.mubr.bf16.gmra.mrb[0].mxu0 %v3687
    %v3899 = vpop.f32.mrb[0].mxu0
    %v3900 = vadd.f32 0.0, %v3899
    %v3901 = vpop.f32.mrb[0].mxu0
    %v3902 = vadd.f32 0.0, %v3901
    %v3903 = vpop.f32.mrb[0].mxu0
    %v3904 = vadd.f32 0.0, %v3903
    %v3905 = vpop.f32.mrb[0].mxu0
    %v3906 = vadd.f32 0.0, %v3905
    %3907 = vmatprep.mubr.bf16.mxu0 %v3831
    %3908 = vmatmul.mubr.bf16.gmra.mrb[0].mxu0 %v3688
    %v3909 = vpop.f32.mrb[0].mxu0
    %v3910 = vadd.f32 0.0, %v3909
    %v3911 = vpop.f32.mrb[0].mxu0
    %v3912 = vadd.f32 0.0, %v3911
    %v3913 = vpop.f32.mrb[0].mxu0
    %v3914 = vadd.f32 0.0, %v3913
    %v3915 = vpop.f32.mrb[0].mxu0
    %v3916 = vadd.f32 0.0, %v3915
    %3917 = vmatprep.mubr.bf16.mxu0 %v3834
    %3918 = vmatmul.mubr.bf16.gmra.mrb[0].mxu0 %v3689
    %v3919 = vpop.f32.mrb[0].mxu0
    %v3920 = vadd.f32 0.0, %v3919
    %v3921 = vpop.f32.mrb[0].mxu0
    %v3922 = vadd.f32 0.0, %v3921
    %v3923 = vpop.f32.mrb[0].mxu0
    %v3924 = vadd.f32 0.0, %v3923
    %v3925 = vpop.f32.mrb[0].mxu0
    %v3926 = vadd.f32 0.0, %v3925
    %3927 = vmatprep.mubr.bf16.mxu0 %v3837
    %3928 = vmatmul.mubr.bf16.gmra.mrb[0].mxu0 %v3690
    %v3929 = vpop.f32.mrb[0].mxu0
    %v3930 = vadd.f32 0.0, %v3929
    %v3931 = vpop.f32.mrb[0].mxu0
    %v3932 = vadd.f32 0.0, %v3931
    %v3933 = vpop.f32.mrb[0].mxu0
    %v3934 = vadd.f32 0.0, %v3933
    %v3935 = vpop.f32.mrb[0].mxu0
    %v3936 = vadd.f32 0.0, %v3935
    %3937 = vmatprep.mubr.bf16.mxu0 %v3840
    %3938 = vmatmul.mubr.bf16.gmra.mrb[0].mxu0 %v3691
    %v3939 = vpop.f32.mrb[0].mxu0
    %v3940 = vadd.f32 0.0, %v3939
    %v3941 = vpop.f32.mrb[0].mxu0
    %v3942 = vadd.f32 0.0, %v3941
    %v3943 = vpop.f32.mrb[0].mxu0
    %v3944 = vadd.f32 0.0, %v3943
    %v3945 = vpop.f32.mrb[0].mxu0
    %v3946 = vadd.f32 0.0, %v3945
    %3947 = vmatprep.mubr.bf16.mxu0 %v3843
    %3948 = vmatmul.mubr.bf16.gmra.mrb[0].mxu0 %v3692
    %v3949 = vpop.f32.mrb[0].mxu0
    %v3950 = vadd.f32 0.0, %v3949
    %v3951 = vpop.f32.mrb[0].mxu0
    %v3952 = vadd.f32 0.0, %v3951
    %v3953 = vpop.f32.mrb[0].mxu0
    %v3954 = vadd.f32 0.0, %v3953
    %v3955 = vpop.f32.mrb[0].mxu0
    %v3956 = vadd.f32 0.0, %v3955
    %3957 = vdwg.mxu0
    %v3958 = vadd.f32 %v3421, %v3880
    %v3959 = vadd.f32 %v3423, %v3882
    %v3960 = vadd.f32 %v3425, %v3884
    %v3961 = vadd.f32 %v3427, %v3886
    %v3962 = vadd.f32 %v3431, %v3890
    %v3963 = vadd.f32 %v3433, %v3892
    %v3964 = vadd.f32 %v3435, %v3894
    %v3965 = vadd.f32 %v3437, %v3896
    %v3966 = vadd.f32 %v3441, %v3900
    %v3967 = vadd.f32 %v3443, %v3902
    %v3968 = vadd.f32 %v3445, %v3904
    %v3969 = vadd.f32 %v3447, %v3906
    %v3970 = vadd.f32 %v3451, %v3910
    %v3971 = vadd.f32 %v3453, %v3912
    %v3972 = vadd.f32 %v3455, %v3914
    %v3973 = vadd.f32 %v3457, %v3916
    %v3974 = vadd.f32 %v3461, %v3920
    %v3975 = vadd.f32 %v3463, %v3922
    %v3976 = vadd.f32 %v3465, %v3924
    %v3977 = vadd.f32 %v3467, %v3926
    %v3978 = vadd.f32 %v3471, %v3930
    %v3979 = vadd.f32 %v3473, %v3932
    %v3980 = vadd.f32 %v3475, %v3934
    %v3981 = vadd.f32 %v3477, %v3936
    %v3982 = vadd.f32 %v3481, %v3940
    %v3983 = vadd.f32 %v3483, %v3942
    %v3984 = vadd.f32 %v3485, %v3944
    %v3985 = vadd.f32 %v3487, %v3946
    %v3986 = vadd.f32 %v3491, %v3950
    %v3987 = vadd.f32 %v3493, %v3952
    %v3988 = vadd.f32 %v3495, %v3954
    %v3989 = vadd.f32 %v3497, %v3956
    %v3990 = vpack.c.bf16 %v3958, 0.0
    %v3991 = vpack.c.bf16 %v3959, 0.0
    %v3992 = vpack.c.bf16 %v3962, %v3960
    %v3993 = vpack.c.bf16 %v3963, %v3961
    %v3994 = vpack.c.bf16 %v3966, %v3964
    %v3995 = vpack.c.bf16 %v3967, %v3965
    %v3996 = vpack.c.bf16 %v3970, %v3968
    %v3997 = vpack.c.bf16 %v3971, %v3969
    %v3998 = vpack.c.bf16 %v3974, 0.0
    %v3999 = vpack.c.bf16 %v3975, 0.0
    %v4000 = vpack.c.bf16 %v3978, %v3976
    %v4001 = vpack.c.bf16 %v3979, %v3977
    %v4002 = vpack.c.bf16 %v3982, %v3980
    %v4003 = vpack.c.bf16 %v3983, %v3981
    %v4004 = vpack.c.bf16 %v3986, %v3984
    %v4005 = vpack.c.bf16 %v3987, %v3985
    %v4006 = vld [vmem:[%s3] sm:$0xff]
    %v4007 = vld [vmem:[%s3 + $0x8] sm:$0xff]
    %v4008 = vld [vmem:[%s3 + $0x10] sm:$0xff]
    %v4009 = vld [vmem:[%s3 + $0x18] sm:$0xff]
    %v4010 = vld [vmem:[%s3 + $0x20] sm:$0xff]
    %v4011 = vld [vmem:[%s3 + $0x28] sm:$0xff]
    %v4012 = vld [vmem:[%s3 + $0x30] sm:$0xff]
    %v4013 = vld [vmem:[%s3 + $0x38] sm:$0xff]
    %v4014 = vld [vmem:[%s3 + $0x40] sm:$0xff]
    %v4015 = vld [vmem:[%s3 + $0x48] sm:$0xff]
    %v4016 = vld [vmem:[%s3 + $0x50] sm:$0xff]
    %v4017 = vld [vmem:[%s3 + $0x58] sm:$0xff]
    %v4018 = vld [vmem:[%s3 + $0x60] sm:$0xff]
    %v4019 = vld [vmem:[%s3 + $0x68] sm:$0xff]
    %v4020 = vld [vmem:[%s3 + $0x70] sm:$0xff]
    %v4021 = vld [vmem:[%s3 + $0x78] sm:$0xff]
    %v4022 = vld [vmem:[%s3 + $0x80] sm:$0xff]
    %v4023 = vld [vmem:[%s3 + $0x88] sm:$0xff]
    %v4024 = vld [vmem:[%s3 + $0x90] sm:$0xff]
    %v4025 = vld [vmem:[%s3 + $0x98] sm:$0xff]
    %v4026 = vld [vmem:[%s3 + $0xa0] sm:$0xff]
    %v4027 = vld [vmem:[%s3 + $0xa8] sm:$0xff]
    %v4028 = vld [vmem:[%s3 + $0xb0] sm:$0xff]
    %v4029 = vld [vmem:[%s3 + $0xb8] sm:$0xff]
    %v4030 = vld [vmem:[%s3 + $0xc0] sm:$0xff]
    %v4031 = vld [vmem:[%s3 + $0xc8] sm:$0xff]
    %v4032 = vld [vmem:[%s3 + $0xd0] sm:$0xff]
    %v4033 = vld [vmem:[%s3 + $0xd8] sm:$0xff]
    %v4034 = vpack.c.bf16 %v3960, %v3958
    %v4035 = vpack.c.bf16 %v3961, %v3959
    %v4036 = vpack.c.bf16 %v3964, %v3962
    %v4037 = vpack.c.bf16 %v3965, %v3963
    %v4038 = vpack.c.bf16 %v3968, %v3966
    %v4039 = vpack.c.bf16 %v3969, %v3967
    %v4040 = vpack.c.bf16 %v3972, %v3970
    %v4041 = vpack.c.bf16 %v3973, %v3971
    %v4042 = vpack.c.bf16 %v3976, %v3974
    %v4043 = vpack.c.bf16 %v3977, %v3975
    %v4044 = vpack.c.bf16 %v3980, %v3978
    %v4045 = vpack.c.bf16 %v3981, %v3979
    %v4046 = vpack.c.bf16 %v3984, %v3982
    %v4047 = vpack.c.bf16 %v3985, %v3983
    %v4048 = vpack.c.bf16 %v3988, %v3986
    %v4049 = vpack.c.bf16 %v3989, %v3987
    %s4050 = scalar_lea.vmem %s3, 224
    %v4051 = vld [vmem:[%s4050] sm:$0xff]
    %v4052 = vld [vmem:[%s4050 + $0x8] sm:$0xff]
    %v4053 = vld [vmem:[%s4050 + $0x10] sm:$0xff]
    %v4054 = vld [vmem:[%s4050 + $0x18] sm:$0xff]
    %v4055 = vld [vmem:[%s4050 + $0x20] sm:$0xff]
    %v4056 = vld [vmem:[%s4050 + $0x28] sm:$0xff]
    %v4057 = vld [vmem:[%s4050 + $0x30] sm:$0xff]
    %v4058 = vld [vmem:[%s4050 + $0x38] sm:$0xff]
    %v4059 = vld [vmem:[%s4050 + $0x40] sm:$0xff]
    %v4060 = vld [vmem:[%s4050 + $0x48] sm:$0xff]
    %v4061 = vld [vmem:[%s4050 + $0x50] sm:$0xff]
    %v4062 = vld [vmem:[%s4050 + $0x58] sm:$0xff]
    %v4063 = vld [vmem:[%s4050 + $0x60] sm:$0xff]
    %v4064 = vld [vmem:[%s4050 + $0x68] sm:$0xff]
    %v4065 = vld [vmem:[%s4050 + $0x70] sm:$0xff]
    %v4066 = vld [vmem:[%s4050 + $0x78] sm:$0xff]
    %v4067 = vld [vmem:[%s4050 + $0x80] sm:$0xff]
    %v4068 = vld [vmem:[%s4050 + $0x88] sm:$0xff]
    %v4069 = vld [vmem:[%s4050 + $0x90] sm:$0xff]
    %v4070 = vld [vmem:[%s4050 + $0x98] sm:$0xff]
    %v4071 = vld [vmem:[%s4050 + $0xa0] sm:$0xff]
    %v4072 = vld [vmem:[%s4050 + $0xa8] sm:$0xff]
    %v4073 = vld [vmem:[%s4050 + $0xb0] sm:$0xff]
    %v4074 = vld [vmem:[%s4050 + $0xb8] sm:$0xff]
    %v4075 = vld [vmem:[%s4050 + $0xc0] sm:$0xff]
    %v4076 = vld [vmem:[%s4050 + $0xc8] sm:$0xff]
    %v4077 = vld [vmem:[%s4050 + $0xd0] sm:$0xff]
    %v4078 = vld [vmem:[%s4050 + $0xd8] sm:$0xff]
    %v4107 = vunpack.c.l.b16 %v4051
    %v4108 = vunpack.c.h.b16 %v4051
    %v4109 = vunpack.c.l.b16 %v4052
    %v4110 = vunpack.c.h.b16 %v4052
    %v4111 = vunpack.c.l.b16 %v4053
    %v4112 = vunpack.c.h.b16 %v4053
    %v4113 = vunpack.c.l.b16 %v4054
    %v4114 = vunpack.c.h.b16 %v4054
    %v4115 = vunpack.c.l.b16 %v4055
    %v4116 = vunpack.c.h.b16 %v4055
    %v4117 = vunpack.c.l.b16 %v4056
    %v4118 = vunpack.c.h.b16 %v4056
    %v4119 = vunpack.c.l.b16 %v4057
    %v4120 = vunpack.c.h.b16 %v4057
    %v4121 = vunpack.c.l.b16 %v4058
    %v4122 = vunpack.c.h.b16 %v4058
    %v4123 = vunpack.c.l.b16 %v4059
    %v4124 = vunpack.c.h.b16 %v4059
    %v4125 = vunpack.c.l.b16 %v4060
    %v4126 = vunpack.c.h.b16 %v4060
    %v4127 = vunpack.c.l.b16 %v4061
    %v4128 = vunpack.c.h.b16 %v4061
    %v4129 = vunpack.c.l.b16 %v4062
    %v4130 = vunpack.c.h.b16 %v4062
    %v4131 = vunpack.c.l.b16 %v4063
    %v4132 = vunpack.c.h.b16 %v4063
    %v4133 = vunpack.c.l.b16 %v4064
    %v4134 = vunpack.c.h.b16 %v4064
    %v4135 = vunpack.c.l.b16 %v4065
    %v4136 = vunpack.c.h.b16 %v4065
    %v4137 = vunpack.c.l.b16 %v4066
    %v4138 = vunpack.c.h.b16 %v4066
    %v4139 = vunpack.c.l.b16 %v4067
    %v4140 = vunpack.c.h.b16 %v4067
    %v4141 = vunpack.c.l.b16 %v4068
    %v4142 = vunpack.c.h.b16 %v4068
    %v4143 = vunpack.c.l.b16 %v4069
    %v4144 = vunpack.c.h.b16 %v4069
    %v4145 = vunpack.c.l.b16 %v4070
    %v4146 = vunpack.c.h.b16 %v4070
    %v4147 = vunpack.c.l.b16 %v4071
    %v4148 = vunpack.c.h.b16 %v4071
    %v4149 = vunpack.c.l.b16 %v4072
    %v4150 = vunpack.c.h.b16 %v4072
    %v4151 = vunpack.c.l.b16 %v4073
    %v4152 = vunpack.c.h.b16 %v4073
    %v4153 = vunpack.c.l.b16 %v4074
    %v4154 = vunpack.c.h.b16 %v4074
    %v4155 = vunpack.c.l.b16 %v4075
    %v4156 = vunpack.c.h.b16 %v4075
    %v4157 = vunpack.c.l.b16 %v4076
    %v4158 = vunpack.c.h.b16 %v4076
    %v4159 = vunpack.c.l.b16 %v4077
    %v4160 = vunpack.c.h.b16 %v4077
    %v4161 = vunpack.c.l.b16 %v4078
    %v4162 = vunpack.c.h.b16 %v4078
    %v4163 = vpack.c.b16 %v4109, %v4107
    %v4164 = vpack.c.b16 %v4110, %v4108
    %v4165 = vpack.c.b16 %v4113, %v4111
    %v4166 = vpack.c.b16 %v4114, %v4112
    %v4167 = vpack.c.b16 %v4117, %v4115
    %v4168 = vpack.c.b16 %v4118, %v4116
    %v4169 = vpack.c.b16 %v4121, %v4119
    %v4170 = vpack.c.b16 %v4122, %v4120
    %v4171 = vpack.c.b16 %v4125, %v4123
    %v4172 = vpack.c.b16 %v4126, %v4124
    %v4173 = vpack.c.b16 %v4129, %v4127
    %v4174 = vpack.c.b16 %v4130, %v4128
    %v4175 = vpack.c.b16 %v4133, %v4131
    %v4176 = vpack.c.b16 %v4134, %v4132
    %v4177 = vpack.c.b16 %v4137, %v4135
    %v4178 = vpack.c.b16 %v4138, %v4136
    %v4179 = vpack.c.b16 %v4141, %v4139
    %v4180 = vpack.c.b16 %v4142, %v4140
    %v4181 = vpack.c.b16 %v4145, %v4143
    %v4182 = vpack.c.b16 %v4146, %v4144
    %v4183 = vpack.c.b16 %v4149, %v4147
    %v4184 = vpack.c.b16 %v4150, %v4148
    %v4185 = vpack.c.b16 %v4153, %v4151
    %v4186 = vpack.c.b16 %v4154, %v4152
    %v4187 = vpack.c.b16 %v4157, %v4155
    %v4188 = vpack.c.b16 %v4158, %v4156
    %v4189 = vpack.c.b16 %v4161, %v4159
    %v4190 = vpack.c.b16 %v4162, %v4160
    %vm4219 = vcmask 785408
    %v4221 = vsel %vm4219, %v4035, 0
    %v4224 = vsel %vm4219, %v4037, 0
    %v4227 = vsel %vm4219, %v4039, 0
    %v4230 = vsel %vm4219, %v4041, 0
    %v4233 = vsel %vm4219, %v4043, 0
    %v4236 = vsel %vm4219, %v4045, 0
    %v4239 = vsel %vm4219, %v4047, 0
    %v4242 = vsel %vm4219, %v4049, 0
    %4244 = vmatprep.subr.bf16.mxu0 %v4164
    %4245 = vmatpush1.bf16.msra.mxu0 %v4163
    %4246 = vmatprep.subr.bf16.mxu0 %v4166
    %4247 = vmatpush1.bf16.msra.mxu0 %v4165
    %4248 = vmatprep.subr.bf16.mxu0 %v4168
    %4249 = vmatpush1.bf16.msra.mxu0 %v4167
    %4250 = vmatprep.subr.bf16.mxu0 %v4170
    %4251 = vmatpush1.bf16.msra.mxu0 %v4169
    %4252 = vmatprep.subr.bf16.mxu0 %v4172
    %4253 = vmatpush1.bf16.msra.mxu0 %v4171
    %4254 = vmatprep.subr.bf16.mxu0 %v4174
    %4255 = vmatpush1.bf16.msra.mxu0 %v4173
    %4256 = vmatprep.subr.bf16.mxu0 %v4176
    %4257 = vmatpush1.bf16.msra.mxu0 %v4175
    %4258 = vmatprep.subr.bf16.mxu0 %v4178
    %4259 = vmatpush1.bf16.msra.mxu0 %v4177
    %4260 = vmatprep.subr.bf16.mxu0 %v4180
    %4261 = vmatpush1.bf16.msra.mxu0 %v4179
    %4262 = vmatprep.subr.bf16.mxu0 %v4182
    %4263 = vmatpush1.bf16.msra.mxu0 %v4181
    %4264 = vmatprep.subr.bf16.mxu0 %v4184
    %4265 = vmatpush1.bf16.msra.mxu0 %v4183
    %4266 = vmatprep.subr.bf16.mxu0 %v4186
    %4267 = vmatpush1.bf16.msra.mxu0 %v4185
    %4268 = vmatprep.subr.bf16.mxu0 %v4188
    %4269 = vmatpush1.bf16.msra.mxu0 %v4187
    %4270 = vmatprep.subr.bf16.mxu0 %v4190
    %4271 = vmatpush1.bf16.msra.mxu0 %v4189
    %4272 = vmatprep.subr.bf16.mxu0 0
    %4273 = vmatpush1.bf16.msra.mxu0 0
    %4274 = vmatprep.subr.bf16.mxu0 0
    %4275 = vmatpush1.bf16.msra.mxu0 0
    %4276 = vmatprep.mubr.bf16.mxu0 %v4221
    %4277 = vmatmul.mubr.bf16.gmra.mrb[0].mxu0 %v4034
    %v4278 = vpop.f32.mrb[0].mxu0
    %v4279 = vadd.f32 0.0, %v4278
    %v4280 = vpop.f32.mrb[0].mxu0
    %v4281 = vadd.f32 0.0, %v4280
    %v4282 = vpop.f32.mrb[0].mxu0
    %v4283 = vadd.f32 0.0, %v4282
    %v4284 = vpop.f32.mrb[0].mxu0
    %v4285 = vadd.f32 0.0, %v4284
    %4286 = vmatprep.mubr.bf16.mxu0 %v4224
    %4287 = vmatmul.mubr.bf16.gmra.mrb[0].mxu0 %v4036
    %v4288 = vpop.f32.mrb[0].mxu0
    %v4289 = vadd.f32 0.0, %v4288
    %v4290 = vpop.f32.mrb[0].mxu0
    %v4291 = vadd.f32 0.0, %v4290
    %v4292 = vpop.f32.mrb[0].mxu0
    %v4293 = vadd.f32 0.0, %v4292
    %v4294 = vpop.f32.mrb[0].mxu0
    %v4295 = vadd.f32 0.0, %v4294
    %4296 = vmatprep.mubr.bf16.mxu0 %v4227
    %4297 = vmatmul.mubr.bf16.gmra.mrb[0].mxu0 %v4038
    %v4298 = vpop.f32.mrb[0].mxu0
    %v4299 = vadd.f32 0.0, %v4298
    %v4300 = vpop.f32.mrb[0].mxu0
    %v4301 = vadd.f32 0.0, %v4300
    %v4302 = vpop.f32.mrb[0].mxu0
    %v4303 = vadd.f32 0.0, %v4302
    %v4304 = vpop.f32.mrb[0].mxu0
    %v4305 = vadd.f32 0.0, %v4304
    %4306 = vmatprep.mubr.bf16.mxu0 %v4230
    %4307 = vmatmul.mubr.bf16.gmra.mrb[0].mxu0 %v4040
    %v4308 = vpop.f32.mrb[0].mxu0
    %v4309 = vadd.f32 0.0, %v4308
    %v4310 = vpop.f32.mrb[0].mxu0
    %v4311 = vadd.f32 0.0, %v4310
    %v4312 = vpop.f32.mrb[0].mxu0
    %v4313 = vadd.f32 0.0, %v4312
    %v4314 = vpop.f32.mrb[0].mxu0
    %v4315 = vadd.f32 0.0, %v4314
    %4316 = vmatprep.mubr.bf16.mxu0 %v4233
    %4317 = vmatmul.mubr.bf16.gmra.mrb[0].mxu0 %v4042
    %v4318 = vpop.f32.mrb[0].mxu0
    %v4319 = vadd.f32 0.0, %v4318
    %v4320 = vpop.f32.mrb[0].mxu0
    %v4321 = vadd.f32 0.0, %v4320
    %v4322 = vpop.f32.mrb[0].mxu0
    %v4323 = vadd.f32 0.0, %v4322
    %v4324 = vpop.f32.mrb[0].mxu0
    %v4325 = vadd.f32 0.0, %v4324
    %4326 = vmatprep.mubr.bf16.mxu0 %v4236
    %4327 = vmatmul.mubr.bf16.gmra.mrb[0].mxu0 %v4044
    %v4328 = vpop.f32.mrb[0].mxu0
    %v4329 = vadd.f32 0.0, %v4328
    %v4330 = vpop.f32.mrb[0].mxu0
    %v4331 = vadd.f32 0.0, %v4330
    %v4332 = vpop.f32.mrb[0].mxu0
    %v4333 = vadd.f32 0.0, %v4332
    %v4334 = vpop.f32.mrb[0].mxu0
    %v4335 = vadd.f32 0.0, %v4334
    %4336 = vmatprep.mubr.bf16.mxu0 %v4239
    %4337 = vmatmul.mubr.bf16.gmra.mrb[0].mxu0 %v4046
    %v4338 = vpop.f32.mrb[0].mxu0
    %v4339 = vadd.f32 0.0, %v4338
    %v4340 = vpop.f32.mrb[0].mxu0
    %v4341 = vadd.f32 0.0, %v4340
    %v4342 = vpop.f32.mrb[0].mxu0
    %v4343 = vadd.f32 0.0, %v4342
    %v4344 = vpop.f32.mrb[0].mxu0
    %v4345 = vadd.f32 0.0, %v4344
    %4346 = vmatprep.mubr.bf16.mxu0 %v4242
    %4347 = vmatmul.mubr.bf16.gmra.mrb[0].mxu0 %v4048
    %v4348 = vpop.f32.mrb[0].mxu0
    %v4349 = vadd.f32 0.0, %v4348
    %v4350 = vpop.f32.mrb[0].mxu0
    %v4351 = vadd.f32 0.0, %v4350
    %v4352 = vpop.f32.mrb[0].mxu0
    %v4353 = vadd.f32 0.0, %v4352
    %v4354 = vpop.f32.mrb[0].mxu0
    %v4355 = vadd.f32 0.0, %v4354
    %4356 = vdwg.mxu0
    %v4385 = vunpack.c.l.b16 %v4006
    %v4386 = vunpack.c.h.b16 %v4006
    %v4387 = vunpack.c.l.b16 %v4007
    %v4388 = vunpack.c.h.b16 %v4007
    %v4389 = vunpack.c.l.b16 %v4008
    %v4390 = vunpack.c.h.b16 %v4008
    %v4391 = vunpack.c.l.b16 %v4009
    %v4392 = vunpack.c.h.b16 %v4009
    %v4393 = vunpack.c.l.b16 %v4010
    %v4394 = vunpack.c.h.b16 %v4010
    %v4395 = vunpack.c.l.b16 %v4011
    %v4396 = vunpack.c.h.b16 %v4011
    %v4397 = vunpack.c.l.b16 %v4012
    %v4398 = vunpack.c.h.b16 %v4012
    %v4399 = vunpack.c.l.b16 %v4013
    %v4400 = vunpack.c.h.b16 %v4013
    %v4401 = vunpack.c.l.b16 %v4014
    %v4402 = vunpack.c.h.b16 %v4014
    %v4403 = vunpack.c.l.b16 %v4015
    %v4404 = vunpack.c.h.b16 %v4015
    %v4405 = vunpack.c.l.b16 %v4016
    %v4406 = vunpack.c.h.b16 %v4016
    %v4407 = vunpack.c.l.b16 %v4017
    %v4408 = vunpack.c.h.b16 %v4017
    %v4409 = vunpack.c.l.b16 %v4018
    %v4410 = vunpack.c.h.b16 %v4018
    %v4411 = vunpack.c.l.b16 %v4019
    %v4412 = vunpack.c.h.b16 %v4019
    %v4413 = vunpack.c.l.b16 %v4020
    %v4414 = vunpack.c.h.b16 %v4020
    %v4415 = vunpack.c.l.b16 %v4021
    %v4416 = vunpack.c.h.b16 %v4021
    %v4417 = vunpack.c.l.b16 %v4022
    %v4418 = vunpack.c.h.b16 %v4022
    %v4419 = vunpack.c.l.b16 %v4023
    %v4420 = vunpack.c.h.b16 %v4023
    %v4421 = vunpack.c.l.b16 %v4024
    %v4422 = vunpack.c.h.b16 %v4024
    %v4423 = vunpack.c.l.b16 %v4025
    %v4424 = vunpack.c.h.b16 %v4025
    %v4425 = vunpack.c.l.b16 %v4026
    %v4426 = vunpack.c.h.b16 %v4026
    %v4427 = vunpack.c.l.b16 %v4027
    %v4428 = vunpack.c.h.b16 %v4027
    %v4429 = vunpack.c.l.b16 %v4028
    %v4430 = vunpack.c.h.b16 %v4028
    %v4431 = vunpack.c.l.b16 %v4029
    %v4432 = vunpack.c.h.b16 %v4029
    %v4433 = vunpack.c.l.b16 %v4030
    %v4434 = vunpack.c.h.b16 %v4030
    %v4435 = vunpack.c.l.b16 %v4031
    %v4436 = vunpack.c.h.b16 %v4031
    %v4437 = vunpack.c.l.b16 %v4032
    %v4438 = vunpack.c.h.b16 %v4032
    %v4439 = vunpack.c.l.b16 %v4033
    %v4440 = vunpack.c.h.b16 %v4033
    %v4441 = vpack.c.b16 %v4387, %v4385
    %v4442 = vpack.c.b16 %v4388, %v4386
    %v4443 = vpack.c.b16 %v4391, %v4389
    %v4444 = vpack.c.b16 %v4392, %v4390
    %v4445 = vpack.c.b16 %v4395, %v4393
    %v4446 = vpack.c.b16 %v4396, %v4394
    %v4447 = vpack.c.b16 %v4399, %v4397
    %v4448 = vpack.c.b16 %v4400, %v4398
    %v4449 = vpack.c.b16 %v4403, %v4401
    %v4450 = vpack.c.b16 %v4404, %v4402
    %v4451 = vpack.c.b16 %v4407, %v4405
    %v4452 = vpack.c.b16 %v4408, %v4406
    %v4453 = vpack.c.b16 %v4411, %v4409
    %v4454 = vpack.c.b16 %v4412, %v4410
    %v4455 = vpack.c.b16 %v4415, %v4413
    %v4456 = vpack.c.b16 %v4416, %v4414
    %v4457 = vpack.c.b16 %v4419, %v4417
    %v4458 = vpack.c.b16 %v4420, %v4418
    %v4459 = vpack.c.b16 %v4423, %v4421
    %v4460 = vpack.c.b16 %v4424, %v4422
    %v4461 = vpack.c.b16 %v4427, %v4425
    %v4462 = vpack.c.b16 %v4428, %v4426
    %v4463 = vpack.c.b16 %v4431, %v4429
    %v4464 = vpack.c.b16 %v4432, %v4430
    %v4465 = vpack.c.b16 %v4435, %v4433
    %v4466 = vpack.c.b16 %v4436, %v4434
    %v4467 = vpack.c.b16 %v4439, %v4437
    %v4468 = vpack.c.b16 %v4440, %v4438
    %v4498 = vsel %vm4219, %v3991, 0
    %v4501 = vsel %vm4219, %v3993, 0
    %v4504 = vsel %vm4219, %v3995, 0
    %v4507 = vsel %vm4219, %v3997, 0
    %v4510 = vsel %vm4219, %v3999, 0
    %v4513 = vsel %vm4219, %v4001, 0
    %v4516 = vsel %vm4219, %v4003, 0
    %v4519 = vsel %vm4219, %v4005, 0
    %4521 = vmatprep.subr.bf16.mxu0 %v4442
    %4522 = vmatpush1.bf16.msra.mxu0 %v4441
    %4523 = vmatprep.subr.bf16.mxu0 %v4444
    %4524 = vmatpush1.bf16.msra.mxu0 %v4443
    %4525 = vmatprep.subr.bf16.mxu0 %v4446
    %4526 = vmatpush1.bf16.msra.mxu0 %v4445
    %4527 = vmatprep.subr.bf16.mxu0 %v4448
    %4528 = vmatpush1.bf16.msra.mxu0 %v4447
    %4529 = vmatprep.subr.bf16.mxu0 %v4450
    %4530 = vmatpush1.bf16.msra.mxu0 %v4449
    %4531 = vmatprep.subr.bf16.mxu0 %v4452
    %4532 = vmatpush1.bf16.msra.mxu0 %v4451
    %4533 = vmatprep.subr.bf16.mxu0 %v4454
    %4534 = vmatpush1.bf16.msra.mxu0 %v4453
    %4535 = vmatprep.subr.bf16.mxu0 %v4456
    %4536 = vmatpush1.bf16.msra.mxu0 %v4455
    %4537 = vmatprep.subr.bf16.mxu0 %v4458
    %4538 = vmatpush1.bf16.msra.mxu0 %v4457
    %4539 = vmatprep.subr.bf16.mxu0 %v4460
    %4540 = vmatpush1.bf16.msra.mxu0 %v4459
    %4541 = vmatprep.subr.bf16.mxu0 %v4462
    %4542 = vmatpush1.bf16.msra.mxu0 %v4461
    %4543 = vmatprep.subr.bf16.mxu0 %v4464
    %4544 = vmatpush1.bf16.msra.mxu0 %v4463
    %4545 = vmatprep.subr.bf16.mxu0 %v4466
    %4546 = vmatpush1.bf16.msra.mxu0 %v4465
    %4547 = vmatprep.subr.bf16.mxu0 %v4468
    %4548 = vmatpush1.bf16.msra.mxu0 %v4467
    %4549 = vmatprep.subr.bf16.mxu0 0
    %4550 = vmatpush1.bf16.msra.mxu0 0
    %4551 = vmatprep.subr.bf16.mxu0 0
    %4552 = vmatpush1.bf16.msra.mxu0 0
    %4553 = vmatprep.mubr.bf16.mxu0 %v4498
    %4554 = vmatmul.mubr.bf16.gmra.mrb[0].mxu0 %v3990
    %v4555 = vpop.f32.mrb[0].mxu0
    %v4556 = vadd.f32 %v4279, %v4555
    %v4557 = vpop.f32.mrb[0].mxu0
    %v4558 = vadd.f32 %v4281, %v4557
    %v4559 = vpop.f32.mrb[0].mxu0
    %v4560 = vadd.f32 %v4283, %v4559
    %v4561 = vpop.f32.mrb[0].mxu0
    %v4562 = vadd.f32 %v4285, %v4561
    %4563 = vmatprep.mubr.bf16.mxu0 %v4501
    %4564 = vmatmul.mubr.bf16.gmra.mrb[0].mxu0 %v3992
    %v4565 = vpop.f32.mrb[0].mxu0
    %v4566 = vadd.f32 %v4289, %v4565
    %v4567 = vpop.f32.mrb[0].mxu0
    %v4568 = vadd.f32 %v4291, %v4567
    %v4569 = vpop.f32.mrb[0].mxu0
    %v4570 = vadd.f32 %v4293, %v4569
    %v4571 = vpop.f32.mrb[0].mxu0
    %v4572 = vadd.f32 %v4295, %v4571
    %4573 = vmatprep.mubr.bf16.mxu0 %v4504
    %4574 = vmatmul.mubr.bf16.gmra.mrb[0].mxu0 %v3994
    %v4575 = vpop.f32.mrb[0].mxu0
    %v4576 = vadd.f32 %v4299, %v4575
    %v4577 = vpop.f32.mrb[0].mxu0
    %v4578 = vadd.f32 %v4301, %v4577
    %v4579 = vpop.f32.mrb[0].mxu0
    %v4580 = vadd.f32 %v4303, %v4579
    %v4581 = vpop.f32.mrb[0].mxu0
    %v4582 = vadd.f32 %v4305, %v4581
    %4583 = vmatprep.mubr.bf16.mxu0 %v4507
    %4584 = vmatmul.mubr.bf16.gmra.mrb[0].mxu0 %v3996
    %v4585 = vpop.f32.mrb[0].mxu0
    %v4586 = vadd.f32 %v4309, %v4585
    %v4587 = vpop.f32.mrb[0].mxu0
    %v4588 = vadd.f32 %v4311, %v4587
    %v4589 = vpop.f32.mrb[0].mxu0
    %v4590 = vadd.f32 %v4313, %v4589
    %v4591 = vpop.f32.mrb[0].mxu0
    %v4592 = vadd.f32 %v4315, %v4591
    %4593 = vmatprep.mubr.bf16.mxu0 %v4510
    %4594 = vmatmul.mubr.bf16.gmra.mrb[0].mxu0 %v3998
    %v4595 = vpop.f32.mrb[0].mxu0
    %v4596 = vadd.f32 %v4319, %v4595
    %v4597 = vpop.f32.mrb[0].mxu0
    %v4598 = vadd.f32 %v4321, %v4597
    %v4599 = vpop.f32.mrb[0].mxu0
    %v4600 = vadd.f32 %v4323, %v4599
    %v4601 = vpop.f32.mrb[0].mxu0
    %v4602 = vadd.f32 %v4325, %v4601
    %4603 = vmatprep.mubr.bf16.mxu0 %v4513
    %4604 = vmatmul.mubr.bf16.gmra.mrb[0].mxu0 %v4000
    %v4605 = vpop.f32.mrb[0].mxu0
    %v4606 = vadd.f32 %v4329, %v4605
    %v4607 = vpop.f32.mrb[0].mxu0
    %v4608 = vadd.f32 %v4331, %v4607
    %v4609 = vpop.f32.mrb[0].mxu0
    %v4610 = vadd.f32 %v4333, %v4609
    %v4611 = vpop.f32.mrb[0].mxu0
    %v4612 = vadd.f32 %v4335, %v4611
    %4613 = vmatprep.mubr.bf16.mxu0 %v4516
    %4614 = vmatmul.mubr.bf16.gmra.mrb[0].mxu0 %v4002
    %v4615 = vpop.f32.mrb[0].mxu0
    %v4616 = vadd.f32 %v4339, %v4615
    %v4617 = vpop.f32.mrb[0].mxu0
    %v4618 = vadd.f32 %v4341, %v4617
    %v4619 = vpop.f32.mrb[0].mxu0
    %v4620 = vadd.f32 %v4343, %v4619
    %v4621 = vpop.f32.mrb[0].mxu0
    %v4622 = vadd.f32 %v4345, %v4621
    %4623 = vmatprep.mubr.bf16.mxu0 %v4519
    %4624 = vmatmul.mubr.bf16.gmra.mrb[0].mxu0 %v4004
    %v4625 = vpop.f32.mrb[0].mxu0
    %v4626 = vadd.f32 %v4349, %v4625
    %v4627 = vpop.f32.mrb[0].mxu0
    %v4628 = vadd.f32 %v4351, %v4627
    %v4629 = vpop.f32.mrb[0].mxu0
    %v4630 = vadd.f32 %v4353, %v4629
    %v4631 = vpop.f32.mrb[0].mxu0
    %v4632 = vadd.f32 %v4355, %v4631
    %4633 = vdwg.mxu0
    %v4634 = vpack.c.bf16 0.0, %v3972
    %v4635 = vpack.c.bf16 0.0, %v3973
    %v4636 = vpack.c.bf16 0.0, %v3988
    %v4637 = vpack.c.bf16 0.0, %v3989
    %s4638 = scalar_lea.vmem %s3, 448
    %v4639 = vld [vmem:[%s4638] sm:$0xff]
    %v4640 = vld [vmem:[%s4638 + $0x8] sm:$0xff]
    %v4641 = vld [vmem:[%s4638 + $0x10] sm:$0xff]
    %v4642 = vld [vmem:[%s4638 + $0x18] sm:$0xff]
    %v4643 = vld [vmem:[%s4638 + $0x20] sm:$0xff]
    %v4644 = vld [vmem:[%s4638 + $0x28] sm:$0xff]
    %v4645 = vld [vmem:[%s4638 + $0x30] sm:$0xff]
    %v4646 = vld [vmem:[%s4638 + $0x38] sm:$0xff]
    %v4647 = vld [vmem:[%s4638 + $0x40] sm:$0xff]
    %v4648 = vld [vmem:[%s4638 + $0x48] sm:$0xff]
    %v4649 = vld [vmem:[%s4638 + $0x50] sm:$0xff]
    %v4650 = vld [vmem:[%s4638 + $0x58] sm:$0xff]
    %v4651 = vld [vmem:[%s4638 + $0x60] sm:$0xff]
    %v4652 = vld [vmem:[%s4638 + $0x68] sm:$0xff]
    %v4653 = vld [vmem:[%s4638 + $0x70] sm:$0xff]
    %v4654 = vld [vmem:[%s4638 + $0x78] sm:$0xff]
    %v4655 = vld [vmem:[%s4638 + $0x80] sm:$0xff]
    %v4656 = vld [vmem:[%s4638 + $0x88] sm:$0xff]
    %v4657 = vld [vmem:[%s4638 + $0x90] sm:$0xff]
    %v4658 = vld [vmem:[%s4638 + $0x98] sm:$0xff]
    %v4659 = vld [vmem:[%s4638 + $0xa0] sm:$0xff]
    %v4660 = vld [vmem:[%s4638 + $0xa8] sm:$0xff]
    %v4661 = vld [vmem:[%s4638 + $0xb0] sm:$0xff]
    %v4662 = vld [vmem:[%s4638 + $0xb8] sm:$0xff]
    %v4663 = vld [vmem:[%s4638 + $0xc0] sm:$0xff]
    %v4664 = vld [vmem:[%s4638 + $0xc8] sm:$0xff]
    %v4665 = vld [vmem:[%s4638 + $0xd0] sm:$0xff]
    %v4666 = vld [vmem:[%s4638 + $0xd8] sm:$0xff]
    %v4695 = vunpack.c.l.b16 %v4639
    %v4696 = vunpack.c.h.b16 %v4639
    %v4697 = vunpack.c.l.b16 %v4640
    %v4698 = vunpack.c.h.b16 %v4640
    %v4699 = vunpack.c.l.b16 %v4641
    %v4700 = vunpack.c.h.b16 %v4641
    %v4701 = vunpack.c.l.b16 %v4642
    %v4702 = vunpack.c.h.b16 %v4642
    %v4703 = vunpack.c.l.b16 %v4643
    %v4704 = vunpack.c.h.b16 %v4643
    %v4705 = vunpack.c.l.b16 %v4644
    %v4706 = vunpack.c.h.b16 %v4644
    %v4707 = vunpack.c.l.b16 %v4645
    %v4708 = vunpack.c.h.b16 %v4645
    %v4709 = vunpack.c.l.b16 %v4646
    %v4710 = vunpack.c.h.b16 %v4646
    %v4711 = vunpack.c.l.b16 %v4647
    %v4712 = vunpack.c.h.b16 %v4647
    %v4713 = vunpack.c.l.b16 %v4648
    %v4714 = vunpack.c.h.b16 %v4648
    %v4715 = vunpack.c.l.b16 %v4649
    %v4716 = vunpack.c.h.b16 %v4649
    %v4717 = vunpack.c.l.b16 %v4650
    %v4718 = vunpack.c.h.b16 %v4650
    %v4719 = vunpack.c.l.b16 %v4651
    %v4720 = vunpack.c.h.b16 %v4651
    %v4721 = vunpack.c.l.b16 %v4652
    %v4722 = vunpack.c.h.b16 %v4652
    %v4723 = vunpack.c.l.b16 %v4653
    %v4724 = vunpack.c.h.b16 %v4653
    %v4725 = vunpack.c.l.b16 %v4654
    %v4726 = vunpack.c.h.b16 %v4654
    %v4727 = vunpack.c.l.b16 %v4655
    %v4728 = vunpack.c.h.b16 %v4655
    %v4729 = vunpack.c.l.b16 %v4656
    %v4730 = vunpack.c.h.b16 %v4656
    %v4731 = vunpack.c.l.b16 %v4657
    %v4732 = vunpack.c.h.b16 %v4657
    %v4733 = vunpack.c.l.b16 %v4658
    %v4734 = vunpack.c.h.b16 %v4658
    %v4735 = vunpack.c.l.b16 %v4659
    %v4736 = vunpack.c.h.b16 %v4659
    %v4737 = vunpack.c.l.b16 %v4660
    %v4738 = vunpack.c.h.b16 %v4660
    %v4739 = vunpack.c.l.b16 %v4661
    %v4740 = vunpack.c.h.b16 %v4661
    %v4741 = vunpack.c.l.b16 %v4662
    %v4742 = vunpack.c.h.b16 %v4662
    %v4743 = vunpack.c.l.b16 %v4663
    %v4744 = vunpack.c.h.b16 %v4663
    %v4745 = vunpack.c.l.b16 %v4664
    %v4746 = vunpack.c.h.b16 %v4664
    %v4747 = vunpack.c.l.b16 %v4665
    %v4748 = vunpack.c.h.b16 %v4665
    %v4749 = vunpack.c.l.b16 %v4666
    %v4750 = vunpack.c.h.b16 %v4666
    %v4751 = vpack.c.b16 %v4697, %v4695
    %v4752 = vpack.c.b16 %v4698, %v4696
    %v4753 = vpack.c.b16 %v4701, %v4699
    %v4754 = vpack.c.b16 %v4702, %v4700
    %v4755 = vpack.c.b16 %v4705, %v4703
    %v4756 = vpack.c.b16 %v4706, %v4704
    %v4757 = vpack.c.b16 %v4709, %v4707
    %v4758 = vpack.c.b16 %v4710, %v4708
    %v4759 = vpack.c.b16 %v4713, %v4711
    %v4760 = vpack.c.b16 %v4714, %v4712
    %v4761 = vpack.c.b16 %v4717, %v4715
    %v4762 = vpack.c.b16 %v4718, %v4716
    %v4763 = vpack.c.b16 %v4721, %v4719
    %v4764 = vpack.c.b16 %v4722, %v4720
    %v4765 = vpack.c.b16 %v4725, %v4723
    %v4766 = vpack.c.b16 %v4726, %v4724
    %v4767 = vpack.c.b16 %v4729, %v4727
    %v4768 = vpack.c.b16 %v4730, %v4728
    %v4769 = vpack.c.b16 %v4733, %v4731
    %v4770 = vpack.c.b16 %v4734, %v4732
    %v4771 = vpack.c.b16 %v4737, %v4735
    %v4772 = vpack.c.b16 %v4738, %v4736
    %v4773 = vpack.c.b16 %v4741, %v4739
    %v4774 = vpack.c.b16 %v4742, %v4740
    %v4775 = vpack.c.b16 %v4745, %v4743
    %v4776 = vpack.c.b16 %v4746, %v4744
    %v4777 = vpack.c.b16 %v4749, %v4747
    %v4778 = vpack.c.b16 %v4750, %v4748
    %v4808 = vsel %vm4219, %v4635, 0
    %v4811 = vsel %vm4219, %v4637, 0
    %4813 = vmatprep.subr.bf16.mxu0 %v4752
    %4814 = vmatpush1.bf16.msra.mxu0 %v4751
    %4815 = vmatprep.subr.bf16.mxu0 %v4754
    %4816 = vmatpush1.bf16.msra.mxu0 %v4753
    %4817 = vmatprep.subr.bf16.mxu0 %v4756
    %4818 = vmatpush1.bf16.msra.mxu0 %v4755
    %4819 = vmatprep.subr.bf16.mxu0 %v4758
    %4820 = vmatpush1.bf16.msra.mxu0 %v4757
    %4821 = vmatprep.subr.bf16.mxu0 %v4760
    %4822 = vmatpush1.bf16.msra.mxu0 %v4759
    %4823 = vmatprep.subr.bf16.mxu0 %v4762
    %4824 = vmatpush1.bf16.msra.mxu0 %v4761
    %4825 = vmatprep.subr.bf16.mxu0 %v4764
    %4826 = vmatpush1.bf16.msra.mxu0 %v4763
    %4827 = vmatprep.subr.bf16.mxu0 %v4766
    %4828 = vmatpush1.bf16.msra.mxu0 %v4765
    %4829 = vmatprep.subr.bf16.mxu0 %v4768
    %4830 = vmatpush1.bf16.msra.mxu0 %v4767
    %4831 = vmatprep.subr.bf16.mxu0 %v4770
    %4832 = vmatpush1.bf16.msra.mxu0 %v4769
    %4833 = vmatprep.subr.bf16.mxu0 %v4772
    %4834 = vmatpush1.bf16.msra.mxu0 %v4771
    %4835 = vmatprep.subr.bf16.mxu0 %v4774
    %4836 = vmatpush1.bf16.msra.mxu0 %v4773
    %4837 = vmatprep.subr.bf16.mxu0 %v4776
    %4838 = vmatpush1.bf16.msra.mxu0 %v4775
    %4839 = vmatprep.subr.bf16.mxu0 %v4778
    %4840 = vmatpush1.bf16.msra.mxu0 %v4777
    %4841 = vmatprep.subr.bf16.mxu0 0
    %4842 = vmatpush1.bf16.msra.mxu0 0
    %4843 = vmatprep.subr.bf16.mxu0 0
    %4844 = vmatpush1.bf16.msra.mxu0 0
    %4845 = vmatprep.mubr.bf16.mxu0 %v4501
    %4846 = vmatmul.mubr.bf16.gmra.mrb[0].mxu0 %v3992
    %v4847 = vpop.f32.mrb[0].mxu0
    %v4848 = vadd.f32 0.0, %v4847
    %v4849 = vpop.f32.mrb[0].mxu0
    %v4850 = vadd.f32 0.0, %v4849
    %v4851 = vpop.f32.mrb[0].mxu0
    %v4852 = vadd.f32 0.0, %v4851
    %v4853 = vpop.f32.mrb[0].mxu0
    %v4854 = vadd.f32 0.0, %v4853
    %4855 = vmatprep.mubr.bf16.mxu0 %v4504
    %4856 = vmatmul.mubr.bf16.gmra.mrb[0].mxu0 %v3994
    %v4857 = vpop.f32.mrb[0].mxu0
    %v4858 = vadd.f32 0.0, %v4857
    %v4859 = vpop.f32.mrb[0].mxu0
    %v4860 = vadd.f32 0.0, %v4859
    %v4861 = vpop.f32.mrb[0].mxu0
    %v4862 = vadd.f32 0.0, %v4861
    %v4863 = vpop.f32.mrb[0].mxu0
    %v4864 = vadd.f32 0.0, %v4863
    %4865 = vmatprep.mubr.bf16.mxu0 %v4507
    %4866 = vmatmul.mubr.bf16.gmra.mrb[0].mxu0 %v3996
    %v4867 = vpop.f32.mrb[0].mxu0
    %v4868 = vadd.f32 0.0, %v4867
    %v4869 = vpop.f32.mrb[0].mxu0
    %v4870 = vadd.f32 0.0, %v4869
    %v4871 = vpop.f32.mrb[0].mxu0
    %v4872 = vadd.f32 0.0, %v4871
    %v4873 = vpop.f32.mrb[0].mxu0
    %v4874 = vadd.f32 0.0, %v4873
    %4875 = vmatprep.mubr.bf16.mxu0 %v4808
    %4876 = vmatmul.mubr.bf16.gmra.mrb[0].mxu0 %v4634
    %v4877 = vpop.f32.mrb[0].mxu0
    %v4878 = vadd.f32 0.0, %v4877
    %v4879 = vpop.f32.mrb[0].mxu0
    %v4880 = vadd.f32 0.0, %v4879
    %v4881 = vpop.f32.mrb[0].mxu0
    %v4882 = vadd.f32 0.0, %v4881
    %v4883 = vpop.f32.mrb[0].mxu0
    %v4884 = vadd.f32 0.0, %v4883
    %4885 = vmatprep.mubr.bf16.mxu0 %v4513
    %4886 = vmatmul.mubr.bf16.gmra.mrb[0].mxu0 %v4000
    %v4887 = vpop.f32.mrb[0].mxu0
    %v4888 = vadd.f32 0.0, %v4887
    %v4889 = vpop.f32.mrb[0].mxu0
    %v4890 = vadd.f32 0.0, %v4889
    %v4891 = vpop.f32.mrb[0].mxu0
    %v4892 = vadd.f32 0.0, %v4891
    %v4893 = vpop.f32.mrb[0].mxu0
    %v4894 = vadd.f32 0.0, %v4893
    %4895 = vmatprep.mubr.bf16.mxu0 %v4516
    %4896 = vmatmul.mubr.bf16.gmra.mrb[0].mxu0 %v4002
    %v4897 = vpop.f32.mrb[0].mxu0
    %v4898 = vadd.f32 0.0, %v4897
    %v4899 = vpop.f32.mrb[0].mxu0
    %v4900 = vadd.f32 0.0, %v4899
    %v4901 = vpop.f32.mrb[0].mxu0
    %v4902 = vadd.f32 0.0, %v4901
    %v4903 = vpop.f32.mrb[0].mxu0
    %v4904 = vadd.f32 0.0, %v4903
    %4905 = vmatprep.mubr.bf16.mxu0 %v4519
    %4906 = vmatmul.mubr.bf16.gmra.mrb[0].mxu0 %v4004
    %v4907 = vpop.f32.mrb[0].mxu0
    %v4908 = vadd.f32 0.0, %v4907
    %v4909 = vpop.f32.mrb[0].mxu0
    %v4910 = vadd.f32 0.0, %v4909
    %v4911 = vpop.f32.mrb[0].mxu0
    %v4912 = vadd.f32 0.0, %v4911
    %v4913 = vpop.f32.mrb[0].mxu0
    %v4914 = vadd.f32 0.0, %v4913
    %4915 = vmatprep.mubr.bf16.mxu0 %v4811
    %4916 = vmatmul.mubr.bf16.gmra.mrb[0].mxu0 %v4636
    %v4917 = vpop.f32.mrb[0].mxu0
    %v4918 = vadd.f32 0.0, %v4917
    %v4919 = vpop.f32.mrb[0].mxu0
    %v4920 = vadd.f32 0.0, %v4919
    %v4921 = vpop.f32.mrb[0].mxu0
    %v4922 = vadd.f32 0.0, %v4921
    %v4923 = vpop.f32.mrb[0].mxu0
    %v4924 = vadd.f32 0.0, %v4923
    %4925 = vdwg.mxu0
    %v4926 = vadd.f32 %v4556, %v4848
    %v4927 = vadd.f32 %v4558, %v4850
    %v4928 = vadd.f32 %v4560, %v4852
    %v4929 = vadd.f32 %v4562, %v4854
    %v4930 = vadd.f32 %v4566, %v4858
    %v4931 = vadd.f32 %v4568, %v4860
    %v4932 = vadd.f32 %v4570, %v4862
    %v4933 = vadd.f32 %v4572, %v4864
    %v4934 = vadd.f32 %v4576, %v4868
    %v4935 = vadd.f32 %v4578, %v4870
    %v4936 = vadd.f32 %v4580, %v4872
    %v4937 = vadd.f32 %v4582, %v4874
    %v4938 = vadd.f32 %v4586, %v4878
    %v4939 = vadd.f32 %v4588, %v4880
    %v4940 = vadd.f32 %v4590, %v4882
    %v4941 = vadd.f32 %v4592, %v4884
    %v4942 = vadd.f32 %v4596, %v4888
    %v4943 = vadd.f32 %v4598, %v4890
    %v4944 = vadd.f32 %v4600, %v4892
    %v4945 = vadd.f32 %v4602, %v4894
    %v4946 = vadd.f32 %v4606, %v4898
    %v4947 = vadd.f32 %v4608, %v4900
    %v4948 = vadd.f32 %v4610, %v4902
    %v4949 = vadd.f32 %v4612, %v4904
    %v4950 = vadd.f32 %v4616, %v4908
    %v4951 = vadd.f32 %v4618, %v4910
    %v4952 = vadd.f32 %v4620, %v4912
    %v4953 = vadd.f32 %v4622, %v4914
    %v4954 = vadd.f32 %v4626, %v4918
    %v4955 = vadd.f32 %v4628, %v4920
    %v4956 = vadd.f32 %v4630, %v4922
    %v4957 = vadd.f32 %v4632, %v4924
    %v4958 = vpack.c.bf16 %v2070, %v2066
    %v4959 = vpack.c.bf16 %v2080, %v2076
    %v4960 = vpack.c.bf16 %v2090, %v2086
    %v4961 = vpack.c.bf16 %v2100, %v2096
    %v4962 = vpack.c.bf16 %v2110, %v2106
    %v4963 = vpack.c.bf16 %v2120, %v2116
    %v4964 = vpack.c.bf16 %v2130, %v2126
    %v4965 = vpack.c.bf16 %v2140, %v2136
    %v4966 = vld [vmem:[%s4] sm:$0xff]
    %v4967 = vld [vmem:[%s4 + $0x8] sm:$0xff]
    %v4968 = vld [vmem:[%s4 + $0x10] sm:$0xff]
    %v4969 = vld [vmem:[%s4 + $0x18] sm:$0xff]
    %v4970 = vld [vmem:[%s4 + $0x20] sm:$0xf]
    %v4971 = vld [vmem:[%s4 + $0x24] sm:$0xff]
    %v4972 = vld [vmem:[%s4 + $0x2c] sm:$0xff]
    %v4973 = vld [vmem:[%s4 + $0x34] sm:$0xff]
    %v4974 = vld [vmem:[%s4 + $0x3c] sm:$0xff]
    %v4975 = vld [vmem:[%s4 + $0x44] sm:$0xf]
    %v4976 = vld [vmem:[%s4 + $0x48] sm:$0xff]
    %v4977 = vld [vmem:[%s4 + $0x50] sm:$0xff]
    %v4978 = vld [vmem:[%s4 + $0x58] sm:$0xff]
    %v4979 = vld [vmem:[%s4 + $0x60] sm:$0xff]
    %v4980 = vld [vmem:[%s4 + $0x68] sm:$0xf]
    %v4981 = vld [vmem:[%s4 + $0x6c] sm:$0xff]
    %v4982 = vld [vmem:[%s4 + $0x74] sm:$0xff]
    %v4983 = vld [vmem:[%s4 + $0x7c] sm:$0xff]
    %v4984 = vld [vmem:[%s4 + $0x84] sm:$0xff]
    %v4985 = vld [vmem:[%s4 + $0x8c] sm:$0xf]
    %v4986 = vld [vmem:[%s4 + $0x90] sm:$0xff]
    %v4987 = vld [vmem:[%s4 + $0x98] sm:$0xff]
    %v4988 = vld [vmem:[%s4 + $0xa0] sm:$0xff]
    %v4989 = vld [vmem:[%s4 + $0xa8] sm:$0xff]
    %v4990 = vld [vmem:[%s4 + $0xb0] sm:$0xf]
    %v4991 = vld [vmem:[%s4 + $0xb4] sm:$0xff]
    %v4992 = vld [vmem:[%s4 + $0xbc] sm:$0xff]
    %v4993 = vld [vmem:[%s4 + $0xc4] sm:$0xff]
    %v4994 = vld [vmem:[%s4 + $0xcc] sm:$0xff]
    %v4995 = vld [vmem:[%s4 + $0xd4] sm:$0xf]
    %v4996 = vld [vmem:[%s4 + $0xd8] sm:$0xff]
    %v4997 = vld [vmem:[%s4 + $0xe0] sm:$0xff]
    %v4998 = vld [vmem:[%s4 + $0xe8] sm:$0xff]
    %v4999 = vld [vmem:[%s4 + $0xf0] sm:$0xff]
    %v5000 = vld [vmem:[%s4 + $0xf8] sm:$0xf]
    %v5001 = vld [vmem:[%s4 + $0xfc] sm:$0xff]
    %v5002 = vld [vmem:[%s4 + $0x104] sm:$0xff]
    %v5003 = vld [vmem:[%s4 + $0x10c] sm:$0xff]
    %v5004 = vld [vmem:[%s4 + $0x114] sm:$0xff]
    %v5005 = vld [vmem:[%s4 + $0x11c] sm:$0xf]
    %v5006 = vld [vmem:[%s4 + $0x120] sm:$0xff]
    %v5007 = vld [vmem:[%s4 + $0x128] sm:$0xff]
    %v5008 = vld [vmem:[%s4 + $0x130] sm:$0xff]
    %v5009 = vld [vmem:[%s4 + $0x138] sm:$0xff]
    %v5010 = vld [vmem:[%s4 + $0x140] sm:$0xf]
    %v5011 = vld [vmem:[%s4 + $0x144] sm:$0xff]
    %v5012 = vld [vmem:[%s4 + $0x14c] sm:$0xff]
    %v5013 = vld [vmem:[%s4 + $0x154] sm:$0xff]
    %v5014 = vld [vmem:[%s4 + $0x15c] sm:$0xff]
    %v5015 = vld [vmem:[%s4 + $0x164] sm:$0xf]
    %v5016 = vld [vmem:[%s4 + $0x168] sm:$0xff]
    %v5017 = vld [vmem:[%s4 + $0x170] sm:$0xff]
    %v5018 = vld [vmem:[%s4 + $0x178] sm:$0xff]
    %v5019 = vld [vmem:[%s4 + $0x180] sm:$0xff]
    %v5020 = vld [vmem:[%s4 + $0x188] sm:$0xf]
    %v5021 = vld [vmem:[%s4 + $0x18c] sm:$0xff]
    %v5022 = vld [vmem:[%s4 + $0x194] sm:$0xff]
    %v5023 = vld [vmem:[%s4 + $0x19c] sm:$0xff]
    %v5024 = vld [vmem:[%s4 + $0x1a4] sm:$0xff]
    %v5025 = vld [vmem:[%s4 + $0x1ac] sm:$0xf]
    %v5026 = vld [vmem:[%s4 + $0x1b0] sm:$0xff]
    %v5027 = vld [vmem:[%s4 + $0x1b8] sm:$0xff]
    %v5028 = vld [vmem:[%s4 + $0x1c0] sm:$0xff]
    %v5029 = vld [vmem:[%s4 + $0x1c8] sm:$0xff]
    %v5030 = vld [vmem:[%s4 + $0x1d0] sm:$0xf]
    %v5031 = vld [vmem:[%s4 + $0x1d4] sm:$0xff]
    %v5032 = vld [vmem:[%s4 + $0x1dc] sm:$0xff]
    %v5033 = vld [vmem:[%s4 + $0x1e4] sm:$0xff]
    %v5034 = vld [vmem:[%s4 + $0x1ec] sm:$0xff]
    %v5035 = vld [vmem:[%s4 + $0x1f4] sm:$0xf]
    %v5036 = vld [vmem:[%s4 + $0x1f8] sm:$0xff]
    %v5037 = vld [vmem:[%s4 + $0x200] sm:$0xff]
    %v5038 = vld [vmem:[%s4 + $0x208] sm:$0xff]
    %v5039 = vld [vmem:[%s4 + $0x210] sm:$0xff]
    %v5040 = vld [vmem:[%s4 + $0x218] sm:$0xf]
    %v5041 = vld [vmem:[%s4 + $0x21c] sm:$0xff]
    %v5042 = vld [vmem:[%s4 + $0x224] sm:$0xff]
    %v5043 = vld [vmem:[%s4 + $0x22c] sm:$0xff]
    %v5044 = vld [vmem:[%s4 + $0x234] sm:$0xff]
    %v5045 = vld [vmem:[%s4 + $0x23c] sm:$0xf]
    %v5046 = vld [vmem:[%s4 + $0x240] sm:$0xff]
    %v5047 = vld [vmem:[%s4 + $0x248] sm:$0xff]
    %v5048 = vld [vmem:[%s4 + $0x250] sm:$0xff]
    %v5049 = vld [vmem:[%s4 + $0x258] sm:$0xff]
    %v5050 = vld [vmem:[%s4 + $0x260] sm:$0xf]
    %v5051 = vld [vmem:[%s4 + $0x264] sm:$0xff]
    %v5052 = vld [vmem:[%s4 + $0x26c] sm:$0xff]
    %v5053 = vld [vmem:[%s4 + $0x274] sm:$0xff]
    %v5054 = vld [vmem:[%s4 + $0x27c] sm:$0xff]
    %v5055 = vld [vmem:[%s4 + $0x284] sm:$0xf]
    %v5056 = vld [vmem:[%s4 + $0x288] sm:$0xff]
    %v5057 = vld [vmem:[%s4 + $0x290] sm:$0xff]
    %v5058 = vld [vmem:[%s4 + $0x298] sm:$0xff]
    %v5059 = vld [vmem:[%s4 + $0x2a0] sm:$0xff]
    %v5060 = vld [vmem:[%s4 + $0x2a8] sm:$0xf]
    %v5061 = vld [vmem:[%s4 + $0x2ac] sm:$0xff]
    %v5062 = vld [vmem:[%s4 + $0x2b4] sm:$0xff]
    %v5063 = vld [vmem:[%s4 + $0x2bc] sm:$0xff]
    %v5064 = vld [vmem:[%s4 + $0x2c4] sm:$0xff]
    %v5065 = vld [vmem:[%s4 + $0x2cc] sm:$0xf]
    %v5066 = vld [vmem:[%s4 + $0x2d0] sm:$0xff]
    %v5067 = vld [vmem:[%s4 + $0x2d8] sm:$0xff]
    %v5068 = vld [vmem:[%s4 + $0x2e0] sm:$0xff]
    %v5069 = vld [vmem:[%s4 + $0x2e8] sm:$0xff]
    %v5070 = vld [vmem:[%s4 + $0x2f0] sm:$0xf]
    %v5071 = vld [vmem:[%s4 + $0x2f4] sm:$0xff]
    %v5072 = vld [vmem:[%s4 + $0x2fc] sm:$0xff]
    %v5073 = vld [vmem:[%s4 + $0x304] sm:$0xff]
    %v5074 = vld [vmem:[%s4 + $0x30c] sm:$0xff]
    %v5075 = vld [vmem:[%s4 + $0x314] sm:$0xf]
    %v5076 = vld [vmem:[%s4 + $0x318] sm:$0xff]
    %v5077 = vld [vmem:[%s4 + $0x320] sm:$0xff]
    %v5078 = vld [vmem:[%s4 + $0x328] sm:$0xff]
    %v5079 = vld [vmem:[%s4 + $0x330] sm:$0xff]
    %v5080 = vld [vmem:[%s4 + $0x338] sm:$0xf]
    %v5081 = vld [vmem:[%s4 + $0x33c] sm:$0xff]
    %v5082 = vld [vmem:[%s4 + $0x344] sm:$0xff]
    %v5083 = vld [vmem:[%s4 + $0x34c] sm:$0xff]
    %v5084 = vld [vmem:[%s4 + $0x354] sm:$0xff]
    %v5085 = vld [vmem:[%s4 + $0x35c] sm:$0xf]
    %v5086 = vpack.c.bf16 %v4928, %v4926
    %v5087 = vpack.c.bf16 %v4929, %v4927
    %v5088 = vpack.c.bf16 %v4932, %v4930
    %v5089 = vpack.c.bf16 %v4933, %v4931
    %v5090 = vpack.c.bf16 %v4936, %v4934
    %v5091 = vpack.c.bf16 %v4937, %v4935
    %v5092 = vpack.c.bf16 %v4940, %v4938
    %v5093 = vpack.c.bf16 %v4941, %v4939
    %v5094 = vpack.c.bf16 %v4944, %v4942
    %v5095 = vpack.c.bf16 %v4945, %v4943
    %v5096 = vpack.c.bf16 %v4948, %v4946
    %v5097 = vpack.c.bf16 %v4949, %v4947
    %v5098 = vpack.c.bf16 %v4952, %v4950
    %v5099 = vpack.c.bf16 %v4953, %v4951
    %v5100 = vpack.c.bf16 %v4956, %v4954
    %v5101 = vpack.c.bf16 %v4957, %v4955
    %v5102 = vld [vmem:[%s4 + $0x360] sm:$0xff]
    %v5103 = vld [vmem:[%s4 + $0x368] sm:$0xff]
    %v5104 = vld [vmem:[%s4 + $0x370] sm:$0xff]
    %v5105 = vld [vmem:[%s4 + $0x378] sm:$0xff]
    %v5106 = vld [vmem:[%s4 + $0x380] sm:$0xf]
    %v5107 = vld [vmem:[%s4 + $0x384] sm:$0xff]
    %v5108 = vld [vmem:[%s4 + $0x38c] sm:$0xff]
    %v5109 = vld [vmem:[%s4 + $0x394] sm:$0xff]
    %v5110 = vld [vmem:[%s4 + $0x39c] sm:$0xff]
    %v5111 = vld [vmem:[%s4 + $0x3a4] sm:$0xf]
    %v5112 = vld [vmem:[%s4 + $0x3a8] sm:$0xff]
    %v5113 = vld [vmem:[%s4 + $0x3b0] sm:$0xff]
    %v5114 = vld [vmem:[%s4 + $0x3b8] sm:$0xff]
    %v5115 = vld [vmem:[%s4 + $0x3c0] sm:$0xff]
    %v5116 = vld [vmem:[%s4 + $0x3c8] sm:$0xf]
    %v5117 = vld [vmem:[%s4 + $0x3cc] sm:$0xff]
    %v5118 = vld [vmem:[%s4 + $0x3d4] sm:$0xff]
    %v5119 = vld [vmem:[%s4 + $0x3dc] sm:$0xff]
    %v5120 = vld [vmem:[%s4 + $0x3e4] sm:$0xff]
    %v5121 = vld [vmem:[%s4 + $0x3ec] sm:$0xf]
    %v5122 = vld [vmem:[%s4 + $0x3f0] sm:$0xff]
    %v5123 = vld [vmem:[%s4 + $0x3f8] sm:$0xff]
    %v5124 = vld [vmem:[%s4 + $0x400] sm:$0xff]
    %v5125 = vld [vmem:[%s4 + $0x408] sm:$0xff]
    %v5126 = vld [vmem:[%s4 + $0x410] sm:$0xf]
    %v5127 = vld [vmem:[%s4 + $0x414] sm:$0xff]
    %v5128 = vld [vmem:[%s4 + $0x41c] sm:$0xff]
    %v5129 = vld [vmem:[%s4 + $0x424] sm:$0xff]
    %v5130 = vld [vmem:[%s4 + $0x42c] sm:$0xff]
    %v5131 = vld [vmem:[%s4 + $0x434] sm:$0xf]
    %v5132 = vld [vmem:[%s4 + $0x438] sm:$0xff]
    %v5133 = vld [vmem:[%s4 + $0x440] sm:$0xff]
    %v5134 = vld [vmem:[%s4 + $0x448] sm:$0xff]
    %v5135 = vld [vmem:[%s4 + $0x450] sm:$0xff]
    %v5136 = vld [vmem:[%s4 + $0x458] sm:$0xf]
    %v5137 = vld [vmem:[%s4 + $0x45c] sm:$0xff]
    %v5138 = vld [vmem:[%s4 + $0x464] sm:$0xff]
    %v5139 = vld [vmem:[%s4 + $0x46c] sm:$0xff]
    %v5140 = vld [vmem:[%s4 + $0x474] sm:$0xff]
    %v5141 = vld [vmem:[%s4 + $0x47c] sm:$0xf]
    %v5142 = vld [vmem:[%s4 + $0x480] sm:$0xff]
    %v5143 = vld [vmem:[%s4 + $0x488] sm:$0xff]
    %v5144 = vld [vmem:[%s4 + $0x490] sm:$0xff]
    %v5145 = vld [vmem:[%s4 + $0x498] sm:$0xff]
    %v5146 = vld [vmem:[%s4 + $0x4a0] sm:$0xf]
    %v5147 = vld [vmem:[%s4 + $0x4a4] sm:$0xff]
    %v5148 = vld [vmem:[%s4 + $0x4ac] sm:$0xff]
    %v5149 = vld [vmem:[%s4 + $0x4b4] sm:$0xff]
    %v5150 = vld [vmem:[%s4 + $0x4bc] sm:$0xff]
    %v5151 = vld [vmem:[%s4 + $0x4c4] sm:$0xf]
    %v5152 = vld [vmem:[%s4 + $0x4c8] sm:$0xff]
    %v5153 = vld [vmem:[%s4 + $0x4d0] sm:$0xff]
    %v5154 = vld [vmem:[%s4 + $0x4d8] sm:$0xff]
    %v5155 = vld [vmem:[%s4 + $0x4e0] sm:$0xff]
    %v5156 = vld [vmem:[%s4 + $0x4e8] sm:$0xf]
    %v5157 = vld [vmem:[%s4 + $0x4ec] sm:$0xff]
    %v5158 = vld [vmem:[%s4 + $0x4f4] sm:$0xff]
    %v5159 = vld [vmem:[%s4 + $0x4fc] sm:$0xff]
    %v5160 = vld [vmem:[%s4 + $0x504] sm:$0xff]
    %v5161 = vld [vmem:[%s4 + $0x50c] sm:$0xf]
    %v5162 = vld [vmem:[%s4 + $0x510] sm:$0xff]
    %v5163 = vld [vmem:[%s4 + $0x518] sm:$0xff]
    %v5164 = vld [vmem:[%s4 + $0x520] sm:$0xff]
    %v5165 = vld [vmem:[%s4 + $0x528] sm:$0xff]
    %v5166 = vld [vmem:[%s4 + $0x530] sm:$0xf]
    %v5167 = vld [vmem:[%s4 + $0x534] sm:$0xff]
    %v5168 = vld [vmem:[%s4 + $0x53c] sm:$0xff]
    %v5169 = vld [vmem:[%s4 + $0x544] sm:$0xff]
    %v5170 = vld [vmem:[%s4 + $0x54c] sm:$0xff]
    %v5171 = vld [vmem:[%s4 + $0x554] sm:$0xf]
    %v5172 = vld [vmem:[%s4 + $0x558] sm:$0xff]
    %v5173 = vld [vmem:[%s4 + $0x560] sm:$0xff]
    %v5174 = vld [vmem:[%s4 + $0x568] sm:$0xff]
    %v5175 = vld [vmem:[%s4 + $0x570] sm:$0xff]
    %v5176 = vld [vmem:[%s4 + $0x578] sm:$0xf]
    %v5177 = vld [vmem:[%s4 + $0x57c] sm:$0xff]
    %v5178 = vld [vmem:[%s4 + $0x584] sm:$0xff]
    %v5179 = vld [vmem:[%s4 + $0x58c] sm:$0xff]
    %v5180 = vld [vmem:[%s4 + $0x594] sm:$0xff]
    %v5181 = vld [vmem:[%s4 + $0x59c] sm:$0xf]
    %v5182 = vld [vmem:[%s4 + $0x5a0] sm:$0xff]
    %v5183 = vld [vmem:[%s4 + $0x5a8] sm:$0xff]
    %v5184 = vld [vmem:[%s4 + $0x5b0] sm:$0xff]
    %v5185 = vld [vmem:[%s4 + $0x5b8] sm:$0xff]
    %v5186 = vld [vmem:[%s4 + $0x5c0] sm:$0xf]
    %v5187 = vld [vmem:[%s4 + $0x5c4] sm:$0xff]
    %v5188 = vld [vmem:[%s4 + $0x5cc] sm:$0xff]
    %v5189 = vld [vmem:[%s4 + $0x5d4] sm:$0xff]
    %v5190 = vld [vmem:[%s4 + $0x5dc] sm:$0xff]
    %v5191 = vld [vmem:[%s4 + $0x5e4] sm:$0xf]
    %v5192 = vld [vmem:[%s4 + $0x5e8] sm:$0xff]
    %v5193 = vld [vmem:[%s4 + $0x5f0] sm:$0xff]
    %v5194 = vld [vmem:[%s4 + $0x5f8] sm:$0xff]
    %v5195 = vld [vmem:[%s4 + $0x600] sm:$0xff]
    %v5196 = vld [vmem:[%s4 + $0x608] sm:$0xf]
    %v5197 = vld [vmem:[%s4 + $0x60c] sm:$0xff]
    %v5198 = vld [vmem:[%s4 + $0x614] sm:$0xff]
    %v5199 = vld [vmem:[%s4 + $0x61c] sm:$0xff]
    %v5200 = vld [vmem:[%s4 + $0x624] sm:$0xff]
    %v5201 = vld [vmem:[%s4 + $0x62c] sm:$0xf]
    %v5202 = vld [vmem:[%s4 + $0x630] sm:$0xff]
    %v5203 = vld [vmem:[%s4 + $0x638] sm:$0xff]
    %v5204 = vld [vmem:[%s4 + $0x640] sm:$0xff]
    %v5205 = vld [vmem:[%s4 + $0x648] sm:$0xff]
    %v5206 = vld [vmem:[%s4 + $0x650] sm:$0xf]
    %v5207 = vld [vmem:[%s4 + $0x654] sm:$0xff]
    %v5208 = vld [vmem:[%s4 + $0x65c] sm:$0xff]
    %v5209 = vld [vmem:[%s4 + $0x664] sm:$0xff]
    %v5210 = vld [vmem:[%s4 + $0x66c] sm:$0xff]
    %v5211 = vld [vmem:[%s4 + $0x674] sm:$0xf]
    %v5212 = vld [vmem:[%s4 + $0x678] sm:$0xff]
    %v5213 = vld [vmem:[%s4 + $0x680] sm:$0xff]
    %v5214 = vld [vmem:[%s4 + $0x688] sm:$0xff]
    %v5215 = vld [vmem:[%s4 + $0x690] sm:$0xff]
    %v5216 = vld [vmem:[%s4 + $0x698] sm:$0xf]
    %v5217 = vld [vmem:[%s4 + $0x69c] sm:$0xff]
    %v5218 = vld [vmem:[%s4 + $0x6a4] sm:$0xff]
    %v5219 = vld [vmem:[%s4 + $0x6ac] sm:$0xff]
    %v5220 = vld [vmem:[%s4 + $0x6b4] sm:$0xff]
    %v5221 = vld [vmem:[%s4 + $0x6bc] sm:$0xf]
    %v5222 = vld [vmem:[%s4 + $0x6c0] sm:$0xff]
    %v5223 = vld [vmem:[%s4 + $0x6c8] sm:$0xff]
    %v5224 = vld [vmem:[%s4 + $0x6d0] sm:$0xff]
    %v5225 = vld [vmem:[%s4 + $0x6d8] sm:$0xff]
    %v5226 = vld [vmem:[%s4 + $0x6e0] sm:$0xf]
    %v5227 = vld [vmem:[%s4 + $0x6e4] sm:$0xff]
    %v5228 = vld [vmem:[%s4 + $0x6ec] sm:$0xff]
    %v5229 = vld [vmem:[%s4 + $0x6f4] sm:$0xff]
    %v5230 = vld [vmem:[%s4 + $0x6fc] sm:$0xff]
    %v5231 = vld [vmem:[%s4 + $0x704] sm:$0xf]
    %v5232 = vld [vmem:[%s4 + $0x708] sm:$0xff]
    %v5233 = vld [vmem:[%s4 + $0x710] sm:$0xff]
    %v5234 = vld [vmem:[%s4 + $0x718] sm:$0xff]
    %v5235 = vld [vmem:[%s4 + $0x720] sm:$0xff]
    %v5236 = vld [vmem:[%s4 + $0x728] sm:$0xf]
    %v5237 = vld [vmem:[%s4 + $0x72c] sm:$0xff]
    %v5238 = vld [vmem:[%s4 + $0x734] sm:$0xff]
    %v5239 = vld [vmem:[%s4 + $0x73c] sm:$0xff]
    %v5240 = vld [vmem:[%s4 + $0x744] sm:$0xff]
    %v5241 = vld [vmem:[%s4 + $0x74c] sm:$0xf]
    %v5242 = vld [vmem:[%s4 + $0x750] sm:$0xff]
    %v5243 = vld [vmem:[%s4 + $0x758] sm:$0xff]
    %v5244 = vld [vmem:[%s4 + $0x760] sm:$0xff]
    %v5245 = vld [vmem:[%s4 + $0x768] sm:$0xff]
    %v5246 = vld [vmem:[%s4 + $0x770] sm:$0xf]
    %v5247 = vld [vmem:[%s4 + $0x774] sm:$0xff]
    %v5248 = vld [vmem:[%s4 + $0x77c] sm:$0xff]
    %v5249 = vld [vmem:[%s4 + $0x784] sm:$0xff]
    %v5250 = vld [vmem:[%s4 + $0x78c] sm:$0xff]
    %v5251 = vld [vmem:[%s4 + $0x794] sm:$0xf]
    %v5252 = vld [vmem:[%s4 + $0x798] sm:$0xff]
    %v5253 = vld [vmem:[%s4 + $0x7a0] sm:$0xff]
    %v5254 = vld [vmem:[%s4 + $0x7a8] sm:$0xff]
    %v5255 = vld [vmem:[%s4 + $0x7b0] sm:$0xff]
    %v5256 = vld [vmem:[%s4 + $0x7b8] sm:$0xf]
    %v5257 = vld [vmem:[%s4 + $0x7bc] sm:$0xff]
    %v5258 = vld [vmem:[%s4 + $0x7c4] sm:$0xff]
    %v5259 = vld [vmem:[%s4 + $0x7cc] sm:$0xff]
    %v5260 = vld [vmem:[%s4 + $0x7d4] sm:$0xff]
    %v5261 = vld [vmem:[%s4 + $0x7dc] sm:$0xf]
    %v5422 = vunpack.c.l.b16 %v5102
    %v5423 = vunpack.c.h.b16 %v5102
    %v5424 = vunpack.c.l.b16 %v5103
    %v5425 = vunpack.c.h.b16 %v5103
    %v5426 = vunpack.c.l.b16 %v5104
    %v5427 = vunpack.c.h.b16 %v5104
    %v5428 = vunpack.c.l.b16 %v5105
    %v5429 = vunpack.c.h.b16 %v5105
    %v5430 = vunpack.c.l.b16 %v5106
    %v5431 = vunpack.c.l.b16 %v5107
    %v5432 = vunpack.c.h.b16 %v5107
    %v5433 = vunpack.c.l.b16 %v5108
    %v5434 = vunpack.c.h.b16 %v5108
    %v5435 = vunpack.c.l.b16 %v5109
    %v5436 = vunpack.c.h.b16 %v5109
    %v5437 = vunpack.c.l.b16 %v5110
    %v5438 = vunpack.c.h.b16 %v5110
    %v5439 = vunpack.c.l.b16 %v5111
    %v5440 = vunpack.c.l.b16 %v5112
    %v5441 = vunpack.c.h.b16 %v5112
    %v5442 = vunpack.c.l.b16 %v5113
    %v5443 = vunpack.c.h.b16 %v5113
    %v5444 = vunpack.c.l.b16 %v5114
    %v5445 = vunpack.c.h.b16 %v5114
    %v5446 = vunpack.c.l.b16 %v5115
    %v5447 = vunpack.c.h.b16 %v5115
    %v5448 = vunpack.c.l.b16 %v5116
    %v5449 = vunpack.c.l.b16 %v5117
    %v5450 = vunpack.c.h.b16 %v5117
    %v5451 = vunpack.c.l.b16 %v5118
    %v5452 = vunpack.c.h.b16 %v5118
    %v5453 = vunpack.c.l.b16 %v5119
    %v5454 = vunpack.c.h.b16 %v5119
    %v5455 = vunpack.c.l.b16 %v5120
    %v5456 = vunpack.c.h.b16 %v5120
    %v5457 = vunpack.c.l.b16 %v5121
    %v5458 = vunpack.c.l.b16 %v5122
    %v5459 = vunpack.c.h.b16 %v5122
    %v5460 = vunpack.c.l.b16 %v5123
    %v5461 = vunpack.c.h.b16 %v5123
    %v5462 = vunpack.c.l.b16 %v5124
    %v5463 = vunpack.c.h.b16 %v5124
    %v5464 = vunpack.c.l.b16 %v5125
    %v5465 = vunpack.c.h.b16 %v5125
    %v5466 = vunpack.c.l.b16 %v5126
    %v5467 = vunpack.c.l.b16 %v5127
    %v5468 = vunpack.c.h.b16 %v5127
    %v5469 = vunpack.c.l.b16 %v5128
    %v5470 = vunpack.c.h.b16 %v5128
    %v5471 = vunpack.c.l.b16 %v5129
    %v5472 = vunpack.c.h.b16 %v5129
    %v5473 = vunpack.c.l.b16 %v5130
    %v5474 = vunpack.c.h.b16 %v5130
    %v5475 = vunpack.c.l.b16 %v5131
    %v5476 = vunpack.c.l.b16 %v5132
    %v5477 = vunpack.c.h.b16 %v5132
    %v5478 = vunpack.c.l.b16 %v5133
    %v5479 = vunpack.c.h.b16 %v5133
    %v5480 = vunpack.c.l.b16 %v5134
    %v5481 = vunpack.c.h.b16 %v5134
    %v5482 = vunpack.c.l.b16 %v5135
    %v5483 = vunpack.c.h.b16 %v5135
    %v5484 = vunpack.c.l.b16 %v5136
    %v5485 = vunpack.c.l.b16 %v5137
    %v5486 = vunpack.c.h.b16 %v5137
    %v5487 = vunpack.c.l.b16 %v5138
    %v5488 = vunpack.c.h.b16 %v5138
    %v5489 = vunpack.c.l.b16 %v5139
    %v5490 = vunpack.c.h.b16 %v5139
    %v5491 = vunpack.c.l.b16 %v5140
    %v5492 = vunpack.c.h.b16 %v5140
    %v5493 = vunpack.c.l.b16 %v5141
    %v5494 = vunpack.c.l.b16 %v5142
    %v5495 = vunpack.c.h.b16 %v5142
    %v5496 = vunpack.c.l.b16 %v5143
    %v5497 = vunpack.c.h.b16 %v5143
    %v5498 = vunpack.c.l.b16 %v5144
    %v5499 = vunpack.c.h.b16 %v5144
    %v5500 = vunpack.c.l.b16 %v5145
    %v5501 = vunpack.c.h.b16 %v5145
    %v5502 = vunpack.c.l.b16 %v5146
    %v5503 = vunpack.c.l.b16 %v5147
    %v5504 = vunpack.c.h.b16 %v5147
    %v5505 = vunpack.c.l.b16 %v5148
    %v5506 = vunpack.c.h.b16 %v5148
    %v5507 = vunpack.c.l.b16 %v5149
    %v5508 = vunpack.c.h.b16 %v5149
    %v5509 = vunpack.c.l.b16 %v5150
    %v5510 = vunpack.c.h.b16 %v5150
    %v5511 = vunpack.c.l.b16 %v5151
    %v5512 = vunpack.c.l.b16 %v5152
    %v5513 = vunpack.c.h.b16 %v5152
    %v5514 = vunpack.c.l.b16 %v5153
    %v5515 = vunpack.c.h.b16 %v5153
    %v5516 = vunpack.c.l.b16 %v5154
    %v5517 = vunpack.c.h.b16 %v5154
    %v5518 = vunpack.c.l.b16 %v5155
    %v5519 = vunpack.c.h.b16 %v5155
    %v5520 = vunpack.c.l.b16 %v5156
    %v5521 = vunpack.c.l.b16 %v5157
    %v5522 = vunpack.c.h.b16 %v5157
    %v5523 = vunpack.c.l.b16 %v5158
    %v5524 = vunpack.c.h.b16 %v5158
    %v5525 = vunpack.c.l.b16 %v5159
    %v5526 = vunpack.c.h.b16 %v5159
    %v5527 = vunpack.c.l.b16 %v5160
    %v5528 = vunpack.c.h.b16 %v5160
    %v5529 = vunpack.c.l.b16 %v5161
    %v5530 = vunpack.c.l.b16 %v5162
    %v5531 = vunpack.c.h.b16 %v5162
    %v5532 = vunpack.c.l.b16 %v5163
    %v5533 = vunpack.c.h.b16 %v5163
    %v5534 = vunpack.c.l.b16 %v5164
    %v5535 = vunpack.c.h.b16 %v5164
    %v5536 = vunpack.c.l.b16 %v5165
    %v5537 = vunpack.c.h.b16 %v5165
    %v5538 = vunpack.c.l.b16 %v5166
    %v5539 = vunpack.c.l.b16 %v5167
    %v5540 = vunpack.c.h.b16 %v5167
    %v5541 = vunpack.c.l.b16 %v5168
    %v5542 = vunpack.c.h.b16 %v5168
    %v5543 = vunpack.c.l.b16 %v5169
    %v5544 = vunpack.c.h.b16 %v5169
    %v5545 = vunpack.c.l.b16 %v5170
    %v5546 = vunpack.c.h.b16 %v5170
    %v5547 = vunpack.c.l.b16 %v5171
    %v5548 = vunpack.c.l.b16 %v5172
    %v5549 = vunpack.c.h.b16 %v5172
    %v5550 = vunpack.c.l.b16 %v5173
    %v5551 = vunpack.c.h.b16 %v5173
    %v5552 = vunpack.c.l.b16 %v5174
    %v5553 = vunpack.c.h.b16 %v5174
    %v5554 = vunpack.c.l.b16 %v5175
    %v5555 = vunpack.c.h.b16 %v5175
    %v5556 = vunpack.c.l.b16 %v5176
    %v5557 = vunpack.c.l.b16 %v5177
    %v5558 = vunpack.c.h.b16 %v5177
    %v5559 = vunpack.c.l.b16 %v5178
    %v5560 = vunpack.c.h.b16 %v5178
    %v5561 = vunpack.c.l.b16 %v5179
    %v5562 = vunpack.c.h.b16 %v5179
    %v5563 = vunpack.c.l.b16 %v5180
    %v5564 = vunpack.c.h.b16 %v5180
    %v5565 = vunpack.c.l.b16 %v5181
    %v5566 = vunpack.c.l.b16 %v5182
    %v5567 = vunpack.c.h.b16 %v5182
    %v5568 = vunpack.c.l.b16 %v5183
    %v5569 = vunpack.c.h.b16 %v5183
    %v5570 = vunpack.c.l.b16 %v5184
    %v5571 = vunpack.c.h.b16 %v5184
    %v5572 = vunpack.c.l.b16 %v5185
    %v5573 = vunpack.c.h.b16 %v5185
    %v5574 = vunpack.c.l.b16 %v5186
    %v5575 = vunpack.c.l.b16 %v5187
    %v5576 = vunpack.c.h.b16 %v5187
    %v5577 = vunpack.c.l.b16 %v5188
    %v5578 = vunpack.c.h.b16 %v5188
    %v5579 = vunpack.c.l.b16 %v5189
    %v5580 = vunpack.c.h.b16 %v5189
    %v5581 = vunpack.c.l.b16 %v5190
    %v5582 = vunpack.c.h.b16 %v5190
    %v5583 = vunpack.c.l.b16 %v5191
    %v5584 = vunpack.c.l.b16 %v5192
    %v5585 = vunpack.c.h.b16 %v5192
    %v5586 = vunpack.c.l.b16 %v5193
    %v5587 = vunpack.c.h.b16 %v5193
    %v5588 = vunpack.c.l.b16 %v5194
    %v5589 = vunpack.c.h.b16 %v5194
    %v5590 = vunpack.c.l.b16 %v5195
    %v5591 = vunpack.c.h.b16 %v5195
    %v5592 = vunpack.c.l.b16 %v5196
    %v5593 = vunpack.c.l.b16 %v5197
    %v5594 = vunpack.c.h.b16 %v5197
    %v5595 = vunpack.c.l.b16 %v5198
    %v5596 = vunpack.c.h.b16 %v5198
    %v5597 = vunpack.c.l.b16 %v5199
    %v5598 = vunpack.c.h.b16 %v5199
    %v5599 = vunpack.c.l.b16 %v5200
    %v5600 = vunpack.c.h.b16 %v5200
    %v5601 = vunpack.c.l.b16 %v5201
    %v5602 = vunpack.c.l.b16 %v5202
    %v5603 = vunpack.c.h.b16 %v5202
    %v5604 = vunpack.c.l.b16 %v5203
    %v5605 = vunpack.c.h.b16 %v5203
    %v5606 = vunpack.c.l.b16 %v5204
    %v5607 = vunpack.c.h.b16 %v5204
    %v5608 = vunpack.c.l.b16 %v5205
    %v5609 = vunpack.c.h.b16 %v5205
    %v5610 = vunpack.c.l.b16 %v5206
    %v5611 = vunpack.c.l.b16 %v5207
    %v5612 = vunpack.c.h.b16 %v5207
    %v5613 = vunpack.c.l.b16 %v5208
    %v5614 = vunpack.c.h.b16 %v5208
    %v5615 = vunpack.c.l.b16 %v5209
    %v5616 = vunpack.c.h.b16 %v5209
    %v5617 = vunpack.c.l.b16 %v5210
    %v5618 = vunpack.c.h.b16 %v5210
    %v5619 = vunpack.c.l.b16 %v5211
    %v5620 = vunpack.c.l.b16 %v5212
    %v5621 = vunpack.c.h.b16 %v5212
    %v5622 = vunpack.c.l.b16 %v5213
    %v5623 = vunpack.c.h.b16 %v5213
    %v5624 = vunpack.c.l.b16 %v5214
    %v5625 = vunpack.c.h.b16 %v5214
    %v5626 = vunpack.c.l.b16 %v5215
    %v5627 = vunpack.c.h.b16 %v5215
    %v5628 = vunpack.c.l.b16 %v5216
    %v5629 = vunpack.c.l.b16 %v5217
    %v5630 = vunpack.c.h.b16 %v5217
    %v5631 = vunpack.c.l.b16 %v5218
    %v5632 = vunpack.c.h.b16 %v5218
    %v5633 = vunpack.c.l.b16 %v5219
    %v5634 = vunpack.c.h.b16 %v5219
    %v5635 = vunpack.c.l.b16 %v5220
    %v5636 = vunpack.c.h.b16 %v5220
    %v5637 = vunpack.c.l.b16 %v5221
    %v5638 = vunpack.c.l.b16 %v5222
    %v5639 = vunpack.c.h.b16 %v5222
    %v5640 = vunpack.c.l.b16 %v5223
    %v5641 = vunpack.c.h.b16 %v5223
    %v5642 = vunpack.c.l.b16 %v5224
    %v5643 = vunpack.c.h.b16 %v5224
    %v5644 = vunpack.c.l.b16 %v5225
    %v5645 = vunpack.c.h.b16 %v5225
    %v5646 = vunpack.c.l.b16 %v5226
    %v5647 = vunpack.c.l.b16 %v5227
    %v5648 = vunpack.c.h.b16 %v5227
    %v5649 = vunpack.c.l.b16 %v5228
    %v5650 = vunpack.c.h.b16 %v5228
    %v5651 = vunpack.c.l.b16 %v5229
    %v5652 = vunpack.c.h.b16 %v5229
    %v5653 = vunpack.c.l.b16 %v5230
    %v5654 = vunpack.c.h.b16 %v5230
    %v5655 = vunpack.c.l.b16 %v5231
    %v5656 = vunpack.c.l.b16 %v5232
    %v5657 = vunpack.c.h.b16 %v5232
    %v5658 = vunpack.c.l.b16 %v5233
    %v5659 = vunpack.c.h.b16 %v5233
    %v5660 = vunpack.c.l.b16 %v5234
    %v5661 = vunpack.c.h.b16 %v5234
    %v5662 = vunpack.c.l.b16 %v5235
    %v5663 = vunpack.c.h.b16 %v5235
    %v5664 = vunpack.c.l.b16 %v5236
    %v5665 = vunpack.c.l.b16 %v5237
    %v5666 = vunpack.c.h.b16 %v5237
    %v5667 = vunpack.c.l.b16 %v5238
    %v5668 = vunpack.c.h.b16 %v5238
    %v5669 = vunpack.c.l.b16 %v5239
    %v5670 = vunpack.c.h.b16 %v5239
    %v5671 = vunpack.c.l.b16 %v5240
    %v5672 = vunpack.c.h.b16 %v5240
    %v5673 = vunpack.c.l.b16 %v5241
    %v5674 = vunpack.c.l.b16 %v5242
    %v5675 = vunpack.c.h.b16 %v5242
    %v5676 = vunpack.c.l.b16 %v5243
    %v5677 = vunpack.c.h.b16 %v5243
    %v5678 = vunpack.c.l.b16 %v5244
    %v5679 = vunpack.c.h.b16 %v5244
    %v5680 = vunpack.c.l.b16 %v5245
    %v5681 = vunpack.c.h.b16 %v5245
    %v5682 = vunpack.c.l.b16 %v5246
    %v5683 = vunpack.c.l.b16 %v5247
    %v5684 = vunpack.c.h.b16 %v5247
    %v5685 = vunpack.c.l.b16 %v5248
    %v5686 = vunpack.c.h.b16 %v5248
    %v5687 = vunpack.c.l.b16 %v5249
    %v5688 = vunpack.c.h.b16 %v5249
    %v5689 = vunpack.c.l.b16 %v5250
    %v5690 = vunpack.c.h.b16 %v5250
    %v5691 = vunpack.c.l.b16 %v5251
    %v5692 = vunpack.c.l.b16 %v5252
    %v5693 = vunpack.c.h.b16 %v5252
    %v5694 = vunpack.c.l.b16 %v5253
    %v5695 = vunpack.c.h.b16 %v5253
    %v5696 = vunpack.c.l.b16 %v5254
    %v5697 = vunpack.c.h.b16 %v5254
    %v5698 = vunpack.c.l.b16 %v5255
    %v5699 = vunpack.c.h.b16 %v5255
    %v5700 = vunpack.c.l.b16 %v5256
    %v5701 = vunpack.c.l.b16 %v5257
    %v5702 = vunpack.c.h.b16 %v5257
    %v5703 = vunpack.c.l.b16 %v5258
    %v5704 = vunpack.c.h.b16 %v5258
    %v5705 = vunpack.c.l.b16 %v5259
    %v5706 = vunpack.c.h.b16 %v5259
    %v5707 = vunpack.c.l.b16 %v5260
    %v5708 = vunpack.c.h.b16 %v5260
    %v5709 = vunpack.c.l.b16 %v5261
    %v5710 = vpack.c.b16 %v5431, %v5422
    %v5711 = vpack.c.b16 %v5432, %v5423
    %v5712 = vpack.c.b16 %v5433, %v5424
    %v5713 = vpack.c.b16 %v5434, %v5425
    %v5714 = vpack.c.b16 %v5435, %v5426
    %v5715 = vpack.c.b16 %v5436, %v5427
    %v5716 = vpack.c.b16 %v5437, %v5428
    %v5717 = vpack.c.b16 %v5438, %v5429
    %v5718 = vpack.c.b16 %v5439, %v5430
    %v5719 = vpack.c.b16 %v5449, %v5440
    %v5720 = vpack.c.b16 %v5450, %v5441
    %v5721 = vpack.c.b16 %v5451, %v5442
    %v5722 = vpack.c.b16 %v5452, %v5443
    %v5723 = vpack.c.b16 %v5453, %v5444
    %v5724 = vpack.c.b16 %v5454, %v5445
    %v5725 = vpack.c.b16 %v5455, %v5446
    %v5726 = vpack.c.b16 %v5456, %v5447
    %v5727 = vpack.c.b16 %v5457, %v5448
    %v5728 = vpack.c.b16 %v5467, %v5458
    %v5729 = vpack.c.b16 %v5468, %v5459
    %v5730 = vpack.c.b16 %v5469, %v5460
    %v5731 = vpack.c.b16 %v5470, %v5461
    %v5732 = vpack.c.b16 %v5471, %v5462
    %v5733 = vpack.c.b16 %v5472, %v5463
    %v5734 = vpack.c.b16 %v5473, %v5464
    %v5735 = vpack.c.b16 %v5474, %v5465
    %v5736 = vpack.c.b16 %v5475, %v5466
    %v5737 = vpack.c.b16 %v5485, %v5476
    %v5738 = vpack.c.b16 %v5486, %v5477
    %v5739 = vpack.c.b16 %v5487, %v5478
    %v5740 = vpack.c.b16 %v5488, %v5479
    %v5741 = vpack.c.b16 %v5489, %v5480
    %v5742 = vpack.c.b16 %v5490, %v5481
    %v5743 = vpack.c.b16 %v5491, %v5482
    %v5744 = vpack.c.b16 %v5492, %v5483
    %v5745 = vpack.c.b16 %v5493, %v5484
    %v5746 = vpack.c.b16 %v5503, %v5494
    %v5747 = vpack.c.b16 %v5504, %v5495
    %v5748 = vpack.c.b16 %v5505, %v5496
    %v5749 = vpack.c.b16 %v5506, %v5497
    %v5750 = vpack.c.b16 %v5507, %v5498
    %v5751 = vpack.c.b16 %v5508, %v5499
    %v5752 = vpack.c.b16 %v5509, %v5500
    %v5753 = vpack.c.b16 %v5510, %v5501
    %v5754 = vpack.c.b16 %v5511, %v5502
    %v5755 = vpack.c.b16 %v5521, %v5512
    %v5756 = vpack.c.b16 %v5522, %v5513
    %v5757 = vpack.c.b16 %v5523, %v5514
    %v5758 = vpack.c.b16 %v5524, %v5515
    %v5759 = vpack.c.b16 %v5525, %v5516
    %v5760 = vpack.c.b16 %v5526, %v5517
    %v5761 = vpack.c.b16 %v5527, %v5518
    %v5762 = vpack.c.b16 %v5528, %v5519
    %v5763 = vpack.c.b16 %v5529, %v5520
    %v5764 = vpack.c.b16 %v5539, %v5530
    %v5765 = vpack.c.b16 %v5540, %v5531
    %v5766 = vpack.c.b16 %v5541, %v5532
    %v5767 = vpack.c.b16 %v5542, %v5533
    %v5768 = vpack.c.b16 %v5543, %v5534
    %v5769 = vpack.c.b16 %v5544, %v5535
    %v5770 = vpack.c.b16 %v5545, %v5536
    %v5771 = vpack.c.b16 %v5546, %v5537
    %v5772 = vpack.c.b16 %v5547, %v5538
    %v5773 = vpack.c.b16 %v5557, %v5548
    %v5774 = vpack.c.b16 %v5558, %v5549
    %v5775 = vpack.c.b16 %v5559, %v5550
    %v5776 = vpack.c.b16 %v5560, %v5551
    %v5777 = vpack.c.b16 %v5561, %v5552
    %v5778 = vpack.c.b16 %v5562, %v5553
    %v5779 = vpack.c.b16 %v5563, %v5554
    %v5780 = vpack.c.b16 %v5564, %v5555
    %v5781 = vpack.c.b16 %v5565, %v5556
    %v5782 = vpack.c.b16 %v5575, %v5566
    %v5783 = vpack.c.b16 %v5576, %v5567
    %v5784 = vpack.c.b16 %v5577, %v5568
    %v5785 = vpack.c.b16 %v5578, %v5569
    %v5786 = vpack.c.b16 %v5579, %v5570
    %v5787 = vpack.c.b16 %v5580, %v5571
    %v5788 = vpack.c.b16 %v5581, %v5572
    %v5789 = vpack.c.b16 %v5582, %v5573
    %v5790 = vpack.c.b16 %v5583, %v5574
    %v5791 = vpack.c.b16 %v5593, %v5584
    %v5792 = vpack.c.b16 %v5594, %v5585
    %v5793 = vpack.c.b16 %v5595, %v5586
    %v5794 = vpack.c.b16 %v5596, %v5587
    %v5795 = vpack.c.b16 %v5597, %v5588
    %v5796 = vpack.c.b16 %v5598, %v5589
    %v5797 = vpack.c.b16 %v5599, %v5590
    %v5798 = vpack.c.b16 %v5600, %v5591
    %v5799 = vpack.c.b16 %v5601, %v5592
    %v5800 = vpack.c.b16 %v5611, %v5602
    %v5801 = vpack.c.b16 %v5612, %v5603
    %v5802 = vpack.c.b16 %v5613, %v5604
    %v5803 = vpack.c.b16 %v5614, %v5605
    %v5804 = vpack.c.b16 %v5615, %v5606
    %v5805 = vpack.c.b16 %v5616, %v5607
    %v5806 = vpack.c.b16 %v5617, %v5608
    %v5807 = vpack.c.b16 %v5618, %v5609
    %v5808 = vpack.c.b16 %v5619, %v5610
    %v5809 = vpack.c.b16 %v5629, %v5620
    %v5810 = vpack.c.b16 %v5630, %v5621
    %v5811 = vpack.c.b16 %v5631, %v5622
    %v5812 = vpack.c.b16 %v5632, %v5623
    %v5813 = vpack.c.b16 %v5633, %v5624
    %v5814 = vpack.c.b16 %v5634, %v5625
    %v5815 = vpack.c.b16 %v5635, %v5626
    %v5816 = vpack.c.b16 %v5636, %v5627
    %v5817 = vpack.c.b16 %v5637, %v5628
    %v5818 = vpack.c.b16 %v5647, %v5638
    %v5819 = vpack.c.b16 %v5648, %v5639
    %v5820 = vpack.c.b16 %v5649, %v5640
    %v5821 = vpack.c.b16 %v5650, %v5641
    %v5822 = vpack.c.b16 %v5651, %v5642
    %v5823 = vpack.c.b16 %v5652, %v5643
    %v5824 = vpack.c.b16 %v5653, %v5644
    %v5825 = vpack.c.b16 %v5654, %v5645
    %v5826 = vpack.c.b16 %v5655, %v5646
    %v5827 = vpack.c.b16 %v5665, %v5656
    %v5828 = vpack.c.b16 %v5666, %v5657
    %v5829 = vpack.c.b16 %v5667, %v5658
    %v5830 = vpack.c.b16 %v5668, %v5659
    %v5831 = vpack.c.b16 %v5669, %v5660
    %v5832 = vpack.c.b16 %v5670, %v5661
    %v5833 = vpack.c.b16 %v5671, %v5662
    %v5834 = vpack.c.b16 %v5672, %v5663
    %v5835 = vpack.c.b16 %v5673, %v5664
    %v5836 = vpack.c.b16 %v5683, %v5674
    %v5837 = vpack.c.b16 %v5684, %v5675
    %v5838 = vpack.c.b16 %v5685, %v5676
    %v5839 = vpack.c.b16 %v5686, %v5677
    %v5840 = vpack.c.b16 %v5687, %v5678
    %v5841 = vpack.c.b16 %v5688, %v5679
    %v5842 = vpack.c.b16 %v5689, %v5680
    %v5843 = vpack.c.b16 %v5690, %v5681
    %v5844 = vpack.c.b16 %v5691, %v5682
    %v5845 = vpack.c.b16 %v5701, %v5692
    %v5846 = vpack.c.b16 %v5702, %v5693
    %v5847 = vpack.c.b16 %v5703, %v5694
    %v5848 = vpack.c.b16 %v5704, %v5695
    %v5849 = vpack.c.b16 %v5705, %v5696
    %v5850 = vpack.c.b16 %v5706, %v5697
    %v5851 = vpack.c.b16 %v5707, %v5698
    %v5852 = vpack.c.b16 %v5708, %v5699
    %v5853 = vpack.c.b16 %v5709, %v5700
    %5998 = vmatprep.subr.bf16.mxu0 %v5711
    %5999 = vmatpush1.bf16.msra.mxu0 %v5710
    %6000 = vmatprep.subr.bf16.mxu0 %v5720
    %6001 = vmatpush1.bf16.msra.mxu0 %v5719
    %6002 = vmatprep.subr.bf16.mxu0 %v5729
    %6003 = vmatpush1.bf16.msra.mxu0 %v5728
    %6004 = vmatprep.subr.bf16.mxu0 %v5738
    %6005 = vmatpush1.bf16.msra.mxu0 %v5737
    %6006 = vmatprep.subr.bf16.mxu0 %v5747
    %6007 = vmatpush1.bf16.msra.mxu0 %v5746
    %6008 = vmatprep.subr.bf16.mxu0 %v5756
    %6009 = vmatpush1.bf16.msra.mxu0 %v5755
    %6010 = vmatprep.subr.bf16.mxu0 %v5765
    %6011 = vmatpush1.bf16.msra.mxu0 %v5764
    %6012 = vmatprep.subr.bf16.mxu0 %v5774
    %6013 = vmatpush1.bf16.msra.mxu0 %v5773
    %6014 = vmatprep.subr.bf16.mxu0 %v5783
    %6015 = vmatpush1.bf16.msra.mxu0 %v5782
    %6016 = vmatprep.subr.bf16.mxu0 %v5792
    %6017 = vmatpush1.bf16.msra.mxu0 %v5791
    %6018 = vmatprep.subr.bf16.mxu0 %v5801
    %6019 = vmatpush1.bf16.msra.mxu0 %v5800
    %6020 = vmatprep.subr.bf16.mxu0 %v5810
    %6021 = vmatpush1.bf16.msra.mxu0 %v5809
    %6022 = vmatprep.subr.bf16.mxu0 %v5819
    %6023 = vmatpush1.bf16.msra.mxu0 %v5818
    %6024 = vmatprep.subr.bf16.mxu0 %v5828
    %6025 = vmatpush1.bf16.msra.mxu0 %v5827
    %6026 = vmatprep.subr.bf16.mxu0 %v5837
    %6027 = vmatpush1.bf16.msra.mxu0 %v5836
    %6028 = vmatprep.subr.bf16.mxu0 %v5846
    %6029 = vmatpush1.bf16.msra.mxu0 %v5845
    %6030 = vmatprep.mubr.bf16.mxu0 %v5087
    %6031 = vmatmul.mubr.bf16.gmra.mrb[0].mxu0 %v5086
    %v6032 = vpop.f32.mrb[0].mxu0
    %v6033 = vadd.f32 0.0, %v6032
    %v6034 = vpop.f32.mrb[0].mxu0
    %v6035 = vadd.f32 0.0, %v6034
    %v6036 = vpop.f32.mrb[0].mxu0
    %v6037 = vadd.f32 0.0, %v6036
    %v6038 = vpop.f32.mrb[0].mxu0
    %v6039 = vadd.f32 0.0, %v6038
    %6040 = vmatprep.mubr.bf16.mxu0 %v5089
    %6041 = vmatmul.mubr.bf16.gmra.mrb[0].mxu0 %v5088
    %v6042 = vpop.f32.mrb[0].mxu0
    %v6043 = vadd.f32 0.0, %v6042
    %v6044 = vpop.f32.mrb[0].mxu0
    %v6045 = vadd.f32 0.0, %v6044
    %v6046 = vpop.f32.mrb[0].mxu0
    %v6047 = vadd.f32 0.0, %v6046
    %v6048 = vpop.f32.mrb[0].mxu0
    %v6049 = vadd.f32 0.0, %v6048
    %6050 = vmatprep.mubr.bf16.mxu0 %v5091
    %6051 = vmatmul.mubr.bf16.gmra.mrb[0].mxu0 %v5090
    %v6052 = vpop.f32.mrb[0].mxu0
    %v6053 = vadd.f32 0.0, %v6052
    %v6054 = vpop.f32.mrb[0].mxu0
    %v6055 = vadd.f32 0.0, %v6054
    %v6056 = vpop.f32.mrb[0].mxu0
    %v6057 = vadd.f32 0.0, %v6056
    %v6058 = vpop.f32.mrb[0].mxu0
    %v6059 = vadd.f32 0.0, %v6058
    %6060 = vmatprep.mubr.bf16.mxu0 %v5093
    %6061 = vmatmul.mubr.bf16.gmra.mrb[0].mxu0 %v5092
    %v6062 = vpop.f32.mrb[0].mxu0
    %v6063 = vadd.f32 0.0, %v6062
    %v6064 = vpop.f32.mrb[0].mxu0
    %v6065 = vadd.f32 0.0, %v6064
    %v6066 = vpop.f32.mrb[0].mxu0
    %v6067 = vadd.f32 0.0, %v6066
    %v6068 = vpop.f32.mrb[0].mxu0
    %v6069 = vadd.f32 0.0, %v6068
    %6070 = vmatprep.mubr.bf16.mxu0 %v5095
    %6071 = vmatmul.mubr.bf16.gmra.mrb[0].mxu0 %v5094
    %v6072 = vpop.f32.mrb[0].mxu0
    %v6073 = vadd.f32 0.0, %v6072
    %v6074 = vpop.f32.mrb[0].mxu0
    %v6075 = vadd.f32 0.0, %v6074
    %v6076 = vpop.f32.mrb[0].mxu0
    %v6077 = vadd.f32 0.0, %v6076
    %v6078 = vpop.f32.mrb[0].mxu0
    %v6079 = vadd.f32 0.0, %v6078
    %6080 = vmatprep.mubr.bf16.mxu0 %v5097
    %6081 = vmatmul.mubr.bf16.gmra.mrb[0].mxu0 %v5096
    %v6082 = vpop.f32.mrb[0].mxu0
    %v6083 = vadd.f32 0.0, %v6082
    %v6084 = vpop.f32.mrb[0].mxu0
    %v6085 = vadd.f32 0.0, %v6084
    %v6086 = vpop.f32.mrb[0].mxu0
    %v6087 = vadd.f32 0.0, %v6086
    %v6088 = vpop.f32.mrb[0].mxu0
    %v6089 = vadd.f32 0.0, %v6088
    %6090 = vmatprep.mubr.bf16.mxu0 %v5099
    %6091 = vmatmul.mubr.bf16.gmra.mrb[0].mxu0 %v5098
    %v6092 = vpop.f32.mrb[0].mxu0
    %v6093 = vadd.f32 0.0, %v6092
    %v6094 = vpop.f32.mrb[0].mxu0
    %v6095 = vadd.f32 0.0, %v6094
    %v6096 = vpop.f32.mrb[0].mxu0
    %v6097 = vadd.f32 0.0, %v6096
    %v6098 = vpop.f32.mrb[0].mxu0
    %v6099 = vadd.f32 0.0, %v6098
    %6100 = vmatprep.mubr.bf16.mxu0 %v5101
    %6101 = vmatmul.mubr.bf16.gmra.mrb[0].mxu0 %v5100
    %v6102 = vpop.f32.mrb[0].mxu0
    %v6103 = vadd.f32 0.0, %v6102
    %v6104 = vpop.f32.mrb[0].mxu0
    %v6105 = vadd.f32 0.0, %v6104
    %v6106 = vpop.f32.mrb[0].mxu0
    %v6107 = vadd.f32 0.0, %v6106
    %v6108 = vpop.f32.mrb[0].mxu0
    %v6109 = vadd.f32 0.0, %v6108
    %6110 = vdwg.mxu0
    %6111 = vmatprep.subr.bf16.mxu0 %v5713
    %6112 = vmatpush1.bf16.msra.mxu0 %v5712
    %6113 = vmatprep.subr.bf16.mxu0 %v5722
    %6114 = vmatpush1.bf16.msra.mxu0 %v5721
    %6115 = vmatprep.subr.bf16.mxu0 %v5731
    %6116 = vmatpush1.bf16.msra.mxu0 %v5730
    %6117 = vmatprep.subr.bf16.mxu0 %v5740
    %6118 = vmatpush1.bf16.msra.mxu0 %v5739
    %6119 = vmatprep.subr.bf16.mxu0 %v5749
    %6120 = vmatpush1.bf16.msra.mxu0 %v5748
    %6121 = vmatprep.subr.bf16.mxu0 %v5758
    %6122 = vmatpush1.bf16.msra.mxu0 %v5757
    %6123 = vmatprep.subr.bf16.mxu0 %v5767
    %6124 = vmatpush1.bf16.msra.mxu0 %v5766
    %6125 = vmatprep.subr.bf16.mxu0 %v5776
    %6126 = vmatpush1.bf16.msra.mxu0 %v5775
    %6127 = vmatprep.subr.bf16.mxu0 %v5785
    %6128 = vmatpush1.bf16.msra.mxu0 %v5784
    %6129 = vmatprep.subr.bf16.mxu0 %v5794
    %6130 = vmatpush1.bf16.msra.mxu0 %v5793
    %6131 = vmatprep.subr.bf16.mxu0 %v5803
    %6132 = vmatpush1.bf16.msra.mxu0 %v5802
    %6133 = vmatprep.subr.bf16.mxu0 %v5812
    %6134 = vmatpush1.bf16.msra.mxu0 %v5811
    %6135 = vmatprep.subr.bf16.mxu0 %v5821
    %6136 = vmatpush1.bf16.msra.mxu0 %v5820
    %6137 = vmatprep.subr.bf16.mxu0 %v5830
    %6138 = vmatpush1.bf16.msra.mxu0 %v5829
    %6139 = vmatprep.subr.bf16.mxu0 %v5839
    %6140 = vmatpush1.bf16.msra.mxu0 %v5838
    %6141 = vmatprep.subr.bf16.mxu0 %v5848
    %6142 = vmatpush1.bf16.msra.mxu0 %v5847
    %6143 = vmatprep.mubr.bf16.mxu0 %v5087
    %6144 = vmatmul.mubr.bf16.gmra.mrb[0].mxu0 %v5086
    %v6145 = vpop.f32.mrb[0].mxu0
    %v6146 = vadd.f32 0.0, %v6145
    %v6147 = vpop.f32.mrb[0].mxu0
    %v6148 = vadd.f32 0.0, %v6147
    %v6149 = vpop.f32.mrb[0].mxu0
    %v6150 = vadd.f32 0.0, %v6149
    %v6151 = vpop.f32.mrb[0].mxu0
    %v6152 = vadd.f32 0.0, %v6151
    %6153 = vmatprep.mubr.bf16.mxu0 %v5089
    %6154 = vmatmul.mubr.bf16.gmra.mrb[0].mxu0 %v5088
    %v6155 = vpop.f32.mrb[0].mxu0
    %v6156 = vadd.f32 0.0, %v6155
    %v6157 = vpop.f32.mrb[0].mxu0
    %v6158 = vadd.f32 0.0, %v6157
    %v6159 = vpop.f32.mrb[0].mxu0
    %v6160 = vadd.f32 0.0, %v6159
    %v6161 = vpop.f32.mrb[0].mxu0
    %v6162 = vadd.f32 0.0, %v6161
    %6163 = vmatprep.mubr.bf16.mxu0 %v5091
    %6164 = vmatmul.mubr.bf16.gmra.mrb[0].mxu0 %v5090
    %v6165 = vpop.f32.mrb[0].mxu0
    %v6166 = vadd.f32 0.0, %v6165
    %v6167 = vpop.f32.mrb[0].mxu0
    %v6168 = vadd.f32 0.0, %v6167
    %v6169 = vpop.f32.mrb[0].mxu0
    %v6170 = vadd.f32 0.0, %v6169
    %v6171 = vpop.f32.mrb[0].mxu0
    %v6172 = vadd.f32 0.0, %v6171
    %6173 = vmatprep.mubr.bf16.mxu0 %v5093
    %6174 = vmatmul.mubr.bf16.gmra.mrb[0].mxu0 %v5092
    %v6175 = vpop.f32.mrb[0].mxu0
    %v6176 = vadd.f32 0.0, %v6175
    %v6177 = vpop.f32.mrb[0].mxu0
    %v6178 = vadd.f32 0.0, %v6177
    %v6179 = vpop.f32.mrb[0].mxu0
    %v6180 = vadd.f32 0.0, %v6179
    %v6181 = vpop.f32.mrb[0].mxu0
    %v6182 = vadd.f32 0.0, %v6181
    %6183 = vmatprep.mubr.bf16.mxu0 %v5095
    %6184 = vmatmul.mubr.bf16.gmra.mrb[0].mxu0 %v5094
    %v6185 = vpop.f32.mrb[0].mxu0
    %v6186 = vadd.f32 0.0, %v6185
    %v6187 = vpop.f32.mrb[0].mxu0
    %v6188 = vadd.f32 0.0, %v6187
    %v6189 = vpop.f32.mrb[0].mxu0
    %v6190 = vadd.f32 0.0, %v6189
    %v6191 = vpop.f32.mrb[0].mxu0
    %v6192 = vadd.f32 0.0, %v6191
    %6193 = vmatprep.mubr.bf16.mxu0 %v5097
    %6194 = vmatmul.mubr.bf16.gmra.mrb[0].mxu0 %v5096
    %v6195 = vpop.f32.mrb[0].mxu0
    %v6196 = vadd.f32 0.0, %v6195
    %v6197 = vpop.f32.mrb[0].mxu0
    %v6198 = vadd.f32 0.0, %v6197
    %v6199 = vpop.f32.mrb[0].mxu0
    %v6200 = vadd.f32 0.0, %v6199
    %v6201 = vpop.f32.mrb[0].mxu0
    %v6202 = vadd.f32 0.0, %v6201
    %6203 = vmatprep.mubr.bf16.mxu0 %v5099
    %6204 = vmatmul.mubr.bf16.gmra.mrb[0].mxu0 %v5098
    %v6205 = vpop.f32.mrb[0].mxu0
    %v6206 = vadd.f32 0.0, %v6205
    %v6207 = vpop.f32.mrb[0].mxu0
    %v6208 = vadd.f32 0.0, %v6207
    %v6209 = vpop.f32.mrb[0].mxu0
    %v6210 = vadd.f32 0.0, %v6209
    %v6211 = vpop.f32.mrb[0].mxu0
    %v6212 = vadd.f32 0.0, %v6211
    %6213 = vmatprep.mubr.bf16.mxu0 %v5101
    %6214 = vmatmul.mubr.bf16.gmra.mrb[0].mxu0 %v5100
    %v6215 = vpop.f32.mrb[0].mxu0
    %v6216 = vadd.f32 0.0, %v6215
    %v6217 = vpop.f32.mrb[0].mxu0
    %v6218 = vadd.f32 0.0, %v6217
    %v6219 = vpop.f32.mrb[0].mxu0
    %v6220 = vadd.f32 0.0, %v6219
    %v6221 = vpop.f32.mrb[0].mxu0
    %v6222 = vadd.f32 0.0, %v6221
    %6223 = vdwg.mxu0
    %6224 = vmatprep.subr.bf16.mxu0 %v5715
    %6225 = vmatpush1.bf16.msra.mxu0 %v5714
    %6226 = vmatprep.subr.bf16.mxu0 %v5724
    %6227 = vmatpush1.bf16.msra.mxu0 %v5723
    %6228 = vmatprep.subr.bf16.mxu0 %v5733
    %6229 = vmatpush1.bf16.msra.mxu0 %v5732
    %6230 = vmatprep.subr.bf16.mxu0 %v5742
    %6231 = vmatpush1.bf16.msra.mxu0 %v5741
    %6232 = vmatprep.subr.bf16.mxu0 %v5751
    %6233 = vmatpush1.bf16.msra.mxu0 %v5750
    %6234 = vmatprep.subr.bf16.mxu0 %v5760
    %6235 = vmatpush1.bf16.msra.mxu0 %v5759
    %6236 = vmatprep.subr.bf16.mxu0 %v5769
    %6237 = vmatpush1.bf16.msra.mxu0 %v5768
    %6238 = vmatprep.subr.bf16.mxu0 %v5778
    %6239 = vmatpush1.bf16.msra.mxu0 %v5777
    %6240 = vmatprep.subr.bf16.mxu0 %v5787
    %6241 = vmatpush1.bf16.msra.mxu0 %v5786
    %6242 = vmatprep.subr.bf16.mxu0 %v5796
    %6243 = vmatpush1.bf16.msra.mxu0 %v5795
    %6244 = vmatprep.subr.bf16.mxu0 %v5805
    %6245 = vmatpush1.bf16.msra.mxu0 %v5804
    %6246 = vmatprep.subr.bf16.mxu0 %v5814
    %6247 = vmatpush1.bf16.msra.mxu0 %v5813
    %6248 = vmatprep.subr.bf16.mxu0 %v5823
    %6249 = vmatpush1.bf16.msra.mxu0 %v5822
    %6250 = vmatprep.subr.bf16.mxu0 %v5832
    %6251 = vmatpush1.bf16.msra.mxu0 %v5831
    %6252 = vmatprep.subr.bf16.mxu0 %v5841
    %6253 = vmatpush1.bf16.msra.mxu0 %v5840
    %6254 = vmatprep.subr.bf16.mxu0 %v5850
    %6255 = vmatpush1.bf16.msra.mxu0 %v5849
    %6256 = vmatprep.mubr.bf16.mxu0 %v5087
    %6257 = vmatmul.mubr.bf16.gmra.mrb[0].mxu0 %v5086
    %v6258 = vpop.f32.mrb[0].mxu0
    %v6259 = vadd.f32 0.0, %v6258
    %v6260 = vpop.f32.mrb[0].mxu0
    %v6261 = vadd.f32 0.0, %v6260
    %v6262 = vpop.f32.mrb[0].mxu0
    %v6263 = vadd.f32 0.0, %v6262
    %v6264 = vpop.f32.mrb[0].mxu0
    %v6265 = vadd.f32 0.0, %v6264
    %6266 = vmatprep.mubr.bf16.mxu0 %v5089
    %6267 = vmatmul.mubr.bf16.gmra.mrb[0].mxu0 %v5088
    %v6268 = vpop.f32.mrb[0].mxu0
    %v6269 = vadd.f32 0.0, %v6268
    %v6270 = vpop.f32.mrb[0].mxu0
    %v6271 = vadd.f32 0.0, %v6270
    %v6272 = vpop.f32.mrb[0].mxu0
    %v6273 = vadd.f32 0.0, %v6272
    %v6274 = vpop.f32.mrb[0].mxu0
    %v6275 = vadd.f32 0.0, %v6274
    %6276 = vmatprep.mubr.bf16.mxu0 %v5091
    %6277 = vmatmul.mubr.bf16.gmra.mrb[0].mxu0 %v5090
    %v6278 = vpop.f32.mrb[0].mxu0
    %v6279 = vadd.f32 0.0, %v6278
    %v6280 = vpop.f32.mrb[0].mxu0
    %v6281 = vadd.f32 0.0, %v6280
    %v6282 = vpop.f32.mrb[0].mxu0
    %v6283 = vadd.f32 0.0, %v6282
    %v6284 = vpop.f32.mrb[0].mxu0
    %v6285 = vadd.f32 0.0, %v6284
    %6286 = vmatprep.mubr.bf16.mxu0 %v5093
    %6287 = vmatmul.mubr.bf16.gmra.mrb[0].mxu0 %v5092
    %v6288 = vpop.f32.mrb[0].mxu0
    %v6289 = vadd.f32 0.0, %v6288
    %v6290 = vpop.f32.mrb[0].mxu0
    %v6291 = vadd.f32 0.0, %v6290
    %v6292 = vpop.f32.mrb[0].mxu0
    %v6293 = vadd.f32 0.0, %v6292
    %v6294 = vpop.f32.mrb[0].mxu0
    %v6295 = vadd.f32 0.0, %v6294
    %6296 = vmatprep.mubr.bf16.mxu0 %v5095
    %6297 = vmatmul.mubr.bf16.gmra.mrb[0].mxu0 %v5094
    %v6298 = vpop.f32.mrb[0].mxu0
    %v6299 = vadd.f32 0.0, %v6298
    %v6300 = vpop.f32.mrb[0].mxu0
    %v6301 = vadd.f32 0.0, %v6300
    %v6302 = vpop.f32.mrb[0].mxu0
    %v6303 = vadd.f32 0.0, %v6302
    %v6304 = vpop.f32.mrb[0].mxu0
    %v6305 = vadd.f32 0.0, %v6304
    %6306 = vmatprep.mubr.bf16.mxu0 %v5097
    %6307 = vmatmul.mubr.bf16.gmra.mrb[0].mxu0 %v5096
    %v6308 = vpop.f32.mrb[0].mxu0
    %v6309 = vadd.f32 0.0, %v6308
    %v6310 = vpop.f32.mrb[0].mxu0
    %v6311 = vadd.f32 0.0, %v6310
    %v6312 = vpop.f32.mrb[0].mxu0
    %v6313 = vadd.f32 0.0, %v6312
    %v6314 = vpop.f32.mrb[0].mxu0
    %v6315 = vadd.f32 0.0, %v6314
    %6316 = vmatprep.mubr.bf16.mxu0 %v5099
    %6317 = vmatmul.mubr.bf16.gmra.mrb[0].mxu0 %v5098
    %v6318 = vpop.f32.mrb[0].mxu0
    %v6319 = vadd.f32 0.0, %v6318
    %v6320 = vpop.f32.mrb[0].mxu0
    %v6321 = vadd.f32 0.0, %v6320
    %v6322 = vpop.f32.mrb[0].mxu0
    %v6323 = vadd.f32 0.0, %v6322
    %v6324 = vpop.f32.mrb[0].mxu0
    %v6325 = vadd.f32 0.0, %v6324
    %6326 = vmatprep.mubr.bf16.mxu0 %v5101
    %6327 = vmatmul.mubr.bf16.gmra.mrb[0].mxu0 %v5100
    %v6328 = vpop.f32.mrb[0].mxu0
    %v6329 = vadd.f32 0.0, %v6328
    %v6330 = vpop.f32.mrb[0].mxu0
    %v6331 = vadd.f32 0.0, %v6330
    %v6332 = vpop.f32.mrb[0].mxu0
    %v6333 = vadd.f32 0.0, %v6332
    %v6334 = vpop.f32.mrb[0].mxu0
    %v6335 = vadd.f32 0.0, %v6334
    %6336 = vdwg.mxu0
    %6337 = vmatprep.subr.bf16.mxu0 %v5717
    %6338 = vmatpush1.bf16.msra.mxu0 %v5716
    %6339 = vmatprep.subr.bf16.mxu0 %v5726
    %6340 = vmatpush1.bf16.msra.mxu0 %v5725
    %6341 = vmatprep.subr.bf16.mxu0 %v5735
    %6342 = vmatpush1.bf16.msra.mxu0 %v5734
    %6343 = vmatprep.subr.bf16.mxu0 %v5744
    %6344 = vmatpush1.bf16.msra.mxu0 %v5743
    %6345 = vmatprep.subr.bf16.mxu0 %v5753
    %6346 = vmatpush1.bf16.msra.mxu0 %v5752
    %6347 = vmatprep.subr.bf16.mxu0 %v5762
    %6348 = vmatpush1.bf16.msra.mxu0 %v5761
    %6349 = vmatprep.subr.bf16.mxu0 %v5771
    %6350 = vmatpush1.bf16.msra.mxu0 %v5770
    %6351 = vmatprep.subr.bf16.mxu0 %v5780
    %6352 = vmatpush1.bf16.msra.mxu0 %v5779
    %6353 = vmatprep.subr.bf16.mxu0 %v5789
    %6354 = vmatpush1.bf16.msra.mxu0 %v5788
    %6355 = vmatprep.subr.bf16.mxu0 %v5798
    %6356 = vmatpush1.bf16.msra.mxu0 %v5797
    %6357 = vmatprep.subr.bf16.mxu0 %v5807
    %6358 = vmatpush1.bf16.msra.mxu0 %v5806
    %6359 = vmatprep.subr.bf16.mxu0 %v5816
    %6360 = vmatpush1.bf16.msra.mxu0 %v5815
    %6361 = vmatprep.subr.bf16.mxu0 %v5825
    %6362 = vmatpush1.bf16.msra.mxu0 %v5824
    %6363 = vmatprep.subr.bf16.mxu0 %v5834
    %6364 = vmatpush1.bf16.msra.mxu0 %v5833
    %6365 = vmatprep.subr.bf16.mxu0 %v5843
    %6366 = vmatpush1.bf16.msra.mxu0 %v5842
    %6367 = vmatprep.subr.bf16.mxu0 %v5852
    %6368 = vmatpush1.bf16.msra.mxu0 %v5851
    %6369 = vmatprep.mubr.bf16.mxu0 %v5087
    %6370 = vmatmul.mubr.bf16.gmra.mrb[0].mxu0 %v5086
    %v6371 = vpop.f32.mrb[0].mxu0
    %v6372 = vadd.f32 0.0, %v6371
    %v6373 = vpop.f32.mrb[0].mxu0
    %v6374 = vadd.f32 0.0, %v6373
    %v6375 = vpop.f32.mrb[0].mxu0
    %v6376 = vadd.f32 0.0, %v6375
    %v6377 = vpop.f32.mrb[0].mxu0
    %v6378 = vadd.f32 0.0, %v6377
    %6379 = vmatprep.mubr.bf16.mxu0 %v5089
    %6380 = vmatmul.mubr.bf16.gmra.mrb[0].mxu0 %v5088
    %v6381 = vpop.f32.mrb[0].mxu0
    %v6382 = vadd.f32 0.0, %v6381
    %v6383 = vpop.f32.mrb[0].mxu0
    %v6384 = vadd.f32 0.0, %v6383
    %v6385 = vpop.f32.mrb[0].mxu0
    %v6386 = vadd.f32 0.0, %v6385
    %v6387 = vpop.f32.mrb[0].mxu0
    %v6388 = vadd.f32 0.0, %v6387
    %6389 = vmatprep.mubr.bf16.mxu0 %v5091
    %6390 = vmatmul.mubr.bf16.gmra.mrb[0].mxu0 %v5090
    %v6391 = vpop.f32.mrb[0].mxu0
    %v6392 = vadd.f32 0.0, %v6391
    %v6393 = vpop.f32.mrb[0].mxu0
    %v6394 = vadd.f32 0.0, %v6393
    %v6395 = vpop.f32.mrb[0].mxu0
    %v6396 = vadd.f32 0.0, %v6395
    %v6397 = vpop.f32.mrb[0].mxu0
    %v6398 = vadd.f32 0.0, %v6397
    %6399 = vmatprep.mubr.bf16.mxu0 %v5093
    %6400 = vmatmul.mubr.bf16.gmra.mrb[0].mxu0 %v5092
    %v6401 = vpop.f32.mrb[0].mxu0
    %v6402 = vadd.f32 0.0, %v6401
    %v6403 = vpop.f32.mrb[0].mxu0
    %v6404 = vadd.f32 0.0, %v6403
    %v6405 = vpop.f32.mrb[0].mxu0
    %v6406 = vadd.f32 0.0, %v6405
    %v6407 = vpop.f32.mrb[0].mxu0
    %v6408 = vadd.f32 0.0, %v6407
    %6409 = vmatprep.mubr.bf16.mxu0 %v5095
    %6410 = vmatmul.mubr.bf16.gmra.mrb[0].mxu0 %v5094
    %v6411 = vpop.f32.mrb[0].mxu0
    %v6412 = vadd.f32 0.0, %v6411
    %v6413 = vpop.f32.mrb[0].mxu0
    %v6414 = vadd.f32 0.0, %v6413
    %v6415 = vpop.f32.mrb[0].mxu0
    %v6416 = vadd.f32 0.0, %v6415
    %v6417 = vpop.f32.mrb[0].mxu0
    %v6418 = vadd.f32 0.0, %v6417
    %6419 = vmatprep.mubr.bf16.mxu0 %v5097
    %6420 = vmatmul.mubr.bf16.gmra.mrb[0].mxu0 %v5096
    %v6421 = vpop.f32.mrb[0].mxu0
    %v6422 = vadd.f32 0.0, %v6421
    %v6423 = vpop.f32.mrb[0].mxu0
    %v6424 = vadd.f32 0.0, %v6423
    %v6425 = vpop.f32.mrb[0].mxu0
    %v6426 = vadd.f32 0.0, %v6425
    %v6427 = vpop.f32.mrb[0].mxu0
    %v6428 = vadd.f32 0.0, %v6427
    %6429 = vmatprep.mubr.bf16.mxu0 %v5099
    %6430 = vmatmul.mubr.bf16.gmra.mrb[0].mxu0 %v5098
    %v6431 = vpop.f32.mrb[0].mxu0
    %v6432 = vadd.f32 0.0, %v6431
    %v6433 = vpop.f32.mrb[0].mxu0
    %v6434 = vadd.f32 0.0, %v6433
    %v6435 = vpop.f32.mrb[0].mxu0
    %v6436 = vadd.f32 0.0, %v6435
    %v6437 = vpop.f32.mrb[0].mxu0
    %v6438 = vadd.f32 0.0, %v6437
    %6439 = vmatprep.mubr.bf16.mxu0 %v5101
    %6440 = vmatmul.mubr.bf16.gmra.mrb[0].mxu0 %v5100
    %v6441 = vpop.f32.mrb[0].mxu0
    %v6442 = vadd.f32 0.0, %v6441
    %v6443 = vpop.f32.mrb[0].mxu0
    %v6444 = vadd.f32 0.0, %v6443
    %v6445 = vpop.f32.mrb[0].mxu0
    %v6446 = vadd.f32 0.0, %v6445
    %v6447 = vpop.f32.mrb[0].mxu0
    %v6448 = vadd.f32 0.0, %v6447
    %6449 = vdwg.mxu0
    %6450 = vmatprep.subr.bf16.mxu0 0
    %6451 = vmatpush1.bf16.msra.mxu0 %v5718
    %6452 = vmatprep.subr.bf16.mxu0 0
    %6453 = vmatpush1.bf16.msra.mxu0 %v5727
    %6454 = vmatprep.subr.bf16.mxu0 0
    %6455 = vmatpush1.bf16.msra.mxu0 %v5736
    %6456 = vmatprep.subr.bf16.mxu0 0
    %6457 = vmatpush1.bf16.msra.mxu0 %v5745
    %6458 = vmatprep.subr.bf16.mxu0 0
    %6459 = vmatpush1.bf16.msra.mxu0 %v5754
    %6460 = vmatprep.subr.bf16.mxu0 0
    %6461 = vmatpush1.bf16.msra.mxu0 %v5763
    %6462 = vmatprep.subr.bf16.mxu0 0
    %6463 = vmatpush1.bf16.msra.mxu0 %v5772
    %6464 = vmatprep.subr.bf16.mxu0 0
    %6465 = vmatpush1.bf16.msra.mxu0 %v5781
    %6466 = vmatprep.subr.bf16.mxu0 0
    %6467 = vmatpush1.bf16.msra.mxu0 %v5790
    %6468 = vmatprep.subr.bf16.mxu0 0
    %6469 = vmatpush1.bf16.msra.mxu0 %v5799
    %6470 = vmatprep.subr.bf16.mxu0 0
    %6471 = vmatpush1.bf16.msra.mxu0 %v5808
    %6472 = vmatprep.subr.bf16.mxu0 0
    %6473 = vmatpush1.bf16.msra.mxu0 %v5817
    %6474 = vmatprep.subr.bf16.mxu0 0
    %6475 = vmatpush1.bf16.msra.mxu0 %v5826
    %6476 = vmatprep.subr.bf16.mxu0 0
    %6477 = vmatpush1.bf16.msra.mxu0 %v5835
    %6478 = vmatprep.subr.bf16.mxu0 0
    %6479 = vmatpush1.bf16.msra.mxu0 %v5844
    %6480 = vmatprep.subr.bf16.mxu0 0
    %6481 = vmatpush1.bf16.msra.mxu0 %v5853
    %6482 = vmatprep.mubr.bf16.mxu0 %v5087
    %6483 = vmatmul.mubr.bf16.gmra.mrb[0].mxu0 %v5086
    %v6484 = vpop.f32.mrb[0].mxu0
    %v6485 = vadd.f32 0.0, %v6484
    %v6486 = vpop.f32.mrb[0].mxu0
    %v6487 = vpop.f32.mrb[0].mxu0
    %v6488 = vadd.f32 0.0, %v6487
    %v6489 = vpop.f32.mrb[0].mxu0
    %6490 = vmatprep.mubr.bf16.mxu0 %v5089
    %6491 = vmatmul.mubr.bf16.gmra.mrb[0].mxu0 %v5088
    %v6492 = vpop.f32.mrb[0].mxu0
    %v6493 = vadd.f32 0.0, %v6492
    %v6494 = vpop.f32.mrb[0].mxu0
    %v6495 = vpop.f32.mrb[0].mxu0
    %v6496 = vadd.f32 0.0, %v6495
    %v6497 = vpop.f32.mrb[0].mxu0
    %6498 = vmatprep.mubr.bf16.mxu0 %v5091
    %6499 = vmatmul.mubr.bf16.gmra.mrb[0].mxu0 %v5090
    %v6500 = vpop.f32.mrb[0].mxu0
    %v6501 = vadd.f32 0.0, %v6500
    %v6502 = vpop.f32.mrb[0].mxu0
    %v6503 = vpop.f32.mrb[0].mxu0
    %v6504 = vadd.f32 0.0, %v6503
    %v6505 = vpop.f32.mrb[0].mxu0
    %6506 = vmatprep.mubr.bf16.mxu0 %v5093
    %6507 = vmatmul.mubr.bf16.gmra.mrb[0].mxu0 %v5092
    %v6508 = vpop.f32.mrb[0].mxu0
    %v6509 = vadd.f32 0.0, %v6508
    %v6510 = vpop.f32.mrb[0].mxu0
    %v6511 = vpop.f32.mrb[0].mxu0
    %v6512 = vadd.f32 0.0, %v6511
    %v6513 = vpop.f32.mrb[0].mxu0
    %6514 = vmatprep.mubr.bf16.mxu0 %v5095
    %6515 = vmatmul.mubr.bf16.gmra.mrb[0].mxu0 %v5094
    %v6516 = vpop.f32.mrb[0].mxu0
    %v6517 = vadd.f32 0.0, %v6516
    %v6518 = vpop.f32.mrb[0].mxu0
    %v6519 = vpop.f32.mrb[0].mxu0
    %v6520 = vadd.f32 0.0, %v6519
    %v6521 = vpop.f32.mrb[0].mxu0
    %6522 = vmatprep.mubr.bf16.mxu0 %v5097
    %6523 = vmatmul.mubr.bf16.gmra.mrb[0].mxu0 %v5096
    %v6524 = vpop.f32.mrb[0].mxu0
    %v6525 = vadd.f32 0.0, %v6524
    %v6526 = vpop.f32.mrb[0].mxu0
    %v6527 = vpop.f32.mrb[0].mxu0
    %v6528 = vadd.f32 0.0, %v6527
    %v6529 = vpop.f32.mrb[0].mxu0
    %6530 = vmatprep.mubr.bf16.mxu0 %v5099
    %6531 = vmatmul.mubr.bf16.gmra.mrb[0].mxu0 %v5098
    %v6532 = vpop.f32.mrb[0].mxu0
    %v6533 = vadd.f32 0.0, %v6532
    %v6534 = vpop.f32.mrb[0].mxu0
    %v6535 = vpop.f32.mrb[0].mxu0
    %v6536 = vadd.f32 0.0, %v6535
    %v6537 = vpop.f32.mrb[0].mxu0
    %6538 = vmatprep.mubr.bf16.mxu0 %v5101
    %6539 = vmatmul.mubr.bf16.gmra.mrb[0].mxu0 %v5100
    %v6540 = vpop.f32.mrb[0].mxu0
    %v6541 = vadd.f32 0.0, %v6540
    %v6542 = vpop.f32.mrb[0].mxu0
    %v6543 = vpop.f32.mrb[0].mxu0
    %v6544 = vadd.f32 0.0, %v6543
    %v6545 = vpop.f32.mrb[0].mxu0
    %6546 = vdwg.mxu0
    %v6667 = vunpack.c.l.b16 %v4966
    %v6668 = vunpack.c.h.b16 %v4966
    %v6669 = vunpack.c.l.b16 %v4967
    %v6670 = vunpack.c.h.b16 %v4967
    %v6671 = vunpack.c.l.b16 %v4968
    %v6672 = vunpack.c.h.b16 %v4968
    %v6673 = vunpack.c.l.b16 %v4969
    %v6674 = vunpack.c.h.b16 %v4969
    %v6675 = vunpack.c.l.b16 %v4970
    %v6676 = vunpack.c.l.b16 %v4971
    %v6677 = vunpack.c.h.b16 %v4971
    %v6678 = vunpack.c.l.b16 %v4972
    %v6679 = vunpack.c.h.b16 %v4972
    %v6680 = vunpack.c.l.b16 %v4973
    %v6681 = vunpack.c.h.b16 %v4973
    %v6682 = vunpack.c.l.b16 %v4974
    %v6683 = vunpack.c.h.b16 %v4974
    %v6684 = vunpack.c.l.b16 %v4975
    %v6685 = vunpack.c.l.b16 %v4976
    %v6686 = vunpack.c.h.b16 %v4976
    %v6687 = vunpack.c.l.b16 %v4977
    %v6688 = vunpack.c.h.b16 %v4977
    %v6689 = vunpack.c.l.b16 %v4978
    %v6690 = vunpack.c.h.b16 %v4978
    %v6691 = vunpack.c.l.b16 %v4979
    %v6692 = vunpack.c.h.b16 %v4979
    %v6693 = vunpack.c.l.b16 %v4980
    %v6694 = vunpack.c.l.b16 %v4981
    %v6695 = vunpack.c.h.b16 %v4981
    %v6696 = vunpack.c.l.b16 %v4982
    %v6697 = vunpack.c.h.b16 %v4982
    %v6698 = vunpack.c.l.b16 %v4983
    %v6699 = vunpack.c.h.b16 %v4983
    %v6700 = vunpack.c.l.b16 %v4984
    %v6701 = vunpack.c.h.b16 %v4984
    %v6702 = vunpack.c.l.b16 %v4985
    %v6703 = vunpack.c.l.b16 %v4986
    %v6704 = vunpack.c.h.b16 %v4986
    %v6705 = vunpack.c.l.b16 %v4987
    %v6706 = vunpack.c.h.b16 %v4987
    %v6707 = vunpack.c.l.b16 %v4988
    %v6708 = vunpack.c.h.b16 %v4988
    %v6709 = vunpack.c.l.b16 %v4989
    %v6710 = vunpack.c.h.b16 %v4989
    %v6711 = vunpack.c.l.b16 %v4990
    %v6712 = vunpack.c.l.b16 %v4991
    %v6713 = vunpack.c.h.b16 %v4991
    %v6714 = vunpack.c.l.b16 %v4992
    %v6715 = vunpack.c.h.b16 %v4992
    %v6716 = vunpack.c.l.b16 %v4993
    %v6717 = vunpack.c.h.b16 %v4993
    %v6718 = vunpack.c.l.b16 %v4994
    %v6719 = vunpack.c.h.b16 %v4994
    %v6720 = vunpack.c.l.b16 %v4995
    %v6721 = vunpack.c.l.b16 %v4996
    %v6722 = vunpack.c.h.b16 %v4996
    %v6723 = vunpack.c.l.b16 %v4997
    %v6724 = vunpack.c.h.b16 %v4997
    %v6725 = vunpack.c.l.b16 %v4998
    %v6726 = vunpack.c.h.b16 %v4998
    %v6727 = vunpack.c.l.b16 %v4999
    %v6728 = vunpack.c.h.b16 %v4999
    %v6729 = vunpack.c.l.b16 %v5000
    %v6730 = vunpack.c.l.b16 %v5001
    %v6731 = vunpack.c.h.b16 %v5001
    %v6732 = vunpack.c.l.b16 %v5002
    %v6733 = vunpack.c.h.b16 %v5002
    %v6734 = vunpack.c.l.b16 %v5003
    %v6735 = vunpack.c.h.b16 %v5003
    %v6736 = vunpack.c.l.b16 %v5004
    %v6737 = vunpack.c.h.b16 %v5004
    %v6738 = vunpack.c.l.b16 %v5005
    %v6739 = vunpack.c.l.b16 %v5006
    %v6740 = vunpack.c.h.b16 %v5006
    %v6741 = vunpack.c.l.b16 %v5007
    %v6742 = vunpack.c.h.b16 %v5007
    %v6743 = vunpack.c.l.b16 %v5008
    %v6744 = vunpack.c.h.b16 %v5008
    %v6745 = vunpack.c.l.b16 %v5009
    %v6746 = vunpack.c.h.b16 %v5009
    %v6747 = vunpack.c.l.b16 %v5010
    %v6748 = vunpack.c.l.b16 %v5011
    %v6749 = vunpack.c.h.b16 %v5011
    %v6750 = vunpack.c.l.b16 %v5012
    %v6751 = vunpack.c.h.b16 %v5012
    %v6752 = vunpack.c.l.b16 %v5013
    %v6753 = vunpack.c.h.b16 %v5013
    %v6754 = vunpack.c.l.b16 %v5014
    %v6755 = vunpack.c.h.b16 %v5014
    %v6756 = vunpack.c.l.b16 %v5015
    %v6757 = vunpack.c.l.b16 %v5016
    %v6758 = vunpack.c.h.b16 %v5016
    %v6759 = vunpack.c.l.b16 %v5017
    %v6760 = vunpack.c.h.b16 %v5017
    %v6761 = vunpack.c.l.b16 %v5018
    %v6762 = vunpack.c.h.b16 %v5018
    %v6763 = vunpack.c.l.b16 %v5019
    %v6764 = vunpack.c.h.b16 %v5019
    %v6765 = vunpack.c.l.b16 %v5020
    %v6766 = vunpack.c.l.b16 %v5021
    %v6767 = vunpack.c.h.b16 %v5021
    %v6768 = vunpack.c.l.b16 %v5022
    %v6769 = vunpack.c.h.b16 %v5022
    %v6770 = vunpack.c.l.b16 %v5023
    %v6771 = vunpack.c.h.b16 %v5023
    %v6772 = vunpack.c.l.b16 %v5024
    %v6773 = vunpack.c.h.b16 %v5024
    %v6774 = vunpack.c.l.b16 %v5025
    %v6775 = vunpack.c.l.b16 %v5026
    %v6776 = vunpack.c.h.b16 %v5026
    %v6777 = vunpack.c.l.b16 %v5027
    %v6778 = vunpack.c.h.b16 %v5027
    %v6779 = vunpack.c.l.b16 %v5028
    %v6780 = vunpack.c.h.b16 %v5028
    %v6781 = vunpack.c.l.b16 %v5029
    %v6782 = vunpack.c.h.b16 %v5029
    %v6783 = vunpack.c.l.b16 %v5030
    %v6784 = vunpack.c.l.b16 %v5031
    %v6785 = vunpack.c.h.b16 %v5031
    %v6786 = vunpack.c.l.b16 %v5032
    %v6787 = vunpack.c.h.b16 %v5032
    %v6788 = vunpack.c.l.b16 %v5033
    %v6789 = vunpack.c.h.b16 %v5033
    %v6790 = vunpack.c.l.b16 %v5034
    %v6791 = vunpack.c.h.b16 %v5034
    %v6792 = vunpack.c.l.b16 %v5035
    %v6793 = vunpack.c.l.b16 %v5036
    %v6794 = vunpack.c.h.b16 %v5036
    %v6795 = vunpack.c.l.b16 %v5037
    %v6796 = vunpack.c.h.b16 %v5037
    %v6797 = vunpack.c.l.b16 %v5038
    %v6798 = vunpack.c.h.b16 %v5038
    %v6799 = vunpack.c.l.b16 %v5039
    %v6800 = vunpack.c.h.b16 %v5039
    %v6801 = vunpack.c.l.b16 %v5040
    %v6802 = vunpack.c.l.b16 %v5041
    %v6803 = vunpack.c.h.b16 %v5041
    %v6804 = vunpack.c.l.b16 %v5042
    %v6805 = vunpack.c.h.b16 %v5042
    %v6806 = vunpack.c.l.b16 %v5043
    %v6807 = vunpack.c.h.b16 %v5043
    %v6808 = vunpack.c.l.b16 %v5044
    %v6809 = vunpack.c.h.b16 %v5044
    %v6810 = vunpack.c.l.b16 %v5045
    %v6811 = vunpack.c.l.b16 %v5046
    %v6812 = vunpack.c.h.b16 %v5046
    %v6813 = vunpack.c.l.b16 %v5047
    %v6814 = vunpack.c.h.b16 %v5047
    %v6815 = vunpack.c.l.b16 %v5048
    %v6816 = vunpack.c.h.b16 %v5048
    %v6817 = vunpack.c.l.b16 %v5049
    %v6818 = vunpack.c.h.b16 %v5049
    %v6819 = vunpack.c.l.b16 %v5050
    %v6820 = vunpack.c.l.b16 %v5051
    %v6821 = vunpack.c.h.b16 %v5051
    %v6822 = vunpack.c.l.b16 %v5052
    %v6823 = vunpack.c.h.b16 %v5052
    %v6824 = vunpack.c.l.b16 %v5053
    %v6825 = vunpack.c.h.b16 %v5053
    %v6826 = vunpack.c.l.b16 %v5054
    %v6827 = vunpack.c.h.b16 %v5054
    %v6828 = vunpack.c.l.b16 %v5055
    %v6829 = vunpack.c.l.b16 %v5056
    %v6830 = vunpack.c.h.b16 %v5056
    %v6831 = vunpack.c.l.b16 %v5057
    %v6832 = vunpack.c.h.b16 %v5057
    %v6833 = vunpack.c.l.b16 %v5058
    %v6834 = vunpack.c.h.b16 %v5058
    %v6835 = vunpack.c.l.b16 %v5059
    %v6836 = vunpack.c.h.b16 %v5059
    %v6837 = vunpack.c.l.b16 %v5060
    %v6838 = vunpack.c.l.b16 %v5061
    %v6839 = vunpack.c.h.b16 %v5061
    %v6840 = vunpack.c.l.b16 %v5062
    %v6841 = vunpack.c.h.b16 %v5062
    %v6842 = vunpack.c.l.b16 %v5063
    %v6843 = vunpack.c.h.b16 %v5063
    %v6844 = vunpack.c.l.b16 %v5064
    %v6845 = vunpack.c.h.b16 %v5064
    %v6846 = vunpack.c.l.b16 %v5065
    %v6847 = vunpack.c.l.b16 %v5066
    %v6848 = vunpack.c.h.b16 %v5066
    %v6849 = vunpack.c.l.b16 %v5067
    %v6850 = vunpack.c.h.b16 %v5067
    %v6851 = vunpack.c.l.b16 %v5068
    %v6852 = vunpack.c.h.b16 %v5068
    %v6853 = vunpack.c.l.b16 %v5069
    %v6854 = vunpack.c.h.b16 %v5069
    %v6855 = vunpack.c.l.b16 %v5070
    %v6856 = vunpack.c.l.b16 %v5071
    %v6857 = vunpack.c.h.b16 %v5071
    %v6858 = vunpack.c.l.b16 %v5072
    %v6859 = vunpack.c.h.b16 %v5072
    %v6860 = vunpack.c.l.b16 %v5073
    %v6861 = vunpack.c.h.b16 %v5073
    %v6862 = vunpack.c.l.b16 %v5074
    %v6863 = vunpack.c.h.b16 %v5074
    %v6864 = vunpack.c.l.b16 %v5075
    %v6865 = vunpack.c.l.b16 %v5076
    %v6866 = vunpack.c.h.b16 %v5076
    %v6867 = vunpack.c.l.b16 %v5077
    %v6868 = vunpack.c.h.b16 %v5077
    %v6869 = vunpack.c.l.b16 %v5078
    %v6870 = vunpack.c.h.b16 %v5078
    %v6871 = vunpack.c.l.b16 %v5079
    %v6872 = vunpack.c.h.b16 %v5079
    %v6873 = vunpack.c.l.b16 %v5080
    %v6874 = vunpack.c.l.b16 %v5081
    %v6875 = vunpack.c.h.b16 %v5081
    %v6876 = vunpack.c.l.b16 %v5082
    %v6877 = vunpack.c.h.b16 %v5082
    %v6878 = vunpack.c.l.b16 %v5083
    %v6879 = vunpack.c.h.b16 %v5083
    %v6880 = vunpack.c.l.b16 %v5084
    %v6881 = vunpack.c.h.b16 %v5084
    %v6882 = vunpack.c.l.b16 %v5085
    %v6883 = vpack.c.b16 %v6676, %v6667
    %v6884 = vpack.c.b16 %v6677, %v6668
    %v6885 = vpack.c.b16 %v6678, %v6669
    %v6886 = vpack.c.b16 %v6679, %v6670
    %v6887 = vpack.c.b16 %v6680, %v6671
    %v6888 = vpack.c.b16 %v6681, %v6672
    %v6889 = vpack.c.b16 %v6682, %v6673
    %v6890 = vpack.c.b16 %v6683, %v6674
    %v6891 = vpack.c.b16 %v6684, %v6675
    %v6892 = vpack.c.b16 %v6694, %v6685
    %v6893 = vpack.c.b16 %v6695, %v6686
    %v6894 = vpack.c.b16 %v6696, %v6687
    %v6895 = vpack.c.b16 %v6697, %v6688
    %v6896 = vpack.c.b16 %v6698, %v6689
    %v6897 = vpack.c.b16 %v6699, %v6690
    %v6898 = vpack.c.b16 %v6700, %v6691
    %v6899 = vpack.c.b16 %v6701, %v6692
    %v6900 = vpack.c.b16 %v6702, %v6693
    %v6901 = vpack.c.b16 %v6712, %v6703
    %v6902 = vpack.c.b16 %v6713, %v6704
    %v6903 = vpack.c.b16 %v6714, %v6705
    %v6904 = vpack.c.b16 %v6715, %v6706
    %v6905 = vpack.c.b16 %v6716, %v6707
    %v6906 = vpack.c.b16 %v6717, %v6708
    %v6907 = vpack.c.b16 %v6718, %v6709
    %v6908 = vpack.c.b16 %v6719, %v6710
    %v6909 = vpack.c.b16 %v6720, %v6711
    %v6910 = vpack.c.b16 %v6730, %v6721
    %v6911 = vpack.c.b16 %v6731, %v6722
    %v6912 = vpack.c.b16 %v6732, %v6723
    %v6913 = vpack.c.b16 %v6733, %v6724
    %v6914 = vpack.c.b16 %v6734, %v6725
    %v6915 = vpack.c.b16 %v6735, %v6726
    %v6916 = vpack.c.b16 %v6736, %v6727
    %v6917 = vpack.c.b16 %v6737, %v6728
    %v6918 = vpack.c.b16 %v6738, %v6729
    %v6919 = vpack.c.b16 %v6748, %v6739
    %v6920 = vpack.c.b16 %v6749, %v6740
    %v6921 = vpack.c.b16 %v6750, %v6741
    %v6922 = vpack.c.b16 %v6751, %v6742
    %v6923 = vpack.c.b16 %v6752, %v6743
    %v6924 = vpack.c.b16 %v6753, %v6744
    %v6925 = vpack.c.b16 %v6754, %v6745
    %v6926 = vpack.c.b16 %v6755, %v6746
    %v6927 = vpack.c.b16 %v6756, %v6747
    %v6928 = vpack.c.b16 %v6766, %v6757
    %v6929 = vpack.c.b16 %v6767, %v6758
    %v6930 = vpack.c.b16 %v6768, %v6759
    %v6931 = vpack.c.b16 %v6769, %v6760
    %v6932 = vpack.c.b16 %v6770, %v6761
    %v6933 = vpack.c.b16 %v6771, %v6762
    %v6934 = vpack.c.b16 %v6772, %v6763
    %v6935 = vpack.c.b16 %v6773, %v6764
    %v6936 = vpack.c.b16 %v6774, %v6765
    %v6937 = vpack.c.b16 %v6784, %v6775
    %v6938 = vpack.c.b16 %v6785, %v6776
    %v6939 = vpack.c.b16 %v6786, %v6777
    %v6940 = vpack.c.b16 %v6787, %v6778
    %v6941 = vpack.c.b16 %v6788, %v6779
    %v6942 = vpack.c.b16 %v6789, %v6780
    %v6943 = vpack.c.b16 %v6790, %v6781
    %v6944 = vpack.c.b16 %v6791, %v6782
    %v6945 = vpack.c.b16 %v6792, %v6783
    %v6946 = vpack.c.b16 %v6802, %v6793
    %v6947 = vpack.c.b16 %v6803, %v6794
    %v6948 = vpack.c.b16 %v6804, %v6795
    %v6949 = vpack.c.b16 %v6805, %v6796
    %v6950 = vpack.c.b16 %v6806, %v6797
    %v6951 = vpack.c.b16 %v6807, %v6798
    %v6952 = vpack.c.b16 %v6808, %v6799
    %v6953 = vpack.c.b16 %v6809, %v6800
    %v6954 = vpack.c.b16 %v6810, %v6801
    %v6955 = vpack.c.b16 %v6820, %v6811
    %v6956 = vpack.c.b16 %v6821, %v6812
    %v6957 = vpack.c.b16 %v6822, %v6813
    %v6958 = vpack.c.b16 %v6823, %v6814
    %v6959 = vpack.c.b16 %v6824, %v6815
    %v6960 = vpack.c.b16 %v6825, %v6816
    %v6961 = vpack.c.b16 %v6826, %v6817
    %v6962 = vpack.c.b16 %v6827, %v6818
    %v6963 = vpack.c.b16 %v6828, %v6819
    %v6964 = vpack.c.b16 %v6838, %v6829
    %v6965 = vpack.c.b16 %v6839, %v6830
    %v6966 = vpack.c.b16 %v6840, %v6831
    %v6967 = vpack.c.b16 %v6841, %v6832
    %v6968 = vpack.c.b16 %v6842, %v6833
    %v6969 = vpack.c.b16 %v6843, %v6834
    %v6970 = vpack.c.b16 %v6844, %v6835
    %v6971 = vpack.c.b16 %v6845, %v6836
    %v6972 = vpack.c.b16 %v6846, %v6837
    %v6973 = vpack.c.b16 %v6856, %v6847
    %v6974 = vpack.c.b16 %v6857, %v6848
    %v6975 = vpack.c.b16 %v6858, %v6849
    %v6976 = vpack.c.b16 %v6859, %v6850
    %v6977 = vpack.c.b16 %v6860, %v6851
    %v6978 = vpack.c.b16 %v6861, %v6852
    %v6979 = vpack.c.b16 %v6862, %v6853
    %v6980 = vpack.c.b16 %v6863, %v6854
    %v6981 = vpack.c.b16 %v6864, %v6855
    %v6982 = vpack.c.b16 %v6874, %v6865
    %v6983 = vpack.c.b16 %v6875, %v6866
    %v6984 = vpack.c.b16 %v6876, %v6867
    %v6985 = vpack.c.b16 %v6877, %v6868
    %v6986 = vpack.c.b16 %v6878, %v6869
    %v6987 = vpack.c.b16 %v6879, %v6870
    %v6988 = vpack.c.b16 %v6880, %v6871
    %v6989 = vpack.c.b16 %v6881, %v6872
    %v6990 = vpack.c.b16 %v6882, %v6873
    %v7100 = vsel %vm2757, %v2879, 0
    %v7103 = vsel %vm2757, %v2881, 0
    %v7106 = vsel %vm2757, %v2883, 0
    %v7109 = vsel %vm2757, %v2885, 0
    %v7112 = vsel %vm2757, %v2887, 0
    %v7115 = vsel %vm2757, %v2889, 0
    %v7118 = vsel %vm2757, %v2891, 0
    %v7121 = vsel %vm2757, %v2893, 0
    %7123 = vmatprep.subr.bf16.mxu0 %v6884
    %7124 = vmatpush1.bf16.msra.mxu0 %v6883
    %7125 = vmatprep.subr.bf16.mxu0 %v6893
    %7126 = vmatpush1.bf16.msra.mxu0 %v6892
    %7127 = vmatprep.subr.bf16.mxu0 %v6902
    %7128 = vmatpush1.bf16.msra.mxu0 %v6901
    %7129 = vmatprep.subr.bf16.mxu0 %v6911
    %7130 = vmatpush1.bf16.msra.mxu0 %v6910
    %7131 = vmatprep.subr.bf16.mxu0 %v6920
    %7132 = vmatpush1.bf16.msra.mxu0 %v6919
    %7133 = vmatprep.subr.bf16.mxu0 %v6929
    %7134 = vmatpush1.bf16.msra.mxu0 %v6928
    %7135 = vmatprep.subr.bf16.mxu0 %v6938
    %7136 = vmatpush1.bf16.msra.mxu0 %v6937
    %7137 = vmatprep.subr.bf16.mxu0 %v6947
    %7138 = vmatpush1.bf16.msra.mxu0 %v6946
    %7139 = vmatprep.subr.bf16.mxu0 %v6956
    %7140 = vmatpush1.bf16.msra.mxu0 %v6955
    %7141 = vmatprep.subr.bf16.mxu0 %v6965
    %7142 = vmatpush1.bf16.msra.mxu0 %v6964
    %7143 = vmatprep.subr.bf16.mxu0 %v6974
    %7144 = vmatpush1.bf16.msra.mxu0 %v6973
    %7145 = vmatprep.subr.bf16.mxu0 %v6983
    %7146 = vmatpush1.bf16.msra.mxu0 %v6982
    %7147 = vmatprep.subr.bf16.mxu0 0
    %7148 = vmatpush1.bf16.msra.mxu0 0
    %7149 = vmatprep.subr.bf16.mxu0 0
    %7150 = vmatpush1.bf16.msra.mxu0 0
    %7151 = vmatprep.subr.bf16.mxu0 0
    %7152 = vmatpush1.bf16.msra.mxu0 0
    %7153 = vmatprep.subr.bf16.mxu0 0
    %7154 = vmatpush1.bf16.msra.mxu0 0
    %7155 = vmatprep.mubr.bf16.mxu0 %v7100
    %7156 = vmatmul.mubr.bf16.gmra.mrb[0].mxu0 %v4958
    %v7157 = vpop.f32.mrb[0].mxu0
    %v7158 = vadd.f32 %v6033, %v7157
    %v7159 = vpop.f32.mrb[0].mxu0
    %v7160 = vadd.f32 %v6035, %v7159
    %v7161 = vpop.f32.mrb[0].mxu0
    %v7162 = vadd.f32 %v6037, %v7161
    %v7163 = vpop.f32.mrb[0].mxu0
    %v7164 = vadd.f32 %v6039, %v7163
    %7165 = vmatprep.mubr.bf16.mxu0 %v7103
    %7166 = vmatmul.mubr.bf16.gmra.mrb[0].mxu0 %v4959
    %v7167 = vpop.f32.mrb[0].mxu0
    %v7168 = vadd.f32 %v6043, %v7167
    %v7169 = vpop.f32.mrb[0].mxu0
    %v7170 = vadd.f32 %v6045, %v7169
    %v7171 = vpop.f32.mrb[0].mxu0
    %v7172 = vadd.f32 %v6047, %v7171
    %v7173 = vpop.f32.mrb[0].mxu0
    %v7174 = vadd.f32 %v6049, %v7173
    %7175 = vmatprep.mubr.bf16.mxu0 %v7106
    %7176 = vmatmul.mubr.bf16.gmra.mrb[0].mxu0 %v4960
    %v7177 = vpop.f32.mrb[0].mxu0
    %v7178 = vadd.f32 %v6053, %v7177
    %v7179 = vpop.f32.mrb[0].mxu0
    %v7180 = vadd.f32 %v6055, %v7179
    %v7181 = vpop.f32.mrb[0].mxu0
    %v7182 = vadd.f32 %v6057, %v7181
    %v7183 = vpop.f32.mrb[0].mxu0
    %v7184 = vadd.f32 %v6059, %v7183
    %7185 = vmatprep.mubr.bf16.mxu0 %v7109
    %7186 = vmatmul.mubr.bf16.gmra.mrb[0].mxu0 %v4961
    %v7187 = vpop.f32.mrb[0].mxu0
    %v7188 = vadd.f32 %v6063, %v7187
    %v7189 = vpop.f32.mrb[0].mxu0
    %v7190 = vadd.f32 %v6065, %v7189
    %v7191 = vpop.f32.mrb[0].mxu0
    %v7192 = vadd.f32 %v6067, %v7191
    %v7193 = vpop.f32.mrb[0].mxu0
    %v7194 = vadd.f32 %v6069, %v7193
    %7195 = vmatprep.mubr.bf16.mxu0 %v7112
    %7196 = vmatmul.mubr.bf16.gmra.mrb[0].mxu0 %v4962
    %v7197 = vpop.f32.mrb[0].mxu0
    %v7198 = vadd.f32 %v6073, %v7197
    %v7199 = vpop.f32.mrb[0].mxu0
    %v7200 = vadd.f32 %v6075, %v7199
    %v7201 = vpop.f32.mrb[0].mxu0
    %v7202 = vadd.f32 %v6077, %v7201
    %v7203 = vpop.f32.mrb[0].mxu0
    %v7204 = vadd.f32 %v6079, %v7203
    %7205 = vmatprep.mubr.bf16.mxu0 %v7115
    %7206 = vmatmul.mubr.bf16.gmra.mrb[0].mxu0 %v4963
    %v7207 = vpop.f32.mrb[0].mxu0
    %v7208 = vadd.f32 %v6083, %v7207
    %v7209 = vpop.f32.mrb[0].mxu0
    %v7210 = vadd.f32 %v6085, %v7209
    %v7211 = vpop.f32.mrb[0].mxu0
    %v7212 = vadd.f32 %v6087, %v7211
    %v7213 = vpop.f32.mrb[0].mxu0
    %v7214 = vadd.f32 %v6089, %v7213
    %7215 = vmatprep.mubr.bf16.mxu0 %v7118
    %7216 = vmatmul.mubr.bf16.gmra.mrb[0].mxu0 %v4964
    %v7217 = vpop.f32.mrb[0].mxu0
    %v7218 = vadd.f32 %v6093, %v7217
    %v7219 = vpop.f32.mrb[0].mxu0
    %v7220 = vadd.f32 %v6095, %v7219
    %v7221 = vpop.f32.mrb[0].mxu0
    %v7222 = vadd.f32 %v6097, %v7221
    %v7223 = vpop.f32.mrb[0].mxu0
    %v7224 = vadd.f32 %v6099, %v7223
    %7225 = vmatprep.mubr.bf16.mxu0 %v7121
    %7226 = vmatmul.mubr.bf16.gmra.mrb[0].mxu0 %v4965
    %v7227 = vpop.f32.mrb[0].mxu0
    %v7228 = vadd.f32 %v6103, %v7227
    %v7229 = vpop.f32.mrb[0].mxu0
    %v7230 = vadd.f32 %v6105, %v7229
    %v7231 = vpop.f32.mrb[0].mxu0
    %v7232 = vadd.f32 %v6107, %v7231
    %v7233 = vpop.f32.mrb[0].mxu0
    %v7234 = vadd.f32 %v6109, %v7233
    %7235 = vdwg.mxu0
    %7236 = vmatprep.subr.bf16.mxu0 %v6886
    %7237 = vmatpush1.bf16.msra.mxu0 %v6885
    %7238 = vmatprep.subr.bf16.mxu0 %v6895
    %7239 = vmatpush1.bf16.msra.mxu0 %v6894
    %7240 = vmatprep.subr.bf16.mxu0 %v6904
    %7241 = vmatpush1.bf16.msra.mxu0 %v6903
    %7242 = vmatprep.subr.bf16.mxu0 %v6913
    %7243 = vmatpush1.bf16.msra.mxu0 %v6912
    %7244 = vmatprep.subr.bf16.mxu0 %v6922
    %7245 = vmatpush1.bf16.msra.mxu0 %v6921
    %7246 = vmatprep.subr.bf16.mxu0 %v6931
    %7247 = vmatpush1.bf16.msra.mxu0 %v6930
    %7248 = vmatprep.subr.bf16.mxu0 %v6940
    %7249 = vmatpush1.bf16.msra.mxu0 %v6939
    %7250 = vmatprep.subr.bf16.mxu0 %v6949
    %7251 = vmatpush1.bf16.msra.mxu0 %v6948
    %7252 = vmatprep.subr.bf16.mxu0 %v6958
    %7253 = vmatpush1.bf16.msra.mxu0 %v6957
    %7254 = vmatprep.subr.bf16.mxu0 %v6967
    %7255 = vmatpush1.bf16.msra.mxu0 %v6966
    %7256 = vmatprep.subr.bf16.mxu0 %v6976
    %7257 = vmatpush1.bf16.msra.mxu0 %v6975
    %7258 = vmatprep.subr.bf16.mxu0 %v6985
    %7259 = vmatpush1.bf16.msra.mxu0 %v6984
    %7260 = vmatprep.subr.bf16.mxu0 0
    %7261 = vmatpush1.bf16.msra.mxu0 0
    %7262 = vmatprep.subr.bf16.mxu0 0
    %7263 = vmatpush1.bf16.msra.mxu0 0
    %7264 = vmatprep.subr.bf16.mxu0 0
    %7265 = vmatpush1.bf16.msra.mxu0 0
    %7266 = vmatprep.subr.bf16.mxu0 0
    %7267 = vmatpush1.bf16.msra.mxu0 0
    %7268 = vmatprep.mubr.bf16.mxu0 %v7100
    %7269 = vmatmul.mubr.bf16.gmra.mrb[0].mxu0 %v4958
    %v7270 = vpop.f32.mrb[0].mxu0
    %v7271 = vadd.f32 %v6146, %v7270
    %v7272 = vpop.f32.mrb[0].mxu0
    %v7273 = vadd.f32 %v6148, %v7272
    %v7274 = vpop.f32.mrb[0].mxu0
    %v7275 = vadd.f32 %v6150, %v7274
    %v7276 = vpop.f32.mrb[0].mxu0
    %v7277 = vadd.f32 %v6152, %v7276
    %7278 = vmatprep.mubr.bf16.mxu0 %v7103
    %7279 = vmatmul.mubr.bf16.gmra.mrb[0].mxu0 %v4959
    %v7280 = vpop.f32.mrb[0].mxu0
    %v7281 = vadd.f32 %v6156, %v7280
    %v7282 = vpop.f32.mrb[0].mxu0
    %v7283 = vadd.f32 %v6158, %v7282
    %v7284 = vpop.f32.mrb[0].mxu0
    %v7285 = vadd.f32 %v6160, %v7284
    %v7286 = vpop.f32.mrb[0].mxu0
    %v7287 = vadd.f32 %v6162, %v7286
    %7288 = vmatprep.mubr.bf16.mxu0 %v7106
    %7289 = vmatmul.mubr.bf16.gmra.mrb[0].mxu0 %v4960
    %v7290 = vpop.f32.mrb[0].mxu0
    %v7291 = vadd.f32 %v6166, %v7290
    %v7292 = vpop.f32.mrb[0].mxu0
    %v7293 = vadd.f32 %v6168, %v7292
    %v7294 = vpop.f32.mrb[0].mxu0
    %v7295 = vadd.f32 %v6170, %v7294
    %v7296 = vpop.f32.mrb[0].mxu0
    %v7297 = vadd.f32 %v6172, %v7296
    %7298 = vmatprep.mubr.bf16.mxu0 %v7109
    %7299 = vmatmul.mubr.bf16.gmra.mrb[0].mxu0 %v4961
    %v7300 = vpop.f32.mrb[0].mxu0
    %v7301 = vadd.f32 %v6176, %v7300
    %v7302 = vpop.f32.mrb[0].mxu0
    %v7303 = vadd.f32 %v6178, %v7302
    %v7304 = vpop.f32.mrb[0].mxu0
    %v7305 = vadd.f32 %v6180, %v7304
    %v7306 = vpop.f32.mrb[0].mxu0
    %v7307 = vadd.f32 %v6182, %v7306
    %7308 = vmatprep.mubr.bf16.mxu0 %v7112
    %7309 = vmatmul.mubr.bf16.gmra.mrb[0].mxu0 %v4962
    %v7310 = vpop.f32.mrb[0].mxu0
    %v7311 = vadd.f32 %v6186, %v7310
    %v7312 = vpop.f32.mrb[0].mxu0
    %v7313 = vadd.f32 %v6188, %v7312
    %v7314 = vpop.f32.mrb[0].mxu0
    %v7315 = vadd.f32 %v6190, %v7314
    %v7316 = vpop.f32.mrb[0].mxu0
    %v7317 = vadd.f32 %v6192, %v7316
    %7318 = vmatprep.mubr.bf16.mxu0 %v7115
    %7319 = vmatmul.mubr.bf16.gmra.mrb[0].mxu0 %v4963
    %v7320 = vpop.f32.mrb[0].mxu0
    %v7321 = vadd.f32 %v6196, %v7320
    %v7322 = vpop.f32.mrb[0].mxu0
    %v7323 = vadd.f32 %v6198, %v7322
    %v7324 = vpop.f32.mrb[0].mxu0
    %v7325 = vadd.f32 %v6200, %v7324
    %v7326 = vpop.f32.mrb[0].mxu0
    %v7327 = vadd.f32 %v6202, %v7326
    %7328 = vmatprep.mubr.bf16.mxu0 %v7118
    %7329 = vmatmul.mubr.bf16.gmra.mrb[0].mxu0 %v4964
    %v7330 = vpop.f32.mrb[0].mxu0
    %v7331 = vadd.f32 %v6206, %v7330
    %v7332 = vpop.f32.mrb[0].mxu0
    %v7333 = vadd.f32 %v6208, %v7332
    %v7334 = vpop.f32.mrb[0].mxu0
    %v7335 = vadd.f32 %v6210, %v7334
    %v7336 = vpop.f32.mrb[0].mxu0
    %v7337 = vadd.f32 %v6212, %v7336
    %7338 = vmatprep.mubr.bf16.mxu0 %v7121
    %7339 = vmatmul.mubr.bf16.gmra.mrb[0].mxu0 %v4965
    %v7340 = vpop.f32.mrb[0].mxu0
    %v7341 = vadd.f32 %v6216, %v7340
    %v7342 = vpop.f32.mrb[0].mxu0
    %v7343 = vadd.f32 %v6218, %v7342
    %v7344 = vpop.f32.mrb[0].mxu0
    %v7345 = vadd.f32 %v6220, %v7344
    %v7346 = vpop.f32.mrb[0].mxu0
    %v7347 = vadd.f32 %v6222, %v7346
    %7348 = vdwg.mxu0
    %7349 = vmatprep.subr.bf16.mxu0 %v6888
    %7350 = vmatpush1.bf16.msra.mxu0 %v6887
    %7351 = vmatprep.subr.bf16.mxu0 %v6897
    %7352 = vmatpush1.bf16.msra.mxu0 %v6896
    %7353 = vmatprep.subr.bf16.mxu0 %v6906
    %7354 = vmatpush1.bf16.msra.mxu0 %v6905
    %7355 = vmatprep.subr.bf16.mxu0 %v6915
    %7356 = vmatpush1.bf16.msra.mxu0 %v6914
    %7357 = vmatprep.subr.bf16.mxu0 %v6924
    %7358 = vmatpush1.bf16.msra.mxu0 %v6923
    %7359 = vmatprep.subr.bf16.mxu0 %v6933
    %7360 = vmatpush1.bf16.msra.mxu0 %v6932
    %7361 = vmatprep.subr.bf16.mxu0 %v6942
    %7362 = vmatpush1.bf16.msra.mxu0 %v6941
    %7363 = vmatprep.subr.bf16.mxu0 %v6951
    %7364 = vmatpush1.bf16.msra.mxu0 %v6950
    %7365 = vmatprep.subr.bf16.mxu0 %v6960
    %7366 = vmatpush1.bf16.msra.mxu0 %v6959
    %7367 = vmatprep.subr.bf16.mxu0 %v6969
    %7368 = vmatpush1.bf16.msra.mxu0 %v6968
    %7369 = vmatprep.subr.bf16.mxu0 %v6978
    %7370 = vmatpush1.bf16.msra.mxu0 %v6977
    %7371 = vmatprep.subr.bf16.mxu0 %v6987
    %7372 = vmatpush1.bf16.msra.mxu0 %v6986
    %7373 = vmatprep.subr.bf16.mxu0 0
    %7374 = vmatpush1.bf16.msra.mxu0 0
    %7375 = vmatprep.subr.bf16.mxu0 0
    %7376 = vmatpush1.bf16.msra.mxu0 0
    %7377 = vmatprep.subr.bf16.mxu0 0
    %7378 = vmatpush1.bf16.msra.mxu0 0
    %7379 = vmatprep.subr.bf16.mxu0 0
    %7380 = vmatpush1.bf16.msra.mxu0 0
    %7381 = vmatprep.mubr.bf16.mxu0 %v7100
    %7382 = vmatmul.mubr.bf16.gmra.mrb[0].mxu0 %v4958
    %v7383 = vpop.f32.mrb[0].mxu0
    %v7384 = vadd.f32 %v6259, %v7383
    %v7385 = vpop.f32.mrb[0].mxu0
    %v7386 = vadd.f32 %v6261, %v7385
    %v7387 = vpop.f32.mrb[0].mxu0
    %v7388 = vadd.f32 %v6263, %v7387
    %v7389 = vpop.f32.mrb[0].mxu0
    %v7390 = vadd.f32 %v6265, %v7389
    %7391 = vmatprep.mubr.bf16.mxu0 %v7103
    %7392 = vmatmul.mubr.bf16.gmra.mrb[0].mxu0 %v4959
    %v7393 = vpop.f32.mrb[0].mxu0
    %v7394 = vadd.f32 %v6269, %v7393
    %v7395 = vpop.f32.mrb[0].mxu0
    %v7396 = vadd.f32 %v6271, %v7395
    %v7397 = vpop.f32.mrb[0].mxu0
    %v7398 = vadd.f32 %v6273, %v7397
    %v7399 = vpop.f32.mrb[0].mxu0
    %v7400 = vadd.f32 %v6275, %v7399
    %7401 = vmatprep.mubr.bf16.mxu0 %v7106
    %7402 = vmatmul.mubr.bf16.gmra.mrb[0].mxu0 %v4960
    %v7403 = vpop.f32.mrb[0].mxu0
    %v7404 = vadd.f32 %v6279, %v7403
    %v7405 = vpop.f32.mrb[0].mxu0
    %v7406 = vadd.f32 %v6281, %v7405
    %v7407 = vpop.f32.mrb[0].mxu0
    %v7408 = vadd.f32 %v6283, %v7407
    %v7409 = vpop.f32.mrb[0].mxu0
    %v7410 = vadd.f32 %v6285, %v7409
    %7411 = vmatprep.mubr.bf16.mxu0 %v7109
    %7412 = vmatmul.mubr.bf16.gmra.mrb[0].mxu0 %v4961
    %v7413 = vpop.f32.mrb[0].mxu0
    %v7414 = vadd.f32 %v6289, %v7413
    %v7415 = vpop.f32.mrb[0].mxu0
    %v7416 = vadd.f32 %v6291, %v7415
    %v7417 = vpop.f32.mrb[0].mxu0
    %v7418 = vadd.f32 %v6293, %v7417
    %v7419 = vpop.f32.mrb[0].mxu0
    %v7420 = vadd.f32 %v6295, %v7419
    %7421 = vmatprep.mubr.bf16.mxu0 %v7112
    %7422 = vmatmul.mubr.bf16.gmra.mrb[0].mxu0 %v4962
    %v7423 = vpop.f32.mrb[0].mxu0
    %v7424 = vadd.f32 %v6299, %v7423
    %v7425 = vpop.f32.mrb[0].mxu0
    %v7426 = vadd.f32 %v6301, %v7425
    %v7427 = vpop.f32.mrb[0].mxu0
    %v7428 = vadd.f32 %v6303, %v7427
    %v7429 = vpop.f32.mrb[0].mxu0
    %v7430 = vadd.f32 %v6305, %v7429
    %7431 = vmatprep.mubr.bf16.mxu0 %v7115
    %7432 = vmatmul.mubr.bf16.gmra.mrb[0].mxu0 %v4963
    %v7433 = vpop.f32.mrb[0].mxu0
    %v7434 = vadd.f32 %v6309, %v7433
    %v7435 = vpop.f32.mrb[0].mxu0
    %v7436 = vadd.f32 %v6311, %v7435
    %v7437 = vpop.f32.mrb[0].mxu0
    %v7438 = vadd.f32 %v6313, %v7437
    %v7439 = vpop.f32.mrb[0].mxu0
    %v7440 = vadd.f32 %v6315, %v7439
    %7441 = vmatprep.mubr.bf16.mxu0 %v7118
    %7442 = vmatmul.mubr.bf16.gmra.mrb[0].mxu0 %v4964
    %v7443 = vpop.f32.mrb[0].mxu0
    %v7444 = vadd.f32 %v6319, %v7443
    %v7445 = vpop.f32.mrb[0].mxu0
    %v7446 = vadd.f32 %v6321, %v7445
    %v7447 = vpop.f32.mrb[0].mxu0
    %v7448 = vadd.f32 %v6323, %v7447
    %v7449 = vpop.f32.mrb[0].mxu0
    %v7450 = vadd.f32 %v6325, %v7449
    %7451 = vmatprep.mubr.bf16.mxu0 %v7121
    %7452 = vmatmul.mubr.bf16.gmra.mrb[0].mxu0 %v4965
    %v7453 = vpop.f32.mrb[0].mxu0
    %v7454 = vadd.f32 %v6329, %v7453
    %v7455 = vpop.f32.mrb[0].mxu0
    %v7456 = vadd.f32 %v6331, %v7455
    %v7457 = vpop.f32.mrb[0].mxu0
    %v7458 = vadd.f32 %v6333, %v7457
    %v7459 = vpop.f32.mrb[0].mxu0
    %v7460 = vadd.f32 %v6335, %v7459
    %7461 = vdwg.mxu0
    %7462 = vmatprep.subr.bf16.mxu0 %v6890
    %7463 = vmatpush1.bf16.msra.mxu0 %v6889
    %7464 = vmatprep.subr.bf16.mxu0 %v6899
    %7465 = vmatpush1.bf16.msra.mxu0 %v6898
    %7466 = vmatprep.subr.bf16.mxu0 %v6908
    %7467 = vmatpush1.bf16.msra.mxu0 %v6907
    %7468 = vmatprep.subr.bf16.mxu0 %v6917
    %7469 = vmatpush1.bf16.msra.mxu0 %v6916
    %7470 = vmatprep.subr.bf16.mxu0 %v6926
    %7471 = vmatpush1.bf16.msra.mxu0 %v6925
    %7472 = vmatprep.subr.bf16.mxu0 %v6935
    %7473 = vmatpush1.bf16.msra.mxu0 %v6934
    %7474 = vmatprep.subr.bf16.mxu0 %v6944
    %7475 = vmatpush1.bf16.msra.mxu0 %v6943
    %7476 = vmatprep.subr.bf16.mxu0 %v6953
    %7477 = vmatpush1.bf16.msra.mxu0 %v6952
    %7478 = vmatprep.subr.bf16.mxu0 %v6962
    %7479 = vmatpush1.bf16.msra.mxu0 %v6961
    %7480 = vmatprep.subr.bf16.mxu0 %v6971
    %7481 = vmatpush1.bf16.msra.mxu0 %v6970
    %7482 = vmatprep.subr.bf16.mxu0 %v6980
    %7483 = vmatpush1.bf16.msra.mxu0 %v6979
    %7484 = vmatprep.subr.bf16.mxu0 %v6989
    %7485 = vmatpush1.bf16.msra.mxu0 %v6988
    %7486 = vmatprep.subr.bf16.mxu0 0
    %7487 = vmatpush1.bf16.msra.mxu0 0
    %7488 = vmatprep.subr.bf16.mxu0 0
    %7489 = vmatpush1.bf16.msra.mxu0 0
    %7490 = vmatprep.subr.bf16.mxu0 0
    %7491 = vmatpush1.bf16.msra.mxu0 0
    %7492 = vmatprep.subr.bf16.mxu0 0
    %7493 = vmatpush1.bf16.msra.mxu0 0
    %7494 = vmatprep.mubr.bf16.mxu0 %v7100
    %7495 = vmatmul.mubr.bf16.gmra.mrb[0].mxu0 %v4958
    %v7496 = vpop.f32.mrb[0].mxu0
    %v7497 = vadd.f32 %v6372, %v7496
    %v7498 = vpop.f32.mrb[0].mxu0
    %v7499 = vadd.f32 %v6374, %v7498
    %v7500 = vpop.f32.mrb[0].mxu0
    %v7501 = vadd.f32 %v6376, %v7500
    %v7502 = vpop.f32.mrb[0].mxu0
    %v7503 = vadd.f32 %v6378, %v7502
    %7504 = vmatprep.mubr.bf16.mxu0 %v7103
    %7505 = vmatmul.mubr.bf16.gmra.mrb[0].mxu0 %v4959
    %v7506 = vpop.f32.mrb[0].mxu0
    %v7507 = vadd.f32 %v6382, %v7506
    %v7508 = vpop.f32.mrb[0].mxu0
    %v7509 = vadd.f32 %v6384, %v7508
    %v7510 = vpop.f32.mrb[0].mxu0
    %v7511 = vadd.f32 %v6386, %v7510
    %v7512 = vpop.f32.mrb[0].mxu0
    %v7513 = vadd.f32 %v6388, %v7512
    %7514 = vmatprep.mubr.bf16.mxu0 %v7106
    %7515 = vmatmul.mubr.bf16.gmra.mrb[0].mxu0 %v4960
    %v7516 = vpop.f32.mrb[0].mxu0
    %v7517 = vadd.f32 %v6392, %v7516
    %v7518 = vpop.f32.mrb[0].mxu0
    %v7519 = vadd.f32 %v6394, %v7518
    %v7520 = vpop.f32.mrb[0].mxu0
    %v7521 = vadd.f32 %v6396, %v7520
    %v7522 = vpop.f32.mrb[0].mxu0
    %v7523 = vadd.f32 %v6398, %v7522
    %7524 = vmatprep.mubr.bf16.mxu0 %v7109
    %7525 = vmatmul.mubr.bf16.gmra.mrb[0].mxu0 %v4961
    %v7526 = vpop.f32.mrb[0].mxu0
    %v7527 = vadd.f32 %v6402, %v7526
    %v7528 = vpop.f32.mrb[0].mxu0
    %v7529 = vadd.f32 %v6404, %v7528
    %v7530 = vpop.f32.mrb[0].mxu0
    %v7531 = vadd.f32 %v6406, %v7530
    %v7532 = vpop.f32.mrb[0].mxu0
    %v7533 = vadd.f32 %v6408, %v7532
    %7534 = vmatprep.mubr.bf16.mxu0 %v7112
    %7535 = vmatmul.mubr.bf16.gmra.mrb[0].mxu0 %v4962
    %v7536 = vpop.f32.mrb[0].mxu0
    %v7537 = vadd.f32 %v6412, %v7536
    %v7538 = vpop.f32.mrb[0].mxu0
    %v7539 = vadd.f32 %v6414, %v7538
    %v7540 = vpop.f32.mrb[0].mxu0
    %v7541 = vadd.f32 %v6416, %v7540
    %v7542 = vpop.f32.mrb[0].mxu0
    %v7543 = vadd.f32 %v6418, %v7542
    %7544 = vmatprep.mubr.bf16.mxu0 %v7115
    %7545 = vmatmul.mubr.bf16.gmra.mrb[0].mxu0 %v4963
    %v7546 = vpop.f32.mrb[0].mxu0
    %v7547 = vadd.f32 %v6422, %v7546
    %v7548 = vpop.f32.mrb[0].mxu0
    %v7549 = vadd.f32 %v6424, %v7548
    %v7550 = vpop.f32.mrb[0].mxu0
    %v7551 = vadd.f32 %v6426, %v7550
    %v7552 = vpop.f32.mrb[0].mxu0
    %v7553 = vadd.f32 %v6428, %v7552
    %7554 = vmatprep.mubr.bf16.mxu0 %v7118
    %7555 = vmatmul.mubr.bf16.gmra.mrb[0].mxu0 %v4964
    %v7556 = vpop.f32.mrb[0].mxu0
    %v7557 = vadd.f32 %v6432, %v7556
    %v7558 = vpop.f32.mrb[0].mxu0
    %v7559 = vadd.f32 %v6434, %v7558
    %v7560 = vpop.f32.mrb[0].mxu0
    %v7561 = vadd.f32 %v6436, %v7560
    %v7562 = vpop.f32.mrb[0].mxu0
    %v7563 = vadd.f32 %v6438, %v7562
    %7564 = vmatprep.mubr.bf16.mxu0 %v7121
    %7565 = vmatmul.mubr.bf16.gmra.mrb[0].mxu0 %v4965
    %v7566 = vpop.f32.mrb[0].mxu0
    %v7567 = vadd.f32 %v6442, %v7566
    %v7568 = vpop.f32.mrb[0].mxu0
    %v7569 = vadd.f32 %v6444, %v7568
    %v7570 = vpop.f32.mrb[0].mxu0
    %v7571 = vadd.f32 %v6446, %v7570
    %v7572 = vpop.f32.mrb[0].mxu0
    %v7573 = vadd.f32 %v6448, %v7572
    %7574 = vdwg.mxu0
    %7575 = vmatprep.subr.bf16.mxu0 0
    %7576 = vmatpush1.bf16.msra.mxu0 %v6891
    %7577 = vmatprep.subr.bf16.mxu0 0
    %7578 = vmatpush1.bf16.msra.mxu0 %v6900
    %7579 = vmatprep.subr.bf16.mxu0 0
    %7580 = vmatpush1.bf16.msra.mxu0 %v6909
    %7581 = vmatprep.subr.bf16.mxu0 0
    %7582 = vmatpush1.bf16.msra.mxu0 %v6918
    %7583 = vmatprep.subr.bf16.mxu0 0
    %7584 = vmatpush1.bf16.msra.mxu0 %v6927
    %7585 = vmatprep.subr.bf16.mxu0 0
    %7586 = vmatpush1.bf16.msra.mxu0 %v6936
    %7587 = vmatprep.subr.bf16.mxu0 0
    %7588 = vmatpush1.bf16.msra.mxu0 %v6945
    %7589 = vmatprep.subr.bf16.mxu0 0
    %7590 = vmatpush1.bf16.msra.mxu0 %v6954
    %7591 = vmatprep.subr.bf16.mxu0 0
    %7592 = vmatpush1.bf16.msra.mxu0 %v6963
    %7593 = vmatprep.subr.bf16.mxu0 0
    %7594 = vmatpush1.bf16.msra.mxu0 %v6972
    %7595 = vmatprep.subr.bf16.mxu0 0
    %7596 = vmatpush1.bf16.msra.mxu0 %v6981
    %7597 = vmatprep.subr.bf16.mxu0 0
    %7598 = vmatpush1.bf16.msra.mxu0 %v6990
    %7599 = vmatprep.subr.bf16.mxu0 0
    %7600 = vmatpush1.bf16.msra.mxu0 0
    %7601 = vmatprep.subr.bf16.mxu0 0
    %7602 = vmatpush1.bf16.msra.mxu0 0
    %7603 = vmatprep.subr.bf16.mxu0 0
    %7604 = vmatpush1.bf16.msra.mxu0 0
    %7605 = vmatprep.subr.bf16.mxu0 0
    %7606 = vmatpush1.bf16.msra.mxu0 0
    %7607 = vmatprep.mubr.bf16.mxu0 %v7100
    %7608 = vmatmul.mubr.bf16.gmra.mrb[0].mxu0 %v4958
    %v7609 = vpop.f32.mrb[0].mxu0
    %v7610 = vadd.f32 %v6485, %v7609
    %v7611 = vpop.f32.mrb[0].mxu0
    %v7612 = vpop.f32.mrb[0].mxu0
    %v7613 = vadd.f32 %v6488, %v7612
    %v7614 = vpop.f32.mrb[0].mxu0
    %7615 = vmatprep.mubr.bf16.mxu0 %v7103
    %7616 = vmatmul.mubr.bf16.gmra.mrb[0].mxu0 %v4959
    %v7617 = vpop.f32.mrb[0].mxu0
    %v7618 = vadd.f32 %v6493, %v7617
    %v7619 = vpop.f32.mrb[0].mxu0
    %v7620 = vpop.f32.mrb[0].mxu0
    %v7621 = vadd.f32 %v6496, %v7620
    %v7622 = vpop.f32.mrb[0].mxu0
    %7623 = vmatprep.mubr.bf16.mxu0 %v7106
    %7624 = vmatmul.mubr.bf16.gmra.mrb[0].mxu0 %v4960
    %v7625 = vpop.f32.mrb[0].mxu0
    %v7626 = vadd.f32 %v6501, %v7625
    %v7627 = vpop.f32.mrb[0].mxu0
    %v7628 = vpop.f32.mrb[0].mxu0
    %v7629 = vadd.f32 %v6504, %v7628
    %v7630 = vpop.f32.mrb[0].mxu0
    %7631 = vmatprep.mubr.bf16.mxu0 %v7109
    %7632 = vmatmul.mubr.bf16.gmra.mrb[0].mxu0 %v4961
    %v7633 = vpop.f32.mrb[0].mxu0
    %v7634 = vadd.f32 %v6509, %v7633
    %v7635 = vpop.f32.mrb[0].mxu0
    %v7636 = vpop.f32.mrb[0].mxu0
    %v7637 = vadd.f32 %v6512, %v7636
    %v7638 = vpop.f32.mrb[0].mxu0
    %7639 = vmatprep.mubr.bf16.mxu0 %v7112
    %7640 = vmatmul.mubr.bf16.gmra.mrb[0].mxu0 %v4962
    %v7641 = vpop.f32.mrb[0].mxu0
    %v7642 = vadd.f32 %v6517, %v7641
    %v7643 = vpop.f32.mrb[0].mxu0
    %v7644 = vpop.f32.mrb[0].mxu0
    %v7645 = vadd.f32 %v6520, %v7644
    %v7646 = vpop.f32.mrb[0].mxu0
    %7647 = vmatprep.mubr.bf16.mxu0 %v7115
    %7648 = vmatmul.mubr.bf16.gmra.mrb[0].mxu0 %v4963
    %v7649 = vpop.f32.mrb[0].mxu0
    %v7650 = vadd.f32 %v6525, %v7649
    %v7651 = vpop.f32.mrb[0].mxu0
    %v7652 = vpop.f32.mrb[0].mxu0
    %v7653 = vadd.f32 %v6528, %v7652
    %v7654 = vpop.f32.mrb[0].mxu0
    %7655 = vmatprep.mubr.bf16.mxu0 %v7118
    %7656 = vmatmul.mubr.bf16.gmra.mrb[0].mxu0 %v4964
    %v7657 = vpop.f32.mrb[0].mxu0
    %v7658 = vadd.f32 %v6533, %v7657
    %v7659 = vpop.f32.mrb[0].mxu0
    %v7660 = vpop.f32.mrb[0].mxu0
    %v7661 = vadd.f32 %v6536, %v7660
    %v7662 = vpop.f32.mrb[0].mxu0
    %7663 = vmatprep.mubr.bf16.mxu0 %v7121
    %7664 = vmatmul.mubr.bf16.gmra.mrb[0].mxu0 %v4965
    %v7665 = vpop.f32.mrb[0].mxu0
    %v7666 = vadd.f32 %v6541, %v7665
    %v7667 = vpop.f32.mrb[0].mxu0
    %v7668 = vpop.f32.mrb[0].mxu0
    %v7669 = vadd.f32 %v6544, %v7668
    %v7670 = vpop.f32.mrb[0].mxu0
    %7671 = vdwg.mxu0
    %v7672 = vld [vmem:[%s5] sm:$0xff]
    %v7673 = vld [vmem:[%s5 + $0x8] sm:$0x1]
    %v7676 = vlaneseq
    %v7677 = vshrl.u32 %v7676, 7
    %v7678 = vsub.s32 0, %v7677
    %v7679 = vrot.slane %v7672, %v7678
    %v7680 = vlaneseq
    %v7681 = vshrl.u32 %v7680, 7
    %v7682 = vsub.s32 1, %v7681
    %v7683 = vrot.slane %v7672, %v7682
    %v7684 = vlaneseq
    %v7685 = vshrl.u32 %v7684, 7
    %v7686 = vsub.s32 2, %v7685
    %v7687 = vrot.slane %v7672, %v7686
    %v7688 = vlaneseq
    %v7689 = vshrl.u32 %v7688, 7
    %v7690 = vsub.s32 3, %v7689
    %v7691 = vrot.slane %v7672, %v7690
    %v7692 = vlaneseq
    %v7693 = vshrl.u32 %v7692, 7
    %v7694 = vsub.s32 4, %v7693
    %v7695 = vrot.slane %v7672, %v7694
    %v7696 = vlaneseq
    %v7697 = vshrl.u32 %v7696, 7
    %v7698 = vsub.s32 5, %v7697
    %v7699 = vrot.slane %v7672, %v7698
    %v7700 = vlaneseq
    %v7701 = vshrl.u32 %v7700, 7
    %v7702 = vsub.s32 6, %v7701
    %v7703 = vrot.slane %v7672, %v7702
    %v7704 = vlaneseq
    %v7705 = vshrl.u32 %v7704, 7
    %v7706 = vsub.s32 7, %v7705
    %v7707 = vrot.slane %v7672, %v7706
    %v7708 = vlaneseq
    %v7709 = vshrl.u32 %v7708, 7
    %v7710 = vsub.s32 0, %v7709
    %v7711 = vrot.slane %v7673, %v7710
    %v7721 = vadd.f32 %v7158, %v7679
    %v7722 = vadd.f32 %v7160, %v7683
    %v7723 = vadd.f32 %v7271, %v7687
    %v7724 = vadd.f32 %v7273, %v7691
    %v7725 = vadd.f32 %v7384, %v7695
    %v7726 = vadd.f32 %v7386, %v7699
    %v7727 = vadd.f32 %v7497, %v7703
    %v7728 = vadd.f32 %v7499, %v7707
    %v7729 = vadd.f32 %v7610, %v7711
    %v7730 = vadd.f32 %v7162, %v7679
    %v7731 = vadd.f32 %v7164, %v7683
    %v7732 = vadd.f32 %v7275, %v7687
    %v7733 = vadd.f32 %v7277, %v7691
    %v7734 = vadd.f32 %v7388, %v7695
    %v7735 = vadd.f32 %v7390, %v7699
    %v7736 = vadd.f32 %v7501, %v7703
    %v7737 = vadd.f32 %v7503, %v7707
    %v7738 = vadd.f32 %v7613, %v7711
    %v7739 = vadd.f32 %v7168, %v7679
    %v7740 = vadd.f32 %v7170, %v7683
    %v7741 = vadd.f32 %v7281, %v7687
    %v7742 = vadd.f32 %v7283, %v7691
    %v7743 = vadd.f32 %v7394, %v7695
    %v7744 = vadd.f32 %v7396, %v7699
    %v7745 = vadd.f32 %v7507, %v7703
    %v7746 = vadd.f32 %v7509, %v7707
    %v7747 = vadd.f32 %v7618, %v7711
    %v7748 = vadd.f32 %v7172, %v7679
    %v7749 = vadd.f32 %v7174, %v7683
    %v7750 = vadd.f32 %v7285, %v7687
    %v7751 = vadd.f32 %v7287, %v7691
    %v7752 = vadd.f32 %v7398, %v7695
    %v7753 = vadd.f32 %v7400, %v7699
    %v7754 = vadd.f32 %v7511, %v7703
    %v7755 = vadd.f32 %v7513, %v7707
    %v7756 = vadd.f32 %v7621, %v7711
    %v7757 = vadd.f32 %v7178, %v7679
    %v7758 = vadd.f32 %v7180, %v7683
    %v7759 = vadd.f32 %v7291, %v7687
    %v7760 = vadd.f32 %v7293, %v7691
    %v7761 = vadd.f32 %v7404, %v7695
    %v7762 = vadd.f32 %v7406, %v7699
    %v7763 = vadd.f32 %v7517, %v7703
    %v7764 = vadd.f32 %v7519, %v7707
    %v7765 = vadd.f32 %v7626, %v7711
    %v7766 = vadd.f32 %v7182, %v7679
    %v7767 = vadd.f32 %v7184, %v7683
    %v7768 = vadd.f32 %v7295, %v7687
    %v7769 = vadd.f32 %v7297, %v7691
    %v7770 = vadd.f32 %v7408, %v7695
    %v7771 = vadd.f32 %v7410, %v7699
    %v7772 = vadd.f32 %v7521, %v7703
    %v7773 = vadd.f32 %v7523, %v7707
    %v7774 = vadd.f32 %v7629, %v7711
    %v7775 = vadd.f32 %v7188, %v7679
    %v7776 = vadd.f32 %v7190, %v7683
    %v7777 = vadd.f32 %v7301, %v7687
    %v7778 = vadd.f32 %v7303, %v7691
    %v7779 = vadd.f32 %v7414, %v7695
    %v7780 = vadd.f32 %v7416, %v7699
    %v7781 = vadd.f32 %v7527, %v7703
    %v7782 = vadd.f32 %v7529, %v7707
    %v7783 = vadd.f32 %v7634, %v7711
    %v7784 = vadd.f32 %v7192, %v7679
    %v7785 = vadd.f32 %v7194, %v7683
    %v7786 = vadd.f32 %v7305, %v7687
    %v7787 = vadd.f32 %v7307, %v7691
    %v7788 = vadd.f32 %v7418, %v7695
    %v7789 = vadd.f32 %v7420, %v7699
    %v7790 = vadd.f32 %v7531, %v7703
    %v7791 = vadd.f32 %v7533, %v7707
    %v7792 = vadd.f32 %v7637, %v7711
    %v7793 = vadd.f32 %v7198, %v7679
    %v7794 = vadd.f32 %v7200, %v7683
    %v7795 = vadd.f32 %v7311, %v7687
    %v7796 = vadd.f32 %v7313, %v7691
    %v7797 = vadd.f32 %v7424, %v7695
    %v7798 = vadd.f32 %v7426, %v7699
    %v7799 = vadd.f32 %v7537, %v7703
    %v7800 = vadd.f32 %v7539, %v7707
    %v7801 = vadd.f32 %v7642, %v7711
    %v7802 = vadd.f32 %v7202, %v7679
    %v7803 = vadd.f32 %v7204, %v7683
    %v7804 = vadd.f32 %v7315, %v7687
    %v7805 = vadd.f32 %v7317, %v7691
    %v7806 = vadd.f32 %v7428, %v7695
    %v7807 = vadd.f32 %v7430, %v7699
    %v7808 = vadd.f32 %v7541, %v7703
    %v7809 = vadd.f32 %v7543, %v7707
    %v7810 = vadd.f32 %v7645, %v7711
    %v7811 = vadd.f32 %v7208, %v7679
    %v7812 = vadd.f32 %v7210, %v7683
    %v7813 = vadd.f32 %v7321, %v7687
    %v7814 = vadd.f32 %v7323, %v7691
    %v7815 = vadd.f32 %v7434, %v7695
    %v7816 = vadd.f32 %v7436, %v7699
    %v7817 = vadd.f32 %v7547, %v7703
    %v7818 = vadd.f32 %v7549, %v7707
    %v7819 = vadd.f32 %v7650, %v7711
    %v7820 = vadd.f32 %v7212, %v7679
    %v7821 = vadd.f32 %v7214, %v7683
    %v7822 = vadd.f32 %v7325, %v7687
    %v7823 = vadd.f32 %v7327, %v7691
    %v7824 = vadd.f32 %v7438, %v7695
    %v7825 = vadd.f32 %v7440, %v7699
    %v7826 = vadd.f32 %v7551, %v7703
    %v7827 = vadd.f32 %v7553, %v7707
    %v7828 = vadd.f32 %v7653, %v7711
    %v7829 = vadd.f32 %v7218, %v7679
    %v7830 = vadd.f32 %v7220, %v7683
    %v7831 = vadd.f32 %v7331, %v7687
    %v7832 = vadd.f32 %v7333, %v7691
    %v7833 = vadd.f32 %v7444, %v7695
    %v7834 = vadd.f32 %v7446, %v7699
    %v7835 = vadd.f32 %v7557, %v7703
    %v7836 = vadd.f32 %v7559, %v7707
    %v7837 = vadd.f32 %v7658, %v7711
    %v7838 = vadd.f32 %v7222, %v7679
    %v7839 = vadd.f32 %v7224, %v7683
    %v7840 = vadd.f32 %v7335, %v7687
    %v7841 = vadd.f32 %v7337, %v7691
    %v7842 = vadd.f32 %v7448, %v7695
    %v7843 = vadd.f32 %v7450, %v7699
    %v7844 = vadd.f32 %v7561, %v7703
    %v7845 = vadd.f32 %v7563, %v7707
    %v7846 = vadd.f32 %v7661, %v7711
    %v7847 = vadd.f32 %v7228, %v7679
    %v7848 = vadd.f32 %v7230, %v7683
    %v7849 = vadd.f32 %v7341, %v7687
    %v7850 = vadd.f32 %v7343, %v7691
    %v7851 = vadd.f32 %v7454, %v7695
    %v7852 = vadd.f32 %v7456, %v7699
    %v7853 = vadd.f32 %v7567, %v7703
    %v7854 = vadd.f32 %v7569, %v7707
    %v7855 = vadd.f32 %v7666, %v7711
    %v7856 = vadd.f32 %v7232, %v7679
    %v7857 = vadd.f32 %v7234, %v7683
    %v7858 = vadd.f32 %v7345, %v7687
    %v7859 = vadd.f32 %v7347, %v7691
    %v7860 = vadd.f32 %v7458, %v7695
    %v7861 = vadd.f32 %v7460, %v7699
    %v7862 = vadd.f32 %v7571, %v7703
    %v7863 = vadd.f32 %v7573, %v7707
    %v7864 = vadd.f32 %v7669, %v7711
    %v7865 = vmul.f32 %v7721, 0.5
    %v7866 = vmul.f32 %v7722, 0.5
    %v7867 = vmul.f32 %v7723, 0.5
    %v7868 = vmul.f32 %v7724, 0.5
    %v7869 = vmul.f32 %v7725, 0.5
    %v7870 = vmul.f32 %v7726, 0.5
    %v7871 = vmul.f32 %v7727, 0.5
    %v7872 = vmul.f32 %v7728, 0.5
    %v7873 = vmul.f32 %v7729, 0.5
    %v7874 = vmul.f32 %v7730, 0.5
    %v7875 = vmul.f32 %v7731, 0.5
    %v7876 = vmul.f32 %v7732, 0.5
    %v7877 = vmul.f32 %v7733, 0.5
    %v7878 = vmul.f32 %v7734, 0.5
    %v7879 = vmul.f32 %v7735, 0.5
    %v7880 = vmul.f32 %v7736, 0.5
    %v7881 = vmul.f32 %v7737, 0.5
    %v7882 = vmul.f32 %v7738, 0.5
    %v7883 = vmul.f32 %v7739, 0.5
    %v7884 = vmul.f32 %v7740, 0.5
    %v7885 = vmul.f32 %v7741, 0.5
    %v7886 = vmul.f32 %v7742, 0.5
    %v7887 = vmul.f32 %v7743, 0.5
    %v7888 = vmul.f32 %v7744, 0.5
    %v7889 = vmul.f32 %v7745, 0.5
    %v7890 = vmul.f32 %v7746, 0.5
    %v7891 = vmul.f32 %v7747, 0.5
    %v7892 = vmul.f32 %v7748, 0.5
    %v7893 = vmul.f32 %v7749, 0.5
    %v7894 = vmul.f32 %v7750, 0.5
    %v7895 = vmul.f32 %v7751, 0.5
    %v7896 = vmul.f32 %v7752, 0.5
    %v7897 = vmul.f32 %v7753, 0.5
    %v7898 = vmul.f32 %v7754, 0.5
    %v7899 = vmul.f32 %v7755, 0.5
    %v7900 = vmul.f32 %v7756, 0.5
    %v7901 = vmul.f32 %v7757, 0.5
    %v7902 = vmul.f32 %v7758, 0.5
    %v7903 = vmul.f32 %v7759, 0.5
    %v7904 = vmul.f32 %v7760, 0.5
    %v7905 = vmul.f32 %v7761, 0.5
    %v7906 = vmul.f32 %v7762, 0.5
    %v7907 = vmul.f32 %v7763, 0.5
    %v7908 = vmul.f32 %v7764, 0.5
    %v7909 = vmul.f32 %v7765, 0.5
    %v7910 = vmul.f32 %v7766, 0.5
    %v7911 = vmul.f32 %v7767, 0.5
    %v7912 = vmul.f32 %v7768, 0.5
    %v7913 = vmul.f32 %v7769, 0.5
    %v7914 = vmul.f32 %v7770, 0.5
    %v7915 = vmul.f32 %v7771, 0.5
    %v7916 = vmul.f32 %v7772, 0.5
    %v7917 = vmul.f32 %v7773, 0.5
    %v7918 = vmul.f32 %v7774, 0.5
    %v7919 = vmul.f32 %v7775, 0.5
    %v7920 = vmul.f32 %v7776, 0.5
    %v7921 = vmul.f32 %v7777, 0.5
    %v7922 = vmul.f32 %v7778, 0.5
    %v7923 = vmul.f32 %v7779, 0.5
    %v7924 = vmul.f32 %v7780, 0.5
    %v7925 = vmul.f32 %v7781, 0.5
    %v7926 = vmul.f32 %v7782, 0.5
    %v7927 = vmul.f32 %v7783, 0.5
    %v7928 = vmul.f32 %v7784, 0.5
    %v7929 = vmul.f32 %v7785, 0.5
    %v7930 = vmul.f32 %v7786, 0.5
    %v7931 = vmul.f32 %v7787, 0.5
    %v7932 = vmul.f32 %v7788, 0.5
    %v7933 = vmul.f32 %v7789, 0.5
    %v7934 = vmul.f32 %v7790, 0.5
    %v7935 = vmul.f32 %v7791, 0.5
    %v7936 = vmul.f32 %v7792, 0.5
    %v7937 = vmul.f32 %v7793, 0.5
    %v7938 = vmul.f32 %v7794, 0.5
    %v7939 = vmul.f32 %v7795, 0.5
    %v7940 = vmul.f32 %v7796, 0.5
    %v7941 = vmul.f32 %v7797, 0.5
    %v7942 = vmul.f32 %v7798, 0.5
    %v7943 = vmul.f32 %v7799, 0.5
    %v7944 = vmul.f32 %v7800, 0.5
    %v7945 = vmul.f32 %v7801, 0.5
    %v7946 = vmul.f32 %v7802, 0.5
    %v7947 = vmul.f32 %v7803, 0.5
    %v7948 = vmul.f32 %v7804, 0.5
    %v7949 = vmul.f32 %v7805, 0.5
    %v7950 = vmul.f32 %v7806, 0.5
    %v7951 = vmul.f32 %v7807, 0.5
    %v7952 = vmul.f32 %v7808, 0.5
    %v7953 = vmul.f32 %v7809, 0.5
    %v7954 = vmul.f32 %v7810, 0.5
    %v7955 = vmul.f32 %v7811, 0.5
    %v7956 = vmul.f32 %v7812, 0.5
    %v7957 = vmul.f32 %v7813, 0.5
    %v7958 = vmul.f32 %v7814, 0.5
    %v7959 = vmul.f32 %v7815, 0.5
    %v7960 = vmul.f32 %v7816, 0.5
    %v7961 = vmul.f32 %v7817, 0.5
    %v7962 = vmul.f32 %v7818, 0.5
    %v7963 = vmul.f32 %v7819, 0.5
    %v7964 = vmul.f32 %v7820, 0.5
    %v7965 = vmul.f32 %v7821, 0.5
    %v7966 = vmul.f32 %v7822, 0.5
    %v7967 = vmul.f32 %v7823, 0.5
    %v7968 = vmul.f32 %v7824, 0.5
    %v7969 = vmul.f32 %v7825, 0.5
    %v7970 = vmul.f32 %v7826, 0.5
    %v7971 = vmul.f32 %v7827, 0.5
    %v7972 = vmul.f32 %v7828, 0.5
    %v7973 = vmul.f32 %v7829, 0.5
    %v7974 = vmul.f32 %v7830, 0.5
    %v7975 = vmul.f32 %v7831, 0.5
    %v7976 = vmul.f32 %v7832, 0.5
    %v7977 = vmul.f32 %v7833, 0.5
    %v7978 = vmul.f32 %v7834, 0.5
    %v7979 = vmul.f32 %v7835, 0.5
    %v7980 = vmul.f32 %v7836, 0.5
    %v7981 = vmul.f32 %v7837, 0.5
    %v7982 = vmul.f32 %v7838, 0.5
    %v7983 = vmul.f32 %v7839, 0.5
    %v7984 = vmul.f32 %v7840, 0.5
    %v7985 = vmul.f32 %v7841, 0.5
    %v7986 = vmul.f32 %v7842, 0.5
    %v7987 = vmul.f32 %v7843, 0.5
    %v7988 = vmul.f32 %v7844, 0.5
    %v7989 = vmul.f32 %v7845, 0.5
    %v7990 = vmul.f32 %v7846, 0.5
    %v7991 = vmul.f32 %v7847, 0.5
    %v7992 = vmul.f32 %v7848, 0.5
    %v7993 = vmul.f32 %v7849, 0.5
    %v7994 = vmul.f32 %v7850, 0.5
    %v7995 = vmul.f32 %v7851, 0.5
    %v7996 = vmul.f32 %v7852, 0.5
    %v7997 = vmul.f32 %v7853, 0.5
    %v7998 = vmul.f32 %v7854, 0.5
    %v7999 = vmul.f32 %v7855, 0.5
    %v8000 = vmul.f32 %v7856, 0.5
    %v8001 = vmul.f32 %v7857, 0.5
    %v8002 = vmul.f32 %v7858, 0.5
    %v8003 = vmul.f32 %v7859, 0.5
    %v8004 = vmul.f32 %v7860, 0.5
    %v8005 = vmul.f32 %v7861, 0.5
    %v8006 = vmul.f32 %v7862, 0.5
    %v8007 = vmul.f32 %v7863, 0.5
    %v8008 = vmul.f32 %v7864, 0.5
    %v8009 = vadd.f32 %v38, %v7865
    %v8010 = vadd.f32 %v39, %v7866
    %v8011 = vadd.f32 %v40, %v7867
    %v8012 = vadd.f32 %v41, %v7868
    %v8013 = vadd.f32 %v42, %v7869
    %v8014 = vadd.f32 %v43, %v7870
    %v8015 = vadd.f32 %v44, %v7871
    %v8016 = vadd.f32 %v45, %v7872
    %v8017 = vadd.f32 %v46, %v7873
    %v8018 = vadd.f32 %v47, %v7874
    %v8019 = vadd.f32 %v48, %v7875
    %v8020 = vadd.f32 %v49, %v7876
    %v8021 = vadd.f32 %v50, %v7877
    %v8022 = vadd.f32 %v51, %v7878
    %v8023 = vadd.f32 %v52, %v7879
    %v8024 = vadd.f32 %v53, %v7880
    %v8025 = vadd.f32 %v54, %v7881
    %v8026 = vadd.f32 %v55, %v7882
    %v8027 = vadd.f32 %v56, %v7883
    %v8028 = vadd.f32 %v57, %v7884
    %v8029 = vadd.f32 %v58, %v7885
    %v8030 = vadd.f32 %v59, %v7886
    %v8031 = vadd.f32 %v60, %v7887
    %v8032 = vadd.f32 %v61, %v7888
    %v8033 = vadd.f32 %v62, %v7889
    %v8034 = vadd.f32 %v63, %v7890
    %v8035 = vadd.f32 %v64, %v7891
    %v8036 = vadd.f32 %v65, %v7892
    %v8037 = vadd.f32 %v66, %v7893
    %v8038 = vadd.f32 %v67, %v7894
    %v8039 = vadd.f32 %v68, %v7895
    %v8040 = vadd.f32 %v69, %v7896
    %v8041 = vadd.f32 %v70, %v7897
    %v8042 = vadd.f32 %v71, %v7898
    %v8043 = vadd.f32 %v72, %v7899
    %v8044 = vadd.f32 %v73, %v7900
    %v8045 = vadd.f32 %v74, %v7901
    %v8046 = vadd.f32 %v75, %v7902
    %v8047 = vadd.f32 %v76, %v7903
    %v8048 = vadd.f32 %v77, %v7904
    %v8049 = vadd.f32 %v78, %v7905
    %v8050 = vadd.f32 %v79, %v7906
    %v8051 = vadd.f32 %v80, %v7907
    %v8052 = vadd.f32 %v81, %v7908
    %v8053 = vadd.f32 %v82, %v7909
    %v8054 = vadd.f32 %v83, %v7910
    %v8055 = vadd.f32 %v84, %v7911
    %v8056 = vadd.f32 %v85, %v7912
    %v8057 = vadd.f32 %v86, %v7913
    %v8058 = vadd.f32 %v87, %v7914
    %v8059 = vadd.f32 %v88, %v7915
    %v8060 = vadd.f32 %v89, %v7916
    %v8061 = vadd.f32 %v90, %v7917
    %v8062 = vadd.f32 %v91, %v7918
    %v8063 = vadd.f32 %v92, %v7919
    %v8064 = vadd.f32 %v93, %v7920
    %v8065 = vadd.f32 %v94, %v7921
    %v8066 = vadd.f32 %v95, %v7922
    %v8067 = vadd.f32 %v96, %v7923
    %v8068 = vadd.f32 %v97, %v7924
    %v8069 = vadd.f32 %v98, %v7925
    %v8070 = vadd.f32 %v99, %v7926
    %v8071 = vadd.f32 %v100, %v7927
    %v8072 = vadd.f32 %v101, %v7928
    %v8073 = vadd.f32 %v102, %v7929
    %v8074 = vadd.f32 %v103, %v7930
    %v8075 = vadd.f32 %v104, %v7931
    %v8076 = vadd.f32 %v105, %v7932
    %v8077 = vadd.f32 %v106, %v7933
    %v8078 = vadd.f32 %v107, %v7934
    %v8079 = vadd.f32 %v108, %v7935
    %v8080 = vadd.f32 %v109, %v7936
    %v8081 = vadd.f32 %v110, %v7937
    %v8082 = vadd.f32 %v111, %v7938
    %v8083 = vadd.f32 %v112, %v7939
    %v8084 = vadd.f32 %v113, %v7940
    %v8085 = vadd.f32 %v114, %v7941
    %v8086 = vadd.f32 %v115, %v7942
    %v8087 = vadd.f32 %v116, %v7943
    %v8088 = vadd.f32 %v117, %v7944
    %v8089 = vadd.f32 %v118, %v7945
    %v8090 = vadd.f32 %v119, %v7946
    %v8091 = vadd.f32 %v120, %v7947
    %v8092 = vadd.f32 %v121, %v7948
    %v8093 = vadd.f32 %v122, %v7949
    %v8094 = vadd.f32 %v123, %v7950
    %v8095 = vadd.f32 %v124, %v7951
    %v8096 = vadd.f32 %v125, %v7952
    %v8097 = vadd.f32 %v126, %v7953
    %v8098 = vadd.f32 %v127, %v7954
    %v8099 = vadd.f32 %v128, %v7955
    %v8100 = vadd.f32 %v129, %v7956
    %v8101 = vadd.f32 %v130, %v7957
    %v8102 = vadd.f32 %v131, %v7958
    %v8103 = vadd.f32 %v132, %v7959
    %v8104 = vadd.f32 %v133, %v7960
    %v8105 = vadd.f32 %v134, %v7961
    %v8106 = vadd.f32 %v135, %v7962
    %v8107 = vadd.f32 %v136, %v7963
    %v8108 = vadd.f32 %v137, %v7964
    %v8109 = vadd.f32 %v138, %v7965
    %v8110 = vadd.f32 %v139, %v7966
    %v8111 = vadd.f32 %v140, %v7967
    %v8112 = vadd.f32 %v141, %v7968
    %v8113 = vadd.f32 %v142, %v7969
    %v8114 = vadd.f32 %v143, %v7970
    %v8115 = vadd.f32 %v144, %v7971
    %v8116 = vadd.f32 %v145, %v7972
    %v8117 = vadd.f32 %v146, %v7973
    %v8118 = vadd.f32 %v147, %v7974
    %v8119 = vadd.f32 %v148, %v7975
    %v8120 = vadd.f32 %v149, %v7976
    %v8121 = vadd.f32 %v150, %v7977
    %v8122 = vadd.f32 %v151, %v7978
    %v8123 = vadd.f32 %v152, %v7979
    %v8124 = vadd.f32 %v153, %v7980
    %v8125 = vadd.f32 %v154, %v7981
    %v8126 = vadd.f32 %v155, %v7982
    %v8127 = vadd.f32 %v156, %v7983
    %v8128 = vadd.f32 %v157, %v7984
    %v8129 = vadd.f32 %v158, %v7985
    %v8130 = vadd.f32 %v159, %v7986
    %v8131 = vadd.f32 %v160, %v7987
    %v8132 = vadd.f32 %v161, %v7988
    %v8133 = vadd.f32 %v162, %v7989
    %v8134 = vadd.f32 %v163, %v7990
    %v8135 = vadd.f32 %v164, %v7991
    %v8136 = vadd.f32 %v165, %v7992
    %v8137 = vadd.f32 %v166, %v7993
    %v8138 = vadd.f32 %v167, %v7994
    %v8139 = vadd.f32 %v168, %v7995
    %v8140 = vadd.f32 %v169, %v7996
    %v8141 = vadd.f32 %v170, %v7997
    %v8142 = vadd.f32 %v171, %v7998
    %v8143 = vadd.f32 %v172, %v7999
    %v8144 = vadd.f32 %v173, %v8000
    %v8145 = vadd.f32 %v174, %v8001
    %v8146 = vadd.f32 %v175, %v8002
    %v8147 = vadd.f32 %v176, %v8003
    %v8148 = vadd.f32 %v177, %v8004
    %v8149 = vadd.f32 %v178, %v8005
    %v8150 = vadd.f32 %v179, %v8006
    %v8151 = vadd.f32 %v180, %v8007
    %v8152 = vadd.f32 %v181, %v8008
    %v8153 = vmax.f32 %v8009, 0.0
    %v8154 = vmax.f32 %v8010, 0.0
    %v8155 = vmax.f32 %v8011, 0.0
    %v8156 = vmax.f32 %v8012, 0.0
    %v8157 = vmax.f32 %v8013, 0.0
    %v8158 = vmax.f32 %v8014, 0.0
    %v8159 = vmax.f32 %v8015, 0.0
    %v8160 = vmax.f32 %v8016, 0.0
    %v8161 = vmax.f32 %v8017, 0.0
    %v8162 = vmax.f32 %v8018, 0.0
    %v8163 = vmax.f32 %v8019, 0.0
    %v8164 = vmax.f32 %v8020, 0.0
    %v8165 = vmax.f32 %v8021, 0.0
    %v8166 = vmax.f32 %v8022, 0.0
    %v8167 = vmax.f32 %v8023, 0.0
    %v8168 = vmax.f32 %v8024, 0.0
    %v8169 = vmax.f32 %v8025, 0.0
    %v8170 = vmax.f32 %v8026, 0.0
    %v8171 = vmax.f32 %v8027, 0.0
    %v8172 = vmax.f32 %v8028, 0.0
    %v8173 = vmax.f32 %v8029, 0.0
    %v8174 = vmax.f32 %v8030, 0.0
    %v8175 = vmax.f32 %v8031, 0.0
    %v8176 = vmax.f32 %v8032, 0.0
    %v8177 = vmax.f32 %v8033, 0.0
    %v8178 = vmax.f32 %v8034, 0.0
    %v8179 = vmax.f32 %v8035, 0.0
    %v8180 = vmax.f32 %v8036, 0.0
    %v8181 = vmax.f32 %v8037, 0.0
    %v8182 = vmax.f32 %v8038, 0.0
    %v8183 = vmax.f32 %v8039, 0.0
    %v8184 = vmax.f32 %v8040, 0.0
    %v8185 = vmax.f32 %v8041, 0.0
    %v8186 = vmax.f32 %v8042, 0.0
    %v8187 = vmax.f32 %v8043, 0.0
    %v8188 = vmax.f32 %v8044, 0.0
    %v8189 = vmax.f32 %v8045, 0.0
    %v8190 = vmax.f32 %v8046, 0.0
    %v8191 = vmax.f32 %v8047, 0.0
    %v8192 = vmax.f32 %v8048, 0.0
    %v8193 = vmax.f32 %v8049, 0.0
    %v8194 = vmax.f32 %v8050, 0.0
    %v8195 = vmax.f32 %v8051, 0.0
    %v8196 = vmax.f32 %v8052, 0.0
    %v8197 = vmax.f32 %v8053, 0.0
    %v8198 = vmax.f32 %v8054, 0.0
    %v8199 = vmax.f32 %v8055, 0.0
    %v8200 = vmax.f32 %v8056, 0.0
    %v8201 = vmax.f32 %v8057, 0.0
    %v8202 = vmax.f32 %v8058, 0.0
    %v8203 = vmax.f32 %v8059, 0.0
    %v8204 = vmax.f32 %v8060, 0.0
    %v8205 = vmax.f32 %v8061, 0.0
    %v8206 = vmax.f32 %v8062, 0.0
    %v8207 = vmax.f32 %v8063, 0.0
    %v8208 = vmax.f32 %v8064, 0.0
    %v8209 = vmax.f32 %v8065, 0.0
    %v8210 = vmax.f32 %v8066, 0.0
    %v8211 = vmax.f32 %v8067, 0.0
    %v8212 = vmax.f32 %v8068, 0.0
    %v8213 = vmax.f32 %v8069, 0.0
    %v8214 = vmax.f32 %v8070, 0.0
    %v8215 = vmax.f32 %v8071, 0.0
    %v8216 = vmax.f32 %v8072, 0.0
    %v8217 = vmax.f32 %v8073, 0.0
    %v8218 = vmax.f32 %v8074, 0.0
    %v8219 = vmax.f32 %v8075, 0.0
    %v8220 = vmax.f32 %v8076, 0.0
    %v8221 = vmax.f32 %v8077, 0.0
    %v8222 = vmax.f32 %v8078, 0.0
    %v8223 = vmax.f32 %v8079, 0.0
    %v8224 = vmax.f32 %v8080, 0.0
    %v8225 = vmax.f32 %v8081, 0.0
    %v8226 = vmax.f32 %v8082, 0.0
    %v8227 = vmax.f32 %v8083, 0.0
    %v8228 = vmax.f32 %v8084, 0.0
    %v8229 = vmax.f32 %v8085, 0.0
    %v8230 = vmax.f32 %v8086, 0.0
    %v8231 = vmax.f32 %v8087, 0.0
    %v8232 = vmax.f32 %v8088, 0.0
    %v8233 = vmax.f32 %v8089, 0.0
    %v8234 = vmax.f32 %v8090, 0.0
    %v8235 = vmax.f32 %v8091, 0.0
    %v8236 = vmax.f32 %v8092, 0.0
    %v8237 = vmax.f32 %v8093, 0.0
    %v8238 = vmax.f32 %v8094, 0.0
    %v8239 = vmax.f32 %v8095, 0.0
    %v8240 = vmax.f32 %v8096, 0.0
    %v8241 = vmax.f32 %v8097, 0.0
    %v8242 = vmax.f32 %v8098, 0.0
    %v8243 = vmax.f32 %v8099, 0.0
    %v8244 = vmax.f32 %v8100, 0.0
    %v8245 = vmax.f32 %v8101, 0.0
    %v8246 = vmax.f32 %v8102, 0.0
    %v8247 = vmax.f32 %v8103, 0.0
    %v8248 = vmax.f32 %v8104, 0.0
    %v8249 = vmax.f32 %v8105, 0.0
    %v8250 = vmax.f32 %v8106, 0.0
    %v8251 = vmax.f32 %v8107, 0.0
    %v8252 = vmax.f32 %v8108, 0.0
    %v8253 = vmax.f32 %v8109, 0.0
    %v8254 = vmax.f32 %v8110, 0.0
    %v8255 = vmax.f32 %v8111, 0.0
    %v8256 = vmax.f32 %v8112, 0.0
    %v8257 = vmax.f32 %v8113, 0.0
    %v8258 = vmax.f32 %v8114, 0.0
    %v8259 = vmax.f32 %v8115, 0.0
    %v8260 = vmax.f32 %v8116, 0.0
    %v8261 = vmax.f32 %v8117, 0.0
    %v8262 = vmax.f32 %v8118, 0.0
    %v8263 = vmax.f32 %v8119, 0.0
    %v8264 = vmax.f32 %v8120, 0.0
    %v8265 = vmax.f32 %v8121, 0.0
    %v8266 = vmax.f32 %v8122, 0.0
    %v8267 = vmax.f32 %v8123, 0.0
    %v8268 = vmax.f32 %v8124, 0.0
    %v8269 = vmax.f32 %v8125, 0.0
    %v8270 = vmax.f32 %v8126, 0.0
    %v8271 = vmax.f32 %v8127, 0.0
    %v8272 = vmax.f32 %v8128, 0.0
    %v8273 = vmax.f32 %v8129, 0.0
    %v8274 = vmax.f32 %v8130, 0.0
    %v8275 = vmax.f32 %v8131, 0.0
    %v8276 = vmax.f32 %v8132, 0.0
    %v8277 = vmax.f32 %v8133, 0.0
    %v8278 = vmax.f32 %v8134, 0.0
    %v8279 = vmax.f32 %v8135, 0.0
    %v8280 = vmax.f32 %v8136, 0.0
    %v8281 = vmax.f32 %v8137, 0.0
    %v8282 = vmax.f32 %v8138, 0.0
    %v8283 = vmax.f32 %v8139, 0.0
    %v8284 = vmax.f32 %v8140, 0.0
    %v8285 = vmax.f32 %v8141, 0.0
    %v8286 = vmax.f32 %v8142, 0.0
    %v8287 = vmax.f32 %v8143, 0.0
    %v8288 = vmax.f32 %v8144, 0.0
    %v8289 = vmax.f32 %v8145, 0.0
    %v8290 = vmax.f32 %v8146, 0.0
    %v8291 = vmax.f32 %v8147, 0.0
    %v8292 = vmax.f32 %v8148, 0.0
    %v8293 = vmax.f32 %v8149, 0.0
    %v8294 = vmax.f32 %v8150, 0.0
    %v8295 = vmax.f32 %v8151, 0.0
    %v8296 = vmax.f32 %v8152, 0.0
    %8297 = vst [vmem:[%s6] sm:$0xff] %v8153
    %8298 = vst [vmem:[%s6 + $0x8] sm:$0xff] %v8154
    %8299 = vst [vmem:[%s6 + $0x10] sm:$0xff] %v8155
    %8300 = vst [vmem:[%s6 + $0x18] sm:$0xff] %v8156
    %8301 = vst [vmem:[%s6 + $0x20] sm:$0xff] %v8157
    %8302 = vst [vmem:[%s6 + $0x28] sm:$0xff] %v8158
    %8303 = vst [vmem:[%s6 + $0x30] sm:$0xff] %v8159
    %8304 = vst [vmem:[%s6 + $0x38] sm:$0xff] %v8160
    %8305 = vst.msk [vmem:[%s6 + $0x40] sm:$0xff] %vm1554, %v8161
    %8306 = vst [vmem:[%s6 + $0x48] sm:$0xff] %v8162
    %8307 = vst [vmem:[%s6 + $0x50] sm:$0xff] %v8163
    %8308 = vst [vmem:[%s6 + $0x58] sm:$0xff] %v8164
    %8309 = vst [vmem:[%s6 + $0x60] sm:$0xff] %v8165
    %8310 = vst [vmem:[%s6 + $0x68] sm:$0xff] %v8166
    %8311 = vst [vmem:[%s6 + $0x70] sm:$0xff] %v8167
    %8312 = vst [vmem:[%s6 + $0x78] sm:$0xff] %v8168
    %8313 = vst [vmem:[%s6 + $0x80] sm:$0xff] %v8169
    %8314 = vst.msk [vmem:[%s6 + $0x88] sm:$0xff] %vm1554, %v8170
    %8315 = vst [vmem:[%s6 + $0x90] sm:$0xff] %v8171
    %8316 = vst [vmem:[%s6 + $0x98] sm:$0xff] %v8172
    %8317 = vst [vmem:[%s6 + $0xa0] sm:$0xff] %v8173
    %8318 = vst [vmem:[%s6 + $0xa8] sm:$0xff] %v8174
    %8319 = vst [vmem:[%s6 + $0xb0] sm:$0xff] %v8175
    %8320 = vst [vmem:[%s6 + $0xb8] sm:$0xff] %v8176
    %8321 = vst [vmem:[%s6 + $0xc0] sm:$0xff] %v8177
    %8322 = vst [vmem:[%s6 + $0xc8] sm:$0xff] %v8178
    %8323 = vst.msk [vmem:[%s6 + $0xd0] sm:$0xff] %vm1554, %v8179
    %8324 = vst [vmem:[%s6 + $0xd8] sm:$0xff] %v8180
    %8325 = vst [vmem:[%s6 + $0xe0] sm:$0xff] %v8181
    %8326 = vst [vmem:[%s6 + $0xe8] sm:$0xff] %v8182
    %8327 = vst [vmem:[%s6 + $0xf0] sm:$0xff] %v8183
    %8328 = vst [vmem:[%s6 + $0xf8] sm:$0xff] %v8184
    %8329 = vst [vmem:[%s6 + $0x100] sm:$0xff] %v8185
    %8330 = vst [vmem:[%s6 + $0x108] sm:$0xff] %v8186
    %8331 = vst [vmem:[%s6 + $0x110] sm:$0xff] %v8187
    %8332 = vst.msk [vmem:[%s6 + $0x118] sm:$0xff] %vm1554, %v8188
    %8333 = vst [vmem:[%s6 + $0x120] sm:$0xff] %v8189
    %8334 = vst [vmem:[%s6 + $0x128] sm:$0xff] %v8190
    %8335 = vst [vmem:[%s6 + $0x130] sm:$0xff] %v8191
    %8336 = vst [vmem:[%s6 + $0x138] sm:$0xff] %v8192
    %8337 = vst [vmem:[%s6 + $0x140] sm:$0xff] %v8193
    %8338 = vst [vmem:[%s6 + $0x148] sm:$0xff] %v8194
    %8339 = vst [vmem:[%s6 + $0x150] sm:$0xff] %v8195
    %8340 = vst [vmem:[%s6 + $0x158] sm:$0xff] %v8196
    %8341 = vst.msk [vmem:[%s6 + $0x160] sm:$0xff] %vm1554, %v8197
    %8342 = vst [vmem:[%s6 + $0x168] sm:$0xff] %v8198
    %8343 = vst [vmem:[%s6 + $0x170] sm:$0xff] %v8199
    %8344 = vst [vmem:[%s6 + $0x178] sm:$0xff] %v8200
    %8345 = vst [vmem:[%s6 + $0x180] sm:$0xff] %v8201
    %8346 = vst [vmem:[%s6 + $0x188] sm:$0xff] %v8202
    %8347 = vst [vmem:[%s6 + $0x190] sm:$0xff] %v8203
    %8348 = vst [vmem:[%s6 + $0x198] sm:$0xff] %v8204
    %8349 = vst [vmem:[%s6 + $0x1a0] sm:$0xff] %v8205
    %8350 = vst.msk [vmem:[%s6 + $0x1a8] sm:$0xff] %vm1554, %v8206
    %8351 = vst [vmem:[%s6 + $0x1b0] sm:$0xff] %v8207
    %8352 = vst [vmem:[%s6 + $0x1b8] sm:$0xff] %v8208
    %8353 = vst [vmem:[%s6 + $0x1c0] sm:$0xff] %v8209
    %8354 = vst [vmem:[%s6 + $0x1c8] sm:$0xff] %v8210
    %8355 = vst [vmem:[%s6 + $0x1d0] sm:$0xff] %v8211
    %8356 = vst [vmem:[%s6 + $0x1d8] sm:$0xff] %v8212
    %8357 = vst [vmem:[%s6 + $0x1e0] sm:$0xff] %v8213
    %8358 = vst [vmem:[%s6 + $0x1e8] sm:$0xff] %v8214
    %8359 = vst.msk [vmem:[%s6 + $0x1f0] sm:$0xff] %vm1554, %v8215
    %8360 = vst [vmem:[%s6 + $0x1f8] sm:$0xff] %v8216
    %8361 = vst [vmem:[%s6 + $0x200] sm:$0xff] %v8217
    %8362 = vst [vmem:[%s6 + $0x208] sm:$0xff] %v8218
    %8363 = vst [vmem:[%s6 + $0x210] sm:$0xff] %v8219
    %8364 = vst [vmem:[%s6 + $0x218] sm:$0xff] %v8220
    %8365 = vst [vmem:[%s6 + $0x220] sm:$0xff] %v8221
    %8366 = vst [vmem:[%s6 + $0x228] sm:$0xff] %v8222
    %8367 = vst [vmem:[%s6 + $0x230] sm:$0xff] %v8223
    %8368 = vst.msk [vmem:[%s6 + $0x238] sm:$0xff] %vm1554, %v8224
    %8369 = vst [vmem:[%s6 + $0x240] sm:$0xff] %v8225
    %8370 = vst [vmem:[%s6 + $0x248] sm:$0xff] %v8226
    %8371 = vst [vmem:[%s6 + $0x250] sm:$0xff] %v8227
    %8372 = vst [vmem:[%s6 + $0x258] sm:$0xff] %v8228
    %8373 = vst [vmem:[%s6 + $0x260] sm:$0xff] %v8229
    %8374 = vst [vmem:[%s6 + $0x268] sm:$0xff] %v8230
    %8375 = vst [vmem:[%s6 + $0x270] sm:$0xff] %v8231
    %8376 = vst [vmem:[%s6 + $0x278] sm:$0xff] %v8232
    %8377 = vst.msk [vmem:[%s6 + $0x280] sm:$0xff] %vm1554, %v8233
    %8378 = vst [vmem:[%s6 + $0x288] sm:$0xff] %v8234
    %8379 = vst [vmem:[%s6 + $0x290] sm:$0xff] %v8235
    %8380 = vst [vmem:[%s6 + $0x298] sm:$0xff] %v8236
    %8381 = vst [vmem:[%s6 + $0x2a0] sm:$0xff] %v8237
    %8382 = vst [vmem:[%s6 + $0x2a8] sm:$0xff] %v8238
    %8383 = vst [vmem:[%s6 + $0x2b0] sm:$0xff] %v8239
    %8384 = vst [vmem:[%s6 + $0x2b8] sm:$0xff] %v8240
    %8385 = vst [vmem:[%s6 + $0x2c0] sm:$0xff] %v8241
    %8386 = vst.msk [vmem:[%s6 + $0x2c8] sm:$0xff] %vm1554, %v8242
    %8387 = vst [vmem:[%s6 + $0x2d0] sm:$0xff] %v8243
    %8388 = vst [vmem:[%s6 + $0x2d8] sm:$0xff] %v8244
    %8389 = vst [vmem:[%s6 + $0x2e0] sm:$0xff] %v8245
    %8390 = vst [vmem:[%s6 + $0x2e8] sm:$0xff] %v8246
    %8391 = vst [vmem:[%s6 + $0x2f0] sm:$0xff] %v8247
    %8392 = vst [vmem:[%s6 + $0x2f8] sm:$0xff] %v8248
    %8393 = vst [vmem:[%s6 + $0x300] sm:$0xff] %v8249
    %8394 = vst [vmem:[%s6 + $0x308] sm:$0xff] %v8250
    %8395 = vst.msk [vmem:[%s6 + $0x310] sm:$0xff] %vm1554, %v8251
    %8396 = vst [vmem:[%s6 + $0x318] sm:$0xff] %v8252
    %8397 = vst [vmem:[%s6 + $0x320] sm:$0xff] %v8253
    %8398 = vst [vmem:[%s6 + $0x328] sm:$0xff] %v8254
    %8399 = vst [vmem:[%s6 + $0x330] sm:$0xff] %v8255
    %8400 = vst [vmem:[%s6 + $0x338] sm:$0xff] %v8256
    %8401 = vst [vmem:[%s6 + $0x340] sm:$0xff] %v8257
    %8402 = vst [vmem:[%s6 + $0x348] sm:$0xff] %v8258
    %8403 = vst [vmem:[%s6 + $0x350] sm:$0xff] %v8259
    %8404 = vst.msk [vmem:[%s6 + $0x358] sm:$0xff] %vm1554, %v8260
    %8405 = vst [vmem:[%s6 + $0x360] sm:$0xff] %v8261
    %8406 = vst [vmem:[%s6 + $0x368] sm:$0xff] %v8262
    %8407 = vst [vmem:[%s6 + $0x370] sm:$0xff] %v8263
    %8408 = vst [vmem:[%s6 + $0x378] sm:$0xff] %v8264
    %8409 = vst [vmem:[%s6 + $0x380] sm:$0xff] %v8265
    %8410 = vst [vmem:[%s6 + $0x388] sm:$0xff] %v8266
    %8411 = vst [vmem:[%s6 + $0x390] sm:$0xff] %v8267
    %8412 = vst [vmem:[%s6 + $0x398] sm:$0xff] %v8268
    %8413 = vst.msk [vmem:[%s6 + $0x3a0] sm:$0xff] %vm1554, %v8269
    %8414 = vst [vmem:[%s6 + $0x3a8] sm:$0xff] %v8270
    %8415 = vst [vmem:[%s6 + $0x3b0] sm:$0xff] %v8271
    %8416 = vst [vmem:[%s6 + $0x3b8] sm:$0xff] %v8272
    %8417 = vst [vmem:[%s6 + $0x3c0] sm:$0xff] %v8273
    %8418 = vst [vmem:[%s6 + $0x3c8] sm:$0xff] %v8274
    %8419 = vst [vmem:[%s6 + $0x3d0] sm:$0xff] %v8275
    %8420 = vst [vmem:[%s6 + $0x3d8] sm:$0xff] %v8276
    %8421 = vst [vmem:[%s6 + $0x3e0] sm:$0xff] %v8277
    %8422 = vst.msk [vmem:[%s6 + $0x3e8] sm:$0xff] %vm1554, %v8278
    %8423 = vst [vmem:[%s6 + $0x3f0] sm:$0xff] %v8279
    %8424 = vst [vmem:[%s6 + $0x3f8] sm:$0xff] %v8280
    %8425 = vst [vmem:[%s6 + $0x400] sm:$0xff] %v8281
    %8426 = vst [vmem:[%s6 + $0x408] sm:$0xff] %v8282
    %8427 = vst [vmem:[%s6 + $0x410] sm:$0xff] %v8283
    %8428 = vst [vmem:[%s6 + $0x418] sm:$0xff] %v8284
    %8429 = vst [vmem:[%s6 + $0x420] sm:$0xff] %v8285
    %8430 = vst [vmem:[%s6 + $0x428] sm:$0xff] %v8286
    %8431 = vst.msk [vmem:[%s6 + $0x430] sm:$0xff] %vm1554, %v8287
    %8432 = vst [vmem:[%s6 + $0x438] sm:$0xff] %v8288
    %8433 = vst [vmem:[%s6 + $0x440] sm:$0xff] %v8289
    %8434 = vst [vmem:[%s6 + $0x448] sm:$0xff] %v8290
    %8435 = vst [vmem:[%s6 + $0x450] sm:$0xff] %v8291
    %8436 = vst [vmem:[%s6 + $0x458] sm:$0xff] %v8292
    %8437 = vst [vmem:[%s6 + $0x460] sm:$0xff] %v8293
    %8438 = vst [vmem:[%s6 + $0x468] sm:$0xff] %v8294
    %8439 = vst [vmem:[%s6 + $0x470] sm:$0xff] %v8295
    %8440 = vst.msk [vmem:[%s6 + $0x478] sm:$0xff] %vm1554, %v8296
    // Predicated region
    $region30: #{block_c_forward.1} parent=1 // pred_check
      _
    $region31: #{block_c_forward.1} parent=1 // pred_check_branch
      %8442 = sbr.rel (0) target = $region33
    $region32: #{block_c_forward.1} parent=1 // pred_region
      _
    $region33: #{block_c_forward.1} parent=1 // pred_fallthru
      _
    // Predicated region
    $region34: #{block_c_forward.1} parent=1 // pred_check
      _
    $region35: #{block_c_forward.1} parent=1 // pred_check_branch
      %8444 = sbr.rel (0) target = $region37
    $region36: #{block_c_forward.1} parent=1 // pred_region
      _
    $region37: #{block_c_forward.1} parent=1 // pred_fallthru
      _
    %8445 = vsyncpa [#allocation3], 1

</llo_original>
